<compile_context>
chip_gen: v5e
topology: v5e:2x2
jax: 0.10.0
libtpu: 0.0.40
codegen_flags: <defaults>
</compile_context>

<pallas_src>
import math

import jax
import jax.numpy as jnp
from jax import lax
from jax.experimental import pallas as pl
from jax.experimental.pallas import tpu as pltpu


def _fused_lstm_hn_kernel(
    x_ref,                                   # (S, B) step-major scalar sequence
    wih1_ref, whh1_ref, b1_ref,              # layer 1 (H=16), VMEM
    wih2_ref, whh2_ref, b2_ref,              # layer 2 (H=16), VMEM
    wih3_ref, whh3_ref, b3_ref,              # layer 3 (H=16), VMEM
    wih4_ref, whh4_ref, b4_ref,              # layer 4 (H=1),  SMEM scalars, shape (4,)
    out_ref,                                 # (B, 64) packed: h1|h2|h3|h4|pad
):
    """All four LSTM recurrences back-to-back; writes the packed final hidden states."""
    B = x_ref.shape[1]
    H = 16

    def run_layer16(seq_tb, w_ih, w_hh, b):
        # seq_tb: (T, B) step-major scalar sequence (input_size == 1).
        # w_ih: (1, 4H), w_hh: (H, 4H), b: (1, 4H).  Returns final hidden state (B, H).
        T = seq_tb.shape[0]
        # Precompute input-gate contribution + bias for the whole sequence in one shot,
        # STEP-MAJOR: (T, B, 1) * (1, 4H) + (1, 4H) -> (T, B, 4H).  Per step, g_in[t] is
        # a whole-tile pick (no sublane extraction on the serial critical path).
        g_in = seq_tb[:, :, None] * w_ih + b

        h = jnp.zeros((B, H), jnp.float32)
        c = jnp.zeros((B, H), jnp.float32)

        # Static unroll (T is 8 or 16): exposes cross-iteration scheduling to the LLO.
        # w_hh stays the loop-invariant RHS of every dot (hoistable MXU weight feed).
        for t in range(T):
            gates = g_in[t] + jnp.dot(h, w_hh,
                                      preferred_element_type=jnp.float32)  # (B, 4H)
            sig = jax.nn.sigmoid(gates)                                    # full-width EUP
            tnh = jnp.tanh(gates)                                          # full-width EUP
            i_g = sig[:, 0 * H:1 * H]
            f_g = sig[:, 1 * H:2 * H]
            g_g = tnh[:, 2 * H:3 * H]
            o_g = sig[:, 3 * H:4 * H]
            c = f_g * c + i_g * g_g
            h = o_g * jnp.tanh(c)
        return h

    # Deterministic output buffer (pad lanes are zero); overwritten slice by slice below.
    out_ref[...] = jnp.zeros((B, 64), jnp.float32)

    # ---- layer 1: input already step-major (S, B) from the wrapper -------------------
    h1 = run_layer16(x_ref[...], wih1_ref[...], whh1_ref[...], b1_ref[...])
    out_ref[:, 0:16] = h1

    # ---- layers 2 & 3: one (B,16)->(16,B) transpose per layer replaces per-step
    # ---- sublane extraction inside the 16-step recurrences ---------------------------
    h2 = run_layer16(h1.T, wih2_ref[...], whh2_ref[...], b2_ref[...])
    out_ref[:, 16:32] = h2
    h3 = run_layer16(h2.T, wih3_ref[...], whh3_ref[...], b3_ref[...])
    out_ref[:, 32:48] = h3

    # ---- layer 4 (H=1): per-gate scalar weights from SMEM -> the recurrence is a pure
    # ---- elementwise chain on (B,1) tiles, no per-step lane extracts ------------------
    seq4 = h3.T[:, :, None]                                   # (T=16, B, 1)
    T4 = seq4.shape[0]
    pre_i = seq4 * wih4_ref[0] + b4_ref[0]                    # (T, B, 1)
    pre_f = seq4 * wih4_ref[1] + b4_ref[1]
    pre_g = seq4 * wih4_ref[2] + b4_ref[2]
    pre_o = seq4 * wih4_ref[3] + b4_ref[3]
    whh_i = whh4_ref[0]
    whh_f = whh4_ref[1]
    whh_g = whh4_ref[2]
    whh_o = whh4_ref[3]

    h4 = jnp.zeros((B, 1), jnp.float32)
    c4 = jnp.zeros((B, 1), jnp.float32)
    for t in range(T4):
        i_g = jax.nn.sigmoid(pre_i[t] + h4 * whh_i)
        f_g = jax.nn.sigmoid(pre_f[t] + h4 * whh_f)
        g_g = jnp.tanh(pre_g[t] + h4 * whh_g)
        o_g = jax.nn.sigmoid(pre_o[t] + h4 * whh_o)
        c4 = f_g * c4 + i_g * g_g
        h4 = o_g * jnp.tanh(c4)
    out_ref[:, 48:49] = h4


def _fused_forward(x_sb, p1, p2, p3, p4):
    """x_sb: (S, B) fp32 step-major input.  Returns packed (B, 64) final hidden states."""
    S, B = x_sb.shape
    vmem = lambda: pl.BlockSpec(memory_space=pltpu.MemorySpace.VMEM)
    smem = lambda: pl.BlockSpec(memory_space=pltpu.MemorySpace.SMEM)
    return pl.pallas_call(
        _fused_lstm_hn_kernel,
        out_shape=jax.ShapeDtypeStruct((B, 64), jnp.float32),
        in_specs=[vmem()] * 10 + [smem()] * 3,
        out_specs=vmem(),
    )(x_sb,
      p1["w_ih_t"], p1["w_hh_t"], p1["b"],
      p2["w_ih_t"], p2["w_hh_t"], p2["b"],
      p3["w_ih_t"], p3["w_hh_t"], p3["b"],
      p4["w_ih_t"].reshape(4), p4["w_hh_t"].reshape(4), p4["b"].reshape(4))


@jax.jit
def custom_lstm_hn_forward(x, params):
    """x: (B, S, 1) float32, batch_first like the PyTorch module."""
    x_sb = x[:, :, 0].T                                       # (S, B) step-major
    packed = _fused_forward(
        x_sb, params["lstm1"], params["lstm2"], params["lstm3"], params["lstm4"])
    h1 = packed[:, 0:16]
    h2 = packed[:, 16:32]
    h3 = packed[:, 32:48]
    h4 = packed[:, 48:49]
    hn1 = h1[:, :, None]            # == torch hn1.permute(1,2,0): (B, 16, 1)
    hn2 = h2[:, :, None]            # (B, 16, 1)
    hn3 = h3[:, :, None]            # (B, 16, 1)
    hn4 = h4[None, :, :]            # == torch hn4: (1, B, 1)
    return hn1, hn2, hn3, hn4


# ----------------------------- parameter init --------------------------------

def init_lstm_params(key, input_size, hidden_size):
    """PyTorch-style init: U(-1/sqrt(H), 1/sqrt(H)) for all params."""
    k = 1.0 / math.sqrt(hidden_size)
    k_wi, k_wh, k_bi, k_bh = jax.random.split(key, 4)
    w_ih = jax.random.uniform(k_wi, (4 * hidden_size, input_size), jnp.float32, -k, k)
    w_hh = jax.random.uniform(k_wh, (4 * hidden_size, hidden_size), jnp.float32, -k, k)
    b_ih = jax.random.uniform(k_bi, (4 * hidden_size,), jnp.float32, -k, k)
    b_hh = jax.random.uniform(k_bh, (4 * hidden_size,), jnp.float32, -k, k)
    return dict(
        w_ih_t=jnp.transpose(w_ih),                               # (I, 4H) with I == 1
        w_hh_t=jnp.transpose(w_hh),                               # (H, 4H)
        b=(b_ih + b_hh).reshape(1, 4 * hidden_size),              # (1, 4H)
    )


def init_params(key):
    k1, k2, k3, k4 = jax.random.split(key, 4)
    return dict(
        lstm1=init_lstm_params(k1, 1, 16),
        lstm2=init_lstm_params(k2, 1, 16),
        lstm3=init_lstm_params(k3, 1, 16),
        lstm4=init_lstm_params(k4, 1, 1),
    )


# ----------------------------- pure-JAX reference ----------------------------

def _lstm_ref(seq_bt, p):
    w_ih, w_hh, b = p["w_ih_t"], p["w_hh_t"], p["b"]
    H = w_hh.shape[0]
    B, _ = seq_bt.shape

    def step(carry, x_t):
        h, c = carry
        gates = x_t[:, None] * w_ih + jnp.dot(h, w_hh) + b
        i = jax.nn.sigmoid(gates[:, 0 * H:1 * H])
        f = jax.nn.sigmoid(gates[:, 1 * H:2 * H])
        g = jnp.tanh(gates[:, 2 * H:3 * H])
        o = jax.nn.sigmoid(gates[:, 3 * H:4 * H])
        c = f * c + i * g
        h = o * jnp.tanh(c)
        return (h, c), None

    init = (jnp.zeros((B, H), jnp.float32), jnp.zeros((B, H), jnp.float32))
    (h_fin, _), _ = lax.scan(step, init, jnp.transpose(seq_bt))
    return h_fin


def reference_forward(x, params):
    x_bs = x[:, :, 0]
    h1 = _lstm_ref(x_bs, params["lstm1"])
    h2 = _lstm_ref(h1, params["lstm2"])
    h3 = _lstm_ref(h2, params["lstm3"])
    h4 = _lstm_ref(h3, params["lstm4"])
    return h1[:, :, None], h2[:, :, None], h3[:, :, None], h4[None, :, :]


# ---------------------------------- main --------------------------------------

if __name__ == "__main__":
    root = jax.random.PRNGKey(0)
    k_x, k_p = jax.random.split(root)
    B, S = 2, 8
    x = jax.random.normal(k_x, (B, S, 1), jnp.float32)
    params = init_params(k_p)

    outs = custom_lstm_hn_forward(x, params)
    outs = jax.block_until_ready(outs)
    hn1, hn2, hn3, hn4 = outs

    assert hn1.shape == (B, 16, 1)
    assert hn2.shape == (B, 16, 1)
    assert hn3.shape == (B, 16, 1)
    assert hn4.shape == (1, B, 1)

    refs = jax.block_until_ready(reference_forward(x, params))
    for got, want in zip(outs, refs):
        assert bool(jnp.allclose(got, want, rtol=1e-4, atol=1e-4)), "mismatch vs JAX reference"

    print("KERNEL_OK")
</pallas_src>

<mosaic_0001>
module attributes {stable_mosaic.version = 11 : i64} {
  func.func @_fused_lstm_hn_kernel(%arg0: memref<8x2xf32, #tpu.memory_space<vmem>>, %arg1: memref<1x64xf32, #tpu.memory_space<vmem>>, %arg2: memref<16x64xf32, #tpu.memory_space<vmem>>, %arg3: memref<1x64xf32, #tpu.memory_space<vmem>>, %arg4: memref<1x64xf32, #tpu.memory_space<vmem>>, %arg5: memref<16x64xf32, #tpu.memory_space<vmem>>, %arg6: memref<1x64xf32, #tpu.memory_space<vmem>>, %arg7: memref<1x64xf32, #tpu.memory_space<vmem>>, %arg8: memref<16x64xf32, #tpu.memory_space<vmem>>, %arg9: memref<1x64xf32, #tpu.memory_space<vmem>>, %arg10: memref<4xf32, #tpu.memory_space<smem>>, %arg11: memref<4xf32, #tpu.memory_space<smem>>, %arg12: memref<4xf32, #tpu.memory_space<smem>>, %arg13: memref<2x64xf32, #tpu.memory_space<vmem>>) attributes {dimension_semantics = [], scalar_prefetch = 0 : i64, scratch_operands = 0 : i64, tpu.core_type = #tpu.core_type<tc>} {
    %cst = arith.constant 0.000000e+00 : f32
    %0 = vector.broadcast %cst : f32 to vector<2x64xf32>
    %c0 = arith.constant 0 : index
    %c0_0 = arith.constant 0 : index
    %1 = vector.load %arg13[%c0, %c0_0] : memref<2x64xf32, #tpu.memory_space<vmem>>, vector<2x64xf32>
    tpu.vector_store %arg13[%c0, %c0_0], %0 {strides = array<i32>} : memref<2x64xf32, #tpu.memory_space<vmem>>, vector<2x64xf32>,
    %c0_1 = arith.constant 0 : index
    %c0_2 = arith.constant 0 : index
    %2 = vector.load %arg0[%c0_1, %c0_2] : memref<8x2xf32, #tpu.memory_space<vmem>>, vector<8x2xf32>
    %c0_3 = arith.constant 0 : index
    %c0_4 = arith.constant 0 : index
    %3 = vector.load %arg1[%c0_3, %c0_4] : memref<1x64xf32, #tpu.memory_space<vmem>>, vector<1x64xf32>
    %c0_5 = arith.constant 0 : index
    %c0_6 = arith.constant 0 : index
    %4 = vector.load %arg2[%c0_5, %c0_6] : memref<16x64xf32, #tpu.memory_space<vmem>>, vector<16x64xf32>
    %c0_7 = arith.constant 0 : index
    %c0_8 = arith.constant 0 : index
    %5 = vector.load %arg3[%c0_7, %c0_8] : memref<1x64xf32, #tpu.memory_space<vmem>>, vector<1x64xf32>
    %6 = vector.shape_cast %2 : vector<8x2xf32> to vector<8x2x1xf32>
    %7 = vector.shape_cast %3 : vector<1x64xf32> to vector<1x1x64xf32>
    %8 = vector.broadcast %6 : vector<8x2x1xf32> to vector<8x2x64xf32>
    %9 = vector.broadcast %7 : vector<1x1x64xf32> to vector<8x2x64xf32>
    %10 = arith.mulf %8, %9 : vector<8x2x64xf32>
    %11 = vector.shape_cast %5 : vector<1x64xf32> to vector<1x1x64xf32>
    %12 = vector.broadcast %11 : vector<1x1x64xf32> to vector<8x2x64xf32>
    %13 = arith.addf %10, %12 : vector<8x2x64xf32>
    %cst_9 = arith.constant 0.000000e+00 : f32
    %14 = vector.broadcast %cst_9 : f32 to vector<2x16xf32>
    %cst_10 = arith.constant 0.000000e+00 : f32
    %15 = vector.broadcast %cst_10 : f32 to vector<2x16xf32>
    %16 = vector.extract_strided_slice %13 {offsets = [0, 0, 0], sizes = [1, 2, 64], strides = [1, 1, 1]} : vector<8x2x64xf32> to vector<1x2x64xf32>
    %17 = vector.shape_cast %16 : vector<1x2x64xf32> to vector<2x64xf32>
    %cst_11 = arith.constant dense<0.000000e+00> : vector<2x64xf32>
    %18 = tpu.matmul %14, %4, %cst_11 {dimension_numbers = #tpu.dot_dimension_numbers<[1], [0], [0], [1], [0, 0, 1, 1], [], []>} : vector<2x16xf32>, vector<16x64xf32>, vector<2x64xf32> -> vector<2x64xf32>
    %19 = arith.addf %17, %18 : vector<2x64xf32>
    %20 = arith.negf %19 : vector<2x64xf32>
    %21 = math.exp %20 : vector<2x64xf32>
    %cst_12 = arith.constant 1.000000e+00 : f32
    %22 = vector.broadcast %cst_12 : f32 to vector<2x64xf32>
    %23 = arith.addf %22, %21 : vector<2x64xf32>
    %24 = arith.divf %22, %23 : vector<2x64xf32>
    %25 = math.tanh %19 : vector<2x64xf32>
    %26 = vector.extract_strided_slice %24 {offsets = [0, 0], sizes = [2, 16], strides = [1, 1]} : vector<2x64xf32> to vector<2x16xf32>
    %27 = vector.extract_strided_slice %24 {offsets = [0, 16], sizes = [2, 16], strides = [1, 1]} : vector<2x64xf32> to vector<2x16xf32>
    %28 = vector.extract_strided_slice %25 {offsets = [0, 32], sizes = [2, 16], strides = [1, 1]} : vector<2x64xf32> to vector<2x16xf32>
    %29 = vector.extract_strided_slice %24 {offsets = [0, 48], sizes = [2, 16], strides = [1, 1]} : vector<2x64xf32> to vector<2x16xf32>
    %30 = arith.mulf %27, %15 : vector<2x16xf32>
    %31 = arith.mulf %26, %28 : vector<2x16xf32>
    %32 = arith.addf %30, %31 : vector<2x16xf32>
    %33 = math.tanh %32 : vector<2x16xf32>
    %34 = arith.mulf %29, %33 : vector<2x16xf32>
    %35 = vector.extract_strided_slice %13 {offsets = [1, 0, 0], sizes = [1, 2, 64], strides = [1, 1, 1]} : vector<8x2x64xf32> to vector<1x2x64xf32>
    %36 = vector.shape_cast %35 : vector<1x2x64xf32> to vector<2x64xf32>
    %cst_13 = arith.constant dense<0.000000e+00> : vector<2x64xf32>
    %37 = tpu.matmul %34, %4, %cst_13 {dimension_numbers = #tpu.dot_dimension_numbers<[1], [0], [0], [1], [0, 0, 1, 1], [], []>} : vector<2x16xf32>, vector<16x64xf32>, vector<2x64xf32> -> vector<2x64xf32>
    %38 = arith.addf %36, %37 : vector<2x64xf32>
    %39 = arith.negf %38 : vector<2x64xf32>
    %40 = math.exp %39 : vector<2x64xf32>
    %cst_14 = arith.constant 1.000000e+00 : f32
    %41 = vector.broadcast %cst_14 : f32 to vector<2x64xf32>
    %42 = arith.addf %41, %40 : vector<2x64xf32>
    %43 = arith.divf %41, %42 : vector<2x64xf32>
    %44 = math.tanh %38 : vector<2x64xf32>
    %45 = vector.extract_strided_slice %43 {offsets = [0, 0], sizes = [2, 16], strides = [1, 1]} : vector<2x64xf32> to vector<2x16xf32>
    %46 = vector.extract_strided_slice %43 {offsets = [0, 16], sizes = [2, 16], strides = [1, 1]} : vector<2x64xf32> to vector<2x16xf32>
    %47 = vector.extract_strided_slice %44 {offsets = [0, 32], sizes = [2, 16], strides = [1, 1]} : vector<2x64xf32> to vector<2x16xf32>
    %48 = vector.extract_strided_slice %43 {offsets = [0, 48], sizes = [2, 16], strides = [1, 1]} : vector<2x64xf32> to vector<2x16xf32>
    %49 = arith.mulf %46, %32 : vector<2x16xf32>
    %50 = arith.mulf %45, %47 : vector<2x16xf32>
    %51 = arith.addf %49, %50 : vector<2x16xf32>
    %52 = math.tanh %51 : vector<2x16xf32>
    %53 = arith.mulf %48, %52 : vector<2x16xf32>
    %54 = vector.extract_strided_slice %13 {offsets = [2, 0, 0], sizes = [1, 2, 64], strides = [1, 1, 1]} : vector<8x2x64xf32> to vector<1x2x64xf32>
    %55 = vector.shape_cast %54 : vector<1x2x64xf32> to vector<2x64xf32>
    %cst_15 = arith.constant dense<0.000000e+00> : vector<2x64xf32>
    %56 = tpu.matmul %53, %4, %cst_15 {dimension_numbers = #tpu.dot_dimension_numbers<[1], [0], [0], [1], [0, 0, 1, 1], [], []>} : vector<2x16xf32>, vector<16x64xf32>, vector<2x64xf32> -> vector<2x64xf32>
    %57 = arith.addf %55, %56 : vector<2x64xf32>
    %58 = arith.negf %57 : vector<2x64xf32>
    %59 = math.exp %58 : vector<2x64xf32>
    %cst_16 = arith.constant 1.000000e+00 : f32
    %60 = vector.broadcast %cst_16 : f32 to vector<2x64xf32>
    %61 = arith.addf %60, %59 : vector<2x64xf32>
    %62 = arith.divf %60, %61 : vector<2x64xf32>
    %63 = math.tanh %57 : vector<2x64xf32>
    %64 = vector.extract_strided_slice %62 {offsets = [0, 0], sizes = [2, 16], strides = [1, 1]} : vector<2x64xf32> to vector<2x16xf32>
    %65 = vector.extract_strided_slice %62 {offsets = [0, 16], sizes = [2, 16], strides = [1, 1]} : vector<2x64xf32> to vector<2x16xf32>
    %66 = vector.extract_strided_slice %63 {offsets = [0, 32], sizes = [2, 16], strides = [1, 1]} : vector<2x64xf32> to vector<2x16xf32>
    %67 = vector.extract_strided_slice %62 {offsets = [0, 48], sizes = [2, 16], strides = [1, 1]} : vector<2x64xf32> to vector<2x16xf32>
    %68 = arith.mulf %65, %51 : vector<2x16xf32>
    %69 = arith.mulf %64, %66 : vector<2x16xf32>
    %70 = arith.addf %68, %69 : vector<2x16xf32>
    %71 = math.tanh %70 : vector<2x16xf32>
    %72 = arith.mulf %67, %71 : vector<2x16xf32>
    %73 = vector.extract_strided_slice %13 {offsets = [3, 0, 0], sizes = [1, 2, 64], strides = [1, 1, 1]} : vector<8x2x64xf32> to vector<1x2x64xf32>
    %74 = vector.shape_cast %73 : vector<1x2x64xf32> to vector<2x64xf32>
    %cst_17 = arith.constant dense<0.000000e+00> : vector<2x64xf32>
    %75 = tpu.matmul %72, %4, %cst_17 {dimension_numbers = #tpu.dot_dimension_numbers<[1], [0], [0], [1], [0, 0, 1, 1], [], []>} : vector<2x16xf32>, vector<16x64xf32>, vector<2x64xf32> -> vector<2x64xf32>
    %76 = arith.addf %74, %75 : vector<2x64xf32>
    %77 = arith.negf %76 : vector<2x64xf32>
    %78 = math.exp %77 : vector<2x64xf32>
    %cst_18 = arith.constant 1.000000e+00 : f32
    %79 = vector.broadcast %cst_18 : f32 to vector<2x64xf32>
    %80 = arith.addf %79, %78 : vector<2x64xf32>
    %81 = arith.divf %79, %80 : vector<2x64xf32>
    %82 = math.tanh %76 : vector<2x64xf32>
    %83 = vector.extract_strided_slice %81 {offsets = [0, 0], sizes = [2, 16], strides = [1, 1]} : vector<2x64xf32> to vector<2x16xf32>
    %84 = vector.extract_strided_slice %81 {offsets = [0, 16], sizes = [2, 16], strides = [1, 1]} : vector<2x64xf32> to vector<2x16xf32>
    %85 = vector.extract_strided_slice %82 {offsets = [0, 32], sizes = [2, 16], strides = [1, 1]} : vector<2x64xf32> to vector<2x16xf32>
    %86 = vector.extract_strided_slice %81 {offsets = [0, 48], sizes = [2, 16], strides = [1, 1]} : vector<2x64xf32> to vector<2x16xf32>
    %87 = arith.mulf %84, %70 : vector<2x16xf32>
    %88 = arith.mulf %83, %85 : vector<2x16xf32>
    %89 = arith.addf %87, %88 : vector<2x16xf32>
    %90 = math.tanh %89 : vector<2x16xf32>
    %91 = arith.mulf %86, %90 : vector<2x16xf32>
    %92 = vector.extract_strided_slice %13 {offsets = [4, 0, 0], sizes = [1, 2, 64], strides = [1, 1, 1]} : vector<8x2x64xf32> to vector<1x2x64xf32>
    %93 = vector.shape_cast %92 : vector<1x2x64xf32> to vector<2x64xf32>
    %cst_19 = arith.constant dense<0.000000e+00> : vector<2x64xf32>
    %94 = tpu.matmul %91, %4, %cst_19 {dimension_numbers = #tpu.dot_dimension_numbers<[1], [0], [0], [1], [0, 0, 1, 1], [], []>} : vector<2x16xf32>, vector<16x64xf32>, vector<2x64xf32> -> vector<2x64xf32>
    %95 = arith.addf %93, %94 : vector<2x64xf32>
    %96 = arith.negf %95 : vector<2x64xf32>
    %97 = math.exp %96 : vector<2x64xf32>
    %cst_20 = arith.constant 1.000000e+00 : f32
    %98 = vector.broadcast %cst_20 : f32 to vector<2x64xf32>
    %99 = arith.addf %98, %97 : vector<2x64xf32>
    %100 = arith.divf %98, %99 : vector<2x64xf32>
    %101 = math.tanh %95 : vector<2x64xf32>
    %102 = vector.extract_strided_slice %100 {offsets = [0, 0], sizes = [2, 16], strides = [1, 1]} : vector<2x64xf32> to vector<2x16xf32>
    %103 = vector.extract_strided_slice %100 {offsets = [0, 16], sizes = [2, 16], strides = [1, 1]} : vector<2x64xf32> to vector<2x16xf32>
    %104 = vector.extract_strided_slice %101 {offsets = [0, 32], sizes = [2, 16], strides = [1, 1]} : vector<2x64xf32> to vector<2x16xf32>
    %105 = vector.extract_strided_slice %100 {offsets = [0, 48], sizes = [2, 16], strides = [1, 1]} : vector<2x64xf32> to vector<2x16xf32>
    %106 = arith.mulf %103, %89 : vector<2x16xf32>
    %107 = arith.mulf %102, %104 : vector<2x16xf32>
    %108 = arith.addf %106, %107 : vector<2x16xf32>
    %109 = math.tanh %108 : vector<2x16xf32>
    %110 = arith.mulf %105, %109 : vector<2x16xf32>
    %111 = vector.extract_strided_slice %13 {offsets = [5, 0, 0], sizes = [1, 2, 64], strides = [1, 1, 1]} : vector<8x2x64xf32> to vector<1x2x64xf32>
    %112 = vector.shape_cast %111 : vector<1x2x64xf32> to vector<2x64xf32>
    %cst_21 = arith.constant dense<0.000000e+00> : vector<2x64xf32>
    %113 = tpu.matmul %110, %4, %cst_21 {dimension_numbers = #tpu.dot_dimension_numbers<[1], [0], [0], [1], [0, 0, 1, 1], [], []>} : vector<2x16xf32>, vector<16x64xf32>, vector<2x64xf32> -> vector<2x64xf32>
    %114 = arith.addf %112, %113 : vector<2x64xf32>
    %115 = arith.negf %114 : vector<2x64xf32>
    %116 = math.exp %115 : vector<2x64xf32>
    %cst_22 = arith.constant 1.000000e+00 : f32
    %117 = vector.broadcast %cst_22 : f32 to vector<2x64xf32>
    %118 = arith.addf %117, %116 : vector<2x64xf32>
    %119 = arith.divf %117, %118 : vector<2x64xf32>
    %120 = math.tanh %114 : vector<2x64xf32>
    %121 = vector.extract_strided_slice %119 {offsets = [0, 0], sizes = [2, 16], strides = [1, 1]} : vector<2x64xf32> to vector<2x16xf32>
    %122 = vector.extract_strided_slice %119 {offsets = [0, 16], sizes = [2, 16], strides = [1, 1]} : vector<2x64xf32> to vector<2x16xf32>
    %123 = vector.extract_strided_slice %120 {offsets = [0, 32], sizes = [2, 16], strides = [1, 1]} : vector<2x64xf32> to vector<2x16xf32>
    %124 = vector.extract_strided_slice %119 {offsets = [0, 48], sizes = [2, 16], strides = [1, 1]} : vector<2x64xf32> to vector<2x16xf32>
    %125 = arith.mulf %122, %108 : vector<2x16xf32>
    %126 = arith.mulf %121, %123 : vector<2x16xf32>
    %127 = arith.addf %125, %126 : vector<2x16xf32>
    %128 = math.tanh %127 : vector<2x16xf32>
    %129 = arith.mulf %124, %128 : vector<2x16xf32>
    %130 = vector.extract_strided_slice %13 {offsets = [6, 0, 0], sizes = [1, 2, 64], strides = [1, 1, 1]} : vector<8x2x64xf32> to vector<1x2x64xf32>
    %131 = vector.shape_cast %130 : vector<1x2x64xf32> to vector<2x64xf32>
    %cst_23 = arith.constant dense<0.000000e+00> : vector<2x64xf32>
    %132 = tpu.matmul %129, %4, %cst_23 {dimension_numbers = #tpu.dot_dimension_numbers<[1], [0], [0], [1], [0, 0, 1, 1], [], []>} : vector<2x16xf32>, vector<16x64xf32>, vector<2x64xf32> -> vector<2x64xf32>
    %133 = arith.addf %131, %132 : vector<2x64xf32>
    %134 = arith.negf %133 : vector<2x64xf32>
    %135 = math.exp %134 : vector<2x64xf32>
    %cst_24 = arith.constant 1.000000e+00 : f32
    %136 = vector.broadcast %cst_24 : f32 to vector<2x64xf32>
    %137 = arith.addf %136, %135 : vector<2x64xf32>
    %138 = arith.divf %136, %137 : vector<2x64xf32>
    %139 = math.tanh %133 : vector<2x64xf32>
    %140 = vector.extract_strided_slice %138 {offsets = [0, 0], sizes = [2, 16], strides = [1, 1]} : vector<2x64xf32> to vector<2x16xf32>
    %141 = vector.extract_strided_slice %138 {offsets = [0, 16], sizes = [2, 16], strides = [1, 1]} : vector<2x64xf32> to vector<2x16xf32>
    %142 = vector.extract_strided_slice %139 {offsets = [0, 32], sizes = [2, 16], strides = [1, 1]} : vector<2x64xf32> to vector<2x16xf32>
    %143 = vector.extract_strided_slice %138 {offsets = [0, 48], sizes = [2, 16], strides = [1, 1]} : vector<2x64xf32> to vector<2x16xf32>
    %144 = arith.mulf %141, %127 : vector<2x16xf32>
    %145 = arith.mulf %140, %142 : vector<2x16xf32>
    %146 = arith.addf %144, %145 : vector<2x16xf32>
    %147 = math.tanh %146 : vector<2x16xf32>
    %148 = arith.mulf %143, %147 : vector<2x16xf32>
    %149 = vector.extract_strided_slice %13 {offsets = [7, 0, 0], sizes = [1, 2, 64], strides = [1, 1, 1]} : vector<8x2x64xf32> to vector<1x2x64xf32>
    %150 = vector.shape_cast %149 : vector<1x2x64xf32> to vector<2x64xf32>
    %cst_25 = arith.constant dense<0.000000e+00> : vector<2x64xf32>
    %151 = tpu.matmul %148, %4, %cst_25 {dimension_numbers = #tpu.dot_dimension_numbers<[1], [0], [0], [1], [0, 0, 1, 1], [], []>} : vector<2x16xf32>, vector<16x64xf32>, vector<2x64xf32> -> vector<2x64xf32>
    %152 = arith.addf %150, %151 : vector<2x64xf32>
    %153 = arith.negf %152 : vector<2x64xf32>
    %154 = math.exp %153 : vector<2x64xf32>
    %cst_26 = arith.constant 1.000000e+00 : f32
    %155 = vector.broadcast %cst_26 : f32 to vector<2x64xf32>
    %156 = arith.addf %155, %154 : vector<2x64xf32>
    %157 = arith.divf %155, %156 : vector<2x64xf32>
    %158 = math.tanh %152 : vector<2x64xf32>
    %159 = vector.extract_strided_slice %157 {offsets = [0, 0], sizes = [2, 16], strides = [1, 1]} : vector<2x64xf32> to vector<2x16xf32>
    %160 = vector.extract_strided_slice %157 {offsets = [0, 16], sizes = [2, 16], strides = [1, 1]} : vector<2x64xf32> to vector<2x16xf32>
    %161 = vector.extract_strided_slice %158 {offsets = [0, 32], sizes = [2, 16], strides = [1, 1]} : vector<2x64xf32> to vector<2x16xf32>
    %162 = vector.extract_strided_slice %157 {offsets = [0, 48], sizes = [2, 16], strides = [1, 1]} : vector<2x64xf32> to vector<2x16xf32>
    %163 = arith.mulf %160, %146 : vector<2x16xf32>
    %164 = arith.mulf %159, %161 : vector<2x16xf32>
    %165 = arith.addf %163, %164 : vector<2x16xf32>
    %166 = math.tanh %165 : vector<2x16xf32>
    %167 = arith.mulf %162, %166 : vector<2x16xf32>
    %c0_27 = arith.constant 0 : index
    %c0_28 = arith.constant 0 : index
    %168 = vector.load %arg13[%c0_27, %c0_28] : memref<2x64xf32, #tpu.memory_space<vmem>>, vector<2x16xf32>
    tpu.vector_store %arg13[%c0_27, %c0_28], %167 {strides = array<i32>} : memref<2x64xf32, #tpu.memory_space<vmem>>, vector<2x16xf32>,
    %169 = tpu.transpose %167, [1, 0] : vector<2x16xf32> -> vector<16x2xf32>
    %c0_29 = arith.constant 0 : index
    %c0_30 = arith.constant 0 : index
    %170 = vector.load %arg4[%c0_29, %c0_30] : memref<1x64xf32, #tpu.memory_space<vmem>>, vector<1x64xf32>
    %c0_31 = arith.constant 0 : index
    %c0_32 = arith.constant 0 : index
    %171 = vector.load %arg5[%c0_31, %c0_32] : memref<16x64xf32, #tpu.memory_space<vmem>>, vector<16x64xf32>
    %c0_33 = arith.constant 0 : index
    %c0_34 = arith.constant 0 : index
    %172 = vector.load %arg6[%c0_33, %c0_34] : memref<1x64xf32, #tpu.memory_space<vmem>>, vector<1x64xf32>
    %173 = vector.shape_cast %169 : vector<16x2xf32> to vector<16x2x1xf32>
    %174 = vector.shape_cast %170 : vector<1x64xf32> to vector<1x1x64xf32>
    %175 = vector.broadcast %173 : vector<16x2x1xf32> to vector<16x2x64xf32>
    %176 = vector.broadcast %174 : vector<1x1x64xf32> to vector<16x2x64xf32>
    %177 = arith.mulf %175, %176 : vector<16x2x64xf32>
    %178 = vector.shape_cast %172 : vector<1x64xf32> to vector<1x1x64xf32>
    %179 = vector.broadcast %178 : vector<1x1x64xf32> to vector<16x2x64xf32>
    %180 = arith.addf %177, %179 : vector<16x2x64xf32>
    %cst_35 = arith.constant 0.000000e+00 : f32
    %181 = vector.broadcast %cst_35 : f32 to vector<2x16xf32>
    %cst_36 = arith.constant 0.000000e+00 : f32
    %182 = vector.broadcast %cst_36 : f32 to vector<2x16xf32>
    %183 = vector.extract_strided_slice %180 {offsets = [0, 0, 0], sizes = [1, 2, 64], strides = [1, 1, 1]} : vector<16x2x64xf32> to vector<1x2x64xf32>
    %184 = vector.shape_cast %183 : vector<1x2x64xf32> to vector<2x64xf32>
    %cst_37 = arith.constant dense<0.000000e+00> : vector<2x64xf32>
    %185 = tpu.matmul %181, %171, %cst_37 {dimension_numbers = #tpu.dot_dimension_numbers<[1], [0], [0], [1], [0, 0, 1, 1], [], []>} : vector<2x16xf32>, vector<16x64xf32>, vector<2x64xf32> -> vector<2x64xf32>
    %186 = arith.addf %184, %185 : vector<2x64xf32>
    %187 = arith.negf %186 : vector<2x64xf32>
    %188 = math.exp %187 : vector<2x64xf32>
    %cst_38 = arith.constant 1.000000e+00 : f32
    %189 = vector.broadcast %cst_38 : f32 to vector<2x64xf32>
    %190 = arith.addf %189, %188 : vector<2x64xf32>
    %191 = arith.divf %189, %190 : vector<2x64xf32>
    %192 = math.tanh %186 : vector<2x64xf32>
    %193 = vector.extract_strided_slice %191 {offsets = [0, 0], sizes = [2, 16], strides = [1, 1]} : vector<2x64xf32> to vector<2x16xf32>
    %194 = vector.extract_strided_slice %191 {offsets = [0, 16], sizes = [2, 16], strides = [1, 1]} : vector<2x64xf32> to vector<2x16xf32>
    %195 = vector.extract_strided_slice %192 {offsets = [0, 32], sizes = [2, 16], strides = [1, 1]} : vector<2x64xf32> to vector<2x16xf32>
    %196 = vector.extract_strided_slice %191 {offsets = [0, 48], sizes = [2, 16], strides = [1, 1]} : vector<2x64xf32> to vector<2x16xf32>
    %197 = arith.mulf %194, %182 : vector<2x16xf32>
    %198 = arith.mulf %193, %195 : vector<2x16xf32>
    %199 = arith.addf %197, %198 : vector<2x16xf32>
    %200 = math.tanh %199 : vector<2x16xf32>
    %201 = arith.mulf %196, %200 : vector<2x16xf32>
    %202 = vector.extract_strided_slice %180 {offsets = [1, 0, 0], sizes = [1, 2, 64], strides = [1, 1, 1]} : vector<16x2x64xf32> to vector<1x2x64xf32>
    %203 = vector.shape_cast %202 : vector<1x2x64xf32> to vector<2x64xf32>
    %cst_39 = arith.constant dense<0.000000e+00> : vector<2x64xf32>
    %204 = tpu.matmul %201, %171, %cst_39 {dimension_numbers = #tpu.dot_dimension_numbers<[1], [0], [0], [1], [0, 0, 1, 1], [], []>} : vector<2x16xf32>, vector<16x64xf32>, vector<2x64xf32> -> vector<2x64xf32>
    %205 = arith.addf %203, %204 : vector<2x64xf32>
    %206 = arith.negf %205 : vector<2x64xf32>
    %207 = math.exp %206 : vector<2x64xf32>
    %cst_40 = arith.constant 1.000000e+00 : f32
    %208 = vector.broadcast %cst_40 : f32 to vector<2x64xf32>
    %209 = arith.addf %208, %207 : vector<2x64xf32>
    %210 = arith.divf %208, %209 : vector<2x64xf32>
    %211 = math.tanh %205 : vector<2x64xf32>
    %212 = vector.extract_strided_slice %210 {offsets = [0, 0], sizes = [2, 16], strides = [1, 1]} : vector<2x64xf32> to vector<2x16xf32>
    %213 = vector.extract_strided_slice %210 {offsets = [0, 16], sizes = [2, 16], strides = [1, 1]} : vector<2x64xf32> to vector<2x16xf32>
    %214 = vector.extract_strided_slice %211 {offsets = [0, 32], sizes = [2, 16], strides = [1, 1]} : vector<2x64xf32> to vector<2x16xf32>
    %215 = vector.extract_strided_slice %210 {offsets = [0, 48], sizes = [2, 16], strides = [1, 1]} : vector<2x64xf32> to vector<2x16xf32>
    %216 = arith.mulf %213, %199 : vector<2x16xf32>
    %217 = arith.mulf %212, %214 : vector<2x16xf32>
    %218 = arith.addf %216, %217 : vector<2x16xf32>
    %219 = math.tanh %218 : vector<2x16xf32>
    %220 = arith.mulf %215, %219 : vector<2x16xf32>
    %221 = vector.extract_strided_slice %180 {offsets = [2, 0, 0], sizes = [1, 2, 64], strides = [1, 1, 1]} : vector<16x2x64xf32> to vector<1x2x64xf32>
    %222 = vector.shape_cast %221 : vector<1x2x64xf32> to vector<2x64xf32>
    %cst_41 = arith.constant dense<0.000000e+00> : vector<2x64xf32>
    %223 = tpu.matmul %220, %171, %cst_41 {dimension_numbers = #tpu.dot_dimension_numbers<[1], [0], [0], [1], [0, 0, 1, 1], [], []>} : vector<2x16xf32>, vector<16x64xf32>, vector<2x64xf32> -> vector<2x64xf32>
    %224 = arith.addf %222, %223 : vector<2x64xf32>
    %225 = arith.negf %224 : vector<2x64xf32>
    %226 = math.exp %225 : vector<2x64xf32>
    %cst_42 = arith.constant 1.000000e+00 : f32
    %227 = vector.broadcast %cst_42 : f32 to vector<2x64xf32>
    %228 = arith.addf %227, %226 : vector<2x64xf32>
    %229 = arith.divf %227, %228 : vector<2x64xf32>
    %230 = math.tanh %224 : vector<2x64xf32>
    %231 = vector.extract_strided_slice %229 {offsets = [0, 0], sizes = [2, 16], strides = [1, 1]} : vector<2x64xf32> to vector<2x16xf32>
    %232 = vector.extract_strided_slice %229 {offsets = [0, 16], sizes = [2, 16], strides = [1, 1]} : vector<2x64xf32> to vector<2x16xf32>
    %233 = vector.extract_strided_slice %230 {offsets = [0, 32], sizes = [2, 16], strides = [1, 1]} : vector<2x64xf32> to vector<2x16xf32>
    %234 = vector.extract_strided_slice %229 {offsets = [0, 48], sizes = [2, 16], strides = [1, 1]} : vector<2x64xf32> to vector<2x16xf32>
    %235 = arith.mulf %232, %218 : vector<2x16xf32>
    %236 = arith.mulf %231, %233 : vector<2x16xf32>
    %237 = arith.addf %235, %236 : vector<2x16xf32>
    %238 = math.tanh %237 : vector<2x16xf32>
    %239 = arith.mulf %234, %238 : vector<2x16xf32>
    %240 = vector.extract_strided_slice %180 {offsets = [3, 0, 0], sizes = [1, 2, 64], strides = [1, 1, 1]} : vector<16x2x64xf32> to vector<1x2x64xf32>
    %241 = vector.shape_cast %240 : vector<1x2x64xf32> to vector<2x64xf32>
    %cst_43 = arith.constant dense<0.000000e+00> : vector<2x64xf32>
    %242 = tpu.matmul %239, %171, %cst_43 {dimension_numbers = #tpu.dot_dimension_numbers<[1], [0], [0], [1], [0, 0, 1, 1], [], []>} : vector<2x16xf32>, vector<16x64xf32>, vector<2x64xf32> -> vector<2x64xf32>
    %243 = arith.addf %241, %242 : vector<2x64xf32>
    %244 = arith.negf %243 : vector<2x64xf32>
    %245 = math.exp %244 : vector<2x64xf32>
    %cst_44 = arith.constant 1.000000e+00 : f32
    %246 = vector.broadcast %cst_44 : f32 to vector<2x64xf32>
    %247 = arith.addf %246, %245 : vector<2x64xf32>
    %248 = arith.divf %246, %247 : vector<2x64xf32>
    %249 = math.tanh %243 : vector<2x64xf32>
    %250 = vector.extract_strided_slice %248 {offsets = [0, 0], sizes = [2, 16], strides = [1, 1]} : vector<2x64xf32> to vector<2x16xf32>
    %251 = vector.extract_strided_slice %248 {offsets = [0, 16], sizes = [2, 16], strides = [1, 1]} : vector<2x64xf32> to vector<2x16xf32>
    %252 = vector.extract_strided_slice %249 {offsets = [0, 32], sizes = [2, 16], strides = [1, 1]} : vector<2x64xf32> to vector<2x16xf32>
    %253 = vector.extract_strided_slice %248 {offsets = [0, 48], sizes = [2, 16], strides = [1, 1]} : vector<2x64xf32> to vector<2x16xf32>
    %254 = arith.mulf %251, %237 : vector<2x16xf32>
    %255 = arith.mulf %250, %252 : vector<2x16xf32>
    %256 = arith.addf %254, %255 : vector<2x16xf32>
    %257 = math.tanh %256 : vector<2x16xf32>
    %258 = arith.mulf %253, %257 : vector<2x16xf32>
    %259 = vector.extract_strided_slice %180 {offsets = [4, 0, 0], sizes = [1, 2, 64], strides = [1, 1, 1]} : vector<16x2x64xf32> to vector<1x2x64xf32>
    %260 = vector.shape_cast %259 : vector<1x2x64xf32> to vector<2x64xf32>
    %cst_45 = arith.constant dense<0.000000e+00> : vector<2x64xf32>
    %261 = tpu.matmul %258, %171, %cst_45 {dimension_numbers = #tpu.dot_dimension_numbers<[1], [0], [0], [1], [0, 0, 1, 1], [], []>} : vector<2x16xf32>, vector<16x64xf32>, vector<2x64xf32> -> vector<2x64xf32>
    %262 = arith.addf %260, %261 : vector<2x64xf32>
    %263 = arith.negf %262 : vector<2x64xf32>
    %264 = math.exp %263 : vector<2x64xf32>
    %cst_46 = arith.constant 1.000000e+00 : f32
    %265 = vector.broadcast %cst_46 : f32 to vector<2x64xf32>
    %266 = arith.addf %265, %264 : vector<2x64xf32>
    %267 = arith.divf %265, %266 : vector<2x64xf32>
    %268 = math.tanh %262 : vector<2x64xf32>
    %269 = vector.extract_strided_slice %267 {offsets = [0, 0], sizes = [2, 16], strides = [1, 1]} : vector<2x64xf32> to vector<2x16xf32>
    %270 = vector.extract_strided_slice %267 {offsets = [0, 16], sizes = [2, 16], strides = [1, 1]} : vector<2x64xf32> to vector<2x16xf32>
    %271 = vector.extract_strided_slice %268 {offsets = [0, 32], sizes = [2, 16], strides = [1, 1]} : vector<2x64xf32> to vector<2x16xf32>
    %272 = vector.extract_strided_slice %267 {offsets = [0, 48], sizes = [2, 16], strides = [1, 1]} : vector<2x64xf32> to vector<2x16xf32>
    %273 = arith.mulf %270, %256 : vector<2x16xf32>
    %274 = arith.mulf %269, %271 : vector<2x16xf32>
    %275 = arith.addf %273, %274 : vector<2x16xf32>
    %276 = math.tanh %275 : vector<2x16xf32>
    %277 = arith.mulf %272, %276 : vector<2x16xf32>
    %278 = vector.extract_strided_slice %180 {offsets = [5, 0, 0], sizes = [1, 2, 64], strides = [1, 1, 1]} : vector<16x2x64xf32> to vector<1x2x64xf32>
    %279 = vector.shape_cast %278 : vector<1x2x64xf32> to vector<2x64xf32>
    %cst_47 = arith.constant dense<0.000000e+00> : vector<2x64xf32>
    %280 = tpu.matmul %277, %171, %cst_47 {dimension_numbers = #tpu.dot_dimension_numbers<[1], [0], [0], [1], [0, 0, 1, 1], [], []>} : vector<2x16xf32>, vector<16x64xf32>, vector<2x64xf32> -> vector<2x64xf32>
    %281 = arith.addf %279, %280 : vector<2x64xf32>
    %282 = arith.negf %281 : vector<2x64xf32>
    %283 = math.exp %282 : vector<2x64xf32>
    %cst_48 = arith.constant 1.000000e+00 : f32
    %284 = vector.broadcast %cst_48 : f32 to vector<2x64xf32>
    %285 = arith.addf %284, %283 : vector<2x64xf32>
    %286 = arith.divf %284, %285 : vector<2x64xf32>
    %287 = math.tanh %281 : vector<2x64xf32>
    %288 = vector.extract_strided_slice %286 {offsets = [0, 0], sizes = [2, 16], strides = [1, 1]} : vector<2x64xf32> to vector<2x16xf32>
    %289 = vector.extract_strided_slice %286 {offsets = [0, 16], sizes = [2, 16], strides = [1, 1]} : vector<2x64xf32> to vector<2x16xf32>
    %290 = vector.extract_strided_slice %287 {offsets = [0, 32], sizes = [2, 16], strides = [1, 1]} : vector<2x64xf32> to vector<2x16xf32>
    %291 = vector.extract_strided_slice %286 {offsets = [0, 48], sizes = [2, 16], strides = [1, 1]} : vector<2x64xf32> to vector<2x16xf32>
    %292 = arith.mulf %289, %275 : vector<2x16xf32>
    %293 = arith.mulf %288, %290 : vector<2x16xf32>
    %294 = arith.addf %292, %293 : vector<2x16xf32>
    %295 = math.tanh %294 : vector<2x16xf32>
    %296 = arith.mulf %291, %295 : vector<2x16xf32>
    %297 = vector.extract_strided_slice %180 {offsets = [6, 0, 0], sizes = [1, 2, 64], strides = [1, 1, 1]} : vector<16x2x64xf32> to vector<1x2x64xf32>
    %298 = vector.shape_cast %297 : vector<1x2x64xf32> to vector<2x64xf32>
    %cst_49 = arith.constant dense<0.000000e+00> : vector<2x64xf32>
    %299 = tpu.matmul %296, %171, %cst_49 {dimension_numbers = #tpu.dot_dimension_numbers<[1], [0], [0], [1], [0, 0, 1, 1], [], []>} : vector<2x16xf32>, vector<16x64xf32>, vector<2x64xf32> -> vector<2x64xf32>
    %300 = arith.addf %298, %299 : vector<2x64xf32>
    %301 = arith.negf %300 : vector<2x64xf32>
    %302 = math.exp %301 : vector<2x64xf32>
    %cst_50 = arith.constant 1.000000e+00 : f32
    %303 = vector.broadcast %cst_50 : f32 to vector<2x64xf32>
    %304 = arith.addf %303, %302 : vector<2x64xf32>
    %305 = arith.divf %303, %304 : vector<2x64xf32>
    %306 = math.tanh %300 : vector<2x64xf32>
    %307 = vector.extract_strided_slice %305 {offsets = [0, 0], sizes = [2, 16], strides = [1, 1]} : vector<2x64xf32> to vector<2x16xf32>
    %308 = vector.extract_strided_slice %305 {offsets = [0, 16], sizes = [2, 16], strides = [1, 1]} : vector<2x64xf32> to vector<2x16xf32>
    %309 = vector.extract_strided_slice %306 {offsets = [0, 32], sizes = [2, 16], strides = [1, 1]} : vector<2x64xf32> to vector<2x16xf32>
    %310 = vector.extract_strided_slice %305 {offsets = [0, 48], sizes = [2, 16], strides = [1, 1]} : vector<2x64xf32> to vector<2x16xf32>
    %311 = arith.mulf %308, %294 : vector<2x16xf32>
    %312 = arith.mulf %307, %309 : vector<2x16xf32>
    %313 = arith.addf %311, %312 : vector<2x16xf32>
    %314 = math.tanh %313 : vector<2x16xf32>
    %315 = arith.mulf %310, %314 : vector<2x16xf32>
    %316 = vector.extract_strided_slice %180 {offsets = [7, 0, 0], sizes = [1, 2, 64], strides = [1, 1, 1]} : vector<16x2x64xf32> to vector<1x2x64xf32>
    %317 = vector.shape_cast %316 : vector<1x2x64xf32> to vector<2x64xf32>
    %cst_51 = arith.constant dense<0.000000e+00> : vector<2x64xf32>
    %318 = tpu.matmul %315, %171, %cst_51 {dimension_numbers = #tpu.dot_dimension_numbers<[1], [0], [0], [1], [0, 0, 1, 1], [], []>} : vector<2x16xf32>, vector<16x64xf32>, vector<2x64xf32> -> vector<2x64xf32>
    %319 = arith.addf %317, %318 : vector<2x64xf32>
    %320 = arith.negf %319 : vector<2x64xf32>
    %321 = math.exp %320 : vector<2x64xf32>
    %cst_52 = arith.constant 1.000000e+00 : f32
    %322 = vector.broadcast %cst_52 : f32 to vector<2x64xf32>
    %323 = arith.addf %322, %321 : vector<2x64xf32>
    %324 = arith.divf %322, %323 : vector<2x64xf32>
    %325 = math.tanh %319 : vector<2x64xf32>
    %326 = vector.extract_strided_slice %324 {offsets = [0, 0], sizes = [2, 16], strides = [1, 1]} : vector<2x64xf32> to vector<2x16xf32>
    %327 = vector.extract_strided_slice %324 {offsets = [0, 16], sizes = [2, 16], strides = [1, 1]} : vector<2x64xf32> to vector<2x16xf32>
    %328 = vector.extract_strided_slice %325 {offsets = [0, 32], sizes = [2, 16], strides = [1, 1]} : vector<2x64xf32> to vector<2x16xf32>
    %329 = vector.extract_strided_slice %324 {offsets = [0, 48], sizes = [2, 16], strides = [1, 1]} : vector<2x64xf32> to vector<2x16xf32>
    %330 = arith.mulf %327, %313 : vector<2x16xf32>
    %331 = arith.mulf %326, %328 : vector<2x16xf32>
    %332 = arith.addf %330, %331 : vector<2x16xf32>
    %333 = math.tanh %332 : vector<2x16xf32>
    %334 = arith.mulf %329, %333 : vector<2x16xf32>
    %335 = vector.extract_strided_slice %180 {offsets = [8, 0, 0], sizes = [1, 2, 64], strides = [1, 1, 1]} : vector<16x2x64xf32> to vector<1x2x64xf32>
    %336 = vector.shape_cast %335 : vector<1x2x64xf32> to vector<2x64xf32>
    %cst_53 = arith.constant dense<0.000000e+00> : vector<2x64xf32>
    %337 = tpu.matmul %334, %171, %cst_53 {dimension_numbers = #tpu.dot_dimension_numbers<[1], [0], [0], [1], [0, 0, 1, 1], [], []>} : vector<2x16xf32>, vector<16x64xf32>, vector<2x64xf32> -> vector<2x64xf32>
    %338 = arith.addf %336, %337 : vector<2x64xf32>
    %339 = arith.negf %338 : vector<2x64xf32>
    %340 = math.exp %339 : vector<2x64xf32>
    %cst_54 = arith.constant 1.000000e+00 : f32
    %341 = vector.broadcast %cst_54 : f32 to vector<2x64xf32>
    %342 = arith.addf %341, %340 : vector<2x64xf32>
    %343 = arith.divf %341, %342 : vector<2x64xf32>
    %344 = math.tanh %338 : vector<2x64xf32>
    %345 = vector.extract_strided_slice %343 {offsets = [0, 0], sizes = [2, 16], strides = [1, 1]} : vector<2x64xf32> to vector<2x16xf32>
    %346 = vector.extract_strided_slice %343 {offsets = [0, 16], sizes = [2, 16], strides = [1, 1]} : vector<2x64xf32> to vector<2x16xf32>
    %347 = vector.extract_strided_slice %344 {offsets = [0, 32], sizes = [2, 16], strides = [1, 1]} : vector<2x64xf32> to vector<2x16xf32>
    %348 = vector.extract_strided_slice %343 {offsets = [0, 48], sizes = [2, 16], strides = [1, 1]} : vector<2x64xf32> to vector<2x16xf32>
    %349 = arith.mulf %346, %332 : vector<2x16xf32>
    %350 = arith.mulf %345, %347 : vector<2x16xf32>
    %351 = arith.addf %349, %350 : vector<2x16xf32>
    %352 = math.tanh %351 : vector<2x16xf32>
    %353 = arith.mulf %348, %352 : vector<2x16xf32>
    %354 = vector.extract_strided_slice %180 {offsets = [9, 0, 0], sizes = [1, 2, 64], strides = [1, 1, 1]} : vector<16x2x64xf32> to vector<1x2x64xf32>
    %355 = vector.shape_cast %354 : vector<1x2x64xf32> to vector<2x64xf32>
    %cst_55 = arith.constant dense<0.000000e+00> : vector<2x64xf32>
    %356 = tpu.matmul %353, %171, %cst_55 {dimension_numbers = #tpu.dot_dimension_numbers<[1], [0], [0], [1], [0, 0, 1, 1], [], []>} : vector<2x16xf32>, vector<16x64xf32>, vector<2x64xf32> -> vector<2x64xf32>
    %357 = arith.addf %355, %356 : vector<2x64xf32>
    %358 = arith.negf %357 : vector<2x64xf32>
    %359 = math.exp %358 : vector<2x64xf32>
    %cst_56 = arith.constant 1.000000e+00 : f32
    %360 = vector.broadcast %cst_56 : f32 to vector<2x64xf32>
    %361 = arith.addf %360, %359 : vector<2x64xf32>
    %362 = arith.divf %360, %361 : vector<2x64xf32>
    %363 = math.tanh %357 : vector<2x64xf32>
    %364 = vector.extract_strided_slice %362 {offsets = [0, 0], sizes = [2, 16], strides = [1, 1]} : vector<2x64xf32> to vector<2x16xf32>
    %365 = vector.extract_strided_slice %362 {offsets = [0, 16], sizes = [2, 16], strides = [1, 1]} : vector<2x64xf32> to vector<2x16xf32>
    %366 = vector.extract_strided_slice %363 {offsets = [0, 32], sizes = [2, 16], strides = [1, 1]} : vector<2x64xf32> to vector<2x16xf32>
    %367 = vector.extract_strided_slice %362 {offsets = [0, 48], sizes = [2, 16], strides = [1, 1]} : vector<2x64xf32> to vector<2x16xf32>
    %368 = arith.mulf %365, %351 : vector<2x16xf32>
    %369 = arith.mulf %364, %366 : vector<2x16xf32>
    %370 = arith.addf %368, %369 : vector<2x16xf32>
    %371 = math.tanh %370 : vector<2x16xf32>
    %372 = arith.mulf %367, %371 : vector<2x16xf32>
    %373 = vector.extract_strided_slice %180 {offsets = [10, 0, 0], sizes = [1, 2, 64], strides = [1, 1, 1]} : vector<16x2x64xf32> to vector<1x2x64xf32>
    %374 = vector.shape_cast %373 : vector<1x2x64xf32> to vector<2x64xf32>
    %cst_57 = arith.constant dense<0.000000e+00> : vector<2x64xf32>
    %375 = tpu.matmul %372, %171, %cst_57 {dimension_numbers = #tpu.dot_dimension_numbers<[1], [0], [0], [1], [0, 0, 1, 1], [], []>} : vector<2x16xf32>, vector<16x64xf32>, vector<2x64xf32> -> vector<2x64xf32>
    %376 = arith.addf %374, %375 : vector<2x64xf32>
    %377 = arith.negf %376 : vector<2x64xf32>
    %378 = math.exp %377 : vector<2x64xf32>
    %cst_58 = arith.constant 1.000000e+00 : f32
    %379 = vector.broadcast %cst_58 : f32 to vector<2x64xf32>
    %380 = arith.addf %379, %378 : vector<2x64xf32>
    %381 = arith.divf %379, %380 : vector<2x64xf32>
    %382 = math.tanh %376 : vector<2x64xf32>
    %383 = vector.extract_strided_slice %381 {offsets = [0, 0], sizes = [2, 16], strides = [1, 1]} : vector<2x64xf32> to vector<2x16xf32>
    %384 = vector.extract_strided_slice %381 {offsets = [0, 16], sizes = [2, 16], strides = [1, 1]} : vector<2x64xf32> to vector<2x16xf32>
    %385 = vector.extract_strided_slice %382 {offsets = [0, 32], sizes = [2, 16], strides = [1, 1]} : vector<2x64xf32> to vector<2x16xf32>
    %386 = vector.extract_strided_slice %381 {offsets = [0, 48], sizes = [2, 16], strides = [1, 1]} : vector<2x64xf32> to vector<2x16xf32>
    %387 = arith.mulf %384, %370 : vector<2x16xf32>
    %388 = arith.mulf %383, %385 : vector<2x16xf32>
    %389 = arith.addf %387, %388 : vector<2x16xf32>
    %390 = math.tanh %389 : vector<2x16xf32>
    %391 = arith.mulf %386, %390 : vector<2x16xf32>
    %392 = vector.extract_strided_slice %180 {offsets = [11, 0, 0], sizes = [1, 2, 64], strides = [1, 1, 1]} : vector<16x2x64xf32> to vector<1x2x64xf32>
    %393 = vector.shape_cast %392 : vector<1x2x64xf32> to vector<2x64xf32>
    %cst_59 = arith.constant dense<0.000000e+00> : vector<2x64xf32>
    %394 = tpu.matmul %391, %171, %cst_59 {dimension_numbers = #tpu.dot_dimension_numbers<[1], [0], [0], [1], [0, 0, 1, 1], [], []>} : vector<2x16xf32>, vector<16x64xf32>, vector<2x64xf32> -> vector<2x64xf32>
    %395 = arith.addf %393, %394 : vector<2x64xf32>
    %396 = arith.negf %395 : vector<2x64xf32>
    %397 = math.exp %396 : vector<2x64xf32>
    %cst_60 = arith.constant 1.000000e+00 : f32
    %398 = vector.broadcast %cst_60 : f32 to vector<2x64xf32>
    %399 = arith.addf %398, %397 : vector<2x64xf32>
    %400 = arith.divf %398, %399 : vector<2x64xf32>
    %401 = math.tanh %395 : vector<2x64xf32>
    %402 = vector.extract_strided_slice %400 {offsets = [0, 0], sizes = [2, 16], strides = [1, 1]} : vector<2x64xf32> to vector<2x16xf32>
    %403 = vector.extract_strided_slice %400 {offsets = [0, 16], sizes = [2, 16], strides = [1, 1]} : vector<2x64xf32> to vector<2x16xf32>
    %404 = vector.extract_strided_slice %401 {offsets = [0, 32], sizes = [2, 16], strides = [1, 1]} : vector<2x64xf32> to vector<2x16xf32>
    %405 = vector.extract_strided_slice %400 {offsets = [0, 48], sizes = [2, 16], strides = [1, 1]} : vector<2x64xf32> to vector<2x16xf32>
    %406 = arith.mulf %403, %389 : vector<2x16xf32>
    %407 = arith.mulf %402, %404 : vector<2x16xf32>
    %408 = arith.addf %406, %407 : vector<2x16xf32>
    %409 = math.tanh %408 : vector<2x16xf32>
    %410 = arith.mulf %405, %409 : vector<2x16xf32>
    %411 = vector.extract_strided_slice %180 {offsets = [12, 0, 0], sizes = [1, 2, 64], strides = [1, 1, 1]} : vector<16x2x64xf32> to vector<1x2x64xf32>
    %412 = vector.shape_cast %411 : vector<1x2x64xf32> to vector<2x64xf32>
    %cst_61 = arith.constant dense<0.000000e+00> : vector<2x64xf32>
    %413 = tpu.matmul %410, %171, %cst_61 {dimension_numbers = #tpu.dot_dimension_numbers<[1], [0], [0], [1], [0, 0, 1, 1], [], []>} : vector<2x16xf32>, vector<16x64xf32>, vector<2x64xf32> -> vector<2x64xf32>
    %414 = arith.addf %412, %413 : vector<2x64xf32>
    %415 = arith.negf %414 : vector<2x64xf32>
    %416 = math.exp %415 : vector<2x64xf32>
    %cst_62 = arith.constant 1.000000e+00 : f32
    %417 = vector.broadcast %cst_62 : f32 to vector<2x64xf32>
    %418 = arith.addf %417, %416 : vector<2x64xf32>
    %419 = arith.divf %417, %418 : vector<2x64xf32>
    %420 = math.tanh %414 : vector<2x64xf32>
    %421 = vector.extract_strided_slice %419 {offsets = [0, 0], sizes = [2, 16], strides = [1, 1]} : vector<2x64xf32> to vector<2x16xf32>
    %422 = vector.extract_strided_slice %419 {offsets = [0, 16], sizes = [2, 16], strides = [1, 1]} : vector<2x64xf32> to vector<2x16xf32>
    %423 = vector.extract_strided_slice %420 {offsets = [0, 32], sizes = [2, 16], strides = [1, 1]} : vector<2x64xf32> to vector<2x16xf32>
    %424 = vector.extract_strided_slice %419 {offsets = [0, 48], sizes = [2, 16], strides = [1, 1]} : vector<2x64xf32> to vector<2x16xf32>
    %425 = arith.mulf %422, %408 : vector<2x16xf32>
    %426 = arith.mulf %421, %423 : vector<2x16xf32>
    %427 = arith.addf %425, %426 : vector<2x16xf32>
    %428 = math.tanh %427 : vector<2x16xf32>
    %429 = arith.mulf %424, %428 : vector<2x16xf32>
    %430 = vector.extract_strided_slice %180 {offsets = [13, 0, 0], sizes = [1, 2, 64], strides = [1, 1, 1]} : vector<16x2x64xf32> to vector<1x2x64xf32>
    %431 = vector.shape_cast %430 : vector<1x2x64xf32> to vector<2x64xf32>
    %cst_63 = arith.constant dense<0.000000e+00> : vector<2x64xf32>
    %432 = tpu.matmul %429, %171, %cst_63 {dimension_numbers = #tpu.dot_dimension_numbers<[1], [0], [0], [1], [0, 0, 1, 1], [], []>} : vector<2x16xf32>, vector<16x64xf32>, vector<2x64xf32> -> vector<2x64xf32>
    %433 = arith.addf %431, %432 : vector<2x64xf32>
    %434 = arith.negf %433 : vector<2x64xf32>
    %435 = math.exp %434 : vector<2x64xf32>
    %cst_64 = arith.constant 1.000000e+00 : f32
    %436 = vector.broadcast %cst_64 : f32 to vector<2x64xf32>
    %437 = arith.addf %436, %435 : vector<2x64xf32>
    %438 = arith.divf %436, %437 : vector<2x64xf32>
    %439 = math.tanh %433 : vector<2x64xf32>
    %440 = vector.extract_strided_slice %438 {offsets = [0, 0], sizes = [2, 16], strides = [1, 1]} : vector<2x64xf32> to vector<2x16xf32>
    %441 = vector.extract_strided_slice %438 {offsets = [0, 16], sizes = [2, 16], strides = [1, 1]} : vector<2x64xf32> to vector<2x16xf32>
    %442 = vector.extract_strided_slice %439 {offsets = [0, 32], sizes = [2, 16], strides = [1, 1]} : vector<2x64xf32> to vector<2x16xf32>
    %443 = vector.extract_strided_slice %438 {offsets = [0, 48], sizes = [2, 16], strides = [1, 1]} : vector<2x64xf32> to vector<2x16xf32>
    %444 = arith.mulf %441, %427 : vector<2x16xf32>
    %445 = arith.mulf %440, %442 : vector<2x16xf32>
    %446 = arith.addf %444, %445 : vector<2x16xf32>
    %447 = math.tanh %446 : vector<2x16xf32>
    %448 = arith.mulf %443, %447 : vector<2x16xf32>
    %449 = vector.extract_strided_slice %180 {offsets = [14, 0, 0], sizes = [1, 2, 64], strides = [1, 1, 1]} : vector<16x2x64xf32> to vector<1x2x64xf32>
    %450 = vector.shape_cast %449 : vector<1x2x64xf32> to vector<2x64xf32>
    %cst_65 = arith.constant dense<0.000000e+00> : vector<2x64xf32>
    %451 = tpu.matmul %448, %171, %cst_65 {dimension_numbers = #tpu.dot_dimension_numbers<[1], [0], [0], [1], [0, 0, 1, 1], [], []>} : vector<2x16xf32>, vector<16x64xf32>, vector<2x64xf32> -> vector<2x64xf32>
    %452 = arith.addf %450, %451 : vector<2x64xf32>
    %453 = arith.negf %452 : vector<2x64xf32>
    %454 = math.exp %453 : vector<2x64xf32>
    %cst_66 = arith.constant 1.000000e+00 : f32
    %455 = vector.broadcast %cst_66 : f32 to vector<2x64xf32>
    %456 = arith.addf %455, %454 : vector<2x64xf32>
    %457 = arith.divf %455, %456 : vector<2x64xf32>
    %458 = math.tanh %452 : vector<2x64xf32>
    %459 = vector.extract_strided_slice %457 {offsets = [0, 0], sizes = [2, 16], strides = [1, 1]} : vector<2x64xf32> to vector<2x16xf32>
    %460 = vector.extract_strided_slice %457 {offsets = [0, 16], sizes = [2, 16], strides = [1, 1]} : vector<2x64xf32> to vector<2x16xf32>
    %461 = vector.extract_strided_slice %458 {offsets = [0, 32], sizes = [2, 16], strides = [1, 1]} : vector<2x64xf32> to vector<2x16xf32>
    %462 = vector.extract_strided_slice %457 {offsets = [0, 48], sizes = [2, 16], strides = [1, 1]} : vector<2x64xf32> to vector<2x16xf32>
    %463 = arith.mulf %460, %446 : vector<2x16xf32>
    %464 = arith.mulf %459, %461 : vector<2x16xf32>
    %465 = arith.addf %463, %464 : vector<2x16xf32>
    %466 = math.tanh %465 : vector<2x16xf32>
    %467 = arith.mulf %462, %466 : vector<2x16xf32>
    %468 = vector.extract_strided_slice %180 {offsets = [15, 0, 0], sizes = [1, 2, 64], strides = [1, 1, 1]} : vector<16x2x64xf32> to vector<1x2x64xf32>
    %469 = vector.shape_cast %468 : vector<1x2x64xf32> to vector<2x64xf32>
    %cst_67 = arith.constant dense<0.000000e+00> : vector<2x64xf32>
    %470 = tpu.matmul %467, %171, %cst_67 {dimension_numbers = #tpu.dot_dimension_numbers<[1], [0], [0], [1], [0, 0, 1, 1], [], []>} : vector<2x16xf32>, vector<16x64xf32>, vector<2x64xf32> -> vector<2x64xf32>
    %471 = arith.addf %469, %470 : vector<2x64xf32>
    %472 = arith.negf %471 : vector<2x64xf32>
    %473 = math.exp %472 : vector<2x64xf32>
    %cst_68 = arith.constant 1.000000e+00 : f32
    %474 = vector.broadcast %cst_68 : f32 to vector<2x64xf32>
    %475 = arith.addf %474, %473 : vector<2x64xf32>
    %476 = arith.divf %474, %475 : vector<2x64xf32>
    %477 = math.tanh %471 : vector<2x64xf32>
    %478 = vector.extract_strided_slice %476 {offsets = [0, 0], sizes = [2, 16], strides = [1, 1]} : vector<2x64xf32> to vector<2x16xf32>
    %479 = vector.extract_strided_slice %476 {offsets = [0, 16], sizes = [2, 16], strides = [1, 1]} : vector<2x64xf32> to vector<2x16xf32>
    %480 = vector.extract_strided_slice %477 {offsets = [0, 32], sizes = [2, 16], strides = [1, 1]} : vector<2x64xf32> to vector<2x16xf32>
    %481 = vector.extract_strided_slice %476 {offsets = [0, 48], sizes = [2, 16], strides = [1, 1]} : vector<2x64xf32> to vector<2x16xf32>
    %482 = arith.mulf %479, %465 : vector<2x16xf32>
    %483 = arith.mulf %478, %480 : vector<2x16xf32>
    %484 = arith.addf %482, %483 : vector<2x16xf32>
    %485 = math.tanh %484 : vector<2x16xf32>
    %486 = arith.mulf %481, %485 : vector<2x16xf32>
    %c0_69 = arith.constant 0 : index
    %c16 = arith.constant 16 : index
    %487 = vector.load %arg13[%c0_69, %c16] : memref<2x64xf32, #tpu.memory_space<vmem>>, vector<2x16xf32>
    tpu.vector_store %arg13[%c0_69, %c16], %486 {strides = array<i32>} : memref<2x64xf32, #tpu.memory_space<vmem>>, vector<2x16xf32>,
    %488 = tpu.transpose %486, [1, 0] : vector<2x16xf32> -> vector<16x2xf32>
    %c0_70 = arith.constant 0 : index
    %c0_71 = arith.constant 0 : index
    %489 = vector.load %arg7[%c0_70, %c0_71] : memref<1x64xf32, #tpu.memory_space<vmem>>, vector<1x64xf32>
    %c0_72 = arith.constant 0 : index
    %c0_73 = arith.constant 0 : index
    %490 = vector.load %arg8[%c0_72, %c0_73] : memref<16x64xf32, #tpu.memory_space<vmem>>, vector<16x64xf32>
    %c0_74 = arith.constant 0 : index
    %c0_75 = arith.constant 0 : index
    %491 = vector.load %arg9[%c0_74, %c0_75] : memref<1x64xf32, #tpu.memory_space<vmem>>, vector<1x64xf32>
    %492 = vector.shape_cast %488 : vector<16x2xf32> to vector<16x2x1xf32>
    %493 = vector.shape_cast %489 : vector<1x64xf32> to vector<1x1x64xf32>
    %494 = vector.broadcast %492 : vector<16x2x1xf32> to vector<16x2x64xf32>
    %495 = vector.broadcast %493 : vector<1x1x64xf32> to vector<16x2x64xf32>
    %496 = arith.mulf %494, %495 : vector<16x2x64xf32>
    %497 = vector.shape_cast %491 : vector<1x64xf32> to vector<1x1x64xf32>
    %498 = vector.broadcast %497 : vector<1x1x64xf32> to vector<16x2x64xf32>
    %499 = arith.addf %496, %498 : vector<16x2x64xf32>
    %cst_76 = arith.constant 0.000000e+00 : f32
    %500 = vector.broadcast %cst_76 : f32 to vector<2x16xf32>
    %cst_77 = arith.constant 0.000000e+00 : f32
    %501 = vector.broadcast %cst_77 : f32 to vector<2x16xf32>
    %502 = vector.extract_strided_slice %499 {offsets = [0, 0, 0], sizes = [1, 2, 64], strides = [1, 1, 1]} : vector<16x2x64xf32> to vector<1x2x64xf32>
    %503 = vector.shape_cast %502 : vector<1x2x64xf32> to vector<2x64xf32>
    %cst_78 = arith.constant dense<0.000000e+00> : vector<2x64xf32>
    %504 = tpu.matmul %500, %490, %cst_78 {dimension_numbers = #tpu.dot_dimension_numbers<[1], [0], [0], [1], [0, 0, 1, 1], [], []>} : vector<2x16xf32>, vector<16x64xf32>, vector<2x64xf32> -> vector<2x64xf32>
    %505 = arith.addf %503, %504 : vector<2x64xf32>
    %506 = arith.negf %505 : vector<2x64xf32>
    %507 = math.exp %506 : vector<2x64xf32>
    %cst_79 = arith.constant 1.000000e+00 : f32
    %508 = vector.broadcast %cst_79 : f32 to vector<2x64xf32>
    %509 = arith.addf %508, %507 : vector<2x64xf32>
    %510 = arith.divf %508, %509 : vector<2x64xf32>
    %511 = math.tanh %505 : vector<2x64xf32>
    %512 = vector.extract_strided_slice %510 {offsets = [0, 0], sizes = [2, 16], strides = [1, 1]} : vector<2x64xf32> to vector<2x16xf32>
    %513 = vector.extract_strided_slice %510 {offsets = [0, 16], sizes = [2, 16], strides = [1, 1]} : vector<2x64xf32> to vector<2x16xf32>
    %514 = vector.extract_strided_slice %511 {offsets = [0, 32], sizes = [2, 16], strides = [1, 1]} : vector<2x64xf32> to vector<2x16xf32>
    %515 = vector.extract_strided_slice %510 {offsets = [0, 48], sizes = [2, 16], strides = [1, 1]} : vector<2x64xf32> to vector<2x16xf32>
    %516 = arith.mulf %513, %501 : vector<2x16xf32>
    %517 = arith.mulf %512, %514 : vector<2x16xf32>
    %518 = arith.addf %516, %517 : vector<2x16xf32>
    %519 = math.tanh %518 : vector<2x16xf32>
    %520 = arith.mulf %515, %519 : vector<2x16xf32>
    %521 = vector.extract_strided_slice %499 {offsets = [1, 0, 0], sizes = [1, 2, 64], strides = [1, 1, 1]} : vector<16x2x64xf32> to vector<1x2x64xf32>
    %522 = vector.shape_cast %521 : vector<1x2x64xf32> to vector<2x64xf32>
    %cst_80 = arith.constant dense<0.000000e+00> : vector<2x64xf32>
    %523 = tpu.matmul %520, %490, %cst_80 {dimension_numbers = #tpu.dot_dimension_numbers<[1], [0], [0], [1], [0, 0, 1, 1], [], []>} : vector<2x16xf32>, vector<16x64xf32>, vector<2x64xf32> -> vector<2x64xf32>
    %524 = arith.addf %522, %523 : vector<2x64xf32>
    %525 = arith.negf %524 : vector<2x64xf32>
    %526 = math.exp %525 : vector<2x64xf32>
    %cst_81 = arith.constant 1.000000e+00 : f32
    %527 = vector.broadcast %cst_81 : f32 to vector<2x64xf32>
    %528 = arith.addf %527, %526 : vector<2x64xf32>
    %529 = arith.divf %527, %528 : vector<2x64xf32>
    %530 = math.tanh %524 : vector<2x64xf32>
    %531 = vector.extract_strided_slice %529 {offsets = [0, 0], sizes = [2, 16], strides = [1, 1]} : vector<2x64xf32> to vector<2x16xf32>
    %532 = vector.extract_strided_slice %529 {offsets = [0, 16], sizes = [2, 16], strides = [1, 1]} : vector<2x64xf32> to vector<2x16xf32>
    %533 = vector.extract_strided_slice %530 {offsets = [0, 32], sizes = [2, 16], strides = [1, 1]} : vector<2x64xf32> to vector<2x16xf32>
    %534 = vector.extract_strided_slice %529 {offsets = [0, 48], sizes = [2, 16], strides = [1, 1]} : vector<2x64xf32> to vector<2x16xf32>
    %535 = arith.mulf %532, %518 : vector<2x16xf32>
    %536 = arith.mulf %531, %533 : vector<2x16xf32>
    %537 = arith.addf %535, %536 : vector<2x16xf32>
    %538 = math.tanh %537 : vector<2x16xf32>
    %539 = arith.mulf %534, %538 : vector<2x16xf32>
    %540 = vector.extract_strided_slice %499 {offsets = [2, 0, 0], sizes = [1, 2, 64], strides = [1, 1, 1]} : vector<16x2x64xf32> to vector<1x2x64xf32>
    %541 = vector.shape_cast %540 : vector<1x2x64xf32> to vector<2x64xf32>
    %cst_82 = arith.constant dense<0.000000e+00> : vector<2x64xf32>
    %542 = tpu.matmul %539, %490, %cst_82 {dimension_numbers = #tpu.dot_dimension_numbers<[1], [0], [0], [1], [0, 0, 1, 1], [], []>} : vector<2x16xf32>, vector<16x64xf32>, vector<2x64xf32> -> vector<2x64xf32>
    %543 = arith.addf %541, %542 : vector<2x64xf32>
    %544 = arith.negf %543 : vector<2x64xf32>
    %545 = math.exp %544 : vector<2x64xf32>
    %cst_83 = arith.constant 1.000000e+00 : f32
    %546 = vector.broadcast %cst_83 : f32 to vector<2x64xf32>
    %547 = arith.addf %546, %545 : vector<2x64xf32>
    %548 = arith.divf %546, %547 : vector<2x64xf32>
    %549 = math.tanh %543 : vector<2x64xf32>
    %550 = vector.extract_strided_slice %548 {offsets = [0, 0], sizes = [2, 16], strides = [1, 1]} : vector<2x64xf32> to vector<2x16xf32>
    %551 = vector.extract_strided_slice %548 {offsets = [0, 16], sizes = [2, 16], strides = [1, 1]} : vector<2x64xf32> to vector<2x16xf32>
    %552 = vector.extract_strided_slice %549 {offsets = [0, 32], sizes = [2, 16], strides = [1, 1]} : vector<2x64xf32> to vector<2x16xf32>
    %553 = vector.extract_strided_slice %548 {offsets = [0, 48], sizes = [2, 16], strides = [1, 1]} : vector<2x64xf32> to vector<2x16xf32>
    %554 = arith.mulf %551, %537 : vector<2x16xf32>
    %555 = arith.mulf %550, %552 : vector<2x16xf32>
    %556 = arith.addf %554, %555 : vector<2x16xf32>
    %557 = math.tanh %556 : vector<2x16xf32>
    %558 = arith.mulf %553, %557 : vector<2x16xf32>
    %559 = vector.extract_strided_slice %499 {offsets = [3, 0, 0], sizes = [1, 2, 64], strides = [1, 1, 1]} : vector<16x2x64xf32> to vector<1x2x64xf32>
    %560 = vector.shape_cast %559 : vector<1x2x64xf32> to vector<2x64xf32>
    %cst_84 = arith.constant dense<0.000000e+00> : vector<2x64xf32>
    %561 = tpu.matmul %558, %490, %cst_84 {dimension_numbers = #tpu.dot_dimension_numbers<[1], [0], [0], [1], [0, 0, 1, 1], [], []>} : vector<2x16xf32>, vector<16x64xf32>, vector<2x64xf32> -> vector<2x64xf32>
    %562 = arith.addf %560, %561 : vector<2x64xf32>
    %563 = arith.negf %562 : vector<2x64xf32>
    %564 = math.exp %563 : vector<2x64xf32>
    %cst_85 = arith.constant 1.000000e+00 : f32
    %565 = vector.broadcast %cst_85 : f32 to vector<2x64xf32>
    %566 = arith.addf %565, %564 : vector<2x64xf32>
    %567 = arith.divf %565, %566 : vector<2x64xf32>
    %568 = math.tanh %562 : vector<2x64xf32>
    %569 = vector.extract_strided_slice %567 {offsets = [0, 0], sizes = [2, 16], strides = [1, 1]} : vector<2x64xf32> to vector<2x16xf32>
    %570 = vector.extract_strided_slice %567 {offsets = [0, 16], sizes = [2, 16], strides = [1, 1]} : vector<2x64xf32> to vector<2x16xf32>
    %571 = vector.extract_strided_slice %568 {offsets = [0, 32], sizes = [2, 16], strides = [1, 1]} : vector<2x64xf32> to vector<2x16xf32>
    %572 = vector.extract_strided_slice %567 {offsets = [0, 48], sizes = [2, 16], strides = [1, 1]} : vector<2x64xf32> to vector<2x16xf32>
    %573 = arith.mulf %570, %556 : vector<2x16xf32>
    %574 = arith.mulf %569, %571 : vector<2x16xf32>
    %575 = arith.addf %573, %574 : vector<2x16xf32>
    %576 = math.tanh %575 : vector<2x16xf32>
    %577 = arith.mulf %572, %576 : vector<2x16xf32>
    %578 = vector.extract_strided_slice %499 {offsets = [4, 0, 0], sizes = [1, 2, 64], strides = [1, 1, 1]} : vector<16x2x64xf32> to vector<1x2x64xf32>
    %579 = vector.shape_cast %578 : vector<1x2x64xf32> to vector<2x64xf32>
    %cst_86 = arith.constant dense<0.000000e+00> : vector<2x64xf32>
    %580 = tpu.matmul %577, %490, %cst_86 {dimension_numbers = #tpu.dot_dimension_numbers<[1], [0], [0], [1], [0, 0, 1, 1], [], []>} : vector<2x16xf32>, vector<16x64xf32>, vector<2x64xf32> -> vector<2x64xf32>
    %581 = arith.addf %579, %580 : vector<2x64xf32>
    %582 = arith.negf %581 : vector<2x64xf32>
    %583 = math.exp %582 : vector<2x64xf32>
    %cst_87 = arith.constant 1.000000e+00 : f32
    %584 = vector.broadcast %cst_87 : f32 to vector<2x64xf32>
    %585 = arith.addf %584, %583 : vector<2x64xf32>
    %586 = arith.divf %584, %585 : vector<2x64xf32>
    %587 = math.tanh %581 : vector<2x64xf32>
    %588 = vector.extract_strided_slice %586 {offsets = [0, 0], sizes = [2, 16], strides = [1, 1]} : vector<2x64xf32> to vector<2x16xf32>
    %589 = vector.extract_strided_slice %586 {offsets = [0, 16], sizes = [2, 16], strides = [1, 1]} : vector<2x64xf32> to vector<2x16xf32>
    %590 = vector.extract_strided_slice %587 {offsets = [0, 32], sizes = [2, 16], strides = [1, 1]} : vector<2x64xf32> to vector<2x16xf32>
    %591 = vector.extract_strided_slice %586 {offsets = [0, 48], sizes = [2, 16], strides = [1, 1]} : vector<2x64xf32> to vector<2x16xf32>
    %592 = arith.mulf %589, %575 : vector<2x16xf32>
    %593 = arith.mulf %588, %590 : vector<2x16xf32>
    %594 = arith.addf %592, %593 : vector<2x16xf32>
    %595 = math.tanh %594 : vector<2x16xf32>
    %596 = arith.mulf %591, %595 : vector<2x16xf32>
    %597 = vector.extract_strided_slice %499 {offsets = [5, 0, 0], sizes = [1, 2, 64], strides = [1, 1, 1]} : vector<16x2x64xf32> to vector<1x2x64xf32>
    %598 = vector.shape_cast %597 : vector<1x2x64xf32> to vector<2x64xf32>
    %cst_88 = arith.constant dense<0.000000e+00> : vector<2x64xf32>
    %599 = tpu.matmul %596, %490, %cst_88 {dimension_numbers = #tpu.dot_dimension_numbers<[1], [0], [0], [1], [0, 0, 1, 1], [], []>} : vector<2x16xf32>, vector<16x64xf32>, vector<2x64xf32> -> vector<2x64xf32>
    %600 = arith.addf %598, %599 : vector<2x64xf32>
    %601 = arith.negf %600 : vector<2x64xf32>
    %602 = math.exp %601 : vector<2x64xf32>
    %cst_89 = arith.constant 1.000000e+00 : f32
    %603 = vector.broadcast %cst_89 : f32 to vector<2x64xf32>
    %604 = arith.addf %603, %602 : vector<2x64xf32>
    %605 = arith.divf %603, %604 : vector<2x64xf32>
    %606 = math.tanh %600 : vector<2x64xf32>
    %607 = vector.extract_strided_slice %605 {offsets = [0, 0], sizes = [2, 16], strides = [1, 1]} : vector<2x64xf32> to vector<2x16xf32>
    %608 = vector.extract_strided_slice %605 {offsets = [0, 16], sizes = [2, 16], strides = [1, 1]} : vector<2x64xf32> to vector<2x16xf32>
    %609 = vector.extract_strided_slice %606 {offsets = [0, 32], sizes = [2, 16], strides = [1, 1]} : vector<2x64xf32> to vector<2x16xf32>
    %610 = vector.extract_strided_slice %605 {offsets = [0, 48], sizes = [2, 16], strides = [1, 1]} : vector<2x64xf32> to vector<2x16xf32>
    %611 = arith.mulf %608, %594 : vector<2x16xf32>
    %612 = arith.mulf %607, %609 : vector<2x16xf32>
    %613 = arith.addf %611, %612 : vector<2x16xf32>
    %614 = math.tanh %613 : vector<2x16xf32>
    %615 = arith.mulf %610, %614 : vector<2x16xf32>
    %616 = vector.extract_strided_slice %499 {offsets = [6, 0, 0], sizes = [1, 2, 64], strides = [1, 1, 1]} : vector<16x2x64xf32> to vector<1x2x64xf32>
    %617 = vector.shape_cast %616 : vector<1x2x64xf32> to vector<2x64xf32>
    %cst_90 = arith.constant dense<0.000000e+00> : vector<2x64xf32>
    %618 = tpu.matmul %615, %490, %cst_90 {dimension_numbers = #tpu.dot_dimension_numbers<[1], [0], [0], [1], [0, 0, 1, 1], [], []>} : vector<2x16xf32>, vector<16x64xf32>, vector<2x64xf32> -> vector<2x64xf32>
    %619 = arith.addf %617, %618 : vector<2x64xf32>
    %620 = arith.negf %619 : vector<2x64xf32>
    %621 = math.exp %620 : vector<2x64xf32>
    %cst_91 = arith.constant 1.000000e+00 : f32
    %622 = vector.broadcast %cst_91 : f32 to vector<2x64xf32>
    %623 = arith.addf %622, %621 : vector<2x64xf32>
    %624 = arith.divf %622, %623 : vector<2x64xf32>
    %625 = math.tanh %619 : vector<2x64xf32>
    %626 = vector.extract_strided_slice %624 {offsets = [0, 0], sizes = [2, 16], strides = [1, 1]} : vector<2x64xf32> to vector<2x16xf32>
    %627 = vector.extract_strided_slice %624 {offsets = [0, 16], sizes = [2, 16], strides = [1, 1]} : vector<2x64xf32> to vector<2x16xf32>
    %628 = vector.extract_strided_slice %625 {offsets = [0, 32], sizes = [2, 16], strides = [1, 1]} : vector<2x64xf32> to vector<2x16xf32>
    %629 = vector.extract_strided_slice %624 {offsets = [0, 48], sizes = [2, 16], strides = [1, 1]} : vector<2x64xf32> to vector<2x16xf32>
    %630 = arith.mulf %627, %613 : vector<2x16xf32>
    %631 = arith.mulf %626, %628 : vector<2x16xf32>
    %632 = arith.addf %630, %631 : vector<2x16xf32>
    %633 = math.tanh %632 : vector<2x16xf32>
    %634 = arith.mulf %629, %633 : vector<2x16xf32>
    %635 = vector.extract_strided_slice %499 {offsets = [7, 0, 0], sizes = [1, 2, 64], strides = [1, 1, 1]} : vector<16x2x64xf32> to vector<1x2x64xf32>
    %636 = vector.shape_cast %635 : vector<1x2x64xf32> to vector<2x64xf32>
    %cst_92 = arith.constant dense<0.000000e+00> : vector<2x64xf32>
    %637 = tpu.matmul %634, %490, %cst_92 {dimension_numbers = #tpu.dot_dimension_numbers<[1], [0], [0], [1], [0, 0, 1, 1], [], []>} : vector<2x16xf32>, vector<16x64xf32>, vector<2x64xf32> -> vector<2x64xf32>
    %638 = arith.addf %636, %637 : vector<2x64xf32>
    %639 = arith.negf %638 : vector<2x64xf32>
    %640 = math.exp %639 : vector<2x64xf32>
    %cst_93 = arith.constant 1.000000e+00 : f32
    %641 = vector.broadcast %cst_93 : f32 to vector<2x64xf32>
    %642 = arith.addf %641, %640 : vector<2x64xf32>
    %643 = arith.divf %641, %642 : vector<2x64xf32>
    %644 = math.tanh %638 : vector<2x64xf32>
    %645 = vector.extract_strided_slice %643 {offsets = [0, 0], sizes = [2, 16], strides = [1, 1]} : vector<2x64xf32> to vector<2x16xf32>
    %646 = vector.extract_strided_slice %643 {offsets = [0, 16], sizes = [2, 16], strides = [1, 1]} : vector<2x64xf32> to vector<2x16xf32>
    %647 = vector.extract_strided_slice %644 {offsets = [0, 32], sizes = [2, 16], strides = [1, 1]} : vector<2x64xf32> to vector<2x16xf32>
    %648 = vector.extract_strided_slice %643 {offsets = [0, 48], sizes = [2, 16], strides = [1, 1]} : vector<2x64xf32> to vector<2x16xf32>
    %649 = arith.mulf %646, %632 : vector<2x16xf32>
    %650 = arith.mulf %645, %647 : vector<2x16xf32>
    %651 = arith.addf %649, %650 : vector<2x16xf32>
    %652 = math.tanh %651 : vector<2x16xf32>
    %653 = arith.mulf %648, %652 : vector<2x16xf32>
    %654 = vector.extract_strided_slice %499 {offsets = [8, 0, 0], sizes = [1, 2, 64], strides = [1, 1, 1]} : vector<16x2x64xf32> to vector<1x2x64xf32>
    %655 = vector.shape_cast %654 : vector<1x2x64xf32> to vector<2x64xf32>
    %cst_94 = arith.constant dense<0.000000e+00> : vector<2x64xf32>
    %656 = tpu.matmul %653, %490, %cst_94 {dimension_numbers = #tpu.dot_dimension_numbers<[1], [0], [0], [1], [0, 0, 1, 1], [], []>} : vector<2x16xf32>, vector<16x64xf32>, vector<2x64xf32> -> vector<2x64xf32>
    %657 = arith.addf %655, %656 : vector<2x64xf32>
    %658 = arith.negf %657 : vector<2x64xf32>
    %659 = math.exp %658 : vector<2x64xf32>
    %cst_95 = arith.constant 1.000000e+00 : f32
    %660 = vector.broadcast %cst_95 : f32 to vector<2x64xf32>
    %661 = arith.addf %660, %659 : vector<2x64xf32>
    %662 = arith.divf %660, %661 : vector<2x64xf32>
    %663 = math.tanh %657 : vector<2x64xf32>
    %664 = vector.extract_strided_slice %662 {offsets = [0, 0], sizes = [2, 16], strides = [1, 1]} : vector<2x64xf32> to vector<2x16xf32>
    %665 = vector.extract_strided_slice %662 {offsets = [0, 16], sizes = [2, 16], strides = [1, 1]} : vector<2x64xf32> to vector<2x16xf32>
    %666 = vector.extract_strided_slice %663 {offsets = [0, 32], sizes = [2, 16], strides = [1, 1]} : vector<2x64xf32> to vector<2x16xf32>
    %667 = vector.extract_strided_slice %662 {offsets = [0, 48], sizes = [2, 16], strides = [1, 1]} : vector<2x64xf32> to vector<2x16xf32>
    %668 = arith.mulf %665, %651 : vector<2x16xf32>
    %669 = arith.mulf %664, %666 : vector<2x16xf32>
    %670 = arith.addf %668, %669 : vector<2x16xf32>
    %671 = math.tanh %670 : vector<2x16xf32>
    %672 = arith.mulf %667, %671 : vector<2x16xf32>
    %673 = vector.extract_strided_slice %499 {offsets = [9, 0, 0], sizes = [1, 2, 64], strides = [1, 1, 1]} : vector<16x2x64xf32> to vector<1x2x64xf32>
    %674 = vector.shape_cast %673 : vector<1x2x64xf32> to vector<2x64xf32>
    %cst_96 = arith.constant dense<0.000000e+00> : vector<2x64xf32>
    %675 = tpu.matmul %672, %490, %cst_96 {dimension_numbers = #tpu.dot_dimension_numbers<[1], [0], [0], [1], [0, 0, 1, 1], [], []>} : vector<2x16xf32>, vector<16x64xf32>, vector<2x64xf32> -> vector<2x64xf32>
    %676 = arith.addf %674, %675 : vector<2x64xf32>
    %677 = arith.negf %676 : vector<2x64xf32>
    %678 = math.exp %677 : vector<2x64xf32>
    %cst_97 = arith.constant 1.000000e+00 : f32
    %679 = vector.broadcast %cst_97 : f32 to vector<2x64xf32>
    %680 = arith.addf %679, %678 : vector<2x64xf32>
    %681 = arith.divf %679, %680 : vector<2x64xf32>
    %682 = math.tanh %676 : vector<2x64xf32>
    %683 = vector.extract_strided_slice %681 {offsets = [0, 0], sizes = [2, 16], strides = [1, 1]} : vector<2x64xf32> to vector<2x16xf32>
    %684 = vector.extract_strided_slice %681 {offsets = [0, 16], sizes = [2, 16], strides = [1, 1]} : vector<2x64xf32> to vector<2x16xf32>
    %685 = vector.extract_strided_slice %682 {offsets = [0, 32], sizes = [2, 16], strides = [1, 1]} : vector<2x64xf32> to vector<2x16xf32>
    %686 = vector.extract_strided_slice %681 {offsets = [0, 48], sizes = [2, 16], strides = [1, 1]} : vector<2x64xf32> to vector<2x16xf32>
    %687 = arith.mulf %684, %670 : vector<2x16xf32>
    %688 = arith.mulf %683, %685 : vector<2x16xf32>
    %689 = arith.addf %687, %688 : vector<2x16xf32>
    %690 = math.tanh %689 : vector<2x16xf32>
    %691 = arith.mulf %686, %690 : vector<2x16xf32>
    %692 = vector.extract_strided_slice %499 {offsets = [10, 0, 0], sizes = [1, 2, 64], strides = [1, 1, 1]} : vector<16x2x64xf32> to vector<1x2x64xf32>
    %693 = vector.shape_cast %692 : vector<1x2x64xf32> to vector<2x64xf32>
    %cst_98 = arith.constant dense<0.000000e+00> : vector<2x64xf32>
    %694 = tpu.matmul %691, %490, %cst_98 {dimension_numbers = #tpu.dot_dimension_numbers<[1], [0], [0], [1], [0, 0, 1, 1], [], []>} : vector<2x16xf32>, vector<16x64xf32>, vector<2x64xf32> -> vector<2x64xf32>
    %695 = arith.addf %693, %694 : vector<2x64xf32>
    %696 = arith.negf %695 : vector<2x64xf32>
    %697 = math.exp %696 : vector<2x64xf32>
    %cst_99 = arith.constant 1.000000e+00 : f32
    %698 = vector.broadcast %cst_99 : f32 to vector<2x64xf32>
    %699 = arith.addf %698, %697 : vector<2x64xf32>
    %700 = arith.divf %698, %699 : vector<2x64xf32>
    %701 = math.tanh %695 : vector<2x64xf32>
    %702 = vector.extract_strided_slice %700 {offsets = [0, 0], sizes = [2, 16], strides = [1, 1]} : vector<2x64xf32> to vector<2x16xf32>
    %703 = vector.extract_strided_slice %700 {offsets = [0, 16], sizes = [2, 16], strides = [1, 1]} : vector<2x64xf32> to vector<2x16xf32>
    %704 = vector.extract_strided_slice %701 {offsets = [0, 32], sizes = [2, 16], strides = [1, 1]} : vector<2x64xf32> to vector<2x16xf32>
    %705 = vector.extract_strided_slice %700 {offsets = [0, 48], sizes = [2, 16], strides = [1, 1]} : vector<2x64xf32> to vector<2x16xf32>
    %706 = arith.mulf %703, %689 : vector<2x16xf32>
    %707 = arith.mulf %702, %704 : vector<2x16xf32>
    %708 = arith.addf %706, %707 : vector<2x16xf32>
    %709 = math.tanh %708 : vector<2x16xf32>
    %710 = arith.mulf %705, %709 : vector<2x16xf32>
    %711 = vector.extract_strided_slice %499 {offsets = [11, 0, 0], sizes = [1, 2, 64], strides = [1, 1, 1]} : vector<16x2x64xf32> to vector<1x2x64xf32>
    %712 = vector.shape_cast %711 : vector<1x2x64xf32> to vector<2x64xf32>
    %cst_100 = arith.constant dense<0.000000e+00> : vector<2x64xf32>
    %713 = tpu.matmul %710, %490, %cst_100 {dimension_numbers = #tpu.dot_dimension_numbers<[1], [0], [0], [1], [0, 0, 1, 1], [], []>} : vector<2x16xf32>, vector<16x64xf32>, vector<2x64xf32> -> vector<2x64xf32>
    %714 = arith.addf %712, %713 : vector<2x64xf32>
    %715 = arith.negf %714 : vector<2x64xf32>
    %716 = math.exp %715 : vector<2x64xf32>
    %cst_101 = arith.constant 1.000000e+00 : f32
    %717 = vector.broadcast %cst_101 : f32 to vector<2x64xf32>
    %718 = arith.addf %717, %716 : vector<2x64xf32>
    %719 = arith.divf %717, %718 : vector<2x64xf32>
    %720 = math.tanh %714 : vector<2x64xf32>
    %721 = vector.extract_strided_slice %719 {offsets = [0, 0], sizes = [2, 16], strides = [1, 1]} : vector<2x64xf32> to vector<2x16xf32>
    %722 = vector.extract_strided_slice %719 {offsets = [0, 16], sizes = [2, 16], strides = [1, 1]} : vector<2x64xf32> to vector<2x16xf32>
    %723 = vector.extract_strided_slice %720 {offsets = [0, 32], sizes = [2, 16], strides = [1, 1]} : vector<2x64xf32> to vector<2x16xf32>
    %724 = vector.extract_strided_slice %719 {offsets = [0, 48], sizes = [2, 16], strides = [1, 1]} : vector<2x64xf32> to vector<2x16xf32>
    %725 = arith.mulf %722, %708 : vector<2x16xf32>
    %726 = arith.mulf %721, %723 : vector<2x16xf32>
    %727 = arith.addf %725, %726 : vector<2x16xf32>
    %728 = math.tanh %727 : vector<2x16xf32>
    %729 = arith.mulf %724, %728 : vector<2x16xf32>
    %730 = vector.extract_strided_slice %499 {offsets = [12, 0, 0], sizes = [1, 2, 64], strides = [1, 1, 1]} : vector<16x2x64xf32> to vector<1x2x64xf32>
    %731 = vector.shape_cast %730 : vector<1x2x64xf32> to vector<2x64xf32>
    %cst_102 = arith.constant dense<0.000000e+00> : vector<2x64xf32>
    %732 = tpu.matmul %729, %490, %cst_102 {dimension_numbers = #tpu.dot_dimension_numbers<[1], [0], [0], [1], [0, 0, 1, 1], [], []>} : vector<2x16xf32>, vector<16x64xf32>, vector<2x64xf32> -> vector<2x64xf32>
    %733 = arith.addf %731, %732 : vector<2x64xf32>
    %734 = arith.negf %733 : vector<2x64xf32>
    %735 = math.exp %734 : vector<2x64xf32>
    %cst_103 = arith.constant 1.000000e+00 : f32
    %736 = vector.broadcast %cst_103 : f32 to vector<2x64xf32>
    %737 = arith.addf %736, %735 : vector<2x64xf32>
    %738 = arith.divf %736, %737 : vector<2x64xf32>
    %739 = math.tanh %733 : vector<2x64xf32>
    %740 = vector.extract_strided_slice %738 {offsets = [0, 0], sizes = [2, 16], strides = [1, 1]} : vector<2x64xf32> to vector<2x16xf32>
    %741 = vector.extract_strided_slice %738 {offsets = [0, 16], sizes = [2, 16], strides = [1, 1]} : vector<2x64xf32> to vector<2x16xf32>
    %742 = vector.extract_strided_slice %739 {offsets = [0, 32], sizes = [2, 16], strides = [1, 1]} : vector<2x64xf32> to vector<2x16xf32>
    %743 = vector.extract_strided_slice %738 {offsets = [0, 48], sizes = [2, 16], strides = [1, 1]} : vector<2x64xf32> to vector<2x16xf32>
    %744 = arith.mulf %741, %727 : vector<2x16xf32>
    %745 = arith.mulf %740, %742 : vector<2x16xf32>
    %746 = arith.addf %744, %745 : vector<2x16xf32>
    %747 = math.tanh %746 : vector<2x16xf32>
    %748 = arith.mulf %743, %747 : vector<2x16xf32>
    %749 = vector.extract_strided_slice %499 {offsets = [13, 0, 0], sizes = [1, 2, 64], strides = [1, 1, 1]} : vector<16x2x64xf32> to vector<1x2x64xf32>
    %750 = vector.shape_cast %749 : vector<1x2x64xf32> to vector<2x64xf32>
    %cst_104 = arith.constant dense<0.000000e+00> : vector<2x64xf32>
    %751 = tpu.matmul %748, %490, %cst_104 {dimension_numbers = #tpu.dot_dimension_numbers<[1], [0], [0], [1], [0, 0, 1, 1], [], []>} : vector<2x16xf32>, vector<16x64xf32>, vector<2x64xf32> -> vector<2x64xf32>
    %752 = arith.addf %750, %751 : vector<2x64xf32>
    %753 = arith.negf %752 : vector<2x64xf32>
    %754 = math.exp %753 : vector<2x64xf32>
    %cst_105 = arith.constant 1.000000e+00 : f32
    %755 = vector.broadcast %cst_105 : f32 to vector<2x64xf32>
    %756 = arith.addf %755, %754 : vector<2x64xf32>
    %757 = arith.divf %755, %756 : vector<2x64xf32>
    %758 = math.tanh %752 : vector<2x64xf32>
    %759 = vector.extract_strided_slice %757 {offsets = [0, 0], sizes = [2, 16], strides = [1, 1]} : vector<2x64xf32> to vector<2x16xf32>
    %760 = vector.extract_strided_slice %757 {offsets = [0, 16], sizes = [2, 16], strides = [1, 1]} : vector<2x64xf32> to vector<2x16xf32>
    %761 = vector.extract_strided_slice %758 {offsets = [0, 32], sizes = [2, 16], strides = [1, 1]} : vector<2x64xf32> to vector<2x16xf32>
    %762 = vector.extract_strided_slice %757 {offsets = [0, 48], sizes = [2, 16], strides = [1, 1]} : vector<2x64xf32> to vector<2x16xf32>
    %763 = arith.mulf %760, %746 : vector<2x16xf32>
    %764 = arith.mulf %759, %761 : vector<2x16xf32>
    %765 = arith.addf %763, %764 : vector<2x16xf32>
    %766 = math.tanh %765 : vector<2x16xf32>
    %767 = arith.mulf %762, %766 : vector<2x16xf32>
    %768 = vector.extract_strided_slice %499 {offsets = [14, 0, 0], sizes = [1, 2, 64], strides = [1, 1, 1]} : vector<16x2x64xf32> to vector<1x2x64xf32>
    %769 = vector.shape_cast %768 : vector<1x2x64xf32> to vector<2x64xf32>
    %cst_106 = arith.constant dense<0.000000e+00> : vector<2x64xf32>
    %770 = tpu.matmul %767, %490, %cst_106 {dimension_numbers = #tpu.dot_dimension_numbers<[1], [0], [0], [1], [0, 0, 1, 1], [], []>} : vector<2x16xf32>, vector<16x64xf32>, vector<2x64xf32> -> vector<2x64xf32>
    %771 = arith.addf %769, %770 : vector<2x64xf32>
    %772 = arith.negf %771 : vector<2x64xf32>
    %773 = math.exp %772 : vector<2x64xf32>
    %cst_107 = arith.constant 1.000000e+00 : f32
    %774 = vector.broadcast %cst_107 : f32 to vector<2x64xf32>
    %775 = arith.addf %774, %773 : vector<2x64xf32>
    %776 = arith.divf %774, %775 : vector<2x64xf32>
    %777 = math.tanh %771 : vector<2x64xf32>
    %778 = vector.extract_strided_slice %776 {offsets = [0, 0], sizes = [2, 16], strides = [1, 1]} : vector<2x64xf32> to vector<2x16xf32>
    %779 = vector.extract_strided_slice %776 {offsets = [0, 16], sizes = [2, 16], strides = [1, 1]} : vector<2x64xf32> to vector<2x16xf32>
    %780 = vector.extract_strided_slice %777 {offsets = [0, 32], sizes = [2, 16], strides = [1, 1]} : vector<2x64xf32> to vector<2x16xf32>
    %781 = vector.extract_strided_slice %776 {offsets = [0, 48], sizes = [2, 16], strides = [1, 1]} : vector<2x64xf32> to vector<2x16xf32>
    %782 = arith.mulf %779, %765 : vector<2x16xf32>
    %783 = arith.mulf %778, %780 : vector<2x16xf32>
    %784 = arith.addf %782, %783 : vector<2x16xf32>
    %785 = math.tanh %784 : vector<2x16xf32>
    %786 = arith.mulf %781, %785 : vector<2x16xf32>
    %787 = vector.extract_strided_slice %499 {offsets = [15, 0, 0], sizes = [1, 2, 64], strides = [1, 1, 1]} : vector<16x2x64xf32> to vector<1x2x64xf32>
    %788 = vector.shape_cast %787 : vector<1x2x64xf32> to vector<2x64xf32>
    %cst_108 = arith.constant dense<0.000000e+00> : vector<2x64xf32>
    %789 = tpu.matmul %786, %490, %cst_108 {dimension_numbers = #tpu.dot_dimension_numbers<[1], [0], [0], [1], [0, 0, 1, 1], [], []>} : vector<2x16xf32>, vector<16x64xf32>, vector<2x64xf32> -> vector<2x64xf32>
    %790 = arith.addf %788, %789 : vector<2x64xf32>
    %791 = arith.negf %790 : vector<2x64xf32>
    %792 = math.exp %791 : vector<2x64xf32>
    %cst_109 = arith.constant 1.000000e+00 : f32
    %793 = vector.broadcast %cst_109 : f32 to vector<2x64xf32>
    %794 = arith.addf %793, %792 : vector<2x64xf32>
    %795 = arith.divf %793, %794 : vector<2x64xf32>
    %796 = math.tanh %790 : vector<2x64xf32>
    %797 = vector.extract_strided_slice %795 {offsets = [0, 0], sizes = [2, 16], strides = [1, 1]} : vector<2x64xf32> to vector<2x16xf32>
    %798 = vector.extract_strided_slice %795 {offsets = [0, 16], sizes = [2, 16], strides = [1, 1]} : vector<2x64xf32> to vector<2x16xf32>
    %799 = vector.extract_strided_slice %796 {offsets = [0, 32], sizes = [2, 16], strides = [1, 1]} : vector<2x64xf32> to vector<2x16xf32>
    %800 = vector.extract_strided_slice %795 {offsets = [0, 48], sizes = [2, 16], strides = [1, 1]} : vector<2x64xf32> to vector<2x16xf32>
    %801 = arith.mulf %798, %784 : vector<2x16xf32>
    %802 = arith.mulf %797, %799 : vector<2x16xf32>
    %803 = arith.addf %801, %802 : vector<2x16xf32>
    %804 = math.tanh %803 : vector<2x16xf32>
    %805 = arith.mulf %800, %804 : vector<2x16xf32>
    %c0_110 = arith.constant 0 : index
    %c32 = arith.constant 32 : index
    %806 = vector.load %arg13[%c0_110, %c32] : memref<2x64xf32, #tpu.memory_space<vmem>>, vector<2x16xf32>
    tpu.vector_store %arg13[%c0_110, %c32], %805 {strides = array<i32>} : memref<2x64xf32, #tpu.memory_space<vmem>>, vector<2x16xf32>,
    %807 = tpu.transpose %805, [1, 0] : vector<2x16xf32> -> vector<16x2xf32>
    %808 = vector.shape_cast %807 : vector<16x2xf32> to vector<16x2x1xf32>
    %c0_111 = arith.constant 0 : index
    %809 = memref.load %arg10[%c0_111] : memref<4xf32, #tpu.memory_space<smem>>
    %810 = vector.broadcast %809 : f32 to vector<16x2x1xf32>
    %811 = arith.mulf %808, %810 : vector<16x2x1xf32>
    %c0_112 = arith.constant 0 : index
    %812 = memref.load %arg12[%c0_112] : memref<4xf32, #tpu.memory_space<smem>>
    %813 = vector.broadcast %812 : f32 to vector<16x2x1xf32>
    %814 = arith.addf %811, %813 : vector<16x2x1xf32>
    %c1 = arith.constant 1 : index
    %815 = memref.load %arg10[%c1] : memref<4xf32, #tpu.memory_space<smem>>
    %816 = vector.broadcast %815 : f32 to vector<16x2x1xf32>
    %817 = arith.mulf %808, %816 : vector<16x2x1xf32>
    %c1_113 = arith.constant 1 : index
    %818 = memref.load %arg12[%c1_113] : memref<4xf32, #tpu.memory_space<smem>>
    %819 = vector.broadcast %818 : f32 to vector<16x2x1xf32>
    %820 = arith.addf %817, %819 : vector<16x2x1xf32>
    %c2 = arith.constant 2 : index
    %821 = memref.load %arg10[%c2] : memref<4xf32, #tpu.memory_space<smem>>
    %822 = vector.broadcast %821 : f32 to vector<16x2x1xf32>
    %823 = arith.mulf %808, %822 : vector<16x2x1xf32>
    %c2_114 = arith.constant 2 : index
    %824 = memref.load %arg12[%c2_114] : memref<4xf32, #tpu.memory_space<smem>>
    %825 = vector.broadcast %824 : f32 to vector<16x2x1xf32>
    %826 = arith.addf %823, %825 : vector<16x2x1xf32>
    %c3 = arith.constant 3 : index
    %827 = memref.load %arg10[%c3] : memref<4xf32, #tpu.memory_space<smem>>
    %828 = vector.broadcast %827 : f32 to vector<16x2x1xf32>
    %829 = arith.mulf %808, %828 : vector<16x2x1xf32>
    %c3_115 = arith.constant 3 : index
    %830 = memref.load %arg12[%c3_115] : memref<4xf32, #tpu.memory_space<smem>>
    %831 = vector.broadcast %830 : f32 to vector<16x2x1xf32>
    %832 = arith.addf %829, %831 : vector<16x2x1xf32>
    %c0_116 = arith.constant 0 : index
    %833 = memref.load %arg11[%c0_116] : memref<4xf32, #tpu.memory_space<smem>>
    %c1_117 = arith.constant 1 : index
    %834 = memref.load %arg11[%c1_117] : memref<4xf32, #tpu.memory_space<smem>>
    %c2_118 = arith.constant 2 : index
    %835 = memref.load %arg11[%c2_118] : memref<4xf32, #tpu.memory_space<smem>>
    %c3_119 = arith.constant 3 : index
    %836 = memref.load %arg11[%c3_119] : memref<4xf32, #tpu.memory_space<smem>>
    %cst_120 = arith.constant 0.000000e+00 : f32
    %837 = vector.broadcast %cst_120 : f32 to vector<2x1xf32>
    %cst_121 = arith.constant 0.000000e+00 : f32
    %838 = vector.broadcast %cst_121 : f32 to vector<2x1xf32>
    %839 = vector.extract_strided_slice %814 {offsets = [0, 0, 0], sizes = [1, 2, 1], strides = [1, 1, 1]} : vector<16x2x1xf32> to vector<1x2x1xf32>
    %840 = vector.shape_cast %839 : vector<1x2x1xf32> to vector<2x1xf32>
    %841 = vector.broadcast %833 : f32 to vector<2x1xf32>
    %842 = arith.mulf %837, %841 : vector<2x1xf32>
    %843 = arith.addf %840, %842 : vector<2x1xf32>
    %844 = arith.negf %843 : vector<2x1xf32>
    %845 = math.exp %844 : vector<2x1xf32>
    %cst_122 = arith.constant 1.000000e+00 : f32
    %846 = vector.broadcast %cst_122 : f32 to vector<2x1xf32>
    %847 = arith.addf %846, %845 : vector<2x1xf32>
    %848 = arith.divf %846, %847 : vector<2x1xf32>
    %849 = vector.extract_strided_slice %820 {offsets = [0, 0, 0], sizes = [1, 2, 1], strides = [1, 1, 1]} : vector<16x2x1xf32> to vector<1x2x1xf32>
    %850 = vector.shape_cast %849 : vector<1x2x1xf32> to vector<2x1xf32>
    %851 = vector.broadcast %834 : f32 to vector<2x1xf32>
    %852 = arith.mulf %837, %851 : vector<2x1xf32>
    %853 = arith.addf %850, %852 : vector<2x1xf32>
    %854 = arith.negf %853 : vector<2x1xf32>
    %855 = math.exp %854 : vector<2x1xf32>
    %cst_123 = arith.constant 1.000000e+00 : f32
    %856 = vector.broadcast %cst_123 : f32 to vector<2x1xf32>
    %857 = arith.addf %856, %855 : vector<2x1xf32>
    %858 = arith.divf %856, %857 : vector<2x1xf32>
    %859 = vector.extract_strided_slice %826 {offsets = [0, 0, 0], sizes = [1, 2, 1], strides = [1, 1, 1]} : vector<16x2x1xf32> to vector<1x2x1xf32>
    %860 = vector.shape_cast %859 : vector<1x2x1xf32> to vector<2x1xf32>
    %861 = vector.broadcast %835 : f32 to vector<2x1xf32>
    %862 = arith.mulf %837, %861 : vector<2x1xf32>
    %863 = arith.addf %860, %862 : vector<2x1xf32>
    %864 = math.tanh %863 : vector<2x1xf32>
    %865 = vector.extract_strided_slice %832 {offsets = [0, 0, 0], sizes = [1, 2, 1], strides = [1, 1, 1]} : vector<16x2x1xf32> to vector<1x2x1xf32>
    %866 = vector.shape_cast %865 : vector<1x2x1xf32> to vector<2x1xf32>
    %867 = vector.broadcast %836 : f32 to vector<2x1xf32>
    %868 = arith.mulf %837, %867 : vector<2x1xf32>
    %869 = arith.addf %866, %868 : vector<2x1xf32>
    %870 = arith.negf %869 : vector<2x1xf32>
    %871 = math.exp %870 : vector<2x1xf32>
    %cst_124 = arith.constant 1.000000e+00 : f32
    %872 = vector.broadcast %cst_124 : f32 to vector<2x1xf32>
    %873 = arith.addf %872, %871 : vector<2x1xf32>
    %874 = arith.divf %872, %873 : vector<2x1xf32>
    %875 = arith.mulf %858, %838 : vector<2x1xf32>
    %876 = arith.mulf %848, %864 : vector<2x1xf32>
    %877 = arith.addf %875, %876 : vector<2x1xf32>
    %878 = math.tanh %877 : vector<2x1xf32>
    %879 = arith.mulf %874, %878 : vector<2x1xf32>
    %880 = vector.extract_strided_slice %814 {offsets = [1, 0, 0], sizes = [1, 2, 1], strides = [1, 1, 1]} : vector<16x2x1xf32> to vector<1x2x1xf32>
    %881 = vector.shape_cast %880 : vector<1x2x1xf32> to vector<2x1xf32>
    %882 = vector.broadcast %833 : f32 to vector<2x1xf32>
    %883 = arith.mulf %879, %882 : vector<2x1xf32>
    %884 = arith.addf %881, %883 : vector<2x1xf32>
    %885 = arith.negf %884 : vector<2x1xf32>
    %886 = math.exp %885 : vector<2x1xf32>
    %cst_125 = arith.constant 1.000000e+00 : f32
    %887 = vector.broadcast %cst_125 : f32 to vector<2x1xf32>
    %888 = arith.addf %887, %886 : vector<2x1xf32>
    %889 = arith.divf %887, %888 : vector<2x1xf32>
    %890 = vector.extract_strided_slice %820 {offsets = [1, 0, 0], sizes = [1, 2, 1], strides = [1, 1, 1]} : vector<16x2x1xf32> to vector<1x2x1xf32>
    %891 = vector.shape_cast %890 : vector<1x2x1xf32> to vector<2x1xf32>
    %892 = vector.broadcast %834 : f32 to vector<2x1xf32>
    %893 = arith.mulf %879, %892 : vector<2x1xf32>
    %894 = arith.addf %891, %893 : vector<2x1xf32>
    %895 = arith.negf %894 : vector<2x1xf32>
    %896 = math.exp %895 : vector<2x1xf32>
    %cst_126 = arith.constant 1.000000e+00 : f32
    %897 = vector.broadcast %cst_126 : f32 to vector<2x1xf32>
    %898 = arith.addf %897, %896 : vector<2x1xf32>
    %899 = arith.divf %897, %898 : vector<2x1xf32>
    %900 = vector.extract_strided_slice %826 {offsets = [1, 0, 0], sizes = [1, 2, 1], strides = [1, 1, 1]} : vector<16x2x1xf32> to vector<1x2x1xf32>
    %901 = vector.shape_cast %900 : vector<1x2x1xf32> to vector<2x1xf32>
    %902 = vector.broadcast %835 : f32 to vector<2x1xf32>
    %903 = arith.mulf %879, %902 : vector<2x1xf32>
    %904 = arith.addf %901, %903 : vector<2x1xf32>
    %905 = math.tanh %904 : vector<2x1xf32>
    %906 = vector.extract_strided_slice %832 {offsets = [1, 0, 0], sizes = [1, 2, 1], strides = [1, 1, 1]} : vector<16x2x1xf32> to vector<1x2x1xf32>
    %907 = vector.shape_cast %906 : vector<1x2x1xf32> to vector<2x1xf32>
    %908 = vector.broadcast %836 : f32 to vector<2x1xf32>
    %909 = arith.mulf %879, %908 : vector<2x1xf32>
    %910 = arith.addf %907, %909 : vector<2x1xf32>
    %911 = arith.negf %910 : vector<2x1xf32>
    %912 = math.exp %911 : vector<2x1xf32>
    %cst_127 = arith.constant 1.000000e+00 : f32
    %913 = vector.broadcast %cst_127 : f32 to vector<2x1xf32>
    %914 = arith.addf %913, %912 : vector<2x1xf32>
    %915 = arith.divf %913, %914 : vector<2x1xf32>
    %916 = arith.mulf %899, %877 : vector<2x1xf32>
    %917 = arith.mulf %889, %905 : vector<2x1xf32>
    %918 = arith.addf %916, %917 : vector<2x1xf32>
    %919 = math.tanh %918 : vector<2x1xf32>
    %920 = arith.mulf %915, %919 : vector<2x1xf32>
    %921 = vector.extract_strided_slice %814 {offsets = [2, 0, 0], sizes = [1, 2, 1], strides = [1, 1, 1]} : vector<16x2x1xf32> to vector<1x2x1xf32>
    %922 = vector.shape_cast %921 : vector<1x2x1xf32> to vector<2x1xf32>
    %923 = vector.broadcast %833 : f32 to vector<2x1xf32>
    %924 = arith.mulf %920, %923 : vector<2x1xf32>
    %925 = arith.addf %922, %924 : vector<2x1xf32>
    %926 = arith.negf %925 : vector<2x1xf32>
    %927 = math.exp %926 : vector<2x1xf32>
    %cst_128 = arith.constant 1.000000e+00 : f32
    %928 = vector.broadcast %cst_128 : f32 to vector<2x1xf32>
    %929 = arith.addf %928, %927 : vector<2x1xf32>
    %930 = arith.divf %928, %929 : vector<2x1xf32>
    %931 = vector.extract_strided_slice %820 {offsets = [2, 0, 0], sizes = [1, 2, 1], strides = [1, 1, 1]} : vector<16x2x1xf32> to vector<1x2x1xf32>
    %932 = vector.shape_cast %931 : vector<1x2x1xf32> to vector<2x1xf32>
    %933 = vector.broadcast %834 : f32 to vector<2x1xf32>
    %934 = arith.mulf %920, %933 : vector<2x1xf32>
    %935 = arith.addf %932, %934 : vector<2x1xf32>
    %936 = arith.negf %935 : vector<2x1xf32>
    %937 = math.exp %936 : vector<2x1xf32>
    %cst_129 = arith.constant 1.000000e+00 : f32
    %938 = vector.broadcast %cst_129 : f32 to vector<2x1xf32>
    %939 = arith.addf %938, %937 : vector<2x1xf32>
    %940 = arith.divf %938, %939 : vector<2x1xf32>
    %941 = vector.extract_strided_slice %826 {offsets = [2, 0, 0], sizes = [1, 2, 1], strides = [1, 1, 1]} : vector<16x2x1xf32> to vector<1x2x1xf32>
    %942 = vector.shape_cast %941 : vector<1x2x1xf32> to vector<2x1xf32>
    %943 = vector.broadcast %835 : f32 to vector<2x1xf32>
    %944 = arith.mulf %920, %943 : vector<2x1xf32>
    %945 = arith.addf %942, %944 : vector<2x1xf32>
    %946 = math.tanh %945 : vector<2x1xf32>
    %947 = vector.extract_strided_slice %832 {offsets = [2, 0, 0], sizes = [1, 2, 1], strides = [1, 1, 1]} : vector<16x2x1xf32> to vector<1x2x1xf32>
    %948 = vector.shape_cast %947 : vector<1x2x1xf32> to vector<2x1xf32>
    %949 = vector.broadcast %836 : f32 to vector<2x1xf32>
    %950 = arith.mulf %920, %949 : vector<2x1xf32>
    %951 = arith.addf %948, %950 : vector<2x1xf32>
    %952 = arith.negf %951 : vector<2x1xf32>
    %953 = math.exp %952 : vector<2x1xf32>
    %cst_130 = arith.constant 1.000000e+00 : f32
    %954 = vector.broadcast %cst_130 : f32 to vector<2x1xf32>
    %955 = arith.addf %954, %953 : vector<2x1xf32>
    %956 = arith.divf %954, %955 : vector<2x1xf32>
    %957 = arith.mulf %940, %918 : vector<2x1xf32>
    %958 = arith.mulf %930, %946 : vector<2x1xf32>
    %959 = arith.addf %957, %958 : vector<2x1xf32>
    %960 = math.tanh %959 : vector<2x1xf32>
    %961 = arith.mulf %956, %960 : vector<2x1xf32>
    %962 = vector.extract_strided_slice %814 {offsets = [3, 0, 0], sizes = [1, 2, 1], strides = [1, 1, 1]} : vector<16x2x1xf32> to vector<1x2x1xf32>
    %963 = vector.shape_cast %962 : vector<1x2x1xf32> to vector<2x1xf32>
    %964 = vector.broadcast %833 : f32 to vector<2x1xf32>
    %965 = arith.mulf %961, %964 : vector<2x1xf32>
    %966 = arith.addf %963, %965 : vector<2x1xf32>
    %967 = arith.negf %966 : vector<2x1xf32>
    %968 = math.exp %967 : vector<2x1xf32>
    %cst_131 = arith.constant 1.000000e+00 : f32
    %969 = vector.broadcast %cst_131 : f32 to vector<2x1xf32>
    %970 = arith.addf %969, %968 : vector<2x1xf32>
    %971 = arith.divf %969, %970 : vector<2x1xf32>
    %972 = vector.extract_strided_slice %820 {offsets = [3, 0, 0], sizes = [1, 2, 1], strides = [1, 1, 1]} : vector<16x2x1xf32> to vector<1x2x1xf32>
    %973 = vector.shape_cast %972 : vector<1x2x1xf32> to vector<2x1xf32>
    %974 = vector.broadcast %834 : f32 to vector<2x1xf32>
    %975 = arith.mulf %961, %974 : vector<2x1xf32>
    %976 = arith.addf %973, %975 : vector<2x1xf32>
    %977 = arith.negf %976 : vector<2x1xf32>
    %978 = math.exp %977 : vector<2x1xf32>
    %cst_132 = arith.constant 1.000000e+00 : f32
    %979 = vector.broadcast %cst_132 : f32 to vector<2x1xf32>
    %980 = arith.addf %979, %978 : vector<2x1xf32>
    %981 = arith.divf %979, %980 : vector<2x1xf32>
    %982 = vector.extract_strided_slice %826 {offsets = [3, 0, 0], sizes = [1, 2, 1], strides = [1, 1, 1]} : vector<16x2x1xf32> to vector<1x2x1xf32>
    %983 = vector.shape_cast %982 : vector<1x2x1xf32> to vector<2x1xf32>
    %984 = vector.broadcast %835 : f32 to vector<2x1xf32>
    %985 = arith.mulf %961, %984 : vector<2x1xf32>
    %986 = arith.addf %983, %985 : vector<2x1xf32>
    %987 = math.tanh %986 : vector<2x1xf32>
    %988 = vector.extract_strided_slice %832 {offsets = [3, 0, 0], sizes = [1, 2, 1], strides = [1, 1, 1]} : vector<16x2x1xf32> to vector<1x2x1xf32>
    %989 = vector.shape_cast %988 : vector<1x2x1xf32> to vector<2x1xf32>
    %990 = vector.broadcast %836 : f32 to vector<2x1xf32>
    %991 = arith.mulf %961, %990 : vector<2x1xf32>
    %992 = arith.addf %989, %991 : vector<2x1xf32>
    %993 = arith.negf %992 : vector<2x1xf32>
    %994 = math.exp %993 : vector<2x1xf32>
    %cst_133 = arith.constant 1.000000e+00 : f32
    %995 = vector.broadcast %cst_133 : f32 to vector<2x1xf32>
    %996 = arith.addf %995, %994 : vector<2x1xf32>
    %997 = arith.divf %995, %996 : vector<2x1xf32>
    %998 = arith.mulf %981, %959 : vector<2x1xf32>
    %999 = arith.mulf %971, %987 : vector<2x1xf32>
    %1000 = arith.addf %998, %999 : vector<2x1xf32>
    %1001 = math.tanh %1000 : vector<2x1xf32>
    %1002 = arith.mulf %997, %1001 : vector<2x1xf32>
    %1003 = vector.extract_strided_slice %814 {offsets = [4, 0, 0], sizes = [1, 2, 1], strides = [1, 1, 1]} : vector<16x2x1xf32> to vector<1x2x1xf32>
    %1004 = vector.shape_cast %1003 : vector<1x2x1xf32> to vector<2x1xf32>
    %1005 = vector.broadcast %833 : f32 to vector<2x1xf32>
    %1006 = arith.mulf %1002, %1005 : vector<2x1xf32>
    %1007 = arith.addf %1004, %1006 : vector<2x1xf32>
    %1008 = arith.negf %1007 : vector<2x1xf32>
    %1009 = math.exp %1008 : vector<2x1xf32>
    %cst_134 = arith.constant 1.000000e+00 : f32
    %1010 = vector.broadcast %cst_134 : f32 to vector<2x1xf32>
    %1011 = arith.addf %1010, %1009 : vector<2x1xf32>
    %1012 = arith.divf %1010, %1011 : vector<2x1xf32>
    %1013 = vector.extract_strided_slice %820 {offsets = [4, 0, 0], sizes = [1, 2, 1], strides = [1, 1, 1]} : vector<16x2x1xf32> to vector<1x2x1xf32>
    %1014 = vector.shape_cast %1013 : vector<1x2x1xf32> to vector<2x1xf32>
    %1015 = vector.broadcast %834 : f32 to vector<2x1xf32>
    %1016 = arith.mulf %1002, %1015 : vector<2x1xf32>
    %1017 = arith.addf %1014, %1016 : vector<2x1xf32>
    %1018 = arith.negf %1017 : vector<2x1xf32>
    %1019 = math.exp %1018 : vector<2x1xf32>
    %cst_135 = arith.constant 1.000000e+00 : f32
    %1020 = vector.broadcast %cst_135 : f32 to vector<2x1xf32>
    %1021 = arith.addf %1020, %1019 : vector<2x1xf32>
    %1022 = arith.divf %1020, %1021 : vector<2x1xf32>
    %1023 = vector.extract_strided_slice %826 {offsets = [4, 0, 0], sizes = [1, 2, 1], strides = [1, 1, 1]} : vector<16x2x1xf32> to vector<1x2x1xf32>
    %1024 = vector.shape_cast %1023 : vector<1x2x1xf32> to vector<2x1xf32>
    %1025 = vector.broadcast %835 : f32 to vector<2x1xf32>
    %1026 = arith.mulf %1002, %1025 : vector<2x1xf32>
    %1027 = arith.addf %1024, %1026 : vector<2x1xf32>
    %1028 = math.tanh %1027 : vector<2x1xf32>
    %1029 = vector.extract_strided_slice %832 {offsets = [4, 0, 0], sizes = [1, 2, 1], strides = [1, 1, 1]} : vector<16x2x1xf32> to vector<1x2x1xf32>
    %1030 = vector.shape_cast %1029 : vector<1x2x1xf32> to vector<2x1xf32>
    %1031 = vector.broadcast %836 : f32 to vector<2x1xf32>
    %1032 = arith.mulf %1002, %1031 : vector<2x1xf32>
    %1033 = arith.addf %1030, %1032 : vector<2x1xf32>
    %1034 = arith.negf %1033 : vector<2x1xf32>
    %1035 = math.exp %1034 : vector<2x1xf32>
    %cst_136 = arith.constant 1.000000e+00 : f32
    %1036 = vector.broadcast %cst_136 : f32 to vector<2x1xf32>
    %1037 = arith.addf %1036, %1035 : vector<2x1xf32>
    %1038 = arith.divf %1036, %1037 : vector<2x1xf32>
    %1039 = arith.mulf %1022, %1000 : vector<2x1xf32>
    %1040 = arith.mulf %1012, %1028 : vector<2x1xf32>
    %1041 = arith.addf %1039, %1040 : vector<2x1xf32>
    %1042 = math.tanh %1041 : vector<2x1xf32>
    %1043 = arith.mulf %1038, %1042 : vector<2x1xf32>
    %1044 = vector.extract_strided_slice %814 {offsets = [5, 0, 0], sizes = [1, 2, 1], strides = [1, 1, 1]} : vector<16x2x1xf32> to vector<1x2x1xf32>
    %1045 = vector.shape_cast %1044 : vector<1x2x1xf32> to vector<2x1xf32>
    %1046 = vector.broadcast %833 : f32 to vector<2x1xf32>
    %1047 = arith.mulf %1043, %1046 : vector<2x1xf32>
    %1048 = arith.addf %1045, %1047 : vector<2x1xf32>
    %1049 = arith.negf %1048 : vector<2x1xf32>
    %1050 = math.exp %1049 : vector<2x1xf32>
    %cst_137 = arith.constant 1.000000e+00 : f32
    %1051 = vector.broadcast %cst_137 : f32 to vector<2x1xf32>
    %1052 = arith.addf %1051, %1050 : vector<2x1xf32>
    %1053 = arith.divf %1051, %1052 : vector<2x1xf32>
    %1054 = vector.extract_strided_slice %820 {offsets = [5, 0, 0], sizes = [1, 2, 1], strides = [1, 1, 1]} : vector<16x2x1xf32> to vector<1x2x1xf32>
    %1055 = vector.shape_cast %1054 : vector<1x2x1xf32> to vector<2x1xf32>
    %1056 = vector.broadcast %834 : f32 to vector<2x1xf32>
    %1057 = arith.mulf %1043, %1056 : vector<2x1xf32>
    %1058 = arith.addf %1055, %1057 : vector<2x1xf32>
    %1059 = arith.negf %1058 : vector<2x1xf32>
    %1060 = math.exp %1059 : vector<2x1xf32>
    %cst_138 = arith.constant 1.000000e+00 : f32
    %1061 = vector.broadcast %cst_138 : f32 to vector<2x1xf32>
    %1062 = arith.addf %1061, %1060 : vector<2x1xf32>
    %1063 = arith.divf %1061, %1062 : vector<2x1xf32>
    %1064 = vector.extract_strided_slice %826 {offsets = [5, 0, 0], sizes = [1, 2, 1], strides = [1, 1, 1]} : vector<16x2x1xf32> to vector<1x2x1xf32>
    %1065 = vector.shape_cast %1064 : vector<1x2x1xf32> to vector<2x1xf32>
    %1066 = vector.broadcast %835 : f32 to vector<2x1xf32>
    %1067 = arith.mulf %1043, %1066 : vector<2x1xf32>
    %1068 = arith.addf %1065, %1067 : vector<2x1xf32>
    %1069 = math.tanh %1068 : vector<2x1xf32>
    %1070 = vector.extract_strided_slice %832 {offsets = [5, 0, 0], sizes = [1, 2, 1], strides = [1, 1, 1]} : vector<16x2x1xf32> to vector<1x2x1xf32>
    %1071 = vector.shape_cast %1070 : vector<1x2x1xf32> to vector<2x1xf32>
    %1072 = vector.broadcast %836 : f32 to vector<2x1xf32>
    %1073 = arith.mulf %1043, %1072 : vector<2x1xf32>
    %1074 = arith.addf %1071, %1073 : vector<2x1xf32>
    %1075 = arith.negf %1074 : vector<2x1xf32>
    %1076 = math.exp %1075 : vector<2x1xf32>
    %cst_139 = arith.constant 1.000000e+00 : f32
    %1077 = vector.broadcast %cst_139 : f32 to vector<2x1xf32>
    %1078 = arith.addf %1077, %1076 : vector<2x1xf32>
    %1079 = arith.divf %1077, %1078 : vector<2x1xf32>
    %1080 = arith.mulf %1063, %1041 : vector<2x1xf32>
    %1081 = arith.mulf %1053, %1069 : vector<2x1xf32>
    %1082 = arith.addf %1080, %1081 : vector<2x1xf32>
    %1083 = math.tanh %1082 : vector<2x1xf32>
    %1084 = arith.mulf %1079, %1083 : vector<2x1xf32>
    %1085 = vector.extract_strided_slice %814 {offsets = [6, 0, 0], sizes = [1, 2, 1], strides = [1, 1, 1]} : vector<16x2x1xf32> to vector<1x2x1xf32>
    %1086 = vector.shape_cast %1085 : vector<1x2x1xf32> to vector<2x1xf32>
    %1087 = vector.broadcast %833 : f32 to vector<2x1xf32>
    %1088 = arith.mulf %1084, %1087 : vector<2x1xf32>
    %1089 = arith.addf %1086, %1088 : vector<2x1xf32>
    %1090 = arith.negf %1089 : vector<2x1xf32>
    %1091 = math.exp %1090 : vector<2x1xf32>
    %cst_140 = arith.constant 1.000000e+00 : f32
    %1092 = vector.broadcast %cst_140 : f32 to vector<2x1xf32>
    %1093 = arith.addf %1092, %1091 : vector<2x1xf32>
    %1094 = arith.divf %1092, %1093 : vector<2x1xf32>
    %1095 = vector.extract_strided_slice %820 {offsets = [6, 0, 0], sizes = [1, 2, 1], strides = [1, 1, 1]} : vector<16x2x1xf32> to vector<1x2x1xf32>
    %1096 = vector.shape_cast %1095 : vector<1x2x1xf32> to vector<2x1xf32>
    %1097 = vector.broadcast %834 : f32 to vector<2x1xf32>
    %1098 = arith.mulf %1084, %1097 : vector<2x1xf32>
    %1099 = arith.addf %1096, %1098 : vector<2x1xf32>
    %1100 = arith.negf %1099 : vector<2x1xf32>
    %1101 = math.exp %1100 : vector<2x1xf32>
    %cst_141 = arith.constant 1.000000e+00 : f32
    %1102 = vector.broadcast %cst_141 : f32 to vector<2x1xf32>
    %1103 = arith.addf %1102, %1101 : vector<2x1xf32>
    %1104 = arith.divf %1102, %1103 : vector<2x1xf32>
    %1105 = vector.extract_strided_slice %826 {offsets = [6, 0, 0], sizes = [1, 2, 1], strides = [1, 1, 1]} : vector<16x2x1xf32> to vector<1x2x1xf32>
    %1106 = vector.shape_cast %1105 : vector<1x2x1xf32> to vector<2x1xf32>
    %1107 = vector.broadcast %835 : f32 to vector<2x1xf32>
    %1108 = arith.mulf %1084, %1107 : vector<2x1xf32>
    %1109 = arith.addf %1106, %1108 : vector<2x1xf32>
    %1110 = math.tanh %1109 : vector<2x1xf32>
    %1111 = vector.extract_strided_slice %832 {offsets = [6, 0, 0], sizes = [1, 2, 1], strides = [1, 1, 1]} : vector<16x2x1xf32> to vector<1x2x1xf32>
    %1112 = vector.shape_cast %1111 : vector<1x2x1xf32> to vector<2x1xf32>
    %1113 = vector.broadcast %836 : f32 to vector<2x1xf32>
    %1114 = arith.mulf %1084, %1113 : vector<2x1xf32>
    %1115 = arith.addf %1112, %1114 : vector<2x1xf32>
    %1116 = arith.negf %1115 : vector<2x1xf32>
    %1117 = math.exp %1116 : vector<2x1xf32>
    %cst_142 = arith.constant 1.000000e+00 : f32
    %1118 = vector.broadcast %cst_142 : f32 to vector<2x1xf32>
    %1119 = arith.addf %1118, %1117 : vector<2x1xf32>
    %1120 = arith.divf %1118, %1119 : vector<2x1xf32>
    %1121 = arith.mulf %1104, %1082 : vector<2x1xf32>
    %1122 = arith.mulf %1094, %1110 : vector<2x1xf32>
    %1123 = arith.addf %1121, %1122 : vector<2x1xf32>
    %1124 = math.tanh %1123 : vector<2x1xf32>
    %1125 = arith.mulf %1120, %1124 : vector<2x1xf32>
    %1126 = vector.extract_strided_slice %814 {offsets = [7, 0, 0], sizes = [1, 2, 1], strides = [1, 1, 1]} : vector<16x2x1xf32> to vector<1x2x1xf32>
    %1127 = vector.shape_cast %1126 : vector<1x2x1xf32> to vector<2x1xf32>
    %1128 = vector.broadcast %833 : f32 to vector<2x1xf32>
    %1129 = arith.mulf %1125, %1128 : vector<2x1xf32>
    %1130 = arith.addf %1127, %1129 : vector<2x1xf32>
    %1131 = arith.negf %1130 : vector<2x1xf32>
    %1132 = math.exp %1131 : vector<2x1xf32>
    %cst_143 = arith.constant 1.000000e+00 : f32
    %1133 = vector.broadcast %cst_143 : f32 to vector<2x1xf32>
    %1134 = arith.addf %1133, %1132 : vector<2x1xf32>
    %1135 = arith.divf %1133, %1134 : vector<2x1xf32>
    %1136 = vector.extract_strided_slice %820 {offsets = [7, 0, 0], sizes = [1, 2, 1], strides = [1, 1, 1]} : vector<16x2x1xf32> to vector<1x2x1xf32>
    %1137 = vector.shape_cast %1136 : vector<1x2x1xf32> to vector<2x1xf32>
    %1138 = vector.broadcast %834 : f32 to vector<2x1xf32>
    %1139 = arith.mulf %1125, %1138 : vector<2x1xf32>
    %1140 = arith.addf %1137, %1139 : vector<2x1xf32>
    %1141 = arith.negf %1140 : vector<2x1xf32>
    %1142 = math.exp %1141 : vector<2x1xf32>
    %cst_144 = arith.constant 1.000000e+00 : f32
    %1143 = vector.broadcast %cst_144 : f32 to vector<2x1xf32>
    %1144 = arith.addf %1143, %1142 : vector<2x1xf32>
    %1145 = arith.divf %1143, %1144 : vector<2x1xf32>
    %1146 = vector.extract_strided_slice %826 {offsets = [7, 0, 0], sizes = [1, 2, 1], strides = [1, 1, 1]} : vector<16x2x1xf32> to vector<1x2x1xf32>
    %1147 = vector.shape_cast %1146 : vector<1x2x1xf32> to vector<2x1xf32>
    %1148 = vector.broadcast %835 : f32 to vector<2x1xf32>
    %1149 = arith.mulf %1125, %1148 : vector<2x1xf32>
    %1150 = arith.addf %1147, %1149 : vector<2x1xf32>
    %1151 = math.tanh %1150 : vector<2x1xf32>
    %1152 = vector.extract_strided_slice %832 {offsets = [7, 0, 0], sizes = [1, 2, 1], strides = [1, 1, 1]} : vector<16x2x1xf32> to vector<1x2x1xf32>
    %1153 = vector.shape_cast %1152 : vector<1x2x1xf32> to vector<2x1xf32>
    %1154 = vector.broadcast %836 : f32 to vector<2x1xf32>
    %1155 = arith.mulf %1125, %1154 : vector<2x1xf32>
    %1156 = arith.addf %1153, %1155 : vector<2x1xf32>
    %1157 = arith.negf %1156 : vector<2x1xf32>
    %1158 = math.exp %1157 : vector<2x1xf32>
    %cst_145 = arith.constant 1.000000e+00 : f32
    %1159 = vector.broadcast %cst_145 : f32 to vector<2x1xf32>
    %1160 = arith.addf %1159, %1158 : vector<2x1xf32>
    %1161 = arith.divf %1159, %1160 : vector<2x1xf32>
    %1162 = arith.mulf %1145, %1123 : vector<2x1xf32>
    %1163 = arith.mulf %1135, %1151 : vector<2x1xf32>
    %1164 = arith.addf %1162, %1163 : vector<2x1xf32>
    %1165 = math.tanh %1164 : vector<2x1xf32>
    %1166 = arith.mulf %1161, %1165 : vector<2x1xf32>
    %1167 = vector.extract_strided_slice %814 {offsets = [8, 0, 0], sizes = [1, 2, 1], strides = [1, 1, 1]} : vector<16x2x1xf32> to vector<1x2x1xf32>
    %1168 = vector.shape_cast %1167 : vector<1x2x1xf32> to vector<2x1xf32>
    %1169 = vector.broadcast %833 : f32 to vector<2x1xf32>
    %1170 = arith.mulf %1166, %1169 : vector<2x1xf32>
    %1171 = arith.addf %1168, %1170 : vector<2x1xf32>
    %1172 = arith.negf %1171 : vector<2x1xf32>
    %1173 = math.exp %1172 : vector<2x1xf32>
    %cst_146 = arith.constant 1.000000e+00 : f32
    %1174 = vector.broadcast %cst_146 : f32 to vector<2x1xf32>
    %1175 = arith.addf %1174, %1173 : vector<2x1xf32>
    %1176 = arith.divf %1174, %1175 : vector<2x1xf32>
    %1177 = vector.extract_strided_slice %820 {offsets = [8, 0, 0], sizes = [1, 2, 1], strides = [1, 1, 1]} : vector<16x2x1xf32> to vector<1x2x1xf32>
    %1178 = vector.shape_cast %1177 : vector<1x2x1xf32> to vector<2x1xf32>
    %1179 = vector.broadcast %834 : f32 to vector<2x1xf32>
    %1180 = arith.mulf %1166, %1179 : vector<2x1xf32>
    %1181 = arith.addf %1178, %1180 : vector<2x1xf32>
    %1182 = arith.negf %1181 : vector<2x1xf32>
    %1183 = math.exp %1182 : vector<2x1xf32>
    %cst_147 = arith.constant 1.000000e+00 : f32
    %1184 = vector.broadcast %cst_147 : f32 to vector<2x1xf32>
    %1185 = arith.addf %1184, %1183 : vector<2x1xf32>
    %1186 = arith.divf %1184, %1185 : vector<2x1xf32>
    %1187 = vector.extract_strided_slice %826 {offsets = [8, 0, 0], sizes = [1, 2, 1], strides = [1, 1, 1]} : vector<16x2x1xf32> to vector<1x2x1xf32>
    %1188 = vector.shape_cast %1187 : vector<1x2x1xf32> to vector<2x1xf32>
    %1189 = vector.broadcast %835 : f32 to vector<2x1xf32>
    %1190 = arith.mulf %1166, %1189 : vector<2x1xf32>
    %1191 = arith.addf %1188, %1190 : vector<2x1xf32>
    %1192 = math.tanh %1191 : vector<2x1xf32>
    %1193 = vector.extract_strided_slice %832 {offsets = [8, 0, 0], sizes = [1, 2, 1], strides = [1, 1, 1]} : vector<16x2x1xf32> to vector<1x2x1xf32>
    %1194 = vector.shape_cast %1193 : vector<1x2x1xf32> to vector<2x1xf32>
    %1195 = vector.broadcast %836 : f32 to vector<2x1xf32>
    %1196 = arith.mulf %1166, %1195 : vector<2x1xf32>
    %1197 = arith.addf %1194, %1196 : vector<2x1xf32>
    %1198 = arith.negf %1197 : vector<2x1xf32>
    %1199 = math.exp %1198 : vector<2x1xf32>
    %cst_148 = arith.constant 1.000000e+00 : f32
    %1200 = vector.broadcast %cst_148 : f32 to vector<2x1xf32>
    %1201 = arith.addf %1200, %1199 : vector<2x1xf32>
    %1202 = arith.divf %1200, %1201 : vector<2x1xf32>
    %1203 = arith.mulf %1186, %1164 : vector<2x1xf32>
    %1204 = arith.mulf %1176, %1192 : vector<2x1xf32>
    %1205 = arith.addf %1203, %1204 : vector<2x1xf32>
    %1206 = math.tanh %1205 : vector<2x1xf32>
    %1207 = arith.mulf %1202, %1206 : vector<2x1xf32>
    %1208 = vector.extract_strided_slice %814 {offsets = [9, 0, 0], sizes = [1, 2, 1], strides = [1, 1, 1]} : vector<16x2x1xf32> to vector<1x2x1xf32>
    %1209 = vector.shape_cast %1208 : vector<1x2x1xf32> to vector<2x1xf32>
    %1210 = vector.broadcast %833 : f32 to vector<2x1xf32>
    %1211 = arith.mulf %1207, %1210 : vector<2x1xf32>
    %1212 = arith.addf %1209, %1211 : vector<2x1xf32>
    %1213 = arith.negf %1212 : vector<2x1xf32>
    %1214 = math.exp %1213 : vector<2x1xf32>
    %cst_149 = arith.constant 1.000000e+00 : f32
    %1215 = vector.broadcast %cst_149 : f32 to vector<2x1xf32>
    %1216 = arith.addf %1215, %1214 : vector<2x1xf32>
    %1217 = arith.divf %1215, %1216 : vector<2x1xf32>
    %1218 = vector.extract_strided_slice %820 {offsets = [9, 0, 0], sizes = [1, 2, 1], strides = [1, 1, 1]} : vector<16x2x1xf32> to vector<1x2x1xf32>
    %1219 = vector.shape_cast %1218 : vector<1x2x1xf32> to vector<2x1xf32>
    %1220 = vector.broadcast %834 : f32 to vector<2x1xf32>
    %1221 = arith.mulf %1207, %1220 : vector<2x1xf32>
    %1222 = arith.addf %1219, %1221 : vector<2x1xf32>
    %1223 = arith.negf %1222 : vector<2x1xf32>
    %1224 = math.exp %1223 : vector<2x1xf32>
    %cst_150 = arith.constant 1.000000e+00 : f32
    %1225 = vector.broadcast %cst_150 : f32 to vector<2x1xf32>
    %1226 = arith.addf %1225, %1224 : vector<2x1xf32>
    %1227 = arith.divf %1225, %1226 : vector<2x1xf32>
    %1228 = vector.extract_strided_slice %826 {offsets = [9, 0, 0], sizes = [1, 2, 1], strides = [1, 1, 1]} : vector<16x2x1xf32> to vector<1x2x1xf32>
    %1229 = vector.shape_cast %1228 : vector<1x2x1xf32> to vector<2x1xf32>
    %1230 = vector.broadcast %835 : f32 to vector<2x1xf32>
    %1231 = arith.mulf %1207, %1230 : vector<2x1xf32>
    %1232 = arith.addf %1229, %1231 : vector<2x1xf32>
    %1233 = math.tanh %1232 : vector<2x1xf32>
    %1234 = vector.extract_strided_slice %832 {offsets = [9, 0, 0], sizes = [1, 2, 1], strides = [1, 1, 1]} : vector<16x2x1xf32> to vector<1x2x1xf32>
    %1235 = vector.shape_cast %1234 : vector<1x2x1xf32> to vector<2x1xf32>
    %1236 = vector.broadcast %836 : f32 to vector<2x1xf32>
    %1237 = arith.mulf %1207, %1236 : vector<2x1xf32>
    %1238 = arith.addf %1235, %1237 : vector<2x1xf32>
    %1239 = arith.negf %1238 : vector<2x1xf32>
    %1240 = math.exp %1239 : vector<2x1xf32>
    %cst_151 = arith.constant 1.000000e+00 : f32
    %1241 = vector.broadcast %cst_151 : f32 to vector<2x1xf32>
    %1242 = arith.addf %1241, %1240 : vector<2x1xf32>
    %1243 = arith.divf %1241, %1242 : vector<2x1xf32>
    %1244 = arith.mulf %1227, %1205 : vector<2x1xf32>
    %1245 = arith.mulf %1217, %1233 : vector<2x1xf32>
    %1246 = arith.addf %1244, %1245 : vector<2x1xf32>
    %1247 = math.tanh %1246 : vector<2x1xf32>
    %1248 = arith.mulf %1243, %1247 : vector<2x1xf32>
    %1249 = vector.extract_strided_slice %814 {offsets = [10, 0, 0], sizes = [1, 2, 1], strides = [1, 1, 1]} : vector<16x2x1xf32> to vector<1x2x1xf32>
    %1250 = vector.shape_cast %1249 : vector<1x2x1xf32> to vector<2x1xf32>
    %1251 = vector.broadcast %833 : f32 to vector<2x1xf32>
    %1252 = arith.mulf %1248, %1251 : vector<2x1xf32>
    %1253 = arith.addf %1250, %1252 : vector<2x1xf32>
    %1254 = arith.negf %1253 : vector<2x1xf32>
    %1255 = math.exp %1254 : vector<2x1xf32>
    %cst_152 = arith.constant 1.000000e+00 : f32
    %1256 = vector.broadcast %cst_152 : f32 to vector<2x1xf32>
    %1257 = arith.addf %1256, %1255 : vector<2x1xf32>
    %1258 = arith.divf %1256, %1257 : vector<2x1xf32>
    %1259 = vector.extract_strided_slice %820 {offsets = [10, 0, 0], sizes = [1, 2, 1], strides = [1, 1, 1]} : vector<16x2x1xf32> to vector<1x2x1xf32>
    %1260 = vector.shape_cast %1259 : vector<1x2x1xf32> to vector<2x1xf32>
    %1261 = vector.broadcast %834 : f32 to vector<2x1xf32>
    %1262 = arith.mulf %1248, %1261 : vector<2x1xf32>
    %1263 = arith.addf %1260, %1262 : vector<2x1xf32>
    %1264 = arith.negf %1263 : vector<2x1xf32>
    %1265 = math.exp %1264 : vector<2x1xf32>
    %cst_153 = arith.constant 1.000000e+00 : f32
    %1266 = vector.broadcast %cst_153 : f32 to vector<2x1xf32>
    %1267 = arith.addf %1266, %1265 : vector<2x1xf32>
    %1268 = arith.divf %1266, %1267 : vector<2x1xf32>
    %1269 = vector.extract_strided_slice %826 {offsets = [10, 0, 0], sizes = [1, 2, 1], strides = [1, 1, 1]} : vector<16x2x1xf32> to vector<1x2x1xf32>
    %1270 = vector.shape_cast %1269 : vector<1x2x1xf32> to vector<2x1xf32>
    %1271 = vector.broadcast %835 : f32 to vector<2x1xf32>
    %1272 = arith.mulf %1248, %1271 : vector<2x1xf32>
    %1273 = arith.addf %1270, %1272 : vector<2x1xf32>
    %1274 = math.tanh %1273 : vector<2x1xf32>
    %1275 = vector.extract_strided_slice %832 {offsets = [10, 0, 0], sizes = [1, 2, 1], strides = [1, 1, 1]} : vector<16x2x1xf32> to vector<1x2x1xf32>
    %1276 = vector.shape_cast %1275 : vector<1x2x1xf32> to vector<2x1xf32>
    %1277 = vector.broadcast %836 : f32 to vector<2x1xf32>
    %1278 = arith.mulf %1248, %1277 : vector<2x1xf32>
    %1279 = arith.addf %1276, %1278 : vector<2x1xf32>
    %1280 = arith.negf %1279 : vector<2x1xf32>
    %1281 = math.exp %1280 : vector<2x1xf32>
    %cst_154 = arith.constant 1.000000e+00 : f32
    %1282 = vector.broadcast %cst_154 : f32 to vector<2x1xf32>
    %1283 = arith.addf %1282, %1281 : vector<2x1xf32>
    %1284 = arith.divf %1282, %1283 : vector<2x1xf32>
    %1285 = arith.mulf %1268, %1246 : vector<2x1xf32>
    %1286 = arith.mulf %1258, %1274 : vector<2x1xf32>
    %1287 = arith.addf %1285, %1286 : vector<2x1xf32>
    %1288 = math.tanh %1287 : vector<2x1xf32>
    %1289 = arith.mulf %1284, %1288 : vector<2x1xf32>
    %1290 = vector.extract_strided_slice %814 {offsets = [11, 0, 0], sizes = [1, 2, 1], strides = [1, 1, 1]} : vector<16x2x1xf32> to vector<1x2x1xf32>
    %1291 = vector.shape_cast %1290 : vector<1x2x1xf32> to vector<2x1xf32>
    %1292 = vector.broadcast %833 : f32 to vector<2x1xf32>
    %1293 = arith.mulf %1289, %1292 : vector<2x1xf32>
    %1294 = arith.addf %1291, %1293 : vector<2x1xf32>
    %1295 = arith.negf %1294 : vector<2x1xf32>
    %1296 = math.exp %1295 : vector<2x1xf32>
    %cst_155 = arith.constant 1.000000e+00 : f32
    %1297 = vector.broadcast %cst_155 : f32 to vector<2x1xf32>
    %1298 = arith.addf %1297, %1296 : vector<2x1xf32>
    %1299 = arith.divf %1297, %1298 : vector<2x1xf32>
    %1300 = vector.extract_strided_slice %820 {offsets = [11, 0, 0], sizes = [1, 2, 1], strides = [1, 1, 1]} : vector<16x2x1xf32> to vector<1x2x1xf32>
    %1301 = vector.shape_cast %1300 : vector<1x2x1xf32> to vector<2x1xf32>
    %1302 = vector.broadcast %834 : f32 to vector<2x1xf32>
    %1303 = arith.mulf %1289, %1302 : vector<2x1xf32>
    %1304 = arith.addf %1301, %1303 : vector<2x1xf32>
    %1305 = arith.negf %1304 : vector<2x1xf32>
    %1306 = math.exp %1305 : vector<2x1xf32>
    %cst_156 = arith.constant 1.000000e+00 : f32
    %1307 = vector.broadcast %cst_156 : f32 to vector<2x1xf32>
    %1308 = arith.addf %1307, %1306 : vector<2x1xf32>
    %1309 = arith.divf %1307, %1308 : vector<2x1xf32>
    %1310 = vector.extract_strided_slice %826 {offsets = [11, 0, 0], sizes = [1, 2, 1], strides = [1, 1, 1]} : vector<16x2x1xf32> to vector<1x2x1xf32>
    %1311 = vector.shape_cast %1310 : vector<1x2x1xf32> to vector<2x1xf32>
    %1312 = vector.broadcast %835 : f32 to vector<2x1xf32>
    %1313 = arith.mulf %1289, %1312 : vector<2x1xf32>
    %1314 = arith.addf %1311, %1313 : vector<2x1xf32>
    %1315 = math.tanh %1314 : vector<2x1xf32>
    %1316 = vector.extract_strided_slice %832 {offsets = [11, 0, 0], sizes = [1, 2, 1], strides = [1, 1, 1]} : vector<16x2x1xf32> to vector<1x2x1xf32>
    %1317 = vector.shape_cast %1316 : vector<1x2x1xf32> to vector<2x1xf32>
    %1318 = vector.broadcast %836 : f32 to vector<2x1xf32>
    %1319 = arith.mulf %1289, %1318 : vector<2x1xf32>
    %1320 = arith.addf %1317, %1319 : vector<2x1xf32>
    %1321 = arith.negf %1320 : vector<2x1xf32>
    %1322 = math.exp %1321 : vector<2x1xf32>
    %cst_157 = arith.constant 1.000000e+00 : f32
    %1323 = vector.broadcast %cst_157 : f32 to vector<2x1xf32>
    %1324 = arith.addf %1323, %1322 : vector<2x1xf32>
    %1325 = arith.divf %1323, %1324 : vector<2x1xf32>
    %1326 = arith.mulf %1309, %1287 : vector<2x1xf32>
    %1327 = arith.mulf %1299, %1315 : vector<2x1xf32>
    %1328 = arith.addf %1326, %1327 : vector<2x1xf32>
    %1329 = math.tanh %1328 : vector<2x1xf32>
    %1330 = arith.mulf %1325, %1329 : vector<2x1xf32>
    %1331 = vector.extract_strided_slice %814 {offsets = [12, 0, 0], sizes = [1, 2, 1], strides = [1, 1, 1]} : vector<16x2x1xf32> to vector<1x2x1xf32>
    %1332 = vector.shape_cast %1331 : vector<1x2x1xf32> to vector<2x1xf32>
    %1333 = vector.broadcast %833 : f32 to vector<2x1xf32>
    %1334 = arith.mulf %1330, %1333 : vector<2x1xf32>
    %1335 = arith.addf %1332, %1334 : vector<2x1xf32>
    %1336 = arith.negf %1335 : vector<2x1xf32>
    %1337 = math.exp %1336 : vector<2x1xf32>
    %cst_158 = arith.constant 1.000000e+00 : f32
    %1338 = vector.broadcast %cst_158 : f32 to vector<2x1xf32>
    %1339 = arith.addf %1338, %1337 : vector<2x1xf32>
    %1340 = arith.divf %1338, %1339 : vector<2x1xf32>
    %1341 = vector.extract_strided_slice %820 {offsets = [12, 0, 0], sizes = [1, 2, 1], strides = [1, 1, 1]} : vector<16x2x1xf32> to vector<1x2x1xf32>
    %1342 = vector.shape_cast %1341 : vector<1x2x1xf32> to vector<2x1xf32>
    %1343 = vector.broadcast %834 : f32 to vector<2x1xf32>
    %1344 = arith.mulf %1330, %1343 : vector<2x1xf32>
    %1345 = arith.addf %1342, %1344 : vector<2x1xf32>
    %1346 = arith.negf %1345 : vector<2x1xf32>
    %1347 = math.exp %1346 : vector<2x1xf32>
    %cst_159 = arith.constant 1.000000e+00 : f32
    %1348 = vector.broadcast %cst_159 : f32 to vector<2x1xf32>
    %1349 = arith.addf %1348, %1347 : vector<2x1xf32>
    %1350 = arith.divf %1348, %1349 : vector<2x1xf32>
    %1351 = vector.extract_strided_slice %826 {offsets = [12, 0, 0], sizes = [1, 2, 1], strides = [1, 1, 1]} : vector<16x2x1xf32> to vector<1x2x1xf32>
    %1352 = vector.shape_cast %1351 : vector<1x2x1xf32> to vector<2x1xf32>
    %1353 = vector.broadcast %835 : f32 to vector<2x1xf32>
    %1354 = arith.mulf %1330, %1353 : vector<2x1xf32>
    %1355 = arith.addf %1352, %1354 : vector<2x1xf32>
    %1356 = math.tanh %1355 : vector<2x1xf32>
    %1357 = vector.extract_strided_slice %832 {offsets = [12, 0, 0], sizes = [1, 2, 1], strides = [1, 1, 1]} : vector<16x2x1xf32> to vector<1x2x1xf32>
    %1358 = vector.shape_cast %1357 : vector<1x2x1xf32> to vector<2x1xf32>
    %1359 = vector.broadcast %836 : f32 to vector<2x1xf32>
    %1360 = arith.mulf %1330, %1359 : vector<2x1xf32>
    %1361 = arith.addf %1358, %1360 : vector<2x1xf32>
    %1362 = arith.negf %1361 : vector<2x1xf32>
    %1363 = math.exp %1362 : vector<2x1xf32>
    %cst_160 = arith.constant 1.000000e+00 : f32
    %1364 = vector.broadcast %cst_160 : f32 to vector<2x1xf32>
    %1365 = arith.addf %1364, %1363 : vector<2x1xf32>
    %1366 = arith.divf %1364, %1365 : vector<2x1xf32>
    %1367 = arith.mulf %1350, %1328 : vector<2x1xf32>
    %1368 = arith.mulf %1340, %1356 : vector<2x1xf32>
    %1369 = arith.addf %1367, %1368 : vector<2x1xf32>
    %1370 = math.tanh %1369 : vector<2x1xf32>
    %1371 = arith.mulf %1366, %1370 : vector<2x1xf32>
    %1372 = vector.extract_strided_slice %814 {offsets = [13, 0, 0], sizes = [1, 2, 1], strides = [1, 1, 1]} : vector<16x2x1xf32> to vector<1x2x1xf32>
    %1373 = vector.shape_cast %1372 : vector<1x2x1xf32> to vector<2x1xf32>
    %1374 = vector.broadcast %833 : f32 to vector<2x1xf32>
    %1375 = arith.mulf %1371, %1374 : vector<2x1xf32>
    %1376 = arith.addf %1373, %1375 : vector<2x1xf32>
    %1377 = arith.negf %1376 : vector<2x1xf32>
    %1378 = math.exp %1377 : vector<2x1xf32>
    %cst_161 = arith.constant 1.000000e+00 : f32
    %1379 = vector.broadcast %cst_161 : f32 to vector<2x1xf32>
    %1380 = arith.addf %1379, %1378 : vector<2x1xf32>
    %1381 = arith.divf %1379, %1380 : vector<2x1xf32>
    %1382 = vector.extract_strided_slice %820 {offsets = [13, 0, 0], sizes = [1, 2, 1], strides = [1, 1, 1]} : vector<16x2x1xf32> to vector<1x2x1xf32>
    %1383 = vector.shape_cast %1382 : vector<1x2x1xf32> to vector<2x1xf32>
    %1384 = vector.broadcast %834 : f32 to vector<2x1xf32>
    %1385 = arith.mulf %1371, %1384 : vector<2x1xf32>
    %1386 = arith.addf %1383, %1385 : vector<2x1xf32>
    %1387 = arith.negf %1386 : vector<2x1xf32>
    %1388 = math.exp %1387 : vector<2x1xf32>
    %cst_162 = arith.constant 1.000000e+00 : f32
    %1389 = vector.broadcast %cst_162 : f32 to vector<2x1xf32>
    %1390 = arith.addf %1389, %1388 : vector<2x1xf32>
    %1391 = arith.divf %1389, %1390 : vector<2x1xf32>
    %1392 = vector.extract_strided_slice %826 {offsets = [13, 0, 0], sizes = [1, 2, 1], strides = [1, 1, 1]} : vector<16x2x1xf32> to vector<1x2x1xf32>
    %1393 = vector.shape_cast %1392 : vector<1x2x1xf32> to vector<2x1xf32>
    %1394 = vector.broadcast %835 : f32 to vector<2x1xf32>
    %1395 = arith.mulf %1371, %1394 : vector<2x1xf32>
    %1396 = arith.addf %1393, %1395 : vector<2x1xf32>
    %1397 = math.tanh %1396 : vector<2x1xf32>
    %1398 = vector.extract_strided_slice %832 {offsets = [13, 0, 0], sizes = [1, 2, 1], strides = [1, 1, 1]} : vector<16x2x1xf32> to vector<1x2x1xf32>
    %1399 = vector.shape_cast %1398 : vector<1x2x1xf32> to vector<2x1xf32>
    %1400 = vector.broadcast %836 : f32 to vector<2x1xf32>
    %1401 = arith.mulf %1371, %1400 : vector<2x1xf32>
    %1402 = arith.addf %1399, %1401 : vector<2x1xf32>
    %1403 = arith.negf %1402 : vector<2x1xf32>
    %1404 = math.exp %1403 : vector<2x1xf32>
    %cst_163 = arith.constant 1.000000e+00 : f32
    %1405 = vector.broadcast %cst_163 : f32 to vector<2x1xf32>
    %1406 = arith.addf %1405, %1404 : vector<2x1xf32>
    %1407 = arith.divf %1405, %1406 : vector<2x1xf32>
    %1408 = arith.mulf %1391, %1369 : vector<2x1xf32>
    %1409 = arith.mulf %1381, %1397 : vector<2x1xf32>
    %1410 = arith.addf %1408, %1409 : vector<2x1xf32>
    %1411 = math.tanh %1410 : vector<2x1xf32>
    %1412 = arith.mulf %1407, %1411 : vector<2x1xf32>
    %1413 = vector.extract_strided_slice %814 {offsets = [14, 0, 0], sizes = [1, 2, 1], strides = [1, 1, 1]} : vector<16x2x1xf32> to vector<1x2x1xf32>
    %1414 = vector.shape_cast %1413 : vector<1x2x1xf32> to vector<2x1xf32>
    %1415 = vector.broadcast %833 : f32 to vector<2x1xf32>
    %1416 = arith.mulf %1412, %1415 : vector<2x1xf32>
    %1417 = arith.addf %1414, %1416 : vector<2x1xf32>
    %1418 = arith.negf %1417 : vector<2x1xf32>
    %1419 = math.exp %1418 : vector<2x1xf32>
    %cst_164 = arith.constant 1.000000e+00 : f32
    %1420 = vector.broadcast %cst_164 : f32 to vector<2x1xf32>
    %1421 = arith.addf %1420, %1419 : vector<2x1xf32>
    %1422 = arith.divf %1420, %1421 : vector<2x1xf32>
    %1423 = vector.extract_strided_slice %820 {offsets = [14, 0, 0], sizes = [1, 2, 1], strides = [1, 1, 1]} : vector<16x2x1xf32> to vector<1x2x1xf32>
    %1424 = vector.shape_cast %1423 : vector<1x2x1xf32> to vector<2x1xf32>
    %1425 = vector.broadcast %834 : f32 to vector<2x1xf32>
    %1426 = arith.mulf %1412, %1425 : vector<2x1xf32>
    %1427 = arith.addf %1424, %1426 : vector<2x1xf32>
    %1428 = arith.negf %1427 : vector<2x1xf32>
    %1429 = math.exp %1428 : vector<2x1xf32>
    %cst_165 = arith.constant 1.000000e+00 : f32
    %1430 = vector.broadcast %cst_165 : f32 to vector<2x1xf32>
    %1431 = arith.addf %1430, %1429 : vector<2x1xf32>
    %1432 = arith.divf %1430, %1431 : vector<2x1xf32>
    %1433 = vector.extract_strided_slice %826 {offsets = [14, 0, 0], sizes = [1, 2, 1], strides = [1, 1, 1]} : vector<16x2x1xf32> to vector<1x2x1xf32>
    %1434 = vector.shape_cast %1433 : vector<1x2x1xf32> to vector<2x1xf32>
    %1435 = vector.broadcast %835 : f32 to vector<2x1xf32>
    %1436 = arith.mulf %1412, %1435 : vector<2x1xf32>
    %1437 = arith.addf %1434, %1436 : vector<2x1xf32>
    %1438 = math.tanh %1437 : vector<2x1xf32>
    %1439 = vector.extract_strided_slice %832 {offsets = [14, 0, 0], sizes = [1, 2, 1], strides = [1, 1, 1]} : vector<16x2x1xf32> to vector<1x2x1xf32>
    %1440 = vector.shape_cast %1439 : vector<1x2x1xf32> to vector<2x1xf32>
    %1441 = vector.broadcast %836 : f32 to vector<2x1xf32>
    %1442 = arith.mulf %1412, %1441 : vector<2x1xf32>
    %1443 = arith.addf %1440, %1442 : vector<2x1xf32>
    %1444 = arith.negf %1443 : vector<2x1xf32>
    %1445 = math.exp %1444 : vector<2x1xf32>
    %cst_166 = arith.constant 1.000000e+00 : f32
    %1446 = vector.broadcast %cst_166 : f32 to vector<2x1xf32>
    %1447 = arith.addf %1446, %1445 : vector<2x1xf32>
    %1448 = arith.divf %1446, %1447 : vector<2x1xf32>
    %1449 = arith.mulf %1432, %1410 : vector<2x1xf32>
    %1450 = arith.mulf %1422, %1438 : vector<2x1xf32>
    %1451 = arith.addf %1449, %1450 : vector<2x1xf32>
    %1452 = math.tanh %1451 : vector<2x1xf32>
    %1453 = arith.mulf %1448, %1452 : vector<2x1xf32>
    %1454 = vector.extract_strided_slice %814 {offsets = [15, 0, 0], sizes = [1, 2, 1], strides = [1, 1, 1]} : vector<16x2x1xf32> to vector<1x2x1xf32>
    %1455 = vector.shape_cast %1454 : vector<1x2x1xf32> to vector<2x1xf32>
    %1456 = vector.broadcast %833 : f32 to vector<2x1xf32>
    %1457 = arith.mulf %1453, %1456 : vector<2x1xf32>
    %1458 = arith.addf %1455, %1457 : vector<2x1xf32>
    %1459 = arith.negf %1458 : vector<2x1xf32>
    %1460 = math.exp %1459 : vector<2x1xf32>
    %cst_167 = arith.constant 1.000000e+00 : f32
    %1461 = vector.broadcast %cst_167 : f32 to vector<2x1xf32>
    %1462 = arith.addf %1461, %1460 : vector<2x1xf32>
    %1463 = arith.divf %1461, %1462 : vector<2x1xf32>
    %1464 = vector.extract_strided_slice %820 {offsets = [15, 0, 0], sizes = [1, 2, 1], strides = [1, 1, 1]} : vector<16x2x1xf32> to vector<1x2x1xf32>
    %1465 = vector.shape_cast %1464 : vector<1x2x1xf32> to vector<2x1xf32>
    %1466 = vector.broadcast %834 : f32 to vector<2x1xf32>
    %1467 = arith.mulf %1453, %1466 : vector<2x1xf32>
    %1468 = arith.addf %1465, %1467 : vector<2x1xf32>
    %1469 = arith.negf %1468 : vector<2x1xf32>
    %1470 = math.exp %1469 : vector<2x1xf32>
    %cst_168 = arith.constant 1.000000e+00 : f32
    %1471 = vector.broadcast %cst_168 : f32 to vector<2x1xf32>
    %1472 = arith.addf %1471, %1470 : vector<2x1xf32>
    %1473 = arith.divf %1471, %1472 : vector<2x1xf32>
    %1474 = vector.extract_strided_slice %826 {offsets = [15, 0, 0], sizes = [1, 2, 1], strides = [1, 1, 1]} : vector<16x2x1xf32> to vector<1x2x1xf32>
    %1475 = vector.shape_cast %1474 : vector<1x2x1xf32> to vector<2x1xf32>
    %1476 = vector.broadcast %835 : f32 to vector<2x1xf32>
    %1477 = arith.mulf %1453, %1476 : vector<2x1xf32>
    %1478 = arith.addf %1475, %1477 : vector<2x1xf32>
    %1479 = math.tanh %1478 : vector<2x1xf32>
    %1480 = vector.extract_strided_slice %832 {offsets = [15, 0, 0], sizes = [1, 2, 1], strides = [1, 1, 1]} : vector<16x2x1xf32> to vector<1x2x1xf32>
    %1481 = vector.shape_cast %1480 : vector<1x2x1xf32> to vector<2x1xf32>
    %1482 = vector.broadcast %836 : f32 to vector<2x1xf32>
    %1483 = arith.mulf %1453, %1482 : vector<2x1xf32>
    %1484 = arith.addf %1481, %1483 : vector<2x1xf32>
    %1485 = arith.negf %1484 : vector<2x1xf32>
    %1486 = math.exp %1485 : vector<2x1xf32>
    %cst_169 = arith.constant 1.000000e+00 : f32
    %1487 = vector.broadcast %cst_169 : f32 to vector<2x1xf32>
    %1488 = arith.addf %1487, %1486 : vector<2x1xf32>
    %1489 = arith.divf %1487, %1488 : vector<2x1xf32>
    %1490 = arith.mulf %1473, %1451 : vector<2x1xf32>
    %1491 = arith.mulf %1463, %1479 : vector<2x1xf32>
    %1492 = arith.addf %1490, %1491 : vector<2x1xf32>
    %1493 = math.tanh %1492 : vector<2x1xf32>
    %1494 = arith.mulf %1489, %1493 : vector<2x1xf32>
    %c0_170 = arith.constant 0 : index
    %c48 = arith.constant 48 : index
    %1495 = vector.load %arg13[%c0_170, %c48] : memref<2x64xf32, #tpu.memory_space<vmem>>, vector<2x1xf32>
    tpu.vector_store %arg13[%c0_170, %c48], %1494 {strides = array<i32>} : memref<2x64xf32, #tpu.memory_space<vmem>>, vector<2x1xf32>,
    return
  }
}

</mosaic_0001>

<llo_original>
// kernel: custom_lstm_hn_forward.1
$region0: #{custom_lstm_hn_forward.1}
  #allocation0 [shape = 'u32[]', space=smem, size = 0x4, offset = 0x4, fixed_abs, tag = 'smem constant byte address 0x4 - core index']
  #allocation1 [shape = 'u32[72,128]{1,0:T(1,128)}', space=vmem, size = 0x9000, scoped, tag = 'internal scratch']
  %s0 = inlined_call_operand.vmem [shape: f32[8,2], index: 0, kind: input, shape index: {}]
  %s1 = inlined_call_operand.vmem [shape: f32[1,64], index: 1, kind: input, shape index: {}]
  %s2 = inlined_call_operand.hbm [shape: f32[16,64], index: 2, kind: input, shape index: {}]
  %s3 = inlined_call_operand.vmem [shape: f32[1,64], index: 3, kind: input, shape index: {}]
  %s4 = inlined_call_operand.vmem [shape: f32[1,64], index: 4, kind: input, shape index: {}]
  %s5 = inlined_call_operand.hbm [shape: f32[16,64], index: 5, kind: input, shape index: {}]
  %s6 = inlined_call_operand.vmem [shape: f32[1,64], index: 6, kind: input, shape index: {}]
  %s7 = inlined_call_operand.vmem [shape: f32[1,64], index: 7, kind: input, shape index: {}]
  %s8 = inlined_call_operand.hbm [shape: f32[16,64], index: 8, kind: input, shape index: {}]
  %s9 = inlined_call_operand.vmem [shape: f32[1,64], index: 9, kind: input, shape index: {}]
  %s10 = inlined_call_operand.vmem [shape: f32[4], index: 10, kind: input, shape index: {}]
  %s11 = inlined_call_operand.vmem [shape: f32[4], index: 11, kind: input, shape index: {}]
  %s12 = inlined_call_operand.vmem [shape: f32[4], index: 12, kind: input, shape index: {}]
  %s13 = inlined_call_operand.vmem [shape: f32[2,64], index: 13, kind: output, shape index: {}]
  %s14 = sld [smem:[#allocation0]]
  $region86: #{custom_lstm_hn_forward.1} parent=0
    _
  %s16 = ssub.s32 1, %s14
  %s17 = scalar_select 0, %s16, %s14
  $region1: #{custom_lstm_hn_forward.1} parent=0
    #allocation2 [shape = 'u8[8192]{0}', space=vmem, size = 0x2000, scoped, tag = 'input window, operand 2, single buffered']
    #allocation3 [shape = 's32[1]{0}', space=sflag, size = 0x4, scoped, tag = 'scoped memory for custom_lstm_hn_forward.1']
    #allocation4 [shape = 's32[1]{0}', space=sflag, size = 0x4, scoped, tag = 'scoped memory for custom_lstm_hn_forward.1']
    #allocation5 [shape = 'u8[8192]{0}', space=vmem, size = 0x2000, scoped, tag = 'input window, operand 5, single buffered']
    #allocation6 [shape = 's32[1]{0}', space=sflag, size = 0x4, scoped, tag = 'scoped memory for custom_lstm_hn_forward.1']
    #allocation7 [shape = 'u8[8192]{0}', space=vmem, size = 0x2000, scoped, tag = 'input window, operand 8, single buffered']
    #allocation8 [shape = 'u8[512]{0}', space=smem, size = 0x200, scoped, tag = 'input window, operand 10, single buffered']
    #allocation9 [shape = 'u8[512]{0}', space=smem, size = 0x200, scoped, tag = 'input window, operand 11, single buffered']
    #allocation10 [shape = 's32[1]{0}', space=sflag, size = 0x4, scoped, tag = 'scoped memory for custom_lstm_hn_forward.1']
    #allocation11 [shape = 'u8[512]{0}', space=smem, size = 0x200, scoped, tag = 'input window, operand 12, single buffered']
    %18 = vsyncpa [#allocation3], 0
    %19 = vsyncpa [#allocation6], 0
    %20 = vsyncpa [#allocation4], 0
    %21 = vsyncpa [#allocation10], 0
    // Predicated region
    $region2: #{custom_lstm_hn_forward.1} parent=1 // pred_check
      _
    $region3: #{custom_lstm_hn_forward.1} parent=1 // pred_check_branch
      %23 = sbr.rel (0) target = $region5
    $region4: #{custom_lstm_hn_forward.1} parent=1 // pred_region
      _
    $region5: #{custom_lstm_hn_forward.1} parent=1 // pred_fallthru
      _
    // Predicated region
    $region6: #{custom_lstm_hn_forward.1} parent=1 // pred_check
      _
    $region7: #{custom_lstm_hn_forward.1} parent=1 // pred_check_branch
      %25 = sbr.rel (0) target = $region9
    $region8: #{custom_lstm_hn_forward.1} parent=1 // pred_region
      _
    $region9: #{custom_lstm_hn_forward.1} parent=1 // pred_fallthru
      _
    // Predicated region
    $region10: #{custom_lstm_hn_forward.1} parent=1 // pred_check
      _
    $region11: #{custom_lstm_hn_forward.1} parent=1 // pred_check_branch
      %27 = sbr.rel (0) target = $region13
    $region12: #{custom_lstm_hn_forward.1} parent=1 // pred_region
      %29 = vsyncadd [#allocation3], 0
      %s30 = sshll.u32 %s2, 4
      %s31 = int_to_ptr.hbm [resolvable:$true] %s30
      %s32 = sshll.u32 [#allocation2], 4
      %s33 = int_to_ptr.vmem [resolvable:$true] %s32
      %38 = dma.hbm_to_vmem [thread:$0]  %s31, 256, %s33, [#allocation3], 128, 128, 8
    $region13: #{custom_lstm_hn_forward.1} parent=1 // pred_fallthru
      _
    // Predicated region
    $region14: #{custom_lstm_hn_forward.1} parent=1 // pred_check
      _
    $region15: #{custom_lstm_hn_forward.1} parent=1 // pred_check_branch
      %40 = sbr.rel (0) target = $region17
    $region16: #{custom_lstm_hn_forward.1} parent=1 // pred_region
      _
    $region17: #{custom_lstm_hn_forward.1} parent=1 // pred_fallthru
      _
    // Predicated region
    $region18: #{custom_lstm_hn_forward.1} parent=1 // pred_check
      _
    $region19: #{custom_lstm_hn_forward.1} parent=1 // pred_check_branch
      %42 = sbr.rel (0) target = $region21
    $region20: #{custom_lstm_hn_forward.1} parent=1 // pred_region
      _
    $region21: #{custom_lstm_hn_forward.1} parent=1 // pred_fallthru
      _
    // Predicated region
    $region22: #{custom_lstm_hn_forward.1} parent=1 // pred_check
      _
    $region23: #{custom_lstm_hn_forward.1} parent=1 // pred_check_branch
      %44 = sbr.rel (0) target = $region25
    $region24: #{custom_lstm_hn_forward.1} parent=1 // pred_region
      %46 = vsyncadd [#allocation6], 0
      %s47 = sshll.u32 %s5, 4
      %s48 = int_to_ptr.hbm [resolvable:$true] %s47
      %s49 = sshll.u32 [#allocation5], 4
      %s50 = int_to_ptr.vmem [resolvable:$true] %s49
      %55 = dma.hbm_to_vmem [thread:$0]  %s48, 256, %s50, [#allocation6], 128, 128, 8
    $region25: #{custom_lstm_hn_forward.1} parent=1 // pred_fallthru
      _
    // Predicated region
    $region26: #{custom_lstm_hn_forward.1} parent=1 // pred_check
      _
    $region27: #{custom_lstm_hn_forward.1} parent=1 // pred_check_branch
      %57 = sbr.rel (0) target = $region29
    $region28: #{custom_lstm_hn_forward.1} parent=1 // pred_region
      _
    $region29: #{custom_lstm_hn_forward.1} parent=1 // pred_fallthru
      _
    // Predicated region
    $region30: #{custom_lstm_hn_forward.1} parent=1 // pred_check
      _
    $region31: #{custom_lstm_hn_forward.1} parent=1 // pred_check_branch
      %59 = sbr.rel (0) target = $region33
    $region32: #{custom_lstm_hn_forward.1} parent=1 // pred_region
      _
    $region33: #{custom_lstm_hn_forward.1} parent=1 // pred_fallthru
      _
    // Predicated region
    $region34: #{custom_lstm_hn_forward.1} parent=1 // pred_check
      _
    $region35: #{custom_lstm_hn_forward.1} parent=1 // pred_check_branch
      %61 = sbr.rel (0) target = $region37
    $region36: #{custom_lstm_hn_forward.1} parent=1 // pred_region
      %63 = vsyncadd [#allocation6], 0
      %s64 = sshll.u32 %s8, 4
      %s65 = int_to_ptr.hbm [resolvable:$true] %s64
      %s66 = sshll.u32 [#allocation7], 4
      %s67 = int_to_ptr.vmem [resolvable:$true] %s66
      %72 = dma.hbm_to_vmem [thread:$0]  %s65, 256, %s67, [#allocation6], 128, 128, 8
    $region37: #{custom_lstm_hn_forward.1} parent=1 // pred_fallthru
      _
    // Predicated region
    $region38: #{custom_lstm_hn_forward.1} parent=1 // pred_check
      _
    $region39: #{custom_lstm_hn_forward.1} parent=1 // pred_check_branch
      %74 = sbr.rel (0) target = $region41
    $region40: #{custom_lstm_hn_forward.1} parent=1 // pred_region
      _
    $region41: #{custom_lstm_hn_forward.1} parent=1 // pred_fallthru
      _
    // Predicated region
    $region42: #{custom_lstm_hn_forward.1} parent=1 // pred_check
      _
    $region43: #{custom_lstm_hn_forward.1} parent=1 // pred_check_branch
      %76 = sbr.rel (0) target = $region45
    $region44: #{custom_lstm_hn_forward.1} parent=1 // pred_region
      %78 = vsyncadd [#allocation4], 0
      %s80 = sshll.u32 %s10, 4
      %s81 = int_to_ptr.vmem [resolvable:$true] %s80
      %83 = dma.vmem_to_smem %s81, 16, [#allocation8], [#allocation4]
    $region45: #{custom_lstm_hn_forward.1} parent=1 // pred_fallthru
      _
    // Predicated region
    $region46: #{custom_lstm_hn_forward.1} parent=1 // pred_check
      _
    $region47: #{custom_lstm_hn_forward.1} parent=1 // pred_check_branch
      %85 = sbr.rel (0) target = $region49
    $region48: #{custom_lstm_hn_forward.1} parent=1 // pred_region
      %87 = vsyncadd [#allocation10], 0
      %s89 = sshll.u32 %s11, 4
      %s90 = int_to_ptr.vmem [resolvable:$true] %s89
      %92 = dma.vmem_to_smem %s90, 16, [#allocation9], [#allocation10]
    $region49: #{custom_lstm_hn_forward.1} parent=1 // pred_fallthru
      _
    // Predicated region
    $region50: #{custom_lstm_hn_forward.1} parent=1 // pred_check
      _
    $region51: #{custom_lstm_hn_forward.1} parent=1 // pred_check_branch
      %94 = sbr.rel (0) target = $region53
    $region52: #{custom_lstm_hn_forward.1} parent=1 // pred_region
      %96 = vsyncadd [#allocation10], 0
      %s98 = sshll.u32 %s12, 4
      %s99 = int_to_ptr.vmem [resolvable:$true] %s98
      %101 = dma.vmem_to_smem %s99, 16, [#allocation11], [#allocation10]
    $region53: #{custom_lstm_hn_forward.1} parent=1 // pred_fallthru
      _
    // Predicated region
    $region54: #{custom_lstm_hn_forward.1} parent=1 // pred_check
      _
    $region55: #{custom_lstm_hn_forward.1} parent=1 // pred_check_branch
      %103 = sbr.rel (0) target = $region57
    $region56: #{custom_lstm_hn_forward.1} parent=1 // pred_region
      %105 = dma.done [#allocation3], 256
    $region57: #{custom_lstm_hn_forward.1} parent=1 // pred_fallthru
      _
    // Predicated region
    $region58: #{custom_lstm_hn_forward.1} parent=1 // pred_check
      _
    $region59: #{custom_lstm_hn_forward.1} parent=1 // pred_check_branch
      %107 = sbr.rel (0) target = $region61
    $region60: #{custom_lstm_hn_forward.1} parent=1 // pred_region
      %109 = dma.done [#allocation6], 256
    $region61: #{custom_lstm_hn_forward.1} parent=1 // pred_fallthru
      _
    // Predicated region
    $region62: #{custom_lstm_hn_forward.1} parent=1 // pred_check
      _
    $region63: #{custom_lstm_hn_forward.1} parent=1 // pred_check_branch
      %111 = sbr.rel (0) target = $region65
    $region64: #{custom_lstm_hn_forward.1} parent=1 // pred_region
      %113 = dma.done [#allocation6], 256
    $region65: #{custom_lstm_hn_forward.1} parent=1 // pred_fallthru
      _
    // Predicated region
    $region66: #{custom_lstm_hn_forward.1} parent=1 // pred_check
      _
    $region67: #{custom_lstm_hn_forward.1} parent=1 // pred_check_branch
      %115 = sbr.rel (0) target = $region69
    $region68: #{custom_lstm_hn_forward.1} parent=1 // pred_region
      %117 = dma.done [#allocation4], 16
    $region69: #{custom_lstm_hn_forward.1} parent=1 // pred_fallthru
      _
    // Predicated region
    $region70: #{custom_lstm_hn_forward.1} parent=1 // pred_check
      _
    $region71: #{custom_lstm_hn_forward.1} parent=1 // pred_check_branch
      %119 = sbr.rel (0) target = $region73
    $region72: #{custom_lstm_hn_forward.1} parent=1 // pred_region
      %121 = dma.done [#allocation10], 16
    $region73: #{custom_lstm_hn_forward.1} parent=1 // pred_fallthru
      _
    // Predicated region
    $region74: #{custom_lstm_hn_forward.1} parent=1 // pred_check
      _
    $region75: #{custom_lstm_hn_forward.1} parent=1 // pred_check_branch
      %123 = sbr.rel (0) target = $region77
    $region76: #{custom_lstm_hn_forward.1} parent=1 // pred_region
      %125 = dma.done [#allocation10], 16
    $region77: #{custom_lstm_hn_forward.1} parent=1 // pred_fallthru
      _
    %126 = sfence
    %vm127 = vcmask 517120
    %128 = vst.msk [vmem:[%s13] sm:$0x3] %vm127, 0.0
    %v129 = vld [vmem:[%s0] sm:$0xff]
    %v130 = vld [vmem:[%s1] sm:$0x1]
    %v131 = vld [vmem:[#allocation2] sm:$0xff]
    %v132 = vld [vmem:[#allocation2 + $0x8] sm:$0xff]
    %v133 = vld [vmem:[%s3] sm:$0x1]
    %v134 = vperm.slane %v129, 0
    %v135 = vlaneseq
    %v136 = vshrl.u32 %v135, 7
    %138 = vset.pattern.permute.xlu0 %v136
    %139 = vperm.xlu0 %138, %v134
    %v140 = vpop.permute.xlu0 %139
    %v141 = vperm.slane %v129, 1
    %v142 = vlaneseq
    %v143 = vshrl.u32 %v142, 7
    %145 = vset.pattern.permute.xlu0 %v143
    %146 = vperm.xlu0 %145, %v141
    %v147 = vpop.permute.xlu0 %146
    %v148 = vperm.slane %v129, 2
    %v149 = vlaneseq
    %v150 = vshrl.u32 %v149, 7
    %152 = vset.pattern.permute.xlu0 %v150
    %153 = vperm.xlu0 %152, %v148
    %v154 = vpop.permute.xlu0 %153
    %v155 = vperm.slane %v129, 3
    %v156 = vlaneseq
    %v157 = vshrl.u32 %v156, 7
    %159 = vset.pattern.permute.xlu0 %v157
    %160 = vperm.xlu0 %159, %v155
    %v161 = vpop.permute.xlu0 %160
    %v162 = vperm.slane %v129, 4
    %v163 = vlaneseq
    %v164 = vshrl.u32 %v163, 7
    %166 = vset.pattern.permute.xlu0 %v164
    %167 = vperm.xlu0 %166, %v162
    %v168 = vpop.permute.xlu0 %167
    %v169 = vperm.slane %v129, 5
    %v170 = vlaneseq
    %v171 = vshrl.u32 %v170, 7
    %173 = vset.pattern.permute.xlu0 %v171
    %174 = vperm.xlu0 %173, %v169
    %v175 = vpop.permute.xlu0 %174
    %v176 = vperm.slane %v129, 6
    %v177 = vlaneseq
    %v178 = vshrl.u32 %v177, 7
    %180 = vset.pattern.permute.xlu0 %v178
    %181 = vperm.xlu0 %180, %v176
    %v182 = vpop.permute.xlu0 %181
    %v183 = vperm.slane %v129, 7
    %v184 = vlaneseq
    %v185 = vshrl.u32 %v184, 7
    %187 = vset.pattern.permute.xlu0 %v185
    %188 = vperm.xlu0 %187, %v183
    %v189 = vpop.permute.xlu0 %188
    %v191 = vperm.slane %v130, 0
    %v193 = vmul.f32 %v140, %v191
    %v194 = vmul.f32 %v147, %v191
    %v195 = vmul.f32 %v154, %v191
    %v196 = vmul.f32 %v161, %v191
    %v197 = vmul.f32 %v168, %v191
    %v198 = vmul.f32 %v175, %v191
    %v199 = vmul.f32 %v182, %v191
    %v200 = vmul.f32 %v189, %v191
    %v202 = vperm.slane %v133, 0
    %v204 = vadd.f32 %v193, %v202
    %v205 = vadd.f32 %v194, %v202
    %v206 = vadd.f32 %v195, %v202
    %v207 = vadd.f32 %v196, %v202
    %v208 = vadd.f32 %v197, %v202
    %v209 = vadd.f32 %v198, %v202
    %v210 = vadd.f32 %v199, %v202
    %v211 = vadd.f32 %v200, %v202
    %vm212 = vcmask 130048
    %v214 = vsel %vm212, 0.0, 0
    %216 = vmatpush.msra.mxu0 0.0
    %217 = vmatpush.msra.mxu0 0.0
    %218 = vmatpush.msra.mxu0 0.0
    %219 = vmatpush.msra.mxu0 0.0
    %220 = vmatpush.msra.mxu0 0.0
    %221 = vmatpush.msra.mxu0 0.0
    %222 = vmatpush.msra.mxu0 0.0
    %223 = vmatpush.msra.mxu0 0.0
    %224 = vmatpush.msra.mxu0 0.0
    %225 = vmatpush.msra.mxu0 0.0
    %226 = vmatpush.msra.mxu0 0.0
    %227 = vmatpush.msra.mxu0 0.0
    %228 = vmatpush.msra.mxu0 0.0
    %229 = vmatpush.msra.mxu0 0.0
    %230 = vmatpush.msra.mxu0 %v132
    %231 = vmatpush.msra.mxu0 %v131
    %232 = vmatmul.f32.gmra.mxu0 %v214
    %v233 = vpop.f32.mrf.mxu0
    %v234 = vadd.f32 0.0, %v233
    %235 = vdwg.mxu0
    %v236 = vadd.f32 %v204, %v234
    %v237 = vxor.u32 %v236, 2147483648
    %v238 = vmul.f32 %v237, 1.442695
    %v239 = vpow.pop %v238
    %v240 = vadd.f32 %v239, 1.0
    %v241 = vrcp.pop %v240
    %v242 = vmul.f32 %v240, %v241
    %v243 = vsub.f32 1.0, %v242
    %v244 = vmul.f32 %v241, %v243
    %v245 = vadd.f32 %v241, %v244
    %vm246 = vweird.f32 %v240
    %vm247 = vweird.f32 %v241
    %vm248 = vmor %vm246, %vm247
    %v249 = vsel %vm248, %v241, %v245
    %v250 = vand.u32 2147483647, %v240
    %vm251 = vcmp.eq.f32.partialorder %v250, 8.507059e+37
    %v252 = vand.u32 %v240, 2147483648
    %v253 = vor.u32 1.1754944e-38, %v252
    %v254 = vsel %vm251, %v253, %v249
    %v255 = vmul.f32 1.0, %v254
    %v256 = vtanh.pop %v236
    %v257 = vmul.f32 %v255, 0.0
    %259 = vrot.lane.b32.xlu0 %v256, 96
    %v260 = vpop.permute.xlu0 %259
    %v262 = vmul.f32 %v255, %v260
    %264 = vrot.lane.b32.xlu0 %v262, 16
    %v265 = vpop.permute.xlu0 %264
    %v267 = vadd.f32 %v257, %v265
    %v268 = vtanh.pop %v267
    %270 = vrot.lane.b32.xlu0 %v268, 32
    %v271 = vpop.permute.xlu0 %270
    %v273 = vmul.f32 %v255, %v271
    %275 = vrot.lane.b32.xlu0 %v273, 80
    %v276 = vpop.permute.xlu0 %275
    %v277 = vsel %vm212, %v276, 0
    %279 = vmatpush.msra.mxu0 0.0
    %280 = vmatpush.msra.mxu0 0.0
    %281 = vmatpush.msra.mxu0 0.0
    %282 = vmatpush.msra.mxu0 0.0
    %283 = vmatpush.msra.mxu0 0.0
    %284 = vmatpush.msra.mxu0 0.0
    %285 = vmatpush.msra.mxu0 0.0
    %286 = vmatpush.msra.mxu0 0.0
    %287 = vmatpush.msra.mxu0 0.0
    %288 = vmatpush.msra.mxu0 0.0
    %289 = vmatpush.msra.mxu0 0.0
    %290 = vmatpush.msra.mxu0 0.0
    %291 = vmatpush.msra.mxu0 0.0
    %292 = vmatpush.msra.mxu0 0.0
    %293 = vmatpush.msra.mxu0 %v132
    %294 = vmatpush.msra.mxu0 %v131
    %295 = vmatmul.f32.gmra.mxu0 %v277
    %v296 = vpop.f32.mrf.mxu0
    %v297 = vadd.f32 0.0, %v296
    %298 = vdwg.mxu0
    %v299 = vadd.f32 %v205, %v297
    %v300 = vxor.u32 %v299, 2147483648
    %v301 = vmul.f32 %v300, 1.442695
    %v302 = vpow.pop %v301
    %v303 = vadd.f32 %v302, 1.0
    %v304 = vrcp.pop %v303
    %v305 = vmul.f32 %v303, %v304
    %v306 = vsub.f32 1.0, %v305
    %v307 = vmul.f32 %v304, %v306
    %v308 = vadd.f32 %v304, %v307
    %vm309 = vweird.f32 %v303
    %vm310 = vweird.f32 %v304
    %vm311 = vmor %vm309, %vm310
    %v312 = vsel %vm311, %v304, %v308
    %v313 = vand.u32 2147483647, %v303
    %vm314 = vcmp.eq.f32.partialorder %v313, 8.507059e+37
    %v315 = vand.u32 %v303, 2147483648
    %v316 = vor.u32 1.1754944e-38, %v315
    %v317 = vsel %vm314, %v316, %v312
    %v318 = vmul.f32 1.0, %v317
    %v319 = vtanh.pop %v299
    %v320 = vmul.f32 %v318, %v267
    %322 = vrot.lane.b32.xlu0 %v319, 96
    %v323 = vpop.permute.xlu0 %322
    %v325 = vmul.f32 %v318, %v323
    %327 = vrot.lane.b32.xlu0 %v325, 16
    %v328 = vpop.permute.xlu0 %327
    %v330 = vadd.f32 %v320, %v328
    %v331 = vtanh.pop %v330
    %333 = vrot.lane.b32.xlu0 %v331, 32
    %v334 = vpop.permute.xlu0 %333
    %v336 = vmul.f32 %v318, %v334
    %338 = vrot.lane.b32.xlu0 %v336, 80
    %v339 = vpop.permute.xlu0 %338
    %v340 = vsel %vm212, %v339, 0
    %342 = vmatpush.msra.mxu0 0.0
    %343 = vmatpush.msra.mxu0 0.0
    %344 = vmatpush.msra.mxu0 0.0
    %345 = vmatpush.msra.mxu0 0.0
    %346 = vmatpush.msra.mxu0 0.0
    %347 = vmatpush.msra.mxu0 0.0
    %348 = vmatpush.msra.mxu0 0.0
    %349 = vmatpush.msra.mxu0 0.0
    %350 = vmatpush.msra.mxu0 0.0
    %351 = vmatpush.msra.mxu0 0.0
    %352 = vmatpush.msra.mxu0 0.0
    %353 = vmatpush.msra.mxu0 0.0
    %354 = vmatpush.msra.mxu0 0.0
    %355 = vmatpush.msra.mxu0 0.0
    %356 = vmatpush.msra.mxu0 %v132
    %357 = vmatpush.msra.mxu0 %v131
    %358 = vmatmul.f32.gmra.mxu0 %v340
    %v359 = vpop.f32.mrf.mxu0
    %v360 = vadd.f32 0.0, %v359
    %361 = vdwg.mxu0
    %v362 = vadd.f32 %v206, %v360
    %v363 = vxor.u32 %v362, 2147483648
    %v364 = vmul.f32 %v363, 1.442695
    %v365 = vpow.pop %v364
    %v366 = vadd.f32 %v365, 1.0
    %v367 = vrcp.pop %v366
    %v368 = vmul.f32 %v366, %v367
    %v369 = vsub.f32 1.0, %v368
    %v370 = vmul.f32 %v367, %v369
    %v371 = vadd.f32 %v367, %v370
    %vm372 = vweird.f32 %v366
    %vm373 = vweird.f32 %v367
    %vm374 = vmor %vm372, %vm373
    %v375 = vsel %vm374, %v367, %v371
    %v376 = vand.u32 2147483647, %v366
    %vm377 = vcmp.eq.f32.partialorder %v376, 8.507059e+37
    %v378 = vand.u32 %v366, 2147483648
    %v379 = vor.u32 1.1754944e-38, %v378
    %v380 = vsel %vm377, %v379, %v375
    %v381 = vmul.f32 1.0, %v380
    %v382 = vtanh.pop %v362
    %v383 = vmul.f32 %v381, %v330
    %385 = vrot.lane.b32.xlu0 %v382, 96
    %v386 = vpop.permute.xlu0 %385
    %v388 = vmul.f32 %v381, %v386
    %390 = vrot.lane.b32.xlu0 %v388, 16
    %v391 = vpop.permute.xlu0 %390
    %v393 = vadd.f32 %v383, %v391
    %v394 = vtanh.pop %v393
    %396 = vrot.lane.b32.xlu0 %v394, 32
    %v397 = vpop.permute.xlu0 %396
    %v399 = vmul.f32 %v381, %v397
    %401 = vrot.lane.b32.xlu0 %v399, 80
    %v402 = vpop.permute.xlu0 %401
    %v403 = vsel %vm212, %v402, 0
    %405 = vmatpush.msra.mxu0 0.0
    %406 = vmatpush.msra.mxu0 0.0
    %407 = vmatpush.msra.mxu0 0.0
    %408 = vmatpush.msra.mxu0 0.0
    %409 = vmatpush.msra.mxu0 0.0
    %410 = vmatpush.msra.mxu0 0.0
    %411 = vmatpush.msra.mxu0 0.0
    %412 = vmatpush.msra.mxu0 0.0
    %413 = vmatpush.msra.mxu0 0.0
    %414 = vmatpush.msra.mxu0 0.0
    %415 = vmatpush.msra.mxu0 0.0
    %416 = vmatpush.msra.mxu0 0.0
    %417 = vmatpush.msra.mxu0 0.0
    %418 = vmatpush.msra.mxu0 0.0
    %419 = vmatpush.msra.mxu0 %v132
    %420 = vmatpush.msra.mxu0 %v131
    %421 = vmatmul.f32.gmra.mxu0 %v403
    %v422 = vpop.f32.mrf.mxu0
    %v423 = vadd.f32 0.0, %v422
    %424 = vdwg.mxu0
    %v425 = vadd.f32 %v207, %v423
    %v426 = vxor.u32 %v425, 2147483648
    %v427 = vmul.f32 %v426, 1.442695
    %v428 = vpow.pop %v427
    %v429 = vadd.f32 %v428, 1.0
    %v430 = vrcp.pop %v429
    %v431 = vmul.f32 %v429, %v430
    %v432 = vsub.f32 1.0, %v431
    %v433 = vmul.f32 %v430, %v432
    %v434 = vadd.f32 %v430, %v433
    %vm435 = vweird.f32 %v429
    %vm436 = vweird.f32 %v430
    %vm437 = vmor %vm435, %vm436
    %v438 = vsel %vm437, %v430, %v434
    %v439 = vand.u32 2147483647, %v429
    %vm440 = vcmp.eq.f32.partialorder %v439, 8.507059e+37
    %v441 = vand.u32 %v429, 2147483648
    %v442 = vor.u32 1.1754944e-38, %v441
    %v443 = vsel %vm440, %v442, %v438
    %v444 = vmul.f32 1.0, %v443
    %v445 = vtanh.pop %v425
    %v446 = vmul.f32 %v444, %v393
    %448 = vrot.lane.b32.xlu0 %v445, 96
    %v449 = vpop.permute.xlu0 %448
    %v451 = vmul.f32 %v444, %v449
    %453 = vrot.lane.b32.xlu0 %v451, 16
    %v454 = vpop.permute.xlu0 %453
    %v456 = vadd.f32 %v446, %v454
    %v457 = vtanh.pop %v456
    %459 = vrot.lane.b32.xlu0 %v457, 32
    %v460 = vpop.permute.xlu0 %459
    %v462 = vmul.f32 %v444, %v460
    %464 = vrot.lane.b32.xlu0 %v462, 80
    %v465 = vpop.permute.xlu0 %464
    %v466 = vsel %vm212, %v465, 0
    %468 = vmatpush.msra.mxu0 0.0
    %469 = vmatpush.msra.mxu0 0.0
    %470 = vmatpush.msra.mxu0 0.0
    %471 = vmatpush.msra.mxu0 0.0
    %472 = vmatpush.msra.mxu0 0.0
    %473 = vmatpush.msra.mxu0 0.0
    %474 = vmatpush.msra.mxu0 0.0
    %475 = vmatpush.msra.mxu0 0.0
    %476 = vmatpush.msra.mxu0 0.0
    %477 = vmatpush.msra.mxu0 0.0
    %478 = vmatpush.msra.mxu0 0.0
    %479 = vmatpush.msra.mxu0 0.0
    %480 = vmatpush.msra.mxu0 0.0
    %481 = vmatpush.msra.mxu0 0.0
    %482 = vmatpush.msra.mxu0 %v132
    %483 = vmatpush.msra.mxu0 %v131
    %484 = vmatmul.f32.gmra.mxu0 %v466
    %v485 = vpop.f32.mrf.mxu0
    %v486 = vadd.f32 0.0, %v485
    %487 = vdwg.mxu0
    %v488 = vadd.f32 %v208, %v486
    %v489 = vxor.u32 %v488, 2147483648
    %v490 = vmul.f32 %v489, 1.442695
    %v491 = vpow.pop %v490
    %v492 = vadd.f32 %v491, 1.0
    %v493 = vrcp.pop %v492
    %v494 = vmul.f32 %v492, %v493
    %v495 = vsub.f32 1.0, %v494
    %v496 = vmul.f32 %v493, %v495
    %v497 = vadd.f32 %v493, %v496
    %vm498 = vweird.f32 %v492
    %vm499 = vweird.f32 %v493
    %vm500 = vmor %vm498, %vm499
    %v501 = vsel %vm500, %v493, %v497
    %v502 = vand.u32 2147483647, %v492
    %vm503 = vcmp.eq.f32.partialorder %v502, 8.507059e+37
    %v504 = vand.u32 %v492, 2147483648
    %v505 = vor.u32 1.1754944e-38, %v504
    %v506 = vsel %vm503, %v505, %v501
    %v507 = vmul.f32 1.0, %v506
    %v508 = vtanh.pop %v488
    %v509 = vmul.f32 %v507, %v456
    %511 = vrot.lane.b32.xlu0 %v508, 96
    %v512 = vpop.permute.xlu0 %511
    %v514 = vmul.f32 %v507, %v512
    %516 = vrot.lane.b32.xlu0 %v514, 16
    %v517 = vpop.permute.xlu0 %516
    %v519 = vadd.f32 %v509, %v517
    %v520 = vtanh.pop %v519
    %522 = vrot.lane.b32.xlu0 %v520, 32
    %v523 = vpop.permute.xlu0 %522
    %v525 = vmul.f32 %v507, %v523
    %527 = vrot.lane.b32.xlu0 %v525, 80
    %v528 = vpop.permute.xlu0 %527
    %v529 = vsel %vm212, %v528, 0
    %531 = vmatpush.msra.mxu0 0.0
    %532 = vmatpush.msra.mxu0 0.0
    %533 = vmatpush.msra.mxu0 0.0
    %534 = vmatpush.msra.mxu0 0.0
    %535 = vmatpush.msra.mxu0 0.0
    %536 = vmatpush.msra.mxu0 0.0
    %537 = vmatpush.msra.mxu0 0.0
    %538 = vmatpush.msra.mxu0 0.0
    %539 = vmatpush.msra.mxu0 0.0
    %540 = vmatpush.msra.mxu0 0.0
    %541 = vmatpush.msra.mxu0 0.0
    %542 = vmatpush.msra.mxu0 0.0
    %543 = vmatpush.msra.mxu0 0.0
    %544 = vmatpush.msra.mxu0 0.0
    %545 = vmatpush.msra.mxu0 %v132
    %546 = vmatpush.msra.mxu0 %v131
    %547 = vmatmul.f32.gmra.mxu0 %v529
    %v548 = vpop.f32.mrf.mxu0
    %v549 = vadd.f32 0.0, %v548
    %550 = vdwg.mxu0
    %v551 = vadd.f32 %v209, %v549
    %v552 = vxor.u32 %v551, 2147483648
    %v553 = vmul.f32 %v552, 1.442695
    %v554 = vpow.pop %v553
    %v555 = vadd.f32 %v554, 1.0
    %v556 = vrcp.pop %v555
    %v557 = vmul.f32 %v555, %v556
    %v558 = vsub.f32 1.0, %v557
    %v559 = vmul.f32 %v556, %v558
    %v560 = vadd.f32 %v556, %v559
    %vm561 = vweird.f32 %v555
    %vm562 = vweird.f32 %v556
    %vm563 = vmor %vm561, %vm562
    %v564 = vsel %vm563, %v556, %v560
    %v565 = vand.u32 2147483647, %v555
    %vm566 = vcmp.eq.f32.partialorder %v565, 8.507059e+37
    %v567 = vand.u32 %v555, 2147483648
    %v568 = vor.u32 1.1754944e-38, %v567
    %v569 = vsel %vm566, %v568, %v564
    %v570 = vmul.f32 1.0, %v569
    %v571 = vtanh.pop %v551
    %v572 = vmul.f32 %v570, %v519
    %574 = vrot.lane.b32.xlu0 %v571, 96
    %v575 = vpop.permute.xlu0 %574
    %v577 = vmul.f32 %v570, %v575
    %579 = vrot.lane.b32.xlu0 %v577, 16
    %v580 = vpop.permute.xlu0 %579
    %v582 = vadd.f32 %v572, %v580
    %v583 = vtanh.pop %v582
    %585 = vrot.lane.b32.xlu0 %v583, 32
    %v586 = vpop.permute.xlu0 %585
    %v588 = vmul.f32 %v570, %v586
    %590 = vrot.lane.b32.xlu0 %v588, 80
    %v591 = vpop.permute.xlu0 %590
    %v592 = vsel %vm212, %v591, 0
    %594 = vmatpush.msra.mxu0 0.0
    %595 = vmatpush.msra.mxu0 0.0
    %596 = vmatpush.msra.mxu0 0.0
    %597 = vmatpush.msra.mxu0 0.0
    %598 = vmatpush.msra.mxu0 0.0
    %599 = vmatpush.msra.mxu0 0.0
    %600 = vmatpush.msra.mxu0 0.0
    %601 = vmatpush.msra.mxu0 0.0
    %602 = vmatpush.msra.mxu0 0.0
    %603 = vmatpush.msra.mxu0 0.0
    %604 = vmatpush.msra.mxu0 0.0
    %605 = vmatpush.msra.mxu0 0.0
    %606 = vmatpush.msra.mxu0 0.0
    %607 = vmatpush.msra.mxu0 0.0
    %608 = vmatpush.msra.mxu0 %v132
    %609 = vmatpush.msra.mxu0 %v131
    %610 = vmatmul.f32.gmra.mxu0 %v592
    %v611 = vpop.f32.mrf.mxu0
    %v612 = vadd.f32 0.0, %v611
    %613 = vdwg.mxu0
    %v614 = vadd.f32 %v210, %v612
    %v615 = vxor.u32 %v614, 2147483648
    %v616 = vmul.f32 %v615, 1.442695
    %v617 = vpow.pop %v616
    %v618 = vadd.f32 %v617, 1.0
    %v619 = vrcp.pop %v618
    %v620 = vmul.f32 %v618, %v619
    %v621 = vsub.f32 1.0, %v620
    %v622 = vmul.f32 %v619, %v621
    %v623 = vadd.f32 %v619, %v622
    %vm624 = vweird.f32 %v618
    %vm625 = vweird.f32 %v619
    %vm626 = vmor %vm624, %vm625
    %v627 = vsel %vm626, %v619, %v623
    %v628 = vand.u32 2147483647, %v618
    %vm629 = vcmp.eq.f32.partialorder %v628, 8.507059e+37
    %v630 = vand.u32 %v618, 2147483648
    %v631 = vor.u32 1.1754944e-38, %v630
    %v632 = vsel %vm629, %v631, %v627
    %v633 = vmul.f32 1.0, %v632
    %v634 = vtanh.pop %v614
    %v635 = vmul.f32 %v633, %v582
    %637 = vrot.lane.b32.xlu0 %v634, 96
    %v638 = vpop.permute.xlu0 %637
    %v640 = vmul.f32 %v633, %v638
    %642 = vrot.lane.b32.xlu0 %v640, 16
    %v643 = vpop.permute.xlu0 %642
    %v645 = vadd.f32 %v635, %v643
    %v646 = vtanh.pop %v645
    %648 = vrot.lane.b32.xlu0 %v646, 32
    %v649 = vpop.permute.xlu0 %648
    %v651 = vmul.f32 %v633, %v649
    %653 = vrot.lane.b32.xlu0 %v651, 80
    %v654 = vpop.permute.xlu0 %653
    %v655 = vsel %vm212, %v654, 0
    %657 = vmatpush.msra.mxu0 0.0
    %658 = vmatpush.msra.mxu0 0.0
    %659 = vmatpush.msra.mxu0 0.0
    %660 = vmatpush.msra.mxu0 0.0
    %661 = vmatpush.msra.mxu0 0.0
    %662 = vmatpush.msra.mxu0 0.0
    %663 = vmatpush.msra.mxu0 0.0
    %664 = vmatpush.msra.mxu0 0.0
    %665 = vmatpush.msra.mxu0 0.0
    %666 = vmatpush.msra.mxu0 0.0
    %667 = vmatpush.msra.mxu0 0.0
    %668 = vmatpush.msra.mxu0 0.0
    %669 = vmatpush.msra.mxu0 0.0
    %670 = vmatpush.msra.mxu0 0.0
    %671 = vmatpush.msra.mxu0 %v132
    %672 = vmatpush.msra.mxu0 %v131
    %673 = vmatmul.f32.gmra.mxu0 %v655
    %v674 = vpop.f32.mrf.mxu0
    %v675 = vadd.f32 0.0, %v674
    %676 = vdwg.mxu0
    %v677 = vadd.f32 %v211, %v675
    %v678 = vxor.u32 %v677, 2147483648
    %v679 = vmul.f32 %v678, 1.442695
    %v680 = vpow.pop %v679
    %v681 = vadd.f32 %v680, 1.0
    %v682 = vrcp.pop %v681
    %v683 = vmul.f32 %v681, %v682
    %v684 = vsub.f32 1.0, %v683
    %v685 = vmul.f32 %v682, %v684
    %v686 = vadd.f32 %v682, %v685
    %vm687 = vweird.f32 %v681
    %vm688 = vweird.f32 %v682
    %vm689 = vmor %vm687, %vm688
    %v690 = vsel %vm689, %v682, %v686
    %v691 = vand.u32 2147483647, %v681
    %vm692 = vcmp.eq.f32.partialorder %v691, 8.507059e+37
    %v693 = vand.u32 %v681, 2147483648
    %v694 = vor.u32 1.1754944e-38, %v693
    %v695 = vsel %vm692, %v694, %v690
    %v696 = vmul.f32 1.0, %v695
    %v697 = vtanh.pop %v677
    %v698 = vmul.f32 %v696, %v645
    %700 = vrot.lane.b32.xlu0 %v697, 96
    %v701 = vpop.permute.xlu0 %700
    %v703 = vmul.f32 %v696, %v701
    %705 = vrot.lane.b32.xlu0 %v703, 16
    %v706 = vpop.permute.xlu0 %705
    %v708 = vadd.f32 %v698, %v706
    %v709 = vtanh.pop %v708
    %711 = vrot.lane.b32.xlu0 %v709, 32
    %v712 = vpop.permute.xlu0 %711
    %v714 = vmul.f32 %v696, %v712
    %716 = vrot.lane.b32.xlu0 %v714, 80
    %v717 = vpop.permute.xlu0 %716
    %vm719 = vcmask 123904
    %720 = vst.msk [vmem:[%s13] sm:$0x3] %vm719, %v717
    %721 = vxpose.xlu0.b32.start [1/16] %v717, 128
    %722 = vxpose.xlu0.b32.cont [2/16] 0.0, 128
    %723 = vxpose.xlu0.b32.cont [3/16] 0.0, 128
    %724 = vxpose.xlu0.b32.cont [4/16] 0.0, 128
    %725 = vxpose.xlu0.b32.cont [5/16] 0.0, 128
    %726 = vxpose.xlu0.b32.cont [6/16] 0.0, 128
    %727 = vxpose.xlu0.b32.cont [7/16] 0.0, 128
    %728 = vxpose.xlu0.b32.cont [8/16] 0.0, 128
    %729 = vxpose.xlu0.b32.cont [9/16] 0.0, 128
    %730 = vxpose.xlu0.b32.cont [10/16] 0.0, 128
    %731 = vxpose.xlu0.b32.cont [11/16] 0.0, 128
    %732 = vxpose.xlu0.b32.cont [12/16] 0.0, 128
    %733 = vxpose.xlu0.b32.cont [13/16] 0.0, 128
    %734 = vxpose.xlu0.b32.cont [14/16] 0.0, 128
    %735 = vxpose.xlu0.b32.cont [15/16] 0.0, 128
    %736 = vxpose.xlu0.b32.end [16/16] 0.0, 128
    %v737 = vpop.trf.xlu0
    %v738 = vpop.trf.xlu0
    %v739 = vpop.trf.xlu0
    %v740 = vpop.trf.xlu0
    %v741 = vpop.trf.xlu0
    %v742 = vpop.trf.xlu0
    %v743 = vpop.trf.xlu0
    %v744 = vpop.trf.xlu0
    %v745 = vpop.trf.xlu0
    %v746 = vpop.trf.xlu0
    %v747 = vpop.trf.xlu0
    %v748 = vpop.trf.xlu0
    %v749 = vpop.trf.xlu0
    %v750 = vpop.trf.xlu0
    %v751 = vpop.trf.xlu0
    %v752 = vpop.trf.xlu0
    %v753 = vld [vmem:[%s4] sm:$0x1]
    %v754 = vld [vmem:[#allocation5] sm:$0xff]
    %v755 = vld [vmem:[#allocation5 + $0x8] sm:$0xff]
    %v756 = vld [vmem:[%s6] sm:$0x1]
    %v757 = vperm.slane %v737, 0
    %v758 = vlaneseq
    %v759 = vshrl.u32 %v758, 7
    %761 = vset.pattern.permute.xlu0 %v759
    %762 = vperm.xlu0 %761, %v757
    %v763 = vpop.permute.xlu0 %762
    %v764 = vperm.slane %v737, 1
    %v765 = vlaneseq
    %v766 = vshrl.u32 %v765, 7
    %768 = vset.pattern.permute.xlu0 %v766
    %769 = vperm.xlu0 %768, %v764
    %v770 = vpop.permute.xlu0 %769
    %v771 = vperm.slane %v737, 2
    %v772 = vlaneseq
    %v773 = vshrl.u32 %v772, 7
    %775 = vset.pattern.permute.xlu0 %v773
    %776 = vperm.xlu0 %775, %v771
    %v777 = vpop.permute.xlu0 %776
    %v778 = vperm.slane %v737, 3
    %v779 = vlaneseq
    %v780 = vshrl.u32 %v779, 7
    %782 = vset.pattern.permute.xlu0 %v780
    %783 = vperm.xlu0 %782, %v778
    %v784 = vpop.permute.xlu0 %783
    %v785 = vperm.slane %v737, 4
    %v786 = vlaneseq
    %v787 = vshrl.u32 %v786, 7
    %789 = vset.pattern.permute.xlu0 %v787
    %790 = vperm.xlu0 %789, %v785
    %v791 = vpop.permute.xlu0 %790
    %v792 = vperm.slane %v737, 5
    %v793 = vlaneseq
    %v794 = vshrl.u32 %v793, 7
    %796 = vset.pattern.permute.xlu0 %v794
    %797 = vperm.xlu0 %796, %v792
    %v798 = vpop.permute.xlu0 %797
    %v799 = vperm.slane %v737, 6
    %v800 = vlaneseq
    %v801 = vshrl.u32 %v800, 7
    %803 = vset.pattern.permute.xlu0 %v801
    %804 = vperm.xlu0 %803, %v799
    %v805 = vpop.permute.xlu0 %804
    %v806 = vperm.slane %v737, 7
    %v807 = vlaneseq
    %v808 = vshrl.u32 %v807, 7
    %810 = vset.pattern.permute.xlu0 %v808
    %811 = vperm.xlu0 %810, %v806
    %v812 = vpop.permute.xlu0 %811
    %v813 = vperm.slane %v738, 0
    %v814 = vlaneseq
    %v815 = vshrl.u32 %v814, 7
    %817 = vset.pattern.permute.xlu0 %v815
    %818 = vperm.xlu0 %817, %v813
    %v819 = vpop.permute.xlu0 %818
    %v820 = vperm.slane %v738, 1
    %v821 = vlaneseq
    %v822 = vshrl.u32 %v821, 7
    %824 = vset.pattern.permute.xlu0 %v822
    %825 = vperm.xlu0 %824, %v820
    %v826 = vpop.permute.xlu0 %825
    %v827 = vperm.slane %v738, 2
    %v828 = vlaneseq
    %v829 = vshrl.u32 %v828, 7
    %831 = vset.pattern.permute.xlu0 %v829
    %832 = vperm.xlu0 %831, %v827
    %v833 = vpop.permute.xlu0 %832
    %v834 = vperm.slane %v738, 3
    %v835 = vlaneseq
    %v836 = vshrl.u32 %v835, 7
    %838 = vset.pattern.permute.xlu0 %v836
    %839 = vperm.xlu0 %838, %v834
    %v840 = vpop.permute.xlu0 %839
    %v841 = vperm.slane %v738, 4
    %v842 = vlaneseq
    %v843 = vshrl.u32 %v842, 7
    %845 = vset.pattern.permute.xlu0 %v843
    %846 = vperm.xlu0 %845, %v841
    %v847 = vpop.permute.xlu0 %846
    %v848 = vperm.slane %v738, 5
    %v849 = vlaneseq
    %v850 = vshrl.u32 %v849, 7
    %852 = vset.pattern.permute.xlu0 %v850
    %853 = vperm.xlu0 %852, %v848
    %v854 = vpop.permute.xlu0 %853
    %v855 = vperm.slane %v738, 6
    %v856 = vlaneseq
    %v857 = vshrl.u32 %v856, 7
    %859 = vset.pattern.permute.xlu0 %v857
    %860 = vperm.xlu0 %859, %v855
    %v861 = vpop.permute.xlu0 %860
    %v862 = vperm.slane %v738, 7
    %v863 = vlaneseq
    %v864 = vshrl.u32 %v863, 7
    %866 = vset.pattern.permute.xlu0 %v864
    %867 = vperm.xlu0 %866, %v862
    %v868 = vpop.permute.xlu0 %867
    %v870 = vperm.slane %v753, 0
    %v872 = vmul.f32 %v763, %v870
    %v873 = vmul.f32 %v770, %v870
    %v874 = vmul.f32 %v777, %v870
    %v875 = vmul.f32 %v784, %v870
    %v876 = vmul.f32 %v791, %v870
    %v877 = vmul.f32 %v798, %v870
    %v878 = vmul.f32 %v805, %v870
    %v879 = vmul.f32 %v812, %v870
    %v880 = vmul.f32 %v819, %v870
    %v881 = vmul.f32 %v826, %v870
    %v882 = vmul.f32 %v833, %v870
    %v883 = vmul.f32 %v840, %v870
    %v884 = vmul.f32 %v847, %v870
    %v885 = vmul.f32 %v854, %v870
    %v886 = vmul.f32 %v861, %v870
    %v887 = vmul.f32 %v868, %v870
    %v889 = vperm.slane %v756, 0
    %v891 = vadd.f32 %v872, %v889
    %v892 = vadd.f32 %v873, %v889
    %v893 = vadd.f32 %v874, %v889
    %v894 = vadd.f32 %v875, %v889
    %v895 = vadd.f32 %v876, %v889
    %v896 = vadd.f32 %v877, %v889
    %v897 = vadd.f32 %v878, %v889
    %v898 = vadd.f32 %v879, %v889
    %v899 = vadd.f32 %v880, %v889
    %v900 = vadd.f32 %v881, %v889
    %v901 = vadd.f32 %v882, %v889
    %v902 = vadd.f32 %v883, %v889
    %v903 = vadd.f32 %v884, %v889
    %v904 = vadd.f32 %v885, %v889
    %v905 = vadd.f32 %v886, %v889
    %v906 = vadd.f32 %v887, %v889
    %907 = vmatpush.msra.mxu0 0.0
    %908 = vmatpush.msra.mxu0 0.0
    %909 = vmatpush.msra.mxu0 0.0
    %910 = vmatpush.msra.mxu0 0.0
    %911 = vmatpush.msra.mxu0 0.0
    %912 = vmatpush.msra.mxu0 0.0
    %913 = vmatpush.msra.mxu0 0.0
    %914 = vmatpush.msra.mxu0 0.0
    %915 = vmatpush.msra.mxu0 0.0
    %916 = vmatpush.msra.mxu0 0.0
    %917 = vmatpush.msra.mxu0 0.0
    %918 = vmatpush.msra.mxu0 0.0
    %919 = vmatpush.msra.mxu0 0.0
    %920 = vmatpush.msra.mxu0 0.0
    %921 = vmatpush.msra.mxu0 %v755
    %922 = vmatpush.msra.mxu0 %v754
    %923 = vmatmul.f32.gmra.mxu0 %v214
    %v924 = vpop.f32.mrf.mxu0
    %v925 = vadd.f32 0.0, %v924
    %926 = vdwg.mxu0
    %v927 = vadd.f32 %v891, %v925
    %v928 = vxor.u32 %v927, 2147483648
    %v929 = vmul.f32 %v928, 1.442695
    %v930 = vpow.pop %v929
    %v931 = vadd.f32 %v930, 1.0
    %v932 = vrcp.pop %v931
    %v933 = vmul.f32 %v931, %v932
    %v934 = vsub.f32 1.0, %v933
    %v935 = vmul.f32 %v932, %v934
    %v936 = vadd.f32 %v932, %v935
    %vm937 = vweird.f32 %v931
    %vm938 = vweird.f32 %v932
    %vm939 = vmor %vm937, %vm938
    %v940 = vsel %vm939, %v932, %v936
    %v941 = vand.u32 2147483647, %v931
    %vm942 = vcmp.eq.f32.partialorder %v941, 8.507059e+37
    %v943 = vand.u32 %v931, 2147483648
    %v944 = vor.u32 1.1754944e-38, %v943
    %v945 = vsel %vm942, %v944, %v940
    %v946 = vmul.f32 1.0, %v945
    %v947 = vtanh.pop %v927
    %v948 = vmul.f32 %v946, 0.0
    %950 = vrot.lane.b32.xlu0 %v947, 96
    %v951 = vpop.permute.xlu0 %950
    %v953 = vmul.f32 %v946, %v951
    %955 = vrot.lane.b32.xlu0 %v953, 16
    %v956 = vpop.permute.xlu0 %955
    %v958 = vadd.f32 %v948, %v956
    %v959 = vtanh.pop %v958
    %961 = vrot.lane.b32.xlu0 %v959, 32
    %v962 = vpop.permute.xlu0 %961
    %v964 = vmul.f32 %v946, %v962
    %966 = vrot.lane.b32.xlu0 %v964, 80
    %v967 = vpop.permute.xlu0 %966
    %v968 = vsel %vm212, %v967, 0
    %970 = vmatpush.msra.mxu0 0.0
    %971 = vmatpush.msra.mxu0 0.0
    %972 = vmatpush.msra.mxu0 0.0
    %973 = vmatpush.msra.mxu0 0.0
    %974 = vmatpush.msra.mxu0 0.0
    %975 = vmatpush.msra.mxu0 0.0
    %976 = vmatpush.msra.mxu0 0.0
    %977 = vmatpush.msra.mxu0 0.0
    %978 = vmatpush.msra.mxu0 0.0
    %979 = vmatpush.msra.mxu0 0.0
    %980 = vmatpush.msra.mxu0 0.0
    %981 = vmatpush.msra.mxu0 0.0
    %982 = vmatpush.msra.mxu0 0.0
    %983 = vmatpush.msra.mxu0 0.0
    %984 = vmatpush.msra.mxu0 %v755
    %985 = vmatpush.msra.mxu0 %v754
    %986 = vmatmul.f32.gmra.mxu0 %v968
    %v987 = vpop.f32.mrf.mxu0
    %v988 = vadd.f32 0.0, %v987
    %989 = vdwg.mxu0
    %v990 = vadd.f32 %v892, %v988
    %v991 = vxor.u32 %v990, 2147483648
    %v992 = vmul.f32 %v991, 1.442695
    %v993 = vpow.pop %v992
    %v994 = vadd.f32 %v993, 1.0
    %v995 = vrcp.pop %v994
    %v996 = vmul.f32 %v994, %v995
    %v997 = vsub.f32 1.0, %v996
    %v998 = vmul.f32 %v995, %v997
    %v999 = vadd.f32 %v995, %v998
    %vm1000 = vweird.f32 %v994
    %vm1001 = vweird.f32 %v995
    %vm1002 = vmor %vm1000, %vm1001
    %v1003 = vsel %vm1002, %v995, %v999
    %v1004 = vand.u32 2147483647, %v994
    %vm1005 = vcmp.eq.f32.partialorder %v1004, 8.507059e+37
    %v1006 = vand.u32 %v994, 2147483648
    %v1007 = vor.u32 1.1754944e-38, %v1006
    %v1008 = vsel %vm1005, %v1007, %v1003
    %v1009 = vmul.f32 1.0, %v1008
    %v1010 = vtanh.pop %v990
    %v1011 = vmul.f32 %v1009, %v958
    %1013 = vrot.lane.b32.xlu0 %v1010, 96
    %v1014 = vpop.permute.xlu0 %1013
    %v1016 = vmul.f32 %v1009, %v1014
    %1018 = vrot.lane.b32.xlu0 %v1016, 16
    %v1019 = vpop.permute.xlu0 %1018
    %v1021 = vadd.f32 %v1011, %v1019
    %v1022 = vtanh.pop %v1021
    %1024 = vrot.lane.b32.xlu0 %v1022, 32
    %v1025 = vpop.permute.xlu0 %1024
    %v1027 = vmul.f32 %v1009, %v1025
    %1029 = vrot.lane.b32.xlu0 %v1027, 80
    %v1030 = vpop.permute.xlu0 %1029
    %v1031 = vsel %vm212, %v1030, 0
    %1033 = vmatpush.msra.mxu0 0.0
    %1034 = vmatpush.msra.mxu0 0.0
    %1035 = vmatpush.msra.mxu0 0.0
    %1036 = vmatpush.msra.mxu0 0.0
    %1037 = vmatpush.msra.mxu0 0.0
    %1038 = vmatpush.msra.mxu0 0.0
    %1039 = vmatpush.msra.mxu0 0.0
    %1040 = vmatpush.msra.mxu0 0.0
    %1041 = vmatpush.msra.mxu0 0.0
    %1042 = vmatpush.msra.mxu0 0.0
    %1043 = vmatpush.msra.mxu0 0.0
    %1044 = vmatpush.msra.mxu0 0.0
    %1045 = vmatpush.msra.mxu0 0.0
    %1046 = vmatpush.msra.mxu0 0.0
    %1047 = vmatpush.msra.mxu0 %v755
    %1048 = vmatpush.msra.mxu0 %v754
    %1049 = vmatmul.f32.gmra.mxu0 %v1031
    %v1050 = vpop.f32.mrf.mxu0
    %v1051 = vadd.f32 0.0, %v1050
    %1052 = vdwg.mxu0
    %v1053 = vadd.f32 %v893, %v1051
    %v1054 = vxor.u32 %v1053, 2147483648
    %v1055 = vmul.f32 %v1054, 1.442695
    %v1056 = vpow.pop %v1055
    %v1057 = vadd.f32 %v1056, 1.0
    %v1058 = vrcp.pop %v1057
    %v1059 = vmul.f32 %v1057, %v1058
    %v1060 = vsub.f32 1.0, %v1059
    %v1061 = vmul.f32 %v1058, %v1060
    %v1062 = vadd.f32 %v1058, %v1061
    %vm1063 = vweird.f32 %v1057
    %vm1064 = vweird.f32 %v1058
    %vm1065 = vmor %vm1063, %vm1064
    %v1066 = vsel %vm1065, %v1058, %v1062
    %v1067 = vand.u32 2147483647, %v1057
    %vm1068 = vcmp.eq.f32.partialorder %v1067, 8.507059e+37
    %v1069 = vand.u32 %v1057, 2147483648
    %v1070 = vor.u32 1.1754944e-38, %v1069
    %v1071 = vsel %vm1068, %v1070, %v1066
    %v1072 = vmul.f32 1.0, %v1071
    %v1073 = vtanh.pop %v1053
    %v1074 = vmul.f32 %v1072, %v1021
    %1076 = vrot.lane.b32.xlu0 %v1073, 96
    %v1077 = vpop.permute.xlu0 %1076
    %v1079 = vmul.f32 %v1072, %v1077
    %1081 = vrot.lane.b32.xlu0 %v1079, 16
    %v1082 = vpop.permute.xlu0 %1081
    %v1084 = vadd.f32 %v1074, %v1082
    %v1085 = vtanh.pop %v1084
    %1087 = vrot.lane.b32.xlu0 %v1085, 32
    %v1088 = vpop.permute.xlu0 %1087
    %v1090 = vmul.f32 %v1072, %v1088
    %1092 = vrot.lane.b32.xlu0 %v1090, 80
    %v1093 = vpop.permute.xlu0 %1092
    %v1094 = vsel %vm212, %v1093, 0
    %1096 = vmatpush.msra.mxu0 0.0
    %1097 = vmatpush.msra.mxu0 0.0
    %1098 = vmatpush.msra.mxu0 0.0
    %1099 = vmatpush.msra.mxu0 0.0
    %1100 = vmatpush.msra.mxu0 0.0
    %1101 = vmatpush.msra.mxu0 0.0
    %1102 = vmatpush.msra.mxu0 0.0
    %1103 = vmatpush.msra.mxu0 0.0
    %1104 = vmatpush.msra.mxu0 0.0
    %1105 = vmatpush.msra.mxu0 0.0
    %1106 = vmatpush.msra.mxu0 0.0
    %1107 = vmatpush.msra.mxu0 0.0
    %1108 = vmatpush.msra.mxu0 0.0
    %1109 = vmatpush.msra.mxu0 0.0
    %1110 = vmatpush.msra.mxu0 %v755
    %1111 = vmatpush.msra.mxu0 %v754
    %1112 = vmatmul.f32.gmra.mxu0 %v1094
    %v1113 = vpop.f32.mrf.mxu0
    %v1114 = vadd.f32 0.0, %v1113
    %1115 = vdwg.mxu0
    %v1116 = vadd.f32 %v894, %v1114
    %v1117 = vxor.u32 %v1116, 2147483648
    %v1118 = vmul.f32 %v1117, 1.442695
    %v1119 = vpow.pop %v1118
    %v1120 = vadd.f32 %v1119, 1.0
    %v1121 = vrcp.pop %v1120
    %v1122 = vmul.f32 %v1120, %v1121
    %v1123 = vsub.f32 1.0, %v1122
    %v1124 = vmul.f32 %v1121, %v1123
    %v1125 = vadd.f32 %v1121, %v1124
    %vm1126 = vweird.f32 %v1120
    %vm1127 = vweird.f32 %v1121
    %vm1128 = vmor %vm1126, %vm1127
    %v1129 = vsel %vm1128, %v1121, %v1125
    %v1130 = vand.u32 2147483647, %v1120
    %vm1131 = vcmp.eq.f32.partialorder %v1130, 8.507059e+37
    %v1132 = vand.u32 %v1120, 2147483648
    %v1133 = vor.u32 1.1754944e-38, %v1132
    %v1134 = vsel %vm1131, %v1133, %v1129
    %v1135 = vmul.f32 1.0, %v1134
    %v1136 = vtanh.pop %v1116
    %v1137 = vmul.f32 %v1135, %v1084
    %1139 = vrot.lane.b32.xlu0 %v1136, 96
    %v1140 = vpop.permute.xlu0 %1139
    %v1142 = vmul.f32 %v1135, %v1140
    %1144 = vrot.lane.b32.xlu0 %v1142, 16
    %v1145 = vpop.permute.xlu0 %1144
    %v1147 = vadd.f32 %v1137, %v1145
    %v1148 = vtanh.pop %v1147
    %1150 = vrot.lane.b32.xlu0 %v1148, 32
    %v1151 = vpop.permute.xlu0 %1150
    %v1153 = vmul.f32 %v1135, %v1151
    %1155 = vrot.lane.b32.xlu0 %v1153, 80
    %v1156 = vpop.permute.xlu0 %1155
    %v1157 = vsel %vm212, %v1156, 0
    %1159 = vmatpush.msra.mxu0 0.0
    %1160 = vmatpush.msra.mxu0 0.0
    %1161 = vmatpush.msra.mxu0 0.0
    %1162 = vmatpush.msra.mxu0 0.0
    %1163 = vmatpush.msra.mxu0 0.0
    %1164 = vmatpush.msra.mxu0 0.0
    %1165 = vmatpush.msra.mxu0 0.0
    %1166 = vmatpush.msra.mxu0 0.0
    %1167 = vmatpush.msra.mxu0 0.0
    %1168 = vmatpush.msra.mxu0 0.0
    %1169 = vmatpush.msra.mxu0 0.0
    %1170 = vmatpush.msra.mxu0 0.0
    %1171 = vmatpush.msra.mxu0 0.0
    %1172 = vmatpush.msra.mxu0 0.0
    %1173 = vmatpush.msra.mxu0 %v755
    %1174 = vmatpush.msra.mxu0 %v754
    %1175 = vmatmul.f32.gmra.mxu0 %v1157
    %v1176 = vpop.f32.mrf.mxu0
    %v1177 = vadd.f32 0.0, %v1176
    %1178 = vdwg.mxu0
    %v1179 = vadd.f32 %v895, %v1177
    %v1180 = vxor.u32 %v1179, 2147483648
    %v1181 = vmul.f32 %v1180, 1.442695
    %v1182 = vpow.pop %v1181
    %v1183 = vadd.f32 %v1182, 1.0
    %v1184 = vrcp.pop %v1183
    %v1185 = vmul.f32 %v1183, %v1184
    %v1186 = vsub.f32 1.0, %v1185
    %v1187 = vmul.f32 %v1184, %v1186
    %v1188 = vadd.f32 %v1184, %v1187
    %vm1189 = vweird.f32 %v1183
    %vm1190 = vweird.f32 %v1184
    %vm1191 = vmor %vm1189, %vm1190
    %v1192 = vsel %vm1191, %v1184, %v1188
    %v1193 = vand.u32 2147483647, %v1183
    %vm1194 = vcmp.eq.f32.partialorder %v1193, 8.507059e+37
    %v1195 = vand.u32 %v1183, 2147483648
    %v1196 = vor.u32 1.1754944e-38, %v1195
    %v1197 = vsel %vm1194, %v1196, %v1192
    %v1198 = vmul.f32 1.0, %v1197
    %v1199 = vtanh.pop %v1179
    %v1200 = vmul.f32 %v1198, %v1147
    %1202 = vrot.lane.b32.xlu0 %v1199, 96
    %v1203 = vpop.permute.xlu0 %1202
    %v1205 = vmul.f32 %v1198, %v1203
    %1207 = vrot.lane.b32.xlu0 %v1205, 16
    %v1208 = vpop.permute.xlu0 %1207
    %v1210 = vadd.f32 %v1200, %v1208
    %v1211 = vtanh.pop %v1210
    %1213 = vrot.lane.b32.xlu0 %v1211, 32
    %v1214 = vpop.permute.xlu0 %1213
    %v1216 = vmul.f32 %v1198, %v1214
    %1218 = vrot.lane.b32.xlu0 %v1216, 80
    %v1219 = vpop.permute.xlu0 %1218
    %v1220 = vsel %vm212, %v1219, 0
    %1222 = vmatpush.msra.mxu0 0.0
    %1223 = vmatpush.msra.mxu0 0.0
    %1224 = vmatpush.msra.mxu0 0.0
    %1225 = vmatpush.msra.mxu0 0.0
    %1226 = vmatpush.msra.mxu0 0.0
    %1227 = vmatpush.msra.mxu0 0.0
    %1228 = vmatpush.msra.mxu0 0.0
    %1229 = vmatpush.msra.mxu0 0.0
    %1230 = vmatpush.msra.mxu0 0.0
    %1231 = vmatpush.msra.mxu0 0.0
    %1232 = vmatpush.msra.mxu0 0.0
    %1233 = vmatpush.msra.mxu0 0.0
    %1234 = vmatpush.msra.mxu0 0.0
    %1235 = vmatpush.msra.mxu0 0.0
    %1236 = vmatpush.msra.mxu0 %v755
    %1237 = vmatpush.msra.mxu0 %v754
    %1238 = vmatmul.f32.gmra.mxu0 %v1220
    %v1239 = vpop.f32.mrf.mxu0
    %v1240 = vadd.f32 0.0, %v1239
    %1241 = vdwg.mxu0
    %v1242 = vadd.f32 %v896, %v1240
    %v1243 = vxor.u32 %v1242, 2147483648
    %v1244 = vmul.f32 %v1243, 1.442695
    %v1245 = vpow.pop %v1244
    %v1246 = vadd.f32 %v1245, 1.0
    %v1247 = vrcp.pop %v1246
    %v1248 = vmul.f32 %v1246, %v1247
    %v1249 = vsub.f32 1.0, %v1248
    %v1250 = vmul.f32 %v1247, %v1249
    %v1251 = vadd.f32 %v1247, %v1250
    %vm1252 = vweird.f32 %v1246
    %vm1253 = vweird.f32 %v1247
    %vm1254 = vmor %vm1252, %vm1253
    %v1255 = vsel %vm1254, %v1247, %v1251
    %v1256 = vand.u32 2147483647, %v1246
    %vm1257 = vcmp.eq.f32.partialorder %v1256, 8.507059e+37
    %v1258 = vand.u32 %v1246, 2147483648
    %v1259 = vor.u32 1.1754944e-38, %v1258
    %v1260 = vsel %vm1257, %v1259, %v1255
    %v1261 = vmul.f32 1.0, %v1260
    %v1262 = vtanh.pop %v1242
    %v1263 = vmul.f32 %v1261, %v1210
    %1265 = vrot.lane.b32.xlu0 %v1262, 96
    %v1266 = vpop.permute.xlu0 %1265
    %v1268 = vmul.f32 %v1261, %v1266
    %1270 = vrot.lane.b32.xlu0 %v1268, 16
    %v1271 = vpop.permute.xlu0 %1270
    %v1273 = vadd.f32 %v1263, %v1271
    %v1274 = vtanh.pop %v1273
    %1276 = vrot.lane.b32.xlu0 %v1274, 32
    %v1277 = vpop.permute.xlu0 %1276
    %v1279 = vmul.f32 %v1261, %v1277
    %1281 = vrot.lane.b32.xlu0 %v1279, 80
    %v1282 = vpop.permute.xlu0 %1281
    %v1283 = vsel %vm212, %v1282, 0
    %1285 = vmatpush.msra.mxu0 0.0
    %1286 = vmatpush.msra.mxu0 0.0
    %1287 = vmatpush.msra.mxu0 0.0
    %1288 = vmatpush.msra.mxu0 0.0
    %1289 = vmatpush.msra.mxu0 0.0
    %1290 = vmatpush.msra.mxu0 0.0
    %1291 = vmatpush.msra.mxu0 0.0
    %1292 = vmatpush.msra.mxu0 0.0
    %1293 = vmatpush.msra.mxu0 0.0
    %1294 = vmatpush.msra.mxu0 0.0
    %1295 = vmatpush.msra.mxu0 0.0
    %1296 = vmatpush.msra.mxu0 0.0
    %1297 = vmatpush.msra.mxu0 0.0
    %1298 = vmatpush.msra.mxu0 0.0
    %1299 = vmatpush.msra.mxu0 %v755
    %1300 = vmatpush.msra.mxu0 %v754
    %1301 = vmatmul.f32.gmra.mxu0 %v1283
    %v1302 = vpop.f32.mrf.mxu0
    %v1303 = vadd.f32 0.0, %v1302
    %1304 = vdwg.mxu0
    %v1305 = vadd.f32 %v897, %v1303
    %v1306 = vxor.u32 %v1305, 2147483648
    %v1307 = vmul.f32 %v1306, 1.442695
    %v1308 = vpow.pop %v1307
    %v1309 = vadd.f32 %v1308, 1.0
    %v1310 = vrcp.pop %v1309
    %v1311 = vmul.f32 %v1309, %v1310
    %v1312 = vsub.f32 1.0, %v1311
    %v1313 = vmul.f32 %v1310, %v1312
    %v1314 = vadd.f32 %v1310, %v1313
    %vm1315 = vweird.f32 %v1309
    %vm1316 = vweird.f32 %v1310
    %vm1317 = vmor %vm1315, %vm1316
    %v1318 = vsel %vm1317, %v1310, %v1314
    %v1319 = vand.u32 2147483647, %v1309
    %vm1320 = vcmp.eq.f32.partialorder %v1319, 8.507059e+37
    %v1321 = vand.u32 %v1309, 2147483648
    %v1322 = vor.u32 1.1754944e-38, %v1321
    %v1323 = vsel %vm1320, %v1322, %v1318
    %v1324 = vmul.f32 1.0, %v1323
    %v1325 = vtanh.pop %v1305
    %v1326 = vmul.f32 %v1324, %v1273
    %1328 = vrot.lane.b32.xlu0 %v1325, 96
    %v1329 = vpop.permute.xlu0 %1328
    %v1331 = vmul.f32 %v1324, %v1329
    %1333 = vrot.lane.b32.xlu0 %v1331, 16
    %v1334 = vpop.permute.xlu0 %1333
    %v1336 = vadd.f32 %v1326, %v1334
    %v1337 = vtanh.pop %v1336
    %1339 = vrot.lane.b32.xlu0 %v1337, 32
    %v1340 = vpop.permute.xlu0 %1339
    %v1342 = vmul.f32 %v1324, %v1340
    %1344 = vrot.lane.b32.xlu0 %v1342, 80
    %v1345 = vpop.permute.xlu0 %1344
    %v1346 = vsel %vm212, %v1345, 0
    %1348 = vmatpush.msra.mxu0 0.0
    %1349 = vmatpush.msra.mxu0 0.0
    %1350 = vmatpush.msra.mxu0 0.0
    %1351 = vmatpush.msra.mxu0 0.0
    %1352 = vmatpush.msra.mxu0 0.0
    %1353 = vmatpush.msra.mxu0 0.0
    %1354 = vmatpush.msra.mxu0 0.0
    %1355 = vmatpush.msra.mxu0 0.0
    %1356 = vmatpush.msra.mxu0 0.0
    %1357 = vmatpush.msra.mxu0 0.0
    %1358 = vmatpush.msra.mxu0 0.0
    %1359 = vmatpush.msra.mxu0 0.0
    %1360 = vmatpush.msra.mxu0 0.0
    %1361 = vmatpush.msra.mxu0 0.0
    %1362 = vmatpush.msra.mxu0 %v755
    %1363 = vmatpush.msra.mxu0 %v754
    %1364 = vmatmul.f32.gmra.mxu0 %v1346
    %v1365 = vpop.f32.mrf.mxu0
    %v1366 = vadd.f32 0.0, %v1365
    %1367 = vdwg.mxu0
    %v1368 = vadd.f32 %v898, %v1366
    %v1369 = vxor.u32 %v1368, 2147483648
    %v1370 = vmul.f32 %v1369, 1.442695
    %v1371 = vpow.pop %v1370
    %v1372 = vadd.f32 %v1371, 1.0
    %v1373 = vrcp.pop %v1372
    %v1374 = vmul.f32 %v1372, %v1373
    %v1375 = vsub.f32 1.0, %v1374
    %v1376 = vmul.f32 %v1373, %v1375
    %v1377 = vadd.f32 %v1373, %v1376
    %vm1378 = vweird.f32 %v1372
    %vm1379 = vweird.f32 %v1373
    %vm1380 = vmor %vm1378, %vm1379
    %v1381 = vsel %vm1380, %v1373, %v1377
    %v1382 = vand.u32 2147483647, %v1372
    %vm1383 = vcmp.eq.f32.partialorder %v1382, 8.507059e+37
    %v1384 = vand.u32 %v1372, 2147483648
    %v1385 = vor.u32 1.1754944e-38, %v1384
    %v1386 = vsel %vm1383, %v1385, %v1381
    %v1387 = vmul.f32 1.0, %v1386
    %v1388 = vtanh.pop %v1368
    %v1389 = vmul.f32 %v1387, %v1336
    %1391 = vrot.lane.b32.xlu0 %v1388, 96
    %v1392 = vpop.permute.xlu0 %1391
    %v1394 = vmul.f32 %v1387, %v1392
    %1396 = vrot.lane.b32.xlu0 %v1394, 16
    %v1397 = vpop.permute.xlu0 %1396
    %v1399 = vadd.f32 %v1389, %v1397
    %v1400 = vtanh.pop %v1399
    %1402 = vrot.lane.b32.xlu0 %v1400, 32
    %v1403 = vpop.permute.xlu0 %1402
    %v1405 = vmul.f32 %v1387, %v1403
    %1407 = vrot.lane.b32.xlu0 %v1405, 80
    %v1408 = vpop.permute.xlu0 %1407
    %v1409 = vsel %vm212, %v1408, 0
    %1411 = vmatpush.msra.mxu0 0.0
    %1412 = vmatpush.msra.mxu0 0.0
    %1413 = vmatpush.msra.mxu0 0.0
    %1414 = vmatpush.msra.mxu0 0.0
    %1415 = vmatpush.msra.mxu0 0.0
    %1416 = vmatpush.msra.mxu0 0.0
    %1417 = vmatpush.msra.mxu0 0.0
    %1418 = vmatpush.msra.mxu0 0.0
    %1419 = vmatpush.msra.mxu0 0.0
    %1420 = vmatpush.msra.mxu0 0.0
    %1421 = vmatpush.msra.mxu0 0.0
    %1422 = vmatpush.msra.mxu0 0.0
    %1423 = vmatpush.msra.mxu0 0.0
    %1424 = vmatpush.msra.mxu0 0.0
    %1425 = vmatpush.msra.mxu0 %v755
    %1426 = vmatpush.msra.mxu0 %v754
    %1427 = vmatmul.f32.gmra.mxu0 %v1409
    %v1428 = vpop.f32.mrf.mxu0
    %v1429 = vadd.f32 0.0, %v1428
    %1430 = vdwg.mxu0
    %v1431 = vadd.f32 %v899, %v1429
    %v1432 = vxor.u32 %v1431, 2147483648
    %v1433 = vmul.f32 %v1432, 1.442695
    %v1434 = vpow.pop %v1433
    %v1435 = vadd.f32 %v1434, 1.0
    %v1436 = vrcp.pop %v1435
    %v1437 = vmul.f32 %v1435, %v1436
    %v1438 = vsub.f32 1.0, %v1437
    %v1439 = vmul.f32 %v1436, %v1438
    %v1440 = vadd.f32 %v1436, %v1439
    %vm1441 = vweird.f32 %v1435
    %vm1442 = vweird.f32 %v1436
    %vm1443 = vmor %vm1441, %vm1442
    %v1444 = vsel %vm1443, %v1436, %v1440
    %v1445 = vand.u32 2147483647, %v1435
    %vm1446 = vcmp.eq.f32.partialorder %v1445, 8.507059e+37
    %v1447 = vand.u32 %v1435, 2147483648
    %v1448 = vor.u32 1.1754944e-38, %v1447
    %v1449 = vsel %vm1446, %v1448, %v1444
    %v1450 = vmul.f32 1.0, %v1449
    %v1451 = vtanh.pop %v1431
    %v1452 = vmul.f32 %v1450, %v1399
    %1454 = vrot.lane.b32.xlu0 %v1451, 96
    %v1455 = vpop.permute.xlu0 %1454
    %v1457 = vmul.f32 %v1450, %v1455
    %1459 = vrot.lane.b32.xlu0 %v1457, 16
    %v1460 = vpop.permute.xlu0 %1459
    %v1462 = vadd.f32 %v1452, %v1460
    %v1463 = vtanh.pop %v1462
    %1465 = vrot.lane.b32.xlu0 %v1463, 32
    %v1466 = vpop.permute.xlu0 %1465
    %v1468 = vmul.f32 %v1450, %v1466
    %1470 = vrot.lane.b32.xlu0 %v1468, 80
    %v1471 = vpop.permute.xlu0 %1470
    %v1472 = vsel %vm212, %v1471, 0
    %1474 = vmatpush.msra.mxu0 0.0
    %1475 = vmatpush.msra.mxu0 0.0
    %1476 = vmatpush.msra.mxu0 0.0
    %1477 = vmatpush.msra.mxu0 0.0
    %1478 = vmatpush.msra.mxu0 0.0
    %1479 = vmatpush.msra.mxu0 0.0
    %1480 = vmatpush.msra.mxu0 0.0
    %1481 = vmatpush.msra.mxu0 0.0
    %1482 = vmatpush.msra.mxu0 0.0
    %1483 = vmatpush.msra.mxu0 0.0
    %1484 = vmatpush.msra.mxu0 0.0
    %1485 = vmatpush.msra.mxu0 0.0
    %1486 = vmatpush.msra.mxu0 0.0
    %1487 = vmatpush.msra.mxu0 0.0
    %1488 = vmatpush.msra.mxu0 %v755
    %1489 = vmatpush.msra.mxu0 %v754
    %1490 = vmatmul.f32.gmra.mxu0 %v1472
    %v1491 = vpop.f32.mrf.mxu0
    %v1492 = vadd.f32 0.0, %v1491
    %1493 = vdwg.mxu0
    %v1494 = vadd.f32 %v900, %v1492
    %v1495 = vxor.u32 %v1494, 2147483648
    %v1496 = vmul.f32 %v1495, 1.442695
    %v1497 = vpow.pop %v1496
    %v1498 = vadd.f32 %v1497, 1.0
    %v1499 = vrcp.pop %v1498
    %v1500 = vmul.f32 %v1498, %v1499
    %v1501 = vsub.f32 1.0, %v1500
    %v1502 = vmul.f32 %v1499, %v1501
    %v1503 = vadd.f32 %v1499, %v1502
    %vm1504 = vweird.f32 %v1498
    %vm1505 = vweird.f32 %v1499
    %vm1506 = vmor %vm1504, %vm1505
    %v1507 = vsel %vm1506, %v1499, %v1503
    %v1508 = vand.u32 2147483647, %v1498
    %vm1509 = vcmp.eq.f32.partialorder %v1508, 8.507059e+37
    %v1510 = vand.u32 %v1498, 2147483648
    %v1511 = vor.u32 1.1754944e-38, %v1510
    %v1512 = vsel %vm1509, %v1511, %v1507
    %v1513 = vmul.f32 1.0, %v1512
    %v1514 = vtanh.pop %v1494
    %v1515 = vmul.f32 %v1513, %v1462
    %1517 = vrot.lane.b32.xlu0 %v1514, 96
    %v1518 = vpop.permute.xlu0 %1517
    %v1520 = vmul.f32 %v1513, %v1518
    %1522 = vrot.lane.b32.xlu0 %v1520, 16
    %v1523 = vpop.permute.xlu0 %1522
    %v1525 = vadd.f32 %v1515, %v1523
    %v1526 = vtanh.pop %v1525
    %1528 = vrot.lane.b32.xlu0 %v1526, 32
    %v1529 = vpop.permute.xlu0 %1528
    %v1531 = vmul.f32 %v1513, %v1529
    %1533 = vrot.lane.b32.xlu0 %v1531, 80
    %v1534 = vpop.permute.xlu0 %1533
    %v1535 = vsel %vm212, %v1534, 0
    %1537 = vmatpush.msra.mxu0 0.0
    %1538 = vmatpush.msra.mxu0 0.0
    %1539 = vmatpush.msra.mxu0 0.0
    %1540 = vmatpush.msra.mxu0 0.0
    %1541 = vmatpush.msra.mxu0 0.0
    %1542 = vmatpush.msra.mxu0 0.0
    %1543 = vmatpush.msra.mxu0 0.0
    %1544 = vmatpush.msra.mxu0 0.0
    %1545 = vmatpush.msra.mxu0 0.0
    %1546 = vmatpush.msra.mxu0 0.0
    %1547 = vmatpush.msra.mxu0 0.0
    %1548 = vmatpush.msra.mxu0 0.0
    %1549 = vmatpush.msra.mxu0 0.0
    %1550 = vmatpush.msra.mxu0 0.0
    %1551 = vmatpush.msra.mxu0 %v755
    %1552 = vmatpush.msra.mxu0 %v754
    %1553 = vmatmul.f32.gmra.mxu0 %v1535
    %v1554 = vpop.f32.mrf.mxu0
    %v1555 = vadd.f32 0.0, %v1554
    %1556 = vdwg.mxu0
    %v1557 = vadd.f32 %v901, %v1555
    %v1558 = vxor.u32 %v1557, 2147483648
    %v1559 = vmul.f32 %v1558, 1.442695
    %v1560 = vpow.pop %v1559
    %v1561 = vadd.f32 %v1560, 1.0
    %v1562 = vrcp.pop %v1561
    %v1563 = vmul.f32 %v1561, %v1562
    %v1564 = vsub.f32 1.0, %v1563
    %v1565 = vmul.f32 %v1562, %v1564
    %v1566 = vadd.f32 %v1562, %v1565
    %vm1567 = vweird.f32 %v1561
    %vm1568 = vweird.f32 %v1562
    %vm1569 = vmor %vm1567, %vm1568
    %v1570 = vsel %vm1569, %v1562, %v1566
    %v1571 = vand.u32 2147483647, %v1561
    %vm1572 = vcmp.eq.f32.partialorder %v1571, 8.507059e+37
    %v1573 = vand.u32 %v1561, 2147483648
    %v1574 = vor.u32 1.1754944e-38, %v1573
    %v1575 = vsel %vm1572, %v1574, %v1570
    %v1576 = vmul.f32 1.0, %v1575
    %v1577 = vtanh.pop %v1557
    %v1578 = vmul.f32 %v1576, %v1525
    %1580 = vrot.lane.b32.xlu0 %v1577, 96
    %v1581 = vpop.permute.xlu0 %1580
    %v1583 = vmul.f32 %v1576, %v1581
    %1585 = vrot.lane.b32.xlu0 %v1583, 16
    %v1586 = vpop.permute.xlu0 %1585
    %v1588 = vadd.f32 %v1578, %v1586
    %v1589 = vtanh.pop %v1588
    %1591 = vrot.lane.b32.xlu0 %v1589, 32
    %v1592 = vpop.permute.xlu0 %1591
    %v1594 = vmul.f32 %v1576, %v1592
    %1596 = vrot.lane.b32.xlu0 %v1594, 80
    %v1597 = vpop.permute.xlu0 %1596
    %v1598 = vsel %vm212, %v1597, 0
    %1600 = vmatpush.msra.mxu0 0.0
    %1601 = vmatpush.msra.mxu0 0.0
    %1602 = vmatpush.msra.mxu0 0.0
    %1603 = vmatpush.msra.mxu0 0.0
    %1604 = vmatpush.msra.mxu0 0.0
    %1605 = vmatpush.msra.mxu0 0.0
    %1606 = vmatpush.msra.mxu0 0.0
    %1607 = vmatpush.msra.mxu0 0.0
    %1608 = vmatpush.msra.mxu0 0.0
    %1609 = vmatpush.msra.mxu0 0.0
    %1610 = vmatpush.msra.mxu0 0.0
    %1611 = vmatpush.msra.mxu0 0.0
    %1612 = vmatpush.msra.mxu0 0.0
    %1613 = vmatpush.msra.mxu0 0.0
    %1614 = vmatpush.msra.mxu0 %v755
    %1615 = vmatpush.msra.mxu0 %v754
    %1616 = vmatmul.f32.gmra.mxu0 %v1598
    %v1617 = vpop.f32.mrf.mxu0
    %v1618 = vadd.f32 0.0, %v1617
    %1619 = vdwg.mxu0
    %v1620 = vadd.f32 %v902, %v1618
    %v1621 = vxor.u32 %v1620, 2147483648
    %v1622 = vmul.f32 %v1621, 1.442695
    %v1623 = vpow.pop %v1622
    %v1624 = vadd.f32 %v1623, 1.0
    %v1625 = vrcp.pop %v1624
    %v1626 = vmul.f32 %v1624, %v1625
    %v1627 = vsub.f32 1.0, %v1626
    %v1628 = vmul.f32 %v1625, %v1627
    %v1629 = vadd.f32 %v1625, %v1628
    %vm1630 = vweird.f32 %v1624
    %vm1631 = vweird.f32 %v1625
    %vm1632 = vmor %vm1630, %vm1631
    %v1633 = vsel %vm1632, %v1625, %v1629
    %v1634 = vand.u32 2147483647, %v1624
    %vm1635 = vcmp.eq.f32.partialorder %v1634, 8.507059e+37
    %v1636 = vand.u32 %v1624, 2147483648
    %v1637 = vor.u32 1.1754944e-38, %v1636
    %v1638 = vsel %vm1635, %v1637, %v1633
    %v1639 = vmul.f32 1.0, %v1638
    %v1640 = vtanh.pop %v1620
    %v1641 = vmul.f32 %v1639, %v1588
    %1643 = vrot.lane.b32.xlu0 %v1640, 96
    %v1644 = vpop.permute.xlu0 %1643
    %v1646 = vmul.f32 %v1639, %v1644
    %1648 = vrot.lane.b32.xlu0 %v1646, 16
    %v1649 = vpop.permute.xlu0 %1648
    %v1651 = vadd.f32 %v1641, %v1649
    %v1652 = vtanh.pop %v1651
    %1654 = vrot.lane.b32.xlu0 %v1652, 32
    %v1655 = vpop.permute.xlu0 %1654
    %v1657 = vmul.f32 %v1639, %v1655
    %1659 = vrot.lane.b32.xlu0 %v1657, 80
    %v1660 = vpop.permute.xlu0 %1659
    %v1661 = vsel %vm212, %v1660, 0
    %1663 = vmatpush.msra.mxu0 0.0
    %1664 = vmatpush.msra.mxu0 0.0
    %1665 = vmatpush.msra.mxu0 0.0
    %1666 = vmatpush.msra.mxu0 0.0
    %1667 = vmatpush.msra.mxu0 0.0
    %1668 = vmatpush.msra.mxu0 0.0
    %1669 = vmatpush.msra.mxu0 0.0
    %1670 = vmatpush.msra.mxu0 0.0
    %1671 = vmatpush.msra.mxu0 0.0
    %1672 = vmatpush.msra.mxu0 0.0
    %1673 = vmatpush.msra.mxu0 0.0
    %1674 = vmatpush.msra.mxu0 0.0
    %1675 = vmatpush.msra.mxu0 0.0
    %1676 = vmatpush.msra.mxu0 0.0
    %1677 = vmatpush.msra.mxu0 %v755
    %1678 = vmatpush.msra.mxu0 %v754
    %1679 = vmatmul.f32.gmra.mxu0 %v1661
    %v1680 = vpop.f32.mrf.mxu0
    %v1681 = vadd.f32 0.0, %v1680
    %1682 = vdwg.mxu0
    %v1683 = vadd.f32 %v903, %v1681
    %v1684 = vxor.u32 %v1683, 2147483648
    %v1685 = vmul.f32 %v1684, 1.442695
    %v1686 = vpow.pop %v1685
    %v1687 = vadd.f32 %v1686, 1.0
    %v1688 = vrcp.pop %v1687
    %v1689 = vmul.f32 %v1687, %v1688
    %v1690 = vsub.f32 1.0, %v1689
    %v1691 = vmul.f32 %v1688, %v1690
    %v1692 = vadd.f32 %v1688, %v1691
    %vm1693 = vweird.f32 %v1687
    %vm1694 = vweird.f32 %v1688
    %vm1695 = vmor %vm1693, %vm1694
    %v1696 = vsel %vm1695, %v1688, %v1692
    %v1697 = vand.u32 2147483647, %v1687
    %vm1698 = vcmp.eq.f32.partialorder %v1697, 8.507059e+37
    %v1699 = vand.u32 %v1687, 2147483648
    %v1700 = vor.u32 1.1754944e-38, %v1699
    %v1701 = vsel %vm1698, %v1700, %v1696
    %v1702 = vmul.f32 1.0, %v1701
    %v1703 = vtanh.pop %v1683
    %v1704 = vmul.f32 %v1702, %v1651
    %1706 = vrot.lane.b32.xlu0 %v1703, 96
    %v1707 = vpop.permute.xlu0 %1706
    %v1709 = vmul.f32 %v1702, %v1707
    %1711 = vrot.lane.b32.xlu0 %v1709, 16
    %v1712 = vpop.permute.xlu0 %1711
    %v1714 = vadd.f32 %v1704, %v1712
    %v1715 = vtanh.pop %v1714
    %1717 = vrot.lane.b32.xlu0 %v1715, 32
    %v1718 = vpop.permute.xlu0 %1717
    %v1720 = vmul.f32 %v1702, %v1718
    %1722 = vrot.lane.b32.xlu0 %v1720, 80
    %v1723 = vpop.permute.xlu0 %1722
    %v1724 = vsel %vm212, %v1723, 0
    %1726 = vmatpush.msra.mxu0 0.0
    %1727 = vmatpush.msra.mxu0 0.0
    %1728 = vmatpush.msra.mxu0 0.0
    %1729 = vmatpush.msra.mxu0 0.0
    %1730 = vmatpush.msra.mxu0 0.0
    %1731 = vmatpush.msra.mxu0 0.0
    %1732 = vmatpush.msra.mxu0 0.0
    %1733 = vmatpush.msra.mxu0 0.0
    %1734 = vmatpush.msra.mxu0 0.0
    %1735 = vmatpush.msra.mxu0 0.0
    %1736 = vmatpush.msra.mxu0 0.0
    %1737 = vmatpush.msra.mxu0 0.0
    %1738 = vmatpush.msra.mxu0 0.0
    %1739 = vmatpush.msra.mxu0 0.0
    %1740 = vmatpush.msra.mxu0 %v755
    %1741 = vmatpush.msra.mxu0 %v754
    %1742 = vmatmul.f32.gmra.mxu0 %v1724
    %v1743 = vpop.f32.mrf.mxu0
    %v1744 = vadd.f32 0.0, %v1743
    %1745 = vdwg.mxu0
    %v1746 = vadd.f32 %v904, %v1744
    %v1747 = vxor.u32 %v1746, 2147483648
    %v1748 = vmul.f32 %v1747, 1.442695
    %v1749 = vpow.pop %v1748
    %v1750 = vadd.f32 %v1749, 1.0
    %v1751 = vrcp.pop %v1750
    %v1752 = vmul.f32 %v1750, %v1751
    %v1753 = vsub.f32 1.0, %v1752
    %v1754 = vmul.f32 %v1751, %v1753
    %v1755 = vadd.f32 %v1751, %v1754
    %vm1756 = vweird.f32 %v1750
    %vm1757 = vweird.f32 %v1751
    %vm1758 = vmor %vm1756, %vm1757
    %v1759 = vsel %vm1758, %v1751, %v1755
    %v1760 = vand.u32 2147483647, %v1750
    %vm1761 = vcmp.eq.f32.partialorder %v1760, 8.507059e+37
    %v1762 = vand.u32 %v1750, 2147483648
    %v1763 = vor.u32 1.1754944e-38, %v1762
    %v1764 = vsel %vm1761, %v1763, %v1759
    %v1765 = vmul.f32 1.0, %v1764
    %v1766 = vtanh.pop %v1746
    %v1767 = vmul.f32 %v1765, %v1714
    %1769 = vrot.lane.b32.xlu0 %v1766, 96
    %v1770 = vpop.permute.xlu0 %1769
    %v1772 = vmul.f32 %v1765, %v1770
    %1774 = vrot.lane.b32.xlu0 %v1772, 16
    %v1775 = vpop.permute.xlu0 %1774
    %v1777 = vadd.f32 %v1767, %v1775
    %v1778 = vtanh.pop %v1777
    %1780 = vrot.lane.b32.xlu0 %v1778, 32
    %v1781 = vpop.permute.xlu0 %1780
    %v1783 = vmul.f32 %v1765, %v1781
    %1785 = vrot.lane.b32.xlu0 %v1783, 80
    %v1786 = vpop.permute.xlu0 %1785
    %v1787 = vsel %vm212, %v1786, 0
    %1789 = vmatpush.msra.mxu0 0.0
    %1790 = vmatpush.msra.mxu0 0.0
    %1791 = vmatpush.msra.mxu0 0.0
    %1792 = vmatpush.msra.mxu0 0.0
    %1793 = vmatpush.msra.mxu0 0.0
    %1794 = vmatpush.msra.mxu0 0.0
    %1795 = vmatpush.msra.mxu0 0.0
    %1796 = vmatpush.msra.mxu0 0.0
    %1797 = vmatpush.msra.mxu0 0.0
    %1798 = vmatpush.msra.mxu0 0.0
    %1799 = vmatpush.msra.mxu0 0.0
    %1800 = vmatpush.msra.mxu0 0.0
    %1801 = vmatpush.msra.mxu0 0.0
    %1802 = vmatpush.msra.mxu0 0.0
    %1803 = vmatpush.msra.mxu0 %v755
    %1804 = vmatpush.msra.mxu0 %v754
    %1805 = vmatmul.f32.gmra.mxu0 %v1787
    %v1806 = vpop.f32.mrf.mxu0
    %v1807 = vadd.f32 0.0, %v1806
    %1808 = vdwg.mxu0
    %v1809 = vadd.f32 %v905, %v1807
    %v1810 = vxor.u32 %v1809, 2147483648
    %v1811 = vmul.f32 %v1810, 1.442695
    %v1812 = vpow.pop %v1811
    %v1813 = vadd.f32 %v1812, 1.0
    %v1814 = vrcp.pop %v1813
    %v1815 = vmul.f32 %v1813, %v1814
    %v1816 = vsub.f32 1.0, %v1815
    %v1817 = vmul.f32 %v1814, %v1816
    %v1818 = vadd.f32 %v1814, %v1817
    %vm1819 = vweird.f32 %v1813
    %vm1820 = vweird.f32 %v1814
    %vm1821 = vmor %vm1819, %vm1820
    %v1822 = vsel %vm1821, %v1814, %v1818
    %v1823 = vand.u32 2147483647, %v1813
    %vm1824 = vcmp.eq.f32.partialorder %v1823, 8.507059e+37
    %v1825 = vand.u32 %v1813, 2147483648
    %v1826 = vor.u32 1.1754944e-38, %v1825
    %v1827 = vsel %vm1824, %v1826, %v1822
    %v1828 = vmul.f32 1.0, %v1827
    %v1829 = vtanh.pop %v1809
    %v1830 = vmul.f32 %v1828, %v1777
    %1832 = vrot.lane.b32.xlu0 %v1829, 96
    %v1833 = vpop.permute.xlu0 %1832
    %v1835 = vmul.f32 %v1828, %v1833
    %1837 = vrot.lane.b32.xlu0 %v1835, 16
    %v1838 = vpop.permute.xlu0 %1837
    %v1840 = vadd.f32 %v1830, %v1838
    %v1841 = vtanh.pop %v1840
    %1843 = vrot.lane.b32.xlu0 %v1841, 32
    %v1844 = vpop.permute.xlu0 %1843
    %v1846 = vmul.f32 %v1828, %v1844
    %1848 = vrot.lane.b32.xlu0 %v1846, 80
    %v1849 = vpop.permute.xlu0 %1848
    %v1850 = vsel %vm212, %v1849, 0
    %1852 = vmatpush.msra.mxu0 0.0
    %1853 = vmatpush.msra.mxu0 0.0
    %1854 = vmatpush.msra.mxu0 0.0
    %1855 = vmatpush.msra.mxu0 0.0
    %1856 = vmatpush.msra.mxu0 0.0
    %1857 = vmatpush.msra.mxu0 0.0
    %1858 = vmatpush.msra.mxu0 0.0
    %1859 = vmatpush.msra.mxu0 0.0
    %1860 = vmatpush.msra.mxu0 0.0
    %1861 = vmatpush.msra.mxu0 0.0
    %1862 = vmatpush.msra.mxu0 0.0
    %1863 = vmatpush.msra.mxu0 0.0
    %1864 = vmatpush.msra.mxu0 0.0
    %1865 = vmatpush.msra.mxu0 0.0
    %1866 = vmatpush.msra.mxu0 %v755
    %1867 = vmatpush.msra.mxu0 %v754
    %1868 = vmatmul.f32.gmra.mxu0 %v1850
    %v1869 = vpop.f32.mrf.mxu0
    %v1870 = vadd.f32 0.0, %v1869
    %1871 = vdwg.mxu0
    %v1872 = vadd.f32 %v906, %v1870
    %v1873 = vxor.u32 %v1872, 2147483648
    %v1874 = vmul.f32 %v1873, 1.442695
    %v1875 = vpow.pop %v1874
    %v1876 = vadd.f32 %v1875, 1.0
    %v1877 = vrcp.pop %v1876
    %v1878 = vmul.f32 %v1876, %v1877
    %v1879 = vsub.f32 1.0, %v1878
    %v1880 = vmul.f32 %v1877, %v1879
    %v1881 = vadd.f32 %v1877, %v1880
    %vm1882 = vweird.f32 %v1876
    %vm1883 = vweird.f32 %v1877
    %vm1884 = vmor %vm1882, %vm1883
    %v1885 = vsel %vm1884, %v1877, %v1881
    %v1886 = vand.u32 2147483647, %v1876
    %vm1887 = vcmp.eq.f32.partialorder %v1886, 8.507059e+37
    %v1888 = vand.u32 %v1876, 2147483648
    %v1889 = vor.u32 1.1754944e-38, %v1888
    %v1890 = vsel %vm1887, %v1889, %v1885
    %v1891 = vmul.f32 1.0, %v1890
    %v1892 = vtanh.pop %v1872
    %v1893 = vmul.f32 %v1891, %v1840
    %1895 = vrot.lane.b32.xlu0 %v1892, 96
    %v1896 = vpop.permute.xlu0 %1895
    %v1898 = vmul.f32 %v1891, %v1896
    %1900 = vrot.lane.b32.xlu0 %v1898, 16
    %v1901 = vpop.permute.xlu0 %1900
    %v1903 = vadd.f32 %v1893, %v1901
    %v1904 = vtanh.pop %v1903
    %1906 = vrot.lane.b32.xlu0 %v1904, 32
    %v1907 = vpop.permute.xlu0 %1906
    %v1909 = vmul.f32 %v1891, %v1907
    %1911 = vrot.lane.b32.xlu0 %v1909, 96
    %v1912 = vpop.permute.xlu0 %1911
    %vm1914 = vcmask 255104
    %1915 = vst.msk [vmem:[%s13] sm:$0x3] %vm1914, %v1912
    %1916 = vrot.lane.b32.xlu0 %v1909, 80
    %v1917 = vpop.permute.xlu0 %1916
    %1919 = vxpose.xlu0.b32.start [1/16] %v1917, 128
    %1920 = vxpose.xlu0.b32.cont [2/16] 0.0, 128
    %1921 = vxpose.xlu0.b32.cont [3/16] 0.0, 128
    %1922 = vxpose.xlu0.b32.cont [4/16] 0.0, 128
    %1923 = vxpose.xlu0.b32.cont [5/16] 0.0, 128
    %1924 = vxpose.xlu0.b32.cont [6/16] 0.0, 128
    %1925 = vxpose.xlu0.b32.cont [7/16] 0.0, 128
    %1926 = vxpose.xlu0.b32.cont [8/16] 0.0, 128
    %1927 = vxpose.xlu0.b32.cont [9/16] 0.0, 128
    %1928 = vxpose.xlu0.b32.cont [10/16] 0.0, 128
    %1929 = vxpose.xlu0.b32.cont [11/16] 0.0, 128
    %1930 = vxpose.xlu0.b32.cont [12/16] 0.0, 128
    %1931 = vxpose.xlu0.b32.cont [13/16] 0.0, 128
    %1932 = vxpose.xlu0.b32.cont [14/16] 0.0, 128
    %1933 = vxpose.xlu0.b32.cont [15/16] 0.0, 128
    %1934 = vxpose.xlu0.b32.end [16/16] 0.0, 128
    %v1935 = vpop.trf.xlu0
    %v1936 = vpop.trf.xlu0
    %v1937 = vpop.trf.xlu0
    %v1938 = vpop.trf.xlu0
    %v1939 = vpop.trf.xlu0
    %v1940 = vpop.trf.xlu0
    %v1941 = vpop.trf.xlu0
    %v1942 = vpop.trf.xlu0
    %v1943 = vpop.trf.xlu0
    %v1944 = vpop.trf.xlu0
    %v1945 = vpop.trf.xlu0
    %v1946 = vpop.trf.xlu0
    %v1947 = vpop.trf.xlu0
    %v1948 = vpop.trf.xlu0
    %v1949 = vpop.trf.xlu0
    %v1950 = vpop.trf.xlu0
    %v1951 = vld [vmem:[%s7] sm:$0x1]
    %v1952 = vld [vmem:[#allocation7] sm:$0xff]
    %v1953 = vld [vmem:[#allocation7 + $0x8] sm:$0xff]
    %v1954 = vld [vmem:[%s9] sm:$0x1]
    %v1955 = vperm.slane %v1935, 0
    %v1956 = vlaneseq
    %v1957 = vshrl.u32 %v1956, 7
    %1959 = vset.pattern.permute.xlu0 %v1957
    %1960 = vperm.xlu0 %1959, %v1955
    %v1961 = vpop.permute.xlu0 %1960
    %v1962 = vperm.slane %v1935, 1
    %v1963 = vlaneseq
    %v1964 = vshrl.u32 %v1963, 7
    %1966 = vset.pattern.permute.xlu0 %v1964
    %1967 = vperm.xlu0 %1966, %v1962
    %v1968 = vpop.permute.xlu0 %1967
    %v1969 = vperm.slane %v1935, 2
    %v1970 = vlaneseq
    %v1971 = vshrl.u32 %v1970, 7
    %1973 = vset.pattern.permute.xlu0 %v1971
    %1974 = vperm.xlu0 %1973, %v1969
    %v1975 = vpop.permute.xlu0 %1974
    %v1976 = vperm.slane %v1935, 3
    %v1977 = vlaneseq
    %v1978 = vshrl.u32 %v1977, 7
    %1980 = vset.pattern.permute.xlu0 %v1978
    %1981 = vperm.xlu0 %1980, %v1976
    %v1982 = vpop.permute.xlu0 %1981
    %v1983 = vperm.slane %v1935, 4
    %v1984 = vlaneseq
    %v1985 = vshrl.u32 %v1984, 7
    %1987 = vset.pattern.permute.xlu0 %v1985
    %1988 = vperm.xlu0 %1987, %v1983
    %v1989 = vpop.permute.xlu0 %1988
    %v1990 = vperm.slane %v1935, 5
    %v1991 = vlaneseq
    %v1992 = vshrl.u32 %v1991, 7
    %1994 = vset.pattern.permute.xlu0 %v1992
    %1995 = vperm.xlu0 %1994, %v1990
    %v1996 = vpop.permute.xlu0 %1995
    %v1997 = vperm.slane %v1935, 6
    %v1998 = vlaneseq
    %v1999 = vshrl.u32 %v1998, 7
    %2001 = vset.pattern.permute.xlu0 %v1999
    %2002 = vperm.xlu0 %2001, %v1997
    %v2003 = vpop.permute.xlu0 %2002
    %v2004 = vperm.slane %v1935, 7
    %v2005 = vlaneseq
    %v2006 = vshrl.u32 %v2005, 7
    %2008 = vset.pattern.permute.xlu0 %v2006
    %2009 = vperm.xlu0 %2008, %v2004
    %v2010 = vpop.permute.xlu0 %2009
    %v2011 = vperm.slane %v1936, 0
    %v2012 = vlaneseq
    %v2013 = vshrl.u32 %v2012, 7
    %2015 = vset.pattern.permute.xlu0 %v2013
    %2016 = vperm.xlu0 %2015, %v2011
    %v2017 = vpop.permute.xlu0 %2016
    %v2018 = vperm.slane %v1936, 1
    %v2019 = vlaneseq
    %v2020 = vshrl.u32 %v2019, 7
    %2022 = vset.pattern.permute.xlu0 %v2020
    %2023 = vperm.xlu0 %2022, %v2018
    %v2024 = vpop.permute.xlu0 %2023
    %v2025 = vperm.slane %v1936, 2
    %v2026 = vlaneseq
    %v2027 = vshrl.u32 %v2026, 7
    %2029 = vset.pattern.permute.xlu0 %v2027
    %2030 = vperm.xlu0 %2029, %v2025
    %v2031 = vpop.permute.xlu0 %2030
    %v2032 = vperm.slane %v1936, 3
    %v2033 = vlaneseq
    %v2034 = vshrl.u32 %v2033, 7
    %2036 = vset.pattern.permute.xlu0 %v2034
    %2037 = vperm.xlu0 %2036, %v2032
    %v2038 = vpop.permute.xlu0 %2037
    %v2039 = vperm.slane %v1936, 4
    %v2040 = vlaneseq
    %v2041 = vshrl.u32 %v2040, 7
    %2043 = vset.pattern.permute.xlu0 %v2041
    %2044 = vperm.xlu0 %2043, %v2039
    %v2045 = vpop.permute.xlu0 %2044
    %v2046 = vperm.slane %v1936, 5
    %v2047 = vlaneseq
    %v2048 = vshrl.u32 %v2047, 7
    %2050 = vset.pattern.permute.xlu0 %v2048
    %2051 = vperm.xlu0 %2050, %v2046
    %v2052 = vpop.permute.xlu0 %2051
    %v2053 = vperm.slane %v1936, 6
    %v2054 = vlaneseq
    %v2055 = vshrl.u32 %v2054, 7
    %2057 = vset.pattern.permute.xlu0 %v2055
    %2058 = vperm.xlu0 %2057, %v2053
    %v2059 = vpop.permute.xlu0 %2058
    %v2060 = vperm.slane %v1936, 7
    %v2061 = vlaneseq
    %v2062 = vshrl.u32 %v2061, 7
    %2064 = vset.pattern.permute.xlu0 %v2062
    %2065 = vperm.xlu0 %2064, %v2060
    %v2066 = vpop.permute.xlu0 %2065
    %v2068 = vperm.slane %v1951, 0
    %v2070 = vmul.f32 %v1961, %v2068
    %v2071 = vmul.f32 %v1968, %v2068
    %v2072 = vmul.f32 %v1975, %v2068
    %v2073 = vmul.f32 %v1982, %v2068
    %v2074 = vmul.f32 %v1989, %v2068
    %v2075 = vmul.f32 %v1996, %v2068
    %v2076 = vmul.f32 %v2003, %v2068
    %v2077 = vmul.f32 %v2010, %v2068
    %v2078 = vmul.f32 %v2017, %v2068
    %v2079 = vmul.f32 %v2024, %v2068
    %v2080 = vmul.f32 %v2031, %v2068
    %v2081 = vmul.f32 %v2038, %v2068
    %v2082 = vmul.f32 %v2045, %v2068
    %v2083 = vmul.f32 %v2052, %v2068
    %v2084 = vmul.f32 %v2059, %v2068
    %v2085 = vmul.f32 %v2066, %v2068
    %v2087 = vperm.slane %v1954, 0
    %v2089 = vadd.f32 %v2070, %v2087
    %v2090 = vadd.f32 %v2071, %v2087
    %v2091 = vadd.f32 %v2072, %v2087
    %v2092 = vadd.f32 %v2073, %v2087
    %v2093 = vadd.f32 %v2074, %v2087
    %v2094 = vadd.f32 %v2075, %v2087
    %v2095 = vadd.f32 %v2076, %v2087
    %v2096 = vadd.f32 %v2077, %v2087
    %v2097 = vadd.f32 %v2078, %v2087
    %v2098 = vadd.f32 %v2079, %v2087
    %v2099 = vadd.f32 %v2080, %v2087
    %v2100 = vadd.f32 %v2081, %v2087
    %v2101 = vadd.f32 %v2082, %v2087
    %v2102 = vadd.f32 %v2083, %v2087
    %v2103 = vadd.f32 %v2084, %v2087
    %v2104 = vadd.f32 %v2085, %v2087
    %2105 = vmatpush.msra.mxu0 0.0
    %2106 = vmatpush.msra.mxu0 0.0
    %2107 = vmatpush.msra.mxu0 0.0
    %2108 = vmatpush.msra.mxu0 0.0
    %2109 = vmatpush.msra.mxu0 0.0
    %2110 = vmatpush.msra.mxu0 0.0
    %2111 = vmatpush.msra.mxu0 0.0
    %2112 = vmatpush.msra.mxu0 0.0
    %2113 = vmatpush.msra.mxu0 0.0
    %2114 = vmatpush.msra.mxu0 0.0
    %2115 = vmatpush.msra.mxu0 0.0
    %2116 = vmatpush.msra.mxu0 0.0
    %2117 = vmatpush.msra.mxu0 0.0
    %2118 = vmatpush.msra.mxu0 0.0
    %2119 = vmatpush.msra.mxu0 %v1953
    %2120 = vmatpush.msra.mxu0 %v1952
    %2121 = vmatmul.f32.gmra.mxu0 %v214
    %v2122 = vpop.f32.mrf.mxu0
    %v2123 = vadd.f32 0.0, %v2122
    %2124 = vdwg.mxu0
    %v2125 = vadd.f32 %v2089, %v2123
    %v2126 = vxor.u32 %v2125, 2147483648
    %v2127 = vmul.f32 %v2126, 1.442695
    %v2128 = vpow.pop %v2127
    %v2129 = vadd.f32 %v2128, 1.0
    %v2130 = vrcp.pop %v2129
    %v2131 = vmul.f32 %v2129, %v2130
    %v2132 = vsub.f32 1.0, %v2131
    %v2133 = vmul.f32 %v2130, %v2132
    %v2134 = vadd.f32 %v2130, %v2133
    %vm2135 = vweird.f32 %v2129
    %vm2136 = vweird.f32 %v2130
    %vm2137 = vmor %vm2135, %vm2136
    %v2138 = vsel %vm2137, %v2130, %v2134
    %v2139 = vand.u32 2147483647, %v2129
    %vm2140 = vcmp.eq.f32.partialorder %v2139, 8.507059e+37
    %v2141 = vand.u32 %v2129, 2147483648
    %v2142 = vor.u32 1.1754944e-38, %v2141
    %v2143 = vsel %vm2140, %v2142, %v2138
    %v2144 = vmul.f32 1.0, %v2143
    %v2145 = vtanh.pop %v2125
    %v2146 = vmul.f32 %v2144, 0.0
    %2148 = vrot.lane.b32.xlu0 %v2145, 96
    %v2149 = vpop.permute.xlu0 %2148
    %v2151 = vmul.f32 %v2144, %v2149
    %2153 = vrot.lane.b32.xlu0 %v2151, 16
    %v2154 = vpop.permute.xlu0 %2153
    %v2156 = vadd.f32 %v2146, %v2154
    %v2157 = vtanh.pop %v2156
    %2159 = vrot.lane.b32.xlu0 %v2157, 32
    %v2160 = vpop.permute.xlu0 %2159
    %v2162 = vmul.f32 %v2144, %v2160
    %2164 = vrot.lane.b32.xlu0 %v2162, 80
    %v2165 = vpop.permute.xlu0 %2164
    %v2166 = vsel %vm212, %v2165, 0
    %2168 = vmatpush.msra.mxu0 0.0
    %2169 = vmatpush.msra.mxu0 0.0
    %2170 = vmatpush.msra.mxu0 0.0
    %2171 = vmatpush.msra.mxu0 0.0
    %2172 = vmatpush.msra.mxu0 0.0
    %2173 = vmatpush.msra.mxu0 0.0
    %2174 = vmatpush.msra.mxu0 0.0
    %2175 = vmatpush.msra.mxu0 0.0
    %2176 = vmatpush.msra.mxu0 0.0
    %2177 = vmatpush.msra.mxu0 0.0
    %2178 = vmatpush.msra.mxu0 0.0
    %2179 = vmatpush.msra.mxu0 0.0
    %2180 = vmatpush.msra.mxu0 0.0
    %2181 = vmatpush.msra.mxu0 0.0
    %2182 = vmatpush.msra.mxu0 %v1953
    %2183 = vmatpush.msra.mxu0 %v1952
    %2184 = vmatmul.f32.gmra.mxu0 %v2166
    %v2185 = vpop.f32.mrf.mxu0
    %v2186 = vadd.f32 0.0, %v2185
    %2187 = vdwg.mxu0
    %v2188 = vadd.f32 %v2090, %v2186
    %v2189 = vxor.u32 %v2188, 2147483648
    %v2190 = vmul.f32 %v2189, 1.442695
    %v2191 = vpow.pop %v2190
    %v2192 = vadd.f32 %v2191, 1.0
    %v2193 = vrcp.pop %v2192
    %v2194 = vmul.f32 %v2192, %v2193
    %v2195 = vsub.f32 1.0, %v2194
    %v2196 = vmul.f32 %v2193, %v2195
    %v2197 = vadd.f32 %v2193, %v2196
    %vm2198 = vweird.f32 %v2192
    %vm2199 = vweird.f32 %v2193
    %vm2200 = vmor %vm2198, %vm2199
    %v2201 = vsel %vm2200, %v2193, %v2197
    %v2202 = vand.u32 2147483647, %v2192
    %vm2203 = vcmp.eq.f32.partialorder %v2202, 8.507059e+37
    %v2204 = vand.u32 %v2192, 2147483648
    %v2205 = vor.u32 1.1754944e-38, %v2204
    %v2206 = vsel %vm2203, %v2205, %v2201
    %v2207 = vmul.f32 1.0, %v2206
    %v2208 = vtanh.pop %v2188
    %v2209 = vmul.f32 %v2207, %v2156
    %2211 = vrot.lane.b32.xlu0 %v2208, 96
    %v2212 = vpop.permute.xlu0 %2211
    %v2214 = vmul.f32 %v2207, %v2212
    %2216 = vrot.lane.b32.xlu0 %v2214, 16
    %v2217 = vpop.permute.xlu0 %2216
    %v2219 = vadd.f32 %v2209, %v2217
    %v2220 = vtanh.pop %v2219
    %2222 = vrot.lane.b32.xlu0 %v2220, 32
    %v2223 = vpop.permute.xlu0 %2222
    %v2225 = vmul.f32 %v2207, %v2223
    %2227 = vrot.lane.b32.xlu0 %v2225, 80
    %v2228 = vpop.permute.xlu0 %2227
    %v2229 = vsel %vm212, %v2228, 0
    %2231 = vmatpush.msra.mxu0 0.0
    %2232 = vmatpush.msra.mxu0 0.0
    %2233 = vmatpush.msra.mxu0 0.0
    %2234 = vmatpush.msra.mxu0 0.0
    %2235 = vmatpush.msra.mxu0 0.0
    %2236 = vmatpush.msra.mxu0 0.0
    %2237 = vmatpush.msra.mxu0 0.0
    %2238 = vmatpush.msra.mxu0 0.0
    %2239 = vmatpush.msra.mxu0 0.0
    %2240 = vmatpush.msra.mxu0 0.0
    %2241 = vmatpush.msra.mxu0 0.0
    %2242 = vmatpush.msra.mxu0 0.0
    %2243 = vmatpush.msra.mxu0 0.0
    %2244 = vmatpush.msra.mxu0 0.0
    %2245 = vmatpush.msra.mxu0 %v1953
    %2246 = vmatpush.msra.mxu0 %v1952
    %2247 = vmatmul.f32.gmra.mxu0 %v2229
    %v2248 = vpop.f32.mrf.mxu0
    %v2249 = vadd.f32 0.0, %v2248
    %2250 = vdwg.mxu0
    %v2251 = vadd.f32 %v2091, %v2249
    %v2252 = vxor.u32 %v2251, 2147483648
    %v2253 = vmul.f32 %v2252, 1.442695
    %v2254 = vpow.pop %v2253
    %v2255 = vadd.f32 %v2254, 1.0
    %v2256 = vrcp.pop %v2255
    %v2257 = vmul.f32 %v2255, %v2256
    %v2258 = vsub.f32 1.0, %v2257
    %v2259 = vmul.f32 %v2256, %v2258
    %v2260 = vadd.f32 %v2256, %v2259
    %vm2261 = vweird.f32 %v2255
    %vm2262 = vweird.f32 %v2256
    %vm2263 = vmor %vm2261, %vm2262
    %v2264 = vsel %vm2263, %v2256, %v2260
    %v2265 = vand.u32 2147483647, %v2255
    %vm2266 = vcmp.eq.f32.partialorder %v2265, 8.507059e+37
    %v2267 = vand.u32 %v2255, 2147483648
    %v2268 = vor.u32 1.1754944e-38, %v2267
    %v2269 = vsel %vm2266, %v2268, %v2264
    %v2270 = vmul.f32 1.0, %v2269
    %v2271 = vtanh.pop %v2251
    %v2272 = vmul.f32 %v2270, %v2219
    %2274 = vrot.lane.b32.xlu0 %v2271, 96
    %v2275 = vpop.permute.xlu0 %2274
    %v2277 = vmul.f32 %v2270, %v2275
    %2279 = vrot.lane.b32.xlu0 %v2277, 16
    %v2280 = vpop.permute.xlu0 %2279
    %v2282 = vadd.f32 %v2272, %v2280
    %v2283 = vtanh.pop %v2282
    %2285 = vrot.lane.b32.xlu0 %v2283, 32
    %v2286 = vpop.permute.xlu0 %2285
    %v2288 = vmul.f32 %v2270, %v2286
    %2290 = vrot.lane.b32.xlu0 %v2288, 80
    %v2291 = vpop.permute.xlu0 %2290
    %v2292 = vsel %vm212, %v2291, 0
    %2294 = vmatpush.msra.mxu0 0.0
    %2295 = vmatpush.msra.mxu0 0.0
    %2296 = vmatpush.msra.mxu0 0.0
    %2297 = vmatpush.msra.mxu0 0.0
    %2298 = vmatpush.msra.mxu0 0.0
    %2299 = vmatpush.msra.mxu0 0.0
    %2300 = vmatpush.msra.mxu0 0.0
    %2301 = vmatpush.msra.mxu0 0.0
    %2302 = vmatpush.msra.mxu0 0.0
    %2303 = vmatpush.msra.mxu0 0.0
    %2304 = vmatpush.msra.mxu0 0.0
    %2305 = vmatpush.msra.mxu0 0.0
    %2306 = vmatpush.msra.mxu0 0.0
    %2307 = vmatpush.msra.mxu0 0.0
    %2308 = vmatpush.msra.mxu0 %v1953
    %2309 = vmatpush.msra.mxu0 %v1952
    %2310 = vmatmul.f32.gmra.mxu0 %v2292
    %v2311 = vpop.f32.mrf.mxu0
    %v2312 = vadd.f32 0.0, %v2311
    %2313 = vdwg.mxu0
    %v2314 = vadd.f32 %v2092, %v2312
    %v2315 = vxor.u32 %v2314, 2147483648
    %v2316 = vmul.f32 %v2315, 1.442695
    %v2317 = vpow.pop %v2316
    %v2318 = vadd.f32 %v2317, 1.0
    %v2319 = vrcp.pop %v2318
    %v2320 = vmul.f32 %v2318, %v2319
    %v2321 = vsub.f32 1.0, %v2320
    %v2322 = vmul.f32 %v2319, %v2321
    %v2323 = vadd.f32 %v2319, %v2322
    %vm2324 = vweird.f32 %v2318
    %vm2325 = vweird.f32 %v2319
    %vm2326 = vmor %vm2324, %vm2325
    %v2327 = vsel %vm2326, %v2319, %v2323
    %v2328 = vand.u32 2147483647, %v2318
    %vm2329 = vcmp.eq.f32.partialorder %v2328, 8.507059e+37
    %v2330 = vand.u32 %v2318, 2147483648
    %v2331 = vor.u32 1.1754944e-38, %v2330
    %v2332 = vsel %vm2329, %v2331, %v2327
    %v2333 = vmul.f32 1.0, %v2332
    %v2334 = vtanh.pop %v2314
    %v2335 = vmul.f32 %v2333, %v2282
    %2337 = vrot.lane.b32.xlu0 %v2334, 96
    %v2338 = vpop.permute.xlu0 %2337
    %v2340 = vmul.f32 %v2333, %v2338
    %2342 = vrot.lane.b32.xlu0 %v2340, 16
    %v2343 = vpop.permute.xlu0 %2342
    %v2345 = vadd.f32 %v2335, %v2343
    %v2346 = vtanh.pop %v2345
    %2348 = vrot.lane.b32.xlu0 %v2346, 32
    %v2349 = vpop.permute.xlu0 %2348
    %v2351 = vmul.f32 %v2333, %v2349
    %2353 = vrot.lane.b32.xlu0 %v2351, 80
    %v2354 = vpop.permute.xlu0 %2353
    %v2355 = vsel %vm212, %v2354, 0
    %2357 = vmatpush.msra.mxu0 0.0
    %2358 = vmatpush.msra.mxu0 0.0
    %2359 = vmatpush.msra.mxu0 0.0
    %2360 = vmatpush.msra.mxu0 0.0
    %2361 = vmatpush.msra.mxu0 0.0
    %2362 = vmatpush.msra.mxu0 0.0
    %2363 = vmatpush.msra.mxu0 0.0
    %2364 = vmatpush.msra.mxu0 0.0
    %2365 = vmatpush.msra.mxu0 0.0
    %2366 = vmatpush.msra.mxu0 0.0
    %2367 = vmatpush.msra.mxu0 0.0
    %2368 = vmatpush.msra.mxu0 0.0
    %2369 = vmatpush.msra.mxu0 0.0
    %2370 = vmatpush.msra.mxu0 0.0
    %2371 = vmatpush.msra.mxu0 %v1953
    %2372 = vmatpush.msra.mxu0 %v1952
    %2373 = vmatmul.f32.gmra.mxu0 %v2355
    %v2374 = vpop.f32.mrf.mxu0
    %v2375 = vadd.f32 0.0, %v2374
    %2376 = vdwg.mxu0
    %v2377 = vadd.f32 %v2093, %v2375
    %v2378 = vxor.u32 %v2377, 2147483648
    %v2379 = vmul.f32 %v2378, 1.442695
    %v2380 = vpow.pop %v2379
    %v2381 = vadd.f32 %v2380, 1.0
    %v2382 = vrcp.pop %v2381
    %v2383 = vmul.f32 %v2381, %v2382
    %v2384 = vsub.f32 1.0, %v2383
    %v2385 = vmul.f32 %v2382, %v2384
    %v2386 = vadd.f32 %v2382, %v2385
    %vm2387 = vweird.f32 %v2381
    %vm2388 = vweird.f32 %v2382
    %vm2389 = vmor %vm2387, %vm2388
    %v2390 = vsel %vm2389, %v2382, %v2386
    %v2391 = vand.u32 2147483647, %v2381
    %vm2392 = vcmp.eq.f32.partialorder %v2391, 8.507059e+37
    %v2393 = vand.u32 %v2381, 2147483648
    %v2394 = vor.u32 1.1754944e-38, %v2393
    %v2395 = vsel %vm2392, %v2394, %v2390
    %v2396 = vmul.f32 1.0, %v2395
    %v2397 = vtanh.pop %v2377
    %v2398 = vmul.f32 %v2396, %v2345
    %2400 = vrot.lane.b32.xlu0 %v2397, 96
    %v2401 = vpop.permute.xlu0 %2400
    %v2403 = vmul.f32 %v2396, %v2401
    %2405 = vrot.lane.b32.xlu0 %v2403, 16
    %v2406 = vpop.permute.xlu0 %2405
    %v2408 = vadd.f32 %v2398, %v2406
    %v2409 = vtanh.pop %v2408
    %2411 = vrot.lane.b32.xlu0 %v2409, 32
    %v2412 = vpop.permute.xlu0 %2411
    %v2414 = vmul.f32 %v2396, %v2412
    %2416 = vrot.lane.b32.xlu0 %v2414, 80
    %v2417 = vpop.permute.xlu0 %2416
    %v2418 = vsel %vm212, %v2417, 0
    %2420 = vmatpush.msra.mxu0 0.0
    %2421 = vmatpush.msra.mxu0 0.0
    %2422 = vmatpush.msra.mxu0 0.0
    %2423 = vmatpush.msra.mxu0 0.0
    %2424 = vmatpush.msra.mxu0 0.0
    %2425 = vmatpush.msra.mxu0 0.0
    %2426 = vmatpush.msra.mxu0 0.0
    %2427 = vmatpush.msra.mxu0 0.0
    %2428 = vmatpush.msra.mxu0 0.0
    %2429 = vmatpush.msra.mxu0 0.0
    %2430 = vmatpush.msra.mxu0 0.0
    %2431 = vmatpush.msra.mxu0 0.0
    %2432 = vmatpush.msra.mxu0 0.0
    %2433 = vmatpush.msra.mxu0 0.0
    %2434 = vmatpush.msra.mxu0 %v1953
    %2435 = vmatpush.msra.mxu0 %v1952
    %2436 = vmatmul.f32.gmra.mxu0 %v2418
    %v2437 = vpop.f32.mrf.mxu0
    %v2438 = vadd.f32 0.0, %v2437
    %2439 = vdwg.mxu0
    %v2440 = vadd.f32 %v2094, %v2438
    %v2441 = vxor.u32 %v2440, 2147483648
    %v2442 = vmul.f32 %v2441, 1.442695
    %v2443 = vpow.pop %v2442
    %v2444 = vadd.f32 %v2443, 1.0
    %v2445 = vrcp.pop %v2444
    %v2446 = vmul.f32 %v2444, %v2445
    %v2447 = vsub.f32 1.0, %v2446
    %v2448 = vmul.f32 %v2445, %v2447
    %v2449 = vadd.f32 %v2445, %v2448
    %vm2450 = vweird.f32 %v2444
    %vm2451 = vweird.f32 %v2445
    %vm2452 = vmor %vm2450, %vm2451
    %v2453 = vsel %vm2452, %v2445, %v2449
    %v2454 = vand.u32 2147483647, %v2444
    %vm2455 = vcmp.eq.f32.partialorder %v2454, 8.507059e+37
    %v2456 = vand.u32 %v2444, 2147483648
    %v2457 = vor.u32 1.1754944e-38, %v2456
    %v2458 = vsel %vm2455, %v2457, %v2453
    %v2459 = vmul.f32 1.0, %v2458
    %v2460 = vtanh.pop %v2440
    %v2461 = vmul.f32 %v2459, %v2408
    %2463 = vrot.lane.b32.xlu0 %v2460, 96
    %v2464 = vpop.permute.xlu0 %2463
    %v2466 = vmul.f32 %v2459, %v2464
    %2468 = vrot.lane.b32.xlu0 %v2466, 16
    %v2469 = vpop.permute.xlu0 %2468
    %v2471 = vadd.f32 %v2461, %v2469
    %v2472 = vtanh.pop %v2471
    %2474 = vrot.lane.b32.xlu0 %v2472, 32
    %v2475 = vpop.permute.xlu0 %2474
    %v2477 = vmul.f32 %v2459, %v2475
    %2479 = vrot.lane.b32.xlu0 %v2477, 80
    %v2480 = vpop.permute.xlu0 %2479
    %v2481 = vsel %vm212, %v2480, 0
    %2483 = vmatpush.msra.mxu0 0.0
    %2484 = vmatpush.msra.mxu0 0.0
    %2485 = vmatpush.msra.mxu0 0.0
    %2486 = vmatpush.msra.mxu0 0.0
    %2487 = vmatpush.msra.mxu0 0.0
    %2488 = vmatpush.msra.mxu0 0.0
    %2489 = vmatpush.msra.mxu0 0.0
    %2490 = vmatpush.msra.mxu0 0.0
    %2491 = vmatpush.msra.mxu0 0.0
    %2492 = vmatpush.msra.mxu0 0.0
    %2493 = vmatpush.msra.mxu0 0.0
    %2494 = vmatpush.msra.mxu0 0.0
    %2495 = vmatpush.msra.mxu0 0.0
    %2496 = vmatpush.msra.mxu0 0.0
    %2497 = vmatpush.msra.mxu0 %v1953
    %2498 = vmatpush.msra.mxu0 %v1952
    %2499 = vmatmul.f32.gmra.mxu0 %v2481
    %v2500 = vpop.f32.mrf.mxu0
    %v2501 = vadd.f32 0.0, %v2500
    %2502 = vdwg.mxu0
    %v2503 = vadd.f32 %v2095, %v2501
    %v2504 = vxor.u32 %v2503, 2147483648
    %v2505 = vmul.f32 %v2504, 1.442695
    %v2506 = vpow.pop %v2505
    %v2507 = vadd.f32 %v2506, 1.0
    %v2508 = vrcp.pop %v2507
    %v2509 = vmul.f32 %v2507, %v2508
    %v2510 = vsub.f32 1.0, %v2509
    %v2511 = vmul.f32 %v2508, %v2510
    %v2512 = vadd.f32 %v2508, %v2511
    %vm2513 = vweird.f32 %v2507
    %vm2514 = vweird.f32 %v2508
    %vm2515 = vmor %vm2513, %vm2514
    %v2516 = vsel %vm2515, %v2508, %v2512
    %v2517 = vand.u32 2147483647, %v2507
    %vm2518 = vcmp.eq.f32.partialorder %v2517, 8.507059e+37
    %v2519 = vand.u32 %v2507, 2147483648
    %v2520 = vor.u32 1.1754944e-38, %v2519
    %v2521 = vsel %vm2518, %v2520, %v2516
    %v2522 = vmul.f32 1.0, %v2521
    %v2523 = vtanh.pop %v2503
    %v2524 = vmul.f32 %v2522, %v2471
    %2526 = vrot.lane.b32.xlu0 %v2523, 96
    %v2527 = vpop.permute.xlu0 %2526
    %v2529 = vmul.f32 %v2522, %v2527
    %2531 = vrot.lane.b32.xlu0 %v2529, 16
    %v2532 = vpop.permute.xlu0 %2531
    %v2534 = vadd.f32 %v2524, %v2532
    %v2535 = vtanh.pop %v2534
    %2537 = vrot.lane.b32.xlu0 %v2535, 32
    %v2538 = vpop.permute.xlu0 %2537
    %v2540 = vmul.f32 %v2522, %v2538
    %2542 = vrot.lane.b32.xlu0 %v2540, 80
    %v2543 = vpop.permute.xlu0 %2542
    %v2544 = vsel %vm212, %v2543, 0
    %2546 = vmatpush.msra.mxu0 0.0
    %2547 = vmatpush.msra.mxu0 0.0
    %2548 = vmatpush.msra.mxu0 0.0
    %2549 = vmatpush.msra.mxu0 0.0
    %2550 = vmatpush.msra.mxu0 0.0
    %2551 = vmatpush.msra.mxu0 0.0
    %2552 = vmatpush.msra.mxu0 0.0
    %2553 = vmatpush.msra.mxu0 0.0
    %2554 = vmatpush.msra.mxu0 0.0
    %2555 = vmatpush.msra.mxu0 0.0
    %2556 = vmatpush.msra.mxu0 0.0
    %2557 = vmatpush.msra.mxu0 0.0
    %2558 = vmatpush.msra.mxu0 0.0
    %2559 = vmatpush.msra.mxu0 0.0
    %2560 = vmatpush.msra.mxu0 %v1953
    %2561 = vmatpush.msra.mxu0 %v1952
    %2562 = vmatmul.f32.gmra.mxu0 %v2544
    %v2563 = vpop.f32.mrf.mxu0
    %v2564 = vadd.f32 0.0, %v2563
    %2565 = vdwg.mxu0
    %v2566 = vadd.f32 %v2096, %v2564
    %v2567 = vxor.u32 %v2566, 2147483648
    %v2568 = vmul.f32 %v2567, 1.442695
    %v2569 = vpow.pop %v2568
    %v2570 = vadd.f32 %v2569, 1.0
    %v2571 = vrcp.pop %v2570
    %v2572 = vmul.f32 %v2570, %v2571
    %v2573 = vsub.f32 1.0, %v2572
    %v2574 = vmul.f32 %v2571, %v2573
    %v2575 = vadd.f32 %v2571, %v2574
    %vm2576 = vweird.f32 %v2570
    %vm2577 = vweird.f32 %v2571
    %vm2578 = vmor %vm2576, %vm2577
    %v2579 = vsel %vm2578, %v2571, %v2575
    %v2580 = vand.u32 2147483647, %v2570
    %vm2581 = vcmp.eq.f32.partialorder %v2580, 8.507059e+37
    %v2582 = vand.u32 %v2570, 2147483648
    %v2583 = vor.u32 1.1754944e-38, %v2582
    %v2584 = vsel %vm2581, %v2583, %v2579
    %v2585 = vmul.f32 1.0, %v2584
    %v2586 = vtanh.pop %v2566
    %v2587 = vmul.f32 %v2585, %v2534
    %2589 = vrot.lane.b32.xlu0 %v2586, 96
    %v2590 = vpop.permute.xlu0 %2589
    %v2592 = vmul.f32 %v2585, %v2590
    %2594 = vrot.lane.b32.xlu0 %v2592, 16
    %v2595 = vpop.permute.xlu0 %2594
    %v2597 = vadd.f32 %v2587, %v2595
    %v2598 = vtanh.pop %v2597
    %2600 = vrot.lane.b32.xlu0 %v2598, 32
    %v2601 = vpop.permute.xlu0 %2600
    %v2603 = vmul.f32 %v2585, %v2601
    %2605 = vrot.lane.b32.xlu0 %v2603, 80
    %v2606 = vpop.permute.xlu0 %2605
    %v2607 = vsel %vm212, %v2606, 0
    %2609 = vmatpush.msra.mxu0 0.0
    %2610 = vmatpush.msra.mxu0 0.0
    %2611 = vmatpush.msra.mxu0 0.0
    %2612 = vmatpush.msra.mxu0 0.0
    %2613 = vmatpush.msra.mxu0 0.0
    %2614 = vmatpush.msra.mxu0 0.0
    %2615 = vmatpush.msra.mxu0 0.0
    %2616 = vmatpush.msra.mxu0 0.0
    %2617 = vmatpush.msra.mxu0 0.0
    %2618 = vmatpush.msra.mxu0 0.0
    %2619 = vmatpush.msra.mxu0 0.0
    %2620 = vmatpush.msra.mxu0 0.0
    %2621 = vmatpush.msra.mxu0 0.0
    %2622 = vmatpush.msra.mxu0 0.0
    %2623 = vmatpush.msra.mxu0 %v1953
    %2624 = vmatpush.msra.mxu0 %v1952
    %2625 = vmatmul.f32.gmra.mxu0 %v2607
    %v2626 = vpop.f32.mrf.mxu0
    %v2627 = vadd.f32 0.0, %v2626
    %2628 = vdwg.mxu0
    %v2629 = vadd.f32 %v2097, %v2627
    %v2630 = vxor.u32 %v2629, 2147483648
    %v2631 = vmul.f32 %v2630, 1.442695
    %v2632 = vpow.pop %v2631
    %v2633 = vadd.f32 %v2632, 1.0
    %v2634 = vrcp.pop %v2633
    %v2635 = vmul.f32 %v2633, %v2634
    %v2636 = vsub.f32 1.0, %v2635
    %v2637 = vmul.f32 %v2634, %v2636
    %v2638 = vadd.f32 %v2634, %v2637
    %vm2639 = vweird.f32 %v2633
    %vm2640 = vweird.f32 %v2634
    %vm2641 = vmor %vm2639, %vm2640
    %v2642 = vsel %vm2641, %v2634, %v2638
    %v2643 = vand.u32 2147483647, %v2633
    %vm2644 = vcmp.eq.f32.partialorder %v2643, 8.507059e+37
    %v2645 = vand.u32 %v2633, 2147483648
    %v2646 = vor.u32 1.1754944e-38, %v2645
    %v2647 = vsel %vm2644, %v2646, %v2642
    %v2648 = vmul.f32 1.0, %v2647
    %v2649 = vtanh.pop %v2629
    %v2650 = vmul.f32 %v2648, %v2597
    %2652 = vrot.lane.b32.xlu0 %v2649, 96
    %v2653 = vpop.permute.xlu0 %2652
    %v2655 = vmul.f32 %v2648, %v2653
    %2657 = vrot.lane.b32.xlu0 %v2655, 16
    %v2658 = vpop.permute.xlu0 %2657
    %v2660 = vadd.f32 %v2650, %v2658
    %v2661 = vtanh.pop %v2660
    %2663 = vrot.lane.b32.xlu0 %v2661, 32
    %v2664 = vpop.permute.xlu0 %2663
    %v2666 = vmul.f32 %v2648, %v2664
    %2668 = vrot.lane.b32.xlu0 %v2666, 80
    %v2669 = vpop.permute.xlu0 %2668
    %v2670 = vsel %vm212, %v2669, 0
    %2672 = vmatpush.msra.mxu0 0.0
    %2673 = vmatpush.msra.mxu0 0.0
    %2674 = vmatpush.msra.mxu0 0.0
    %2675 = vmatpush.msra.mxu0 0.0
    %2676 = vmatpush.msra.mxu0 0.0
    %2677 = vmatpush.msra.mxu0 0.0
    %2678 = vmatpush.msra.mxu0 0.0
    %2679 = vmatpush.msra.mxu0 0.0
    %2680 = vmatpush.msra.mxu0 0.0
    %2681 = vmatpush.msra.mxu0 0.0
    %2682 = vmatpush.msra.mxu0 0.0
    %2683 = vmatpush.msra.mxu0 0.0
    %2684 = vmatpush.msra.mxu0 0.0
    %2685 = vmatpush.msra.mxu0 0.0
    %2686 = vmatpush.msra.mxu0 %v1953
    %2687 = vmatpush.msra.mxu0 %v1952
    %2688 = vmatmul.f32.gmra.mxu0 %v2670
    %v2689 = vpop.f32.mrf.mxu0
    %v2690 = vadd.f32 0.0, %v2689
    %2691 = vdwg.mxu0
    %v2692 = vadd.f32 %v2098, %v2690
    %v2693 = vxor.u32 %v2692, 2147483648
    %v2694 = vmul.f32 %v2693, 1.442695
    %v2695 = vpow.pop %v2694
    %v2696 = vadd.f32 %v2695, 1.0
    %v2697 = vrcp.pop %v2696
    %v2698 = vmul.f32 %v2696, %v2697
    %v2699 = vsub.f32 1.0, %v2698
    %v2700 = vmul.f32 %v2697, %v2699
    %v2701 = vadd.f32 %v2697, %v2700
    %vm2702 = vweird.f32 %v2696
    %vm2703 = vweird.f32 %v2697
    %vm2704 = vmor %vm2702, %vm2703
    %v2705 = vsel %vm2704, %v2697, %v2701
    %v2706 = vand.u32 2147483647, %v2696
    %vm2707 = vcmp.eq.f32.partialorder %v2706, 8.507059e+37
    %v2708 = vand.u32 %v2696, 2147483648
    %v2709 = vor.u32 1.1754944e-38, %v2708
    %v2710 = vsel %vm2707, %v2709, %v2705
    %v2711 = vmul.f32 1.0, %v2710
    %v2712 = vtanh.pop %v2692
    %v2713 = vmul.f32 %v2711, %v2660
    %2715 = vrot.lane.b32.xlu0 %v2712, 96
    %v2716 = vpop.permute.xlu0 %2715
    %v2718 = vmul.f32 %v2711, %v2716
    %2720 = vrot.lane.b32.xlu0 %v2718, 16
    %v2721 = vpop.permute.xlu0 %2720
    %v2723 = vadd.f32 %v2713, %v2721
    %v2724 = vtanh.pop %v2723
    %2726 = vrot.lane.b32.xlu0 %v2724, 32
    %v2727 = vpop.permute.xlu0 %2726
    %v2729 = vmul.f32 %v2711, %v2727
    %2731 = vrot.lane.b32.xlu0 %v2729, 80
    %v2732 = vpop.permute.xlu0 %2731
    %v2733 = vsel %vm212, %v2732, 0
    %2735 = vmatpush.msra.mxu0 0.0
    %2736 = vmatpush.msra.mxu0 0.0
    %2737 = vmatpush.msra.mxu0 0.0
    %2738 = vmatpush.msra.mxu0 0.0
    %2739 = vmatpush.msra.mxu0 0.0
    %2740 = vmatpush.msra.mxu0 0.0
    %2741 = vmatpush.msra.mxu0 0.0
    %2742 = vmatpush.msra.mxu0 0.0
    %2743 = vmatpush.msra.mxu0 0.0
    %2744 = vmatpush.msra.mxu0 0.0
    %2745 = vmatpush.msra.mxu0 0.0
    %2746 = vmatpush.msra.mxu0 0.0
    %2747 = vmatpush.msra.mxu0 0.0
    %2748 = vmatpush.msra.mxu0 0.0
    %2749 = vmatpush.msra.mxu0 %v1953
    %2750 = vmatpush.msra.mxu0 %v1952
    %2751 = vmatmul.f32.gmra.mxu0 %v2733
    %v2752 = vpop.f32.mrf.mxu0
    %v2753 = vadd.f32 0.0, %v2752
    %2754 = vdwg.mxu0
    %v2755 = vadd.f32 %v2099, %v2753
    %v2756 = vxor.u32 %v2755, 2147483648
    %v2757 = vmul.f32 %v2756, 1.442695
    %v2758 = vpow.pop %v2757
    %v2759 = vadd.f32 %v2758, 1.0
    %v2760 = vrcp.pop %v2759
    %v2761 = vmul.f32 %v2759, %v2760
    %v2762 = vsub.f32 1.0, %v2761
    %v2763 = vmul.f32 %v2760, %v2762
    %v2764 = vadd.f32 %v2760, %v2763
    %vm2765 = vweird.f32 %v2759
    %vm2766 = vweird.f32 %v2760
    %vm2767 = vmor %vm2765, %vm2766
    %v2768 = vsel %vm2767, %v2760, %v2764
    %v2769 = vand.u32 2147483647, %v2759
    %vm2770 = vcmp.eq.f32.partialorder %v2769, 8.507059e+37
    %v2771 = vand.u32 %v2759, 2147483648
    %v2772 = vor.u32 1.1754944e-38, %v2771
    %v2773 = vsel %vm2770, %v2772, %v2768
    %v2774 = vmul.f32 1.0, %v2773
    %v2775 = vtanh.pop %v2755
    %v2776 = vmul.f32 %v2774, %v2723
    %2778 = vrot.lane.b32.xlu0 %v2775, 96
    %v2779 = vpop.permute.xlu0 %2778
    %v2781 = vmul.f32 %v2774, %v2779
    %2783 = vrot.lane.b32.xlu0 %v2781, 16
    %v2784 = vpop.permute.xlu0 %2783
    %v2786 = vadd.f32 %v2776, %v2784
    %v2787 = vtanh.pop %v2786
    %2789 = vrot.lane.b32.xlu0 %v2787, 32
    %v2790 = vpop.permute.xlu0 %2789
    %v2792 = vmul.f32 %v2774, %v2790
    %2794 = vrot.lane.b32.xlu0 %v2792, 80
    %v2795 = vpop.permute.xlu0 %2794
    %v2796 = vsel %vm212, %v2795, 0
    %2798 = vmatpush.msra.mxu0 0.0
    %2799 = vmatpush.msra.mxu0 0.0
    %2800 = vmatpush.msra.mxu0 0.0
    %2801 = vmatpush.msra.mxu0 0.0
    %2802 = vmatpush.msra.mxu0 0.0
    %2803 = vmatpush.msra.mxu0 0.0
    %2804 = vmatpush.msra.mxu0 0.0
    %2805 = vmatpush.msra.mxu0 0.0
    %2806 = vmatpush.msra.mxu0 0.0
    %2807 = vmatpush.msra.mxu0 0.0
    %2808 = vmatpush.msra.mxu0 0.0
    %2809 = vmatpush.msra.mxu0 0.0
    %2810 = vmatpush.msra.mxu0 0.0
    %2811 = vmatpush.msra.mxu0 0.0
    %2812 = vmatpush.msra.mxu0 %v1953
    %2813 = vmatpush.msra.mxu0 %v1952
    %2814 = vmatmul.f32.gmra.mxu0 %v2796
    %v2815 = vpop.f32.mrf.mxu0
    %v2816 = vadd.f32 0.0, %v2815
    %2817 = vdwg.mxu0
    %v2818 = vadd.f32 %v2100, %v2816
    %v2819 = vxor.u32 %v2818, 2147483648
    %v2820 = vmul.f32 %v2819, 1.442695
    %v2821 = vpow.pop %v2820
    %v2822 = vadd.f32 %v2821, 1.0
    %v2823 = vrcp.pop %v2822
    %v2824 = vmul.f32 %v2822, %v2823
    %v2825 = vsub.f32 1.0, %v2824
    %v2826 = vmul.f32 %v2823, %v2825
    %v2827 = vadd.f32 %v2823, %v2826
    %vm2828 = vweird.f32 %v2822
    %vm2829 = vweird.f32 %v2823
    %vm2830 = vmor %vm2828, %vm2829
    %v2831 = vsel %vm2830, %v2823, %v2827
    %v2832 = vand.u32 2147483647, %v2822
    %vm2833 = vcmp.eq.f32.partialorder %v2832, 8.507059e+37
    %v2834 = vand.u32 %v2822, 2147483648
    %v2835 = vor.u32 1.1754944e-38, %v2834
    %v2836 = vsel %vm2833, %v2835, %v2831
    %v2837 = vmul.f32 1.0, %v2836
    %v2838 = vtanh.pop %v2818
    %v2839 = vmul.f32 %v2837, %v2786
    %2841 = vrot.lane.b32.xlu0 %v2838, 96
    %v2842 = vpop.permute.xlu0 %2841
    %v2844 = vmul.f32 %v2837, %v2842
    %2846 = vrot.lane.b32.xlu0 %v2844, 16
    %v2847 = vpop.permute.xlu0 %2846
    %v2849 = vadd.f32 %v2839, %v2847
    %v2850 = vtanh.pop %v2849
    %2852 = vrot.lane.b32.xlu0 %v2850, 32
    %v2853 = vpop.permute.xlu0 %2852
    %v2855 = vmul.f32 %v2837, %v2853
    %2857 = vrot.lane.b32.xlu0 %v2855, 80
    %v2858 = vpop.permute.xlu0 %2857
    %v2859 = vsel %vm212, %v2858, 0
    %2861 = vmatpush.msra.mxu0 0.0
    %2862 = vmatpush.msra.mxu0 0.0
    %2863 = vmatpush.msra.mxu0 0.0
    %2864 = vmatpush.msra.mxu0 0.0
    %2865 = vmatpush.msra.mxu0 0.0
    %2866 = vmatpush.msra.mxu0 0.0
    %2867 = vmatpush.msra.mxu0 0.0
    %2868 = vmatpush.msra.mxu0 0.0
    %2869 = vmatpush.msra.mxu0 0.0
    %2870 = vmatpush.msra.mxu0 0.0
    %2871 = vmatpush.msra.mxu0 0.0
    %2872 = vmatpush.msra.mxu0 0.0
    %2873 = vmatpush.msra.mxu0 0.0
    %2874 = vmatpush.msra.mxu0 0.0
    %2875 = vmatpush.msra.mxu0 %v1953
    %2876 = vmatpush.msra.mxu0 %v1952
    %2877 = vmatmul.f32.gmra.mxu0 %v2859
    %v2878 = vpop.f32.mrf.mxu0
    %v2879 = vadd.f32 0.0, %v2878
    %2880 = vdwg.mxu0
    %v2881 = vadd.f32 %v2101, %v2879
    %v2882 = vxor.u32 %v2881, 2147483648
    %v2883 = vmul.f32 %v2882, 1.442695
    %v2884 = vpow.pop %v2883
    %v2885 = vadd.f32 %v2884, 1.0
    %v2886 = vrcp.pop %v2885
    %v2887 = vmul.f32 %v2885, %v2886
    %v2888 = vsub.f32 1.0, %v2887
    %v2889 = vmul.f32 %v2886, %v2888
    %v2890 = vadd.f32 %v2886, %v2889
    %vm2891 = vweird.f32 %v2885
    %vm2892 = vweird.f32 %v2886
    %vm2893 = vmor %vm2891, %vm2892
    %v2894 = vsel %vm2893, %v2886, %v2890
    %v2895 = vand.u32 2147483647, %v2885
    %vm2896 = vcmp.eq.f32.partialorder %v2895, 8.507059e+37
    %v2897 = vand.u32 %v2885, 2147483648
    %v2898 = vor.u32 1.1754944e-38, %v2897
    %v2899 = vsel %vm2896, %v2898, %v2894
    %v2900 = vmul.f32 1.0, %v2899
    %v2901 = vtanh.pop %v2881
    %v2902 = vmul.f32 %v2900, %v2849
    %2904 = vrot.lane.b32.xlu0 %v2901, 96
    %v2905 = vpop.permute.xlu0 %2904
    %v2907 = vmul.f32 %v2900, %v2905
    %2909 = vrot.lane.b32.xlu0 %v2907, 16
    %v2910 = vpop.permute.xlu0 %2909
    %v2912 = vadd.f32 %v2902, %v2910
    %v2913 = vtanh.pop %v2912
    %2915 = vrot.lane.b32.xlu0 %v2913, 32
    %v2916 = vpop.permute.xlu0 %2915
    %v2918 = vmul.f32 %v2900, %v2916
    %2920 = vrot.lane.b32.xlu0 %v2918, 80
    %v2921 = vpop.permute.xlu0 %2920
    %v2922 = vsel %vm212, %v2921, 0
    %2924 = vmatpush.msra.mxu0 0.0
    %2925 = vmatpush.msra.mxu0 0.0
    %2926 = vmatpush.msra.mxu0 0.0
    %2927 = vmatpush.msra.mxu0 0.0
    %2928 = vmatpush.msra.mxu0 0.0
    %2929 = vmatpush.msra.mxu0 0.0
    %2930 = vmatpush.msra.mxu0 0.0
    %2931 = vmatpush.msra.mxu0 0.0
    %2932 = vmatpush.msra.mxu0 0.0
    %2933 = vmatpush.msra.mxu0 0.0
    %2934 = vmatpush.msra.mxu0 0.0
    %2935 = vmatpush.msra.mxu0 0.0
    %2936 = vmatpush.msra.mxu0 0.0
    %2937 = vmatpush.msra.mxu0 0.0
    %2938 = vmatpush.msra.mxu0 %v1953
    %2939 = vmatpush.msra.mxu0 %v1952
    %2940 = vmatmul.f32.gmra.mxu0 %v2922
    %v2941 = vpop.f32.mrf.mxu0
    %v2942 = vadd.f32 0.0, %v2941
    %2943 = vdwg.mxu0
    %v2944 = vadd.f32 %v2102, %v2942
    %v2945 = vxor.u32 %v2944, 2147483648
    %v2946 = vmul.f32 %v2945, 1.442695
    %v2947 = vpow.pop %v2946
    %v2948 = vadd.f32 %v2947, 1.0
    %v2949 = vrcp.pop %v2948
    %v2950 = vmul.f32 %v2948, %v2949
    %v2951 = vsub.f32 1.0, %v2950
    %v2952 = vmul.f32 %v2949, %v2951
    %v2953 = vadd.f32 %v2949, %v2952
    %vm2954 = vweird.f32 %v2948
    %vm2955 = vweird.f32 %v2949
    %vm2956 = vmor %vm2954, %vm2955
    %v2957 = vsel %vm2956, %v2949, %v2953
    %v2958 = vand.u32 2147483647, %v2948
    %vm2959 = vcmp.eq.f32.partialorder %v2958, 8.507059e+37
    %v2960 = vand.u32 %v2948, 2147483648
    %v2961 = vor.u32 1.1754944e-38, %v2960
    %v2962 = vsel %vm2959, %v2961, %v2957
    %v2963 = vmul.f32 1.0, %v2962
    %v2964 = vtanh.pop %v2944
    %v2965 = vmul.f32 %v2963, %v2912
    %2967 = vrot.lane.b32.xlu0 %v2964, 96
    %v2968 = vpop.permute.xlu0 %2967
    %v2970 = vmul.f32 %v2963, %v2968
    %2972 = vrot.lane.b32.xlu0 %v2970, 16
    %v2973 = vpop.permute.xlu0 %2972
    %v2975 = vadd.f32 %v2965, %v2973
    %v2976 = vtanh.pop %v2975
    %2978 = vrot.lane.b32.xlu0 %v2976, 32
    %v2979 = vpop.permute.xlu0 %2978
    %v2981 = vmul.f32 %v2963, %v2979
    %2983 = vrot.lane.b32.xlu0 %v2981, 80
    %v2984 = vpop.permute.xlu0 %2983
    %v2985 = vsel %vm212, %v2984, 0
    %2987 = vmatpush.msra.mxu0 0.0
    %2988 = vmatpush.msra.mxu0 0.0
    %2989 = vmatpush.msra.mxu0 0.0
    %2990 = vmatpush.msra.mxu0 0.0
    %2991 = vmatpush.msra.mxu0 0.0
    %2992 = vmatpush.msra.mxu0 0.0
    %2993 = vmatpush.msra.mxu0 0.0
    %2994 = vmatpush.msra.mxu0 0.0
    %2995 = vmatpush.msra.mxu0 0.0
    %2996 = vmatpush.msra.mxu0 0.0
    %2997 = vmatpush.msra.mxu0 0.0
    %2998 = vmatpush.msra.mxu0 0.0
    %2999 = vmatpush.msra.mxu0 0.0
    %3000 = vmatpush.msra.mxu0 0.0
    %3001 = vmatpush.msra.mxu0 %v1953
    %3002 = vmatpush.msra.mxu0 %v1952
    %3003 = vmatmul.f32.gmra.mxu0 %v2985
    %v3004 = vpop.f32.mrf.mxu0
    %v3005 = vadd.f32 0.0, %v3004
    %3006 = vdwg.mxu0
    %v3007 = vadd.f32 %v2103, %v3005
    %v3008 = vxor.u32 %v3007, 2147483648
    %v3009 = vmul.f32 %v3008, 1.442695
    %v3010 = vpow.pop %v3009
    %v3011 = vadd.f32 %v3010, 1.0
    %v3012 = vrcp.pop %v3011
    %v3013 = vmul.f32 %v3011, %v3012
    %v3014 = vsub.f32 1.0, %v3013
    %v3015 = vmul.f32 %v3012, %v3014
    %v3016 = vadd.f32 %v3012, %v3015
    %vm3017 = vweird.f32 %v3011
    %vm3018 = vweird.f32 %v3012
    %vm3019 = vmor %vm3017, %vm3018
    %v3020 = vsel %vm3019, %v3012, %v3016
    %v3021 = vand.u32 2147483647, %v3011
    %vm3022 = vcmp.eq.f32.partialorder %v3021, 8.507059e+37
    %v3023 = vand.u32 %v3011, 2147483648
    %v3024 = vor.u32 1.1754944e-38, %v3023
    %v3025 = vsel %vm3022, %v3024, %v3020
    %v3026 = vmul.f32 1.0, %v3025
    %v3027 = vtanh.pop %v3007
    %v3028 = vmul.f32 %v3026, %v2975
    %3030 = vrot.lane.b32.xlu0 %v3027, 96
    %v3031 = vpop.permute.xlu0 %3030
    %v3033 = vmul.f32 %v3026, %v3031
    %3035 = vrot.lane.b32.xlu0 %v3033, 16
    %v3036 = vpop.permute.xlu0 %3035
    %v3038 = vadd.f32 %v3028, %v3036
    %v3039 = vtanh.pop %v3038
    %3041 = vrot.lane.b32.xlu0 %v3039, 32
    %v3042 = vpop.permute.xlu0 %3041
    %v3044 = vmul.f32 %v3026, %v3042
    %3046 = vrot.lane.b32.xlu0 %v3044, 80
    %v3047 = vpop.permute.xlu0 %3046
    %v3048 = vsel %vm212, %v3047, 0
    %3050 = vmatpush.msra.mxu0 0.0
    %3051 = vmatpush.msra.mxu0 0.0
    %3052 = vmatpush.msra.mxu0 0.0
    %3053 = vmatpush.msra.mxu0 0.0
    %3054 = vmatpush.msra.mxu0 0.0
    %3055 = vmatpush.msra.mxu0 0.0
    %3056 = vmatpush.msra.mxu0 0.0
    %3057 = vmatpush.msra.mxu0 0.0
    %3058 = vmatpush.msra.mxu0 0.0
    %3059 = vmatpush.msra.mxu0 0.0
    %3060 = vmatpush.msra.mxu0 0.0
    %3061 = vmatpush.msra.mxu0 0.0
    %3062 = vmatpush.msra.mxu0 0.0
    %3063 = vmatpush.msra.mxu0 0.0
    %3064 = vmatpush.msra.mxu0 %v1953
    %3065 = vmatpush.msra.mxu0 %v1952
    %3066 = vmatmul.f32.gmra.mxu0 %v3048
    %v3067 = vpop.f32.mrf.mxu0
    %v3068 = vadd.f32 0.0, %v3067
    %3069 = vdwg.mxu0
    %v3070 = vadd.f32 %v2104, %v3068
    %v3071 = vxor.u32 %v3070, 2147483648
    %v3072 = vmul.f32 %v3071, 1.442695
    %v3073 = vpow.pop %v3072
    %v3074 = vadd.f32 %v3073, 1.0
    %v3075 = vrcp.pop %v3074
    %v3076 = vmul.f32 %v3074, %v3075
    %v3077 = vsub.f32 1.0, %v3076
    %v3078 = vmul.f32 %v3075, %v3077
    %v3079 = vadd.f32 %v3075, %v3078
    %vm3080 = vweird.f32 %v3074
    %vm3081 = vweird.f32 %v3075
    %vm3082 = vmor %vm3080, %vm3081
    %v3083 = vsel %vm3082, %v3075, %v3079
    %v3084 = vand.u32 2147483647, %v3074
    %vm3085 = vcmp.eq.f32.partialorder %v3084, 8.507059e+37
    %v3086 = vand.u32 %v3074, 2147483648
    %v3087 = vor.u32 1.1754944e-38, %v3086
    %v3088 = vsel %vm3085, %v3087, %v3083
    %v3089 = vmul.f32 1.0, %v3088
    %v3090 = vtanh.pop %v3070
    %v3091 = vmul.f32 %v3089, %v3038
    %3093 = vrot.lane.b32.xlu0 %v3090, 96
    %v3094 = vpop.permute.xlu0 %3093
    %v3096 = vmul.f32 %v3089, %v3094
    %3098 = vrot.lane.b32.xlu0 %v3096, 16
    %v3099 = vpop.permute.xlu0 %3098
    %v3101 = vadd.f32 %v3091, %v3099
    %v3102 = vtanh.pop %v3101
    %3104 = vrot.lane.b32.xlu0 %v3102, 32
    %v3105 = vpop.permute.xlu0 %3104
    %v3107 = vmul.f32 %v3089, %v3105
    %3109 = vrot.lane.b32.xlu0 %v3107, 112
    %v3110 = vpop.permute.xlu0 %3109
    %vm3112 = vcmask 386304
    %3113 = vst.msk [vmem:[%s13] sm:$0x3] %vm3112, %v3110
    %3114 = vrot.lane.b32.xlu0 %v3107, 80
    %v3115 = vpop.permute.xlu0 %3114
    %3117 = vxpose.xlu0.b32.start [1/16] %v3115, 128
    %3118 = vxpose.xlu0.b32.cont [2/16] 0.0, 128
    %3119 = vxpose.xlu0.b32.cont [3/16] 0.0, 128
    %3120 = vxpose.xlu0.b32.cont [4/16] 0.0, 128
    %3121 = vxpose.xlu0.b32.cont [5/16] 0.0, 128
    %3122 = vxpose.xlu0.b32.cont [6/16] 0.0, 128
    %3123 = vxpose.xlu0.b32.cont [7/16] 0.0, 128
    %3124 = vxpose.xlu0.b32.cont [8/16] 0.0, 128
    %3125 = vxpose.xlu0.b32.cont [9/16] 0.0, 128
    %3126 = vxpose.xlu0.b32.cont [10/16] 0.0, 128
    %3127 = vxpose.xlu0.b32.cont [11/16] 0.0, 128
    %3128 = vxpose.xlu0.b32.cont [12/16] 0.0, 128
    %3129 = vxpose.xlu0.b32.cont [13/16] 0.0, 128
    %3130 = vxpose.xlu0.b32.cont [14/16] 0.0, 128
    %3131 = vxpose.xlu0.b32.cont [15/16] 0.0, 128
    %3132 = vxpose.xlu0.b32.end [16/16] 0.0, 128
    %v3133 = vpop.trf.xlu0
    %v3134 = vpop.trf.xlu0
    %v3135 = vpop.trf.xlu0
    %v3136 = vpop.trf.xlu0
    %v3137 = vpop.trf.xlu0
    %v3138 = vpop.trf.xlu0
    %v3139 = vpop.trf.xlu0
    %v3140 = vpop.trf.xlu0
    %v3141 = vpop.trf.xlu0
    %v3142 = vpop.trf.xlu0
    %v3143 = vpop.trf.xlu0
    %v3144 = vpop.trf.xlu0
    %v3145 = vpop.trf.xlu0
    %v3146 = vpop.trf.xlu0
    %v3147 = vpop.trf.xlu0
    %v3148 = vpop.trf.xlu0
    %v3149 = vperm.slane %v3133, 0
    %v3150 = vlaneseq
    %v3151 = vshrl.u32 %v3150, 7
    %3153 = vset.pattern.permute.xlu0 %v3151
    %3154 = vperm.xlu0 %3153, %v3149
    %v3155 = vpop.permute.xlu0 %3154
    %v3156 = vperm.slane %v3133, 1
    %v3157 = vlaneseq
    %v3158 = vshrl.u32 %v3157, 7
    %3160 = vset.pattern.permute.xlu0 %v3158
    %3161 = vperm.xlu0 %3160, %v3156
    %v3162 = vpop.permute.xlu0 %3161
    %v3163 = vperm.slane %v3133, 2
    %v3164 = vlaneseq
    %v3165 = vshrl.u32 %v3164, 7
    %3167 = vset.pattern.permute.xlu0 %v3165
    %3168 = vperm.xlu0 %3167, %v3163
    %v3169 = vpop.permute.xlu0 %3168
    %v3170 = vperm.slane %v3133, 3
    %v3171 = vlaneseq
    %v3172 = vshrl.u32 %v3171, 7
    %3174 = vset.pattern.permute.xlu0 %v3172
    %3175 = vperm.xlu0 %3174, %v3170
    %v3176 = vpop.permute.xlu0 %3175
    %v3177 = vperm.slane %v3133, 4
    %v3178 = vlaneseq
    %v3179 = vshrl.u32 %v3178, 7
    %3181 = vset.pattern.permute.xlu0 %v3179
    %3182 = vperm.xlu0 %3181, %v3177
    %v3183 = vpop.permute.xlu0 %3182
    %v3184 = vperm.slane %v3133, 5
    %v3185 = vlaneseq
    %v3186 = vshrl.u32 %v3185, 7
    %3188 = vset.pattern.permute.xlu0 %v3186
    %3189 = vperm.xlu0 %3188, %v3184
    %v3190 = vpop.permute.xlu0 %3189
    %v3191 = vperm.slane %v3133, 6
    %v3192 = vlaneseq
    %v3193 = vshrl.u32 %v3192, 7
    %3195 = vset.pattern.permute.xlu0 %v3193
    %3196 = vperm.xlu0 %3195, %v3191
    %v3197 = vpop.permute.xlu0 %3196
    %v3198 = vperm.slane %v3133, 7
    %v3199 = vlaneseq
    %v3200 = vshrl.u32 %v3199, 7
    %3202 = vset.pattern.permute.xlu0 %v3200
    %3203 = vperm.xlu0 %3202, %v3198
    %v3204 = vpop.permute.xlu0 %3203
    %v3205 = vperm.slane %v3134, 0
    %v3206 = vlaneseq
    %v3207 = vshrl.u32 %v3206, 7
    %3209 = vset.pattern.permute.xlu0 %v3207
    %3210 = vperm.xlu0 %3209, %v3205
    %v3211 = vpop.permute.xlu0 %3210
    %v3212 = vperm.slane %v3134, 1
    %v3213 = vlaneseq
    %v3214 = vshrl.u32 %v3213, 7
    %3216 = vset.pattern.permute.xlu0 %v3214
    %3217 = vperm.xlu0 %3216, %v3212
    %v3218 = vpop.permute.xlu0 %3217
    %v3219 = vperm.slane %v3134, 2
    %v3220 = vlaneseq
    %v3221 = vshrl.u32 %v3220, 7
    %3223 = vset.pattern.permute.xlu0 %v3221
    %3224 = vperm.xlu0 %3223, %v3219
    %v3225 = vpop.permute.xlu0 %3224
    %v3226 = vperm.slane %v3134, 3
    %v3227 = vlaneseq
    %v3228 = vshrl.u32 %v3227, 7
    %3230 = vset.pattern.permute.xlu0 %v3228
    %3231 = vperm.xlu0 %3230, %v3226
    %v3232 = vpop.permute.xlu0 %3231
    %v3233 = vperm.slane %v3134, 4
    %v3234 = vlaneseq
    %v3235 = vshrl.u32 %v3234, 7
    %3237 = vset.pattern.permute.xlu0 %v3235
    %3238 = vperm.xlu0 %3237, %v3233
    %v3239 = vpop.permute.xlu0 %3238
    %v3240 = vperm.slane %v3134, 5
    %v3241 = vlaneseq
    %v3242 = vshrl.u32 %v3241, 7
    %3244 = vset.pattern.permute.xlu0 %v3242
    %3245 = vperm.xlu0 %3244, %v3240
    %v3246 = vpop.permute.xlu0 %3245
    %v3247 = vperm.slane %v3134, 6
    %v3248 = vlaneseq
    %v3249 = vshrl.u32 %v3248, 7
    %3251 = vset.pattern.permute.xlu0 %v3249
    %3252 = vperm.xlu0 %3251, %v3247
    %v3253 = vpop.permute.xlu0 %3252
    %v3254 = vperm.slane %v3134, 7
    %v3255 = vlaneseq
    %v3256 = vshrl.u32 %v3255, 7
    %3258 = vset.pattern.permute.xlu0 %v3256
    %3259 = vperm.xlu0 %3258, %v3254
    %v3260 = vpop.permute.xlu0 %3259
    %s3261 = sld [smem:[#allocation8]]
    %v3262 = vstv %s3261
    %v3263 = vmul.f32 %v3155, %v3262
    %v3264 = vmul.f32 %v3162, %v3262
    %v3265 = vmul.f32 %v3169, %v3262
    %v3266 = vmul.f32 %v3176, %v3262
    %v3267 = vmul.f32 %v3183, %v3262
    %v3268 = vmul.f32 %v3190, %v3262
    %v3269 = vmul.f32 %v3197, %v3262
    %v3270 = vmul.f32 %v3204, %v3262
    %v3271 = vmul.f32 %v3211, %v3262
    %v3272 = vmul.f32 %v3218, %v3262
    %v3273 = vmul.f32 %v3225, %v3262
    %v3274 = vmul.f32 %v3232, %v3262
    %v3275 = vmul.f32 %v3239, %v3262
    %v3276 = vmul.f32 %v3246, %v3262
    %v3277 = vmul.f32 %v3253, %v3262
    %v3278 = vmul.f32 %v3260, %v3262
    %s3279 = sld [smem:[#allocation11]]
    %v3280 = vstv %s3279
    %v3281 = vadd.f32 %v3263, %v3280
    %v3282 = vadd.f32 %v3264, %v3280
    %v3283 = vadd.f32 %v3265, %v3280
    %v3284 = vadd.f32 %v3266, %v3280
    %v3285 = vadd.f32 %v3267, %v3280
    %v3286 = vadd.f32 %v3268, %v3280
    %v3287 = vadd.f32 %v3269, %v3280
    %v3288 = vadd.f32 %v3270, %v3280
    %v3289 = vadd.f32 %v3271, %v3280
    %v3290 = vadd.f32 %v3272, %v3280
    %v3291 = vadd.f32 %v3273, %v3280
    %v3292 = vadd.f32 %v3274, %v3280
    %v3293 = vadd.f32 %v3275, %v3280
    %v3294 = vadd.f32 %v3276, %v3280
    %v3295 = vadd.f32 %v3277, %v3280
    %v3296 = vadd.f32 %v3278, %v3280
    %s3297 = sld [smem:[#allocation8 + $0x1]]
    %v3298 = vstv %s3297
    %v3299 = vmul.f32 %v3155, %v3298
    %v3300 = vmul.f32 %v3162, %v3298
    %v3301 = vmul.f32 %v3169, %v3298
    %v3302 = vmul.f32 %v3176, %v3298
    %v3303 = vmul.f32 %v3183, %v3298
    %v3304 = vmul.f32 %v3190, %v3298
    %v3305 = vmul.f32 %v3197, %v3298
    %v3306 = vmul.f32 %v3204, %v3298
    %v3307 = vmul.f32 %v3211, %v3298
    %v3308 = vmul.f32 %v3218, %v3298
    %v3309 = vmul.f32 %v3225, %v3298
    %v3310 = vmul.f32 %v3232, %v3298
    %v3311 = vmul.f32 %v3239, %v3298
    %v3312 = vmul.f32 %v3246, %v3298
    %v3313 = vmul.f32 %v3253, %v3298
    %v3314 = vmul.f32 %v3260, %v3298
    %s3315 = sld [smem:[#allocation11 + $0x1]]
    %v3316 = vstv %s3315
    %v3317 = vadd.f32 %v3299, %v3316
    %v3318 = vadd.f32 %v3300, %v3316
    %v3319 = vadd.f32 %v3301, %v3316
    %v3320 = vadd.f32 %v3302, %v3316
    %v3321 = vadd.f32 %v3303, %v3316
    %v3322 = vadd.f32 %v3304, %v3316
    %v3323 = vadd.f32 %v3305, %v3316
    %v3324 = vadd.f32 %v3306, %v3316
    %v3325 = vadd.f32 %v3307, %v3316
    %v3326 = vadd.f32 %v3308, %v3316
    %v3327 = vadd.f32 %v3309, %v3316
    %v3328 = vadd.f32 %v3310, %v3316
    %v3329 = vadd.f32 %v3311, %v3316
    %v3330 = vadd.f32 %v3312, %v3316
    %v3331 = vadd.f32 %v3313, %v3316
    %v3332 = vadd.f32 %v3314, %v3316
    %s3333 = sld [smem:[#allocation8 + $0x2]]
    %v3334 = vstv %s3333
    %v3335 = vmul.f32 %v3155, %v3334
    %v3336 = vmul.f32 %v3162, %v3334
    %v3337 = vmul.f32 %v3169, %v3334
    %v3338 = vmul.f32 %v3176, %v3334
    %v3339 = vmul.f32 %v3183, %v3334
    %v3340 = vmul.f32 %v3190, %v3334
    %v3341 = vmul.f32 %v3197, %v3334
    %v3342 = vmul.f32 %v3204, %v3334
    %v3343 = vmul.f32 %v3211, %v3334
    %v3344 = vmul.f32 %v3218, %v3334
    %v3345 = vmul.f32 %v3225, %v3334
    %v3346 = vmul.f32 %v3232, %v3334
    %v3347 = vmul.f32 %v3239, %v3334
    %v3348 = vmul.f32 %v3246, %v3334
    %v3349 = vmul.f32 %v3253, %v3334
    %v3350 = vmul.f32 %v3260, %v3334
    %s3351 = sld [smem:[#allocation11 + $0x2]]
    %v3352 = vstv %s3351
    %v3353 = vadd.f32 %v3335, %v3352
    %v3354 = vadd.f32 %v3336, %v3352
    %v3355 = vadd.f32 %v3337, %v3352
    %v3356 = vadd.f32 %v3338, %v3352
    %v3357 = vadd.f32 %v3339, %v3352
    %v3358 = vadd.f32 %v3340, %v3352
    %v3359 = vadd.f32 %v3341, %v3352
    %v3360 = vadd.f32 %v3342, %v3352
    %v3361 = vadd.f32 %v3343, %v3352
    %v3362 = vadd.f32 %v3344, %v3352
    %v3363 = vadd.f32 %v3345, %v3352
    %v3364 = vadd.f32 %v3346, %v3352
    %v3365 = vadd.f32 %v3347, %v3352
    %v3366 = vadd.f32 %v3348, %v3352
    %v3367 = vadd.f32 %v3349, %v3352
    %v3368 = vadd.f32 %v3350, %v3352
    %s3369 = sld [smem:[#allocation8 + $0x3]]
    %v3370 = vstv %s3369
    %v3371 = vmul.f32 %v3155, %v3370
    %v3372 = vmul.f32 %v3162, %v3370
    %v3373 = vmul.f32 %v3169, %v3370
    %v3374 = vmul.f32 %v3176, %v3370
    %v3375 = vmul.f32 %v3183, %v3370
    %v3376 = vmul.f32 %v3190, %v3370
    %v3377 = vmul.f32 %v3197, %v3370
    %v3378 = vmul.f32 %v3204, %v3370
    %v3379 = vmul.f32 %v3211, %v3370
    %v3380 = vmul.f32 %v3218, %v3370
    %v3381 = vmul.f32 %v3225, %v3370
    %v3382 = vmul.f32 %v3232, %v3370
    %v3383 = vmul.f32 %v3239, %v3370
    %v3384 = vmul.f32 %v3246, %v3370
    %v3385 = vmul.f32 %v3253, %v3370
    %v3386 = vmul.f32 %v3260, %v3370
    %s3387 = sld [smem:[#allocation11 + $0x3]]
    %v3388 = vstv %s3387
    %v3389 = vadd.f32 %v3371, %v3388
    %v3390 = vadd.f32 %v3372, %v3388
    %v3391 = vadd.f32 %v3373, %v3388
    %v3392 = vadd.f32 %v3374, %v3388
    %v3393 = vadd.f32 %v3375, %v3388
    %v3394 = vadd.f32 %v3376, %v3388
    %v3395 = vadd.f32 %v3377, %v3388
    %v3396 = vadd.f32 %v3378, %v3388
    %v3397 = vadd.f32 %v3379, %v3388
    %v3398 = vadd.f32 %v3380, %v3388
    %v3399 = vadd.f32 %v3381, %v3388
    %v3400 = vadd.f32 %v3382, %v3388
    %v3401 = vadd.f32 %v3383, %v3388
    %v3402 = vadd.f32 %v3384, %v3388
    %v3403 = vadd.f32 %v3385, %v3388
    %v3404 = vadd.f32 %v3386, %v3388
    %s3405 = sld [smem:[#allocation9]]
    %s3406 = sld [smem:[#allocation9 + $0x1]]
    %s3407 = sld [smem:[#allocation9 + $0x2]]
    %s3408 = sld [smem:[#allocation9 + $0x3]]
    %v3409 = vstv %s3405
    %v3410 = vmul.f32 %v3409, 0.0
    %v3411 = vadd.f32 %v3281, %v3410
    %v3412 = vxor.u32 %v3411, 2147483648
    %v3413 = vmul.f32 %v3412, 1.442695
    %v3414 = vpow.pop %v3413
    %v3415 = vadd.f32 %v3414, 1.0
    %v3416 = vrcp.pop %v3415
    %v3417 = vmul.f32 %v3415, %v3416
    %v3418 = vsub.f32 1.0, %v3417
    %v3419 = vmul.f32 %v3416, %v3418
    %v3420 = vadd.f32 %v3416, %v3419
    %vm3421 = vweird.f32 %v3415
    %vm3422 = vweird.f32 %v3416
    %vm3423 = vmor %vm3421, %vm3422
    %v3424 = vsel %vm3423, %v3416, %v3420
    %v3425 = vand.u32 2147483647, %v3415
    %vm3426 = vcmp.eq.f32.partialorder %v3425, 8.507059e+37
    %v3427 = vand.u32 %v3415, 2147483648
    %v3428 = vor.u32 1.1754944e-38, %v3427
    %v3429 = vsel %vm3426, %v3428, %v3424
    %v3430 = vmul.f32 1.0, %v3429
    %v3431 = vstv %s3406
    %v3432 = vmul.f32 %v3431, 0.0
    %v3433 = vadd.f32 %v3317, %v3432
    %v3434 = vxor.u32 %v3433, 2147483648
    %v3435 = vmul.f32 %v3434, 1.442695
    %v3436 = vpow.pop %v3435
    %v3437 = vadd.f32 %v3436, 1.0
    %v3438 = vrcp.pop %v3437
    %v3439 = vmul.f32 %v3437, %v3438
    %v3440 = vsub.f32 1.0, %v3439
    %v3441 = vmul.f32 %v3438, %v3440
    %v3442 = vadd.f32 %v3438, %v3441
    %vm3443 = vweird.f32 %v3437
    %vm3444 = vweird.f32 %v3438
    %vm3445 = vmor %vm3443, %vm3444
    %v3446 = vsel %vm3445, %v3438, %v3442
    %v3447 = vand.u32 2147483647, %v3437
    %vm3448 = vcmp.eq.f32.partialorder %v3447, 8.507059e+37
    %v3449 = vand.u32 %v3437, 2147483648
    %v3450 = vor.u32 1.1754944e-38, %v3449
    %v3451 = vsel %vm3448, %v3450, %v3446
    %v3452 = vmul.f32 1.0, %v3451
    %v3453 = vstv %s3407
    %v3454 = vmul.f32 %v3453, 0.0
    %v3455 = vadd.f32 %v3353, %v3454
    %v3456 = vtanh.pop %v3455
    %v3457 = vstv %s3408
    %v3458 = vmul.f32 %v3457, 0.0
    %v3459 = vadd.f32 %v3389, %v3458
    %v3460 = vxor.u32 %v3459, 2147483648
    %v3461 = vmul.f32 %v3460, 1.442695
    %v3462 = vpow.pop %v3461
    %v3463 = vadd.f32 %v3462, 1.0
    %v3464 = vrcp.pop %v3463
    %v3465 = vmul.f32 %v3463, %v3464
    %v3466 = vsub.f32 1.0, %v3465
    %v3467 = vmul.f32 %v3464, %v3466
    %v3468 = vadd.f32 %v3464, %v3467
    %vm3469 = vweird.f32 %v3463
    %vm3470 = vweird.f32 %v3464
    %vm3471 = vmor %vm3469, %vm3470
    %v3472 = vsel %vm3471, %v3464, %v3468
    %v3473 = vand.u32 2147483647, %v3463
    %vm3474 = vcmp.eq.f32.partialorder %v3473, 8.507059e+37
    %v3475 = vand.u32 %v3463, 2147483648
    %v3476 = vor.u32 1.1754944e-38, %v3475
    %v3477 = vsel %vm3474, %v3476, %v3472
    %v3478 = vmul.f32 1.0, %v3477
    %v3479 = vmul.f32 %v3452, 0.0
    %v3480 = vmul.f32 %v3430, %v3456
    %v3481 = vadd.f32 %v3479, %v3480
    %v3482 = vtanh.pop %v3481
    %v3483 = vmul.f32 %v3478, %v3482
    %v3484 = vmul.f32 %v3483, %v3409
    %v3485 = vadd.f32 %v3282, %v3484
    %v3486 = vxor.u32 %v3485, 2147483648
    %v3487 = vmul.f32 %v3486, 1.442695
    %v3488 = vpow.pop %v3487
    %v3489 = vadd.f32 %v3488, 1.0
    %v3490 = vrcp.pop %v3489
    %v3491 = vmul.f32 %v3489, %v3490
    %v3492 = vsub.f32 1.0, %v3491
    %v3493 = vmul.f32 %v3490, %v3492
    %v3494 = vadd.f32 %v3490, %v3493
    %vm3495 = vweird.f32 %v3489
    %vm3496 = vweird.f32 %v3490
    %vm3497 = vmor %vm3495, %vm3496
    %v3498 = vsel %vm3497, %v3490, %v3494
    %v3499 = vand.u32 2147483647, %v3489
    %vm3500 = vcmp.eq.f32.partialorder %v3499, 8.507059e+37
    %v3501 = vand.u32 %v3489, 2147483648
    %v3502 = vor.u32 1.1754944e-38, %v3501
    %v3503 = vsel %vm3500, %v3502, %v3498
    %v3504 = vmul.f32 1.0, %v3503
    %v3505 = vmul.f32 %v3483, %v3431
    %v3506 = vadd.f32 %v3318, %v3505
    %v3507 = vxor.u32 %v3506, 2147483648
    %v3508 = vmul.f32 %v3507, 1.442695
    %v3509 = vpow.pop %v3508
    %v3510 = vadd.f32 %v3509, 1.0
    %v3511 = vrcp.pop %v3510
    %v3512 = vmul.f32 %v3510, %v3511
    %v3513 = vsub.f32 1.0, %v3512
    %v3514 = vmul.f32 %v3511, %v3513
    %v3515 = vadd.f32 %v3511, %v3514
    %vm3516 = vweird.f32 %v3510
    %vm3517 = vweird.f32 %v3511
    %vm3518 = vmor %vm3516, %vm3517
    %v3519 = vsel %vm3518, %v3511, %v3515
    %v3520 = vand.u32 2147483647, %v3510
    %vm3521 = vcmp.eq.f32.partialorder %v3520, 8.507059e+37
    %v3522 = vand.u32 %v3510, 2147483648
    %v3523 = vor.u32 1.1754944e-38, %v3522
    %v3524 = vsel %vm3521, %v3523, %v3519
    %v3525 = vmul.f32 1.0, %v3524
    %v3526 = vmul.f32 %v3483, %v3453
    %v3527 = vadd.f32 %v3354, %v3526
    %v3528 = vtanh.pop %v3527
    %v3529 = vmul.f32 %v3483, %v3457
    %v3530 = vadd.f32 %v3390, %v3529
    %v3531 = vxor.u32 %v3530, 2147483648
    %v3532 = vmul.f32 %v3531, 1.442695
    %v3533 = vpow.pop %v3532
    %v3534 = vadd.f32 %v3533, 1.0
    %v3535 = vrcp.pop %v3534
    %v3536 = vmul.f32 %v3534, %v3535
    %v3537 = vsub.f32 1.0, %v3536
    %v3538 = vmul.f32 %v3535, %v3537
    %v3539 = vadd.f32 %v3535, %v3538
    %vm3540 = vweird.f32 %v3534
    %vm3541 = vweird.f32 %v3535
    %vm3542 = vmor %vm3540, %vm3541
    %v3543 = vsel %vm3542, %v3535, %v3539
    %v3544 = vand.u32 2147483647, %v3534
    %vm3545 = vcmp.eq.f32.partialorder %v3544, 8.507059e+37
    %v3546 = vand.u32 %v3534, 2147483648
    %v3547 = vor.u32 1.1754944e-38, %v3546
    %v3548 = vsel %vm3545, %v3547, %v3543
    %v3549 = vmul.f32 1.0, %v3548
    %v3550 = vmul.f32 %v3525, %v3481
    %v3551 = vmul.f32 %v3504, %v3528
    %v3552 = vadd.f32 %v3550, %v3551
    %v3553 = vtanh.pop %v3552
    %v3554 = vmul.f32 %v3549, %v3553
    %v3555 = vmul.f32 %v3554, %v3409
    %v3556 = vadd.f32 %v3283, %v3555
    %v3557 = vxor.u32 %v3556, 2147483648
    %v3558 = vmul.f32 %v3557, 1.442695
    %v3559 = vpow.pop %v3558
    %v3560 = vadd.f32 %v3559, 1.0
    %v3561 = vrcp.pop %v3560
    %v3562 = vmul.f32 %v3560, %v3561
    %v3563 = vsub.f32 1.0, %v3562
    %v3564 = vmul.f32 %v3561, %v3563
    %v3565 = vadd.f32 %v3561, %v3564
    %vm3566 = vweird.f32 %v3560
    %vm3567 = vweird.f32 %v3561
    %vm3568 = vmor %vm3566, %vm3567
    %v3569 = vsel %vm3568, %v3561, %v3565
    %v3570 = vand.u32 2147483647, %v3560
    %vm3571 = vcmp.eq.f32.partialorder %v3570, 8.507059e+37
    %v3572 = vand.u32 %v3560, 2147483648
    %v3573 = vor.u32 1.1754944e-38, %v3572
    %v3574 = vsel %vm3571, %v3573, %v3569
    %v3575 = vmul.f32 1.0, %v3574
    %v3576 = vmul.f32 %v3554, %v3431
    %v3577 = vadd.f32 %v3319, %v3576
    %v3578 = vxor.u32 %v3577, 2147483648
    %v3579 = vmul.f32 %v3578, 1.442695
    %v3580 = vpow.pop %v3579
    %v3581 = vadd.f32 %v3580, 1.0
    %v3582 = vrcp.pop %v3581
    %v3583 = vmul.f32 %v3581, %v3582
    %v3584 = vsub.f32 1.0, %v3583
    %v3585 = vmul.f32 %v3582, %v3584
    %v3586 = vadd.f32 %v3582, %v3585
    %vm3587 = vweird.f32 %v3581
    %vm3588 = vweird.f32 %v3582
    %vm3589 = vmor %vm3587, %vm3588
    %v3590 = vsel %vm3589, %v3582, %v3586
    %v3591 = vand.u32 2147483647, %v3581
    %vm3592 = vcmp.eq.f32.partialorder %v3591, 8.507059e+37
    %v3593 = vand.u32 %v3581, 2147483648
    %v3594 = vor.u32 1.1754944e-38, %v3593
    %v3595 = vsel %vm3592, %v3594, %v3590
    %v3596 = vmul.f32 1.0, %v3595
    %v3597 = vmul.f32 %v3554, %v3453
    %v3598 = vadd.f32 %v3355, %v3597
    %v3599 = vtanh.pop %v3598
    %v3600 = vmul.f32 %v3554, %v3457
    %v3601 = vadd.f32 %v3391, %v3600
    %v3602 = vxor.u32 %v3601, 2147483648
    %v3603 = vmul.f32 %v3602, 1.442695
    %v3604 = vpow.pop %v3603
    %v3605 = vadd.f32 %v3604, 1.0
    %v3606 = vrcp.pop %v3605
    %v3607 = vmul.f32 %v3605, %v3606
    %v3608 = vsub.f32 1.0, %v3607
    %v3609 = vmul.f32 %v3606, %v3608
    %v3610 = vadd.f32 %v3606, %v3609
    %vm3611 = vweird.f32 %v3605
    %vm3612 = vweird.f32 %v3606
    %vm3613 = vmor %vm3611, %vm3612
    %v3614 = vsel %vm3613, %v3606, %v3610
    %v3615 = vand.u32 2147483647, %v3605
    %vm3616 = vcmp.eq.f32.partialorder %v3615, 8.507059e+37
    %v3617 = vand.u32 %v3605, 2147483648
    %v3618 = vor.u32 1.1754944e-38, %v3617
    %v3619 = vsel %vm3616, %v3618, %v3614
    %v3620 = vmul.f32 1.0, %v3619
    %v3621 = vmul.f32 %v3596, %v3552
    %v3622 = vmul.f32 %v3575, %v3599
    %v3623 = vadd.f32 %v3621, %v3622
    %v3624 = vtanh.pop %v3623
    %v3625 = vmul.f32 %v3620, %v3624
    %v3626 = vmul.f32 %v3625, %v3409
    %v3627 = vadd.f32 %v3284, %v3626
    %v3628 = vxor.u32 %v3627, 2147483648
    %v3629 = vmul.f32 %v3628, 1.442695
    %v3630 = vpow.pop %v3629
    %v3631 = vadd.f32 %v3630, 1.0
    %v3632 = vrcp.pop %v3631
    %v3633 = vmul.f32 %v3631, %v3632
    %v3634 = vsub.f32 1.0, %v3633
    %v3635 = vmul.f32 %v3632, %v3634
    %v3636 = vadd.f32 %v3632, %v3635
    %vm3637 = vweird.f32 %v3631
    %vm3638 = vweird.f32 %v3632
    %vm3639 = vmor %vm3637, %vm3638
    %v3640 = vsel %vm3639, %v3632, %v3636
    %v3641 = vand.u32 2147483647, %v3631
    %vm3642 = vcmp.eq.f32.partialorder %v3641, 8.507059e+37
    %v3643 = vand.u32 %v3631, 2147483648
    %v3644 = vor.u32 1.1754944e-38, %v3643
    %v3645 = vsel %vm3642, %v3644, %v3640
    %v3646 = vmul.f32 1.0, %v3645
    %v3647 = vmul.f32 %v3625, %v3431
    %v3648 = vadd.f32 %v3320, %v3647
    %v3649 = vxor.u32 %v3648, 2147483648
    %v3650 = vmul.f32 %v3649, 1.442695
    %v3651 = vpow.pop %v3650
    %v3652 = vadd.f32 %v3651, 1.0
    %v3653 = vrcp.pop %v3652
    %v3654 = vmul.f32 %v3652, %v3653
    %v3655 = vsub.f32 1.0, %v3654
    %v3656 = vmul.f32 %v3653, %v3655
    %v3657 = vadd.f32 %v3653, %v3656
    %vm3658 = vweird.f32 %v3652
    %vm3659 = vweird.f32 %v3653
    %vm3660 = vmor %vm3658, %vm3659
    %v3661 = vsel %vm3660, %v3653, %v3657
    %v3662 = vand.u32 2147483647, %v3652
    %vm3663 = vcmp.eq.f32.partialorder %v3662, 8.507059e+37
    %v3664 = vand.u32 %v3652, 2147483648
    %v3665 = vor.u32 1.1754944e-38, %v3664
    %v3666 = vsel %vm3663, %v3665, %v3661
    %v3667 = vmul.f32 1.0, %v3666
    %v3668 = vmul.f32 %v3625, %v3453
    %v3669 = vadd.f32 %v3356, %v3668
    %v3670 = vtanh.pop %v3669
    %v3671 = vmul.f32 %v3625, %v3457
    %v3672 = vadd.f32 %v3392, %v3671
    %v3673 = vxor.u32 %v3672, 2147483648
    %v3674 = vmul.f32 %v3673, 1.442695
    %v3675 = vpow.pop %v3674
    %v3676 = vadd.f32 %v3675, 1.0
    %v3677 = vrcp.pop %v3676
    %v3678 = vmul.f32 %v3676, %v3677
    %v3679 = vsub.f32 1.0, %v3678
    %v3680 = vmul.f32 %v3677, %v3679
    %v3681 = vadd.f32 %v3677, %v3680
    %vm3682 = vweird.f32 %v3676
    %vm3683 = vweird.f32 %v3677
    %vm3684 = vmor %vm3682, %vm3683
    %v3685 = vsel %vm3684, %v3677, %v3681
    %v3686 = vand.u32 2147483647, %v3676
    %vm3687 = vcmp.eq.f32.partialorder %v3686, 8.507059e+37
    %v3688 = vand.u32 %v3676, 2147483648
    %v3689 = vor.u32 1.1754944e-38, %v3688
    %v3690 = vsel %vm3687, %v3689, %v3685
    %v3691 = vmul.f32 1.0, %v3690
    %v3692 = vmul.f32 %v3667, %v3623
    %v3693 = vmul.f32 %v3646, %v3670
    %v3694 = vadd.f32 %v3692, %v3693
    %v3695 = vtanh.pop %v3694
    %v3696 = vmul.f32 %v3691, %v3695
    %v3697 = vmul.f32 %v3696, %v3409
    %v3698 = vadd.f32 %v3285, %v3697
    %v3699 = vxor.u32 %v3698, 2147483648
    %v3700 = vmul.f32 %v3699, 1.442695
    %v3701 = vpow.pop %v3700
    %v3702 = vadd.f32 %v3701, 1.0
    %v3703 = vrcp.pop %v3702
    %v3704 = vmul.f32 %v3702, %v3703
    %v3705 = vsub.f32 1.0, %v3704
    %v3706 = vmul.f32 %v3703, %v3705
    %v3707 = vadd.f32 %v3703, %v3706
    %vm3708 = vweird.f32 %v3702
    %vm3709 = vweird.f32 %v3703
    %vm3710 = vmor %vm3708, %vm3709
    %v3711 = vsel %vm3710, %v3703, %v3707
    %v3712 = vand.u32 2147483647, %v3702
    %vm3713 = vcmp.eq.f32.partialorder %v3712, 8.507059e+37
    %v3714 = vand.u32 %v3702, 2147483648
    %v3715 = vor.u32 1.1754944e-38, %v3714
    %v3716 = vsel %vm3713, %v3715, %v3711
    %v3717 = vmul.f32 1.0, %v3716
    %v3718 = vmul.f32 %v3696, %v3431
    %v3719 = vadd.f32 %v3321, %v3718
    %v3720 = vxor.u32 %v3719, 2147483648
    %v3721 = vmul.f32 %v3720, 1.442695
    %v3722 = vpow.pop %v3721
    %v3723 = vadd.f32 %v3722, 1.0
    %v3724 = vrcp.pop %v3723
    %v3725 = vmul.f32 %v3723, %v3724
    %v3726 = vsub.f32 1.0, %v3725
    %v3727 = vmul.f32 %v3724, %v3726
    %v3728 = vadd.f32 %v3724, %v3727
    %vm3729 = vweird.f32 %v3723
    %vm3730 = vweird.f32 %v3724
    %vm3731 = vmor %vm3729, %vm3730
    %v3732 = vsel %vm3731, %v3724, %v3728
    %v3733 = vand.u32 2147483647, %v3723
    %vm3734 = vcmp.eq.f32.partialorder %v3733, 8.507059e+37
    %v3735 = vand.u32 %v3723, 2147483648
    %v3736 = vor.u32 1.1754944e-38, %v3735
    %v3737 = vsel %vm3734, %v3736, %v3732
    %v3738 = vmul.f32 1.0, %v3737
    %v3739 = vmul.f32 %v3696, %v3453
    %v3740 = vadd.f32 %v3357, %v3739
    %v3741 = vtanh.pop %v3740
    %v3742 = vmul.f32 %v3696, %v3457
    %v3743 = vadd.f32 %v3393, %v3742
    %v3744 = vxor.u32 %v3743, 2147483648
    %v3745 = vmul.f32 %v3744, 1.442695
    %v3746 = vpow.pop %v3745
    %v3747 = vadd.f32 %v3746, 1.0
    %v3748 = vrcp.pop %v3747
    %v3749 = vmul.f32 %v3747, %v3748
    %v3750 = vsub.f32 1.0, %v3749
    %v3751 = vmul.f32 %v3748, %v3750
    %v3752 = vadd.f32 %v3748, %v3751
    %vm3753 = vweird.f32 %v3747
    %vm3754 = vweird.f32 %v3748
    %vm3755 = vmor %vm3753, %vm3754
    %v3756 = vsel %vm3755, %v3748, %v3752
    %v3757 = vand.u32 2147483647, %v3747
    %vm3758 = vcmp.eq.f32.partialorder %v3757, 8.507059e+37
    %v3759 = vand.u32 %v3747, 2147483648
    %v3760 = vor.u32 1.1754944e-38, %v3759
    %v3761 = vsel %vm3758, %v3760, %v3756
    %v3762 = vmul.f32 1.0, %v3761
    %v3763 = vmul.f32 %v3738, %v3694
    %v3764 = vmul.f32 %v3717, %v3741
    %v3765 = vadd.f32 %v3763, %v3764
    %v3766 = vtanh.pop %v3765
    %v3767 = vmul.f32 %v3762, %v3766
    %v3768 = vmul.f32 %v3767, %v3409
    %v3769 = vadd.f32 %v3286, %v3768
    %v3770 = vxor.u32 %v3769, 2147483648
    %v3771 = vmul.f32 %v3770, 1.442695
    %v3772 = vpow.pop %v3771
    %v3773 = vadd.f32 %v3772, 1.0
    %v3774 = vrcp.pop %v3773
    %v3775 = vmul.f32 %v3773, %v3774
    %v3776 = vsub.f32 1.0, %v3775
    %v3777 = vmul.f32 %v3774, %v3776
    %v3778 = vadd.f32 %v3774, %v3777
    %vm3779 = vweird.f32 %v3773
    %vm3780 = vweird.f32 %v3774
    %vm3781 = vmor %vm3779, %vm3780
    %v3782 = vsel %vm3781, %v3774, %v3778
    %v3783 = vand.u32 2147483647, %v3773
    %vm3784 = vcmp.eq.f32.partialorder %v3783, 8.507059e+37
    %v3785 = vand.u32 %v3773, 2147483648
    %v3786 = vor.u32 1.1754944e-38, %v3785
    %v3787 = vsel %vm3784, %v3786, %v3782
    %v3788 = vmul.f32 1.0, %v3787
    %v3789 = vmul.f32 %v3767, %v3431
    %v3790 = vadd.f32 %v3322, %v3789
    %v3791 = vxor.u32 %v3790, 2147483648
    %v3792 = vmul.f32 %v3791, 1.442695
    %v3793 = vpow.pop %v3792
    %v3794 = vadd.f32 %v3793, 1.0
    %v3795 = vrcp.pop %v3794
    %v3796 = vmul.f32 %v3794, %v3795
    %v3797 = vsub.f32 1.0, %v3796
    %v3798 = vmul.f32 %v3795, %v3797
    %v3799 = vadd.f32 %v3795, %v3798
    %vm3800 = vweird.f32 %v3794
    %vm3801 = vweird.f32 %v3795
    %vm3802 = vmor %vm3800, %vm3801
    %v3803 = vsel %vm3802, %v3795, %v3799
    %v3804 = vand.u32 2147483647, %v3794
    %vm3805 = vcmp.eq.f32.partialorder %v3804, 8.507059e+37
    %v3806 = vand.u32 %v3794, 2147483648
    %v3807 = vor.u32 1.1754944e-38, %v3806
    %v3808 = vsel %vm3805, %v3807, %v3803
    %v3809 = vmul.f32 1.0, %v3808
    %v3810 = vmul.f32 %v3767, %v3453
    %v3811 = vadd.f32 %v3358, %v3810
    %v3812 = vtanh.pop %v3811
    %v3813 = vmul.f32 %v3767, %v3457
    %v3814 = vadd.f32 %v3394, %v3813
    %v3815 = vxor.u32 %v3814, 2147483648
    %v3816 = vmul.f32 %v3815, 1.442695
    %v3817 = vpow.pop %v3816
    %v3818 = vadd.f32 %v3817, 1.0
    %v3819 = vrcp.pop %v3818
    %v3820 = vmul.f32 %v3818, %v3819
    %v3821 = vsub.f32 1.0, %v3820
    %v3822 = vmul.f32 %v3819, %v3821
    %v3823 = vadd.f32 %v3819, %v3822
    %vm3824 = vweird.f32 %v3818
    %vm3825 = vweird.f32 %v3819
    %vm3826 = vmor %vm3824, %vm3825
    %v3827 = vsel %vm3826, %v3819, %v3823
    %v3828 = vand.u32 2147483647, %v3818
    %vm3829 = vcmp.eq.f32.partialorder %v3828, 8.507059e+37
    %v3830 = vand.u32 %v3818, 2147483648
    %v3831 = vor.u32 1.1754944e-38, %v3830
    %v3832 = vsel %vm3829, %v3831, %v3827
    %v3833 = vmul.f32 1.0, %v3832
    %v3834 = vmul.f32 %v3809, %v3765
    %v3835 = vmul.f32 %v3788, %v3812
    %v3836 = vadd.f32 %v3834, %v3835
    %v3837 = vtanh.pop %v3836
    %v3838 = vmul.f32 %v3833, %v3837
    %v3839 = vmul.f32 %v3838, %v3409
    %v3840 = vadd.f32 %v3287, %v3839
    %v3841 = vxor.u32 %v3840, 2147483648
    %v3842 = vmul.f32 %v3841, 1.442695
    %v3843 = vpow.pop %v3842
    %v3844 = vadd.f32 %v3843, 1.0
    %v3845 = vrcp.pop %v3844
    %v3846 = vmul.f32 %v3844, %v3845
    %v3847 = vsub.f32 1.0, %v3846
    %v3848 = vmul.f32 %v3845, %v3847
    %v3849 = vadd.f32 %v3845, %v3848
    %vm3850 = vweird.f32 %v3844
    %vm3851 = vweird.f32 %v3845
    %vm3852 = vmor %vm3850, %vm3851
    %v3853 = vsel %vm3852, %v3845, %v3849
    %v3854 = vand.u32 2147483647, %v3844
    %vm3855 = vcmp.eq.f32.partialorder %v3854, 8.507059e+37
    %v3856 = vand.u32 %v3844, 2147483648
    %v3857 = vor.u32 1.1754944e-38, %v3856
    %v3858 = vsel %vm3855, %v3857, %v3853
    %v3859 = vmul.f32 1.0, %v3858
    %v3860 = vmul.f32 %v3838, %v3431
    %v3861 = vadd.f32 %v3323, %v3860
    %v3862 = vxor.u32 %v3861, 2147483648
    %v3863 = vmul.f32 %v3862, 1.442695
    %v3864 = vpow.pop %v3863
    %v3865 = vadd.f32 %v3864, 1.0
    %v3866 = vrcp.pop %v3865
    %v3867 = vmul.f32 %v3865, %v3866
    %v3868 = vsub.f32 1.0, %v3867
    %v3869 = vmul.f32 %v3866, %v3868
    %v3870 = vadd.f32 %v3866, %v3869
    %vm3871 = vweird.f32 %v3865
    %vm3872 = vweird.f32 %v3866
    %vm3873 = vmor %vm3871, %vm3872
    %v3874 = vsel %vm3873, %v3866, %v3870
    %v3875 = vand.u32 2147483647, %v3865
    %vm3876 = vcmp.eq.f32.partialorder %v3875, 8.507059e+37
    %v3877 = vand.u32 %v3865, 2147483648
    %v3878 = vor.u32 1.1754944e-38, %v3877
    %v3879 = vsel %vm3876, %v3878, %v3874
    %v3880 = vmul.f32 1.0, %v3879
    %v3881 = vmul.f32 %v3838, %v3453
    %v3882 = vadd.f32 %v3359, %v3881
    %v3883 = vtanh.pop %v3882
    %v3884 = vmul.f32 %v3838, %v3457
    %v3885 = vadd.f32 %v3395, %v3884
    %v3886 = vxor.u32 %v3885, 2147483648
    %v3887 = vmul.f32 %v3886, 1.442695
    %v3888 = vpow.pop %v3887
    %v3889 = vadd.f32 %v3888, 1.0
    %v3890 = vrcp.pop %v3889
    %v3891 = vmul.f32 %v3889, %v3890
    %v3892 = vsub.f32 1.0, %v3891
    %v3893 = vmul.f32 %v3890, %v3892
    %v3894 = vadd.f32 %v3890, %v3893
    %vm3895 = vweird.f32 %v3889
    %vm3896 = vweird.f32 %v3890
    %vm3897 = vmor %vm3895, %vm3896
    %v3898 = vsel %vm3897, %v3890, %v3894
    %v3899 = vand.u32 2147483647, %v3889
    %vm3900 = vcmp.eq.f32.partialorder %v3899, 8.507059e+37
    %v3901 = vand.u32 %v3889, 2147483648
    %v3902 = vor.u32 1.1754944e-38, %v3901
    %v3903 = vsel %vm3900, %v3902, %v3898
    %v3904 = vmul.f32 1.0, %v3903
    %v3905 = vmul.f32 %v3880, %v3836
    %v3906 = vmul.f32 %v3859, %v3883
    %v3907 = vadd.f32 %v3905, %v3906
    %v3908 = vtanh.pop %v3907
    %v3909 = vmul.f32 %v3904, %v3908
    %v3910 = vmul.f32 %v3909, %v3409
    %v3911 = vadd.f32 %v3288, %v3910
    %v3912 = vxor.u32 %v3911, 2147483648
    %v3913 = vmul.f32 %v3912, 1.442695
    %v3914 = vpow.pop %v3913
    %v3915 = vadd.f32 %v3914, 1.0
    %v3916 = vrcp.pop %v3915
    %v3917 = vmul.f32 %v3915, %v3916
    %v3918 = vsub.f32 1.0, %v3917
    %v3919 = vmul.f32 %v3916, %v3918
    %v3920 = vadd.f32 %v3916, %v3919
    %vm3921 = vweird.f32 %v3915
    %vm3922 = vweird.f32 %v3916
    %vm3923 = vmor %vm3921, %vm3922
    %v3924 = vsel %vm3923, %v3916, %v3920
    %v3925 = vand.u32 2147483647, %v3915
    %vm3926 = vcmp.eq.f32.partialorder %v3925, 8.507059e+37
    %v3927 = vand.u32 %v3915, 2147483648
    %v3928 = vor.u32 1.1754944e-38, %v3927
    %v3929 = vsel %vm3926, %v3928, %v3924
    %v3930 = vmul.f32 1.0, %v3929
    %v3931 = vmul.f32 %v3909, %v3431
    %v3932 = vadd.f32 %v3324, %v3931
    %v3933 = vxor.u32 %v3932, 2147483648
    %v3934 = vmul.f32 %v3933, 1.442695
    %v3935 = vpow.pop %v3934
    %v3936 = vadd.f32 %v3935, 1.0
    %v3937 = vrcp.pop %v3936
    %v3938 = vmul.f32 %v3936, %v3937
    %v3939 = vsub.f32 1.0, %v3938
    %v3940 = vmul.f32 %v3937, %v3939
    %v3941 = vadd.f32 %v3937, %v3940
    %vm3942 = vweird.f32 %v3936
    %vm3943 = vweird.f32 %v3937
    %vm3944 = vmor %vm3942, %vm3943
    %v3945 = vsel %vm3944, %v3937, %v3941
    %v3946 = vand.u32 2147483647, %v3936
    %vm3947 = vcmp.eq.f32.partialorder %v3946, 8.507059e+37
    %v3948 = vand.u32 %v3936, 2147483648
    %v3949 = vor.u32 1.1754944e-38, %v3948
    %v3950 = vsel %vm3947, %v3949, %v3945
    %v3951 = vmul.f32 1.0, %v3950
    %v3952 = vmul.f32 %v3909, %v3453
    %v3953 = vadd.f32 %v3360, %v3952
    %v3954 = vtanh.pop %v3953
    %v3955 = vmul.f32 %v3909, %v3457
    %v3956 = vadd.f32 %v3396, %v3955
    %v3957 = vxor.u32 %v3956, 2147483648
    %v3958 = vmul.f32 %v3957, 1.442695
    %v3959 = vpow.pop %v3958
    %v3960 = vadd.f32 %v3959, 1.0
    %v3961 = vrcp.pop %v3960
    %v3962 = vmul.f32 %v3960, %v3961
    %v3963 = vsub.f32 1.0, %v3962
    %v3964 = vmul.f32 %v3961, %v3963
    %v3965 = vadd.f32 %v3961, %v3964
    %vm3966 = vweird.f32 %v3960
    %vm3967 = vweird.f32 %v3961
    %vm3968 = vmor %vm3966, %vm3967
    %v3969 = vsel %vm3968, %v3961, %v3965
    %v3970 = vand.u32 2147483647, %v3960
    %vm3971 = vcmp.eq.f32.partialorder %v3970, 8.507059e+37
    %v3972 = vand.u32 %v3960, 2147483648
    %v3973 = vor.u32 1.1754944e-38, %v3972
    %v3974 = vsel %vm3971, %v3973, %v3969
    %v3975 = vmul.f32 1.0, %v3974
    %v3976 = vmul.f32 %v3951, %v3907
    %v3977 = vmul.f32 %v3930, %v3954
    %v3978 = vadd.f32 %v3976, %v3977
    %v3979 = vtanh.pop %v3978
    %v3980 = vmul.f32 %v3975, %v3979
    %v3981 = vmul.f32 %v3980, %v3409
    %v3982 = vadd.f32 %v3289, %v3981
    %v3983 = vxor.u32 %v3982, 2147483648
    %v3984 = vmul.f32 %v3983, 1.442695
    %v3985 = vpow.pop %v3984
    %v3986 = vadd.f32 %v3985, 1.0
    %v3987 = vrcp.pop %v3986
    %v3988 = vmul.f32 %v3986, %v3987
    %v3989 = vsub.f32 1.0, %v3988
    %v3990 = vmul.f32 %v3987, %v3989
    %v3991 = vadd.f32 %v3987, %v3990
    %vm3992 = vweird.f32 %v3986
    %vm3993 = vweird.f32 %v3987
    %vm3994 = vmor %vm3992, %vm3993
    %v3995 = vsel %vm3994, %v3987, %v3991
    %v3996 = vand.u32 2147483647, %v3986
    %vm3997 = vcmp.eq.f32.partialorder %v3996, 8.507059e+37
    %v3998 = vand.u32 %v3986, 2147483648
    %v3999 = vor.u32 1.1754944e-38, %v3998
    %v4000 = vsel %vm3997, %v3999, %v3995
    %v4001 = vmul.f32 1.0, %v4000
    %v4002 = vmul.f32 %v3980, %v3431
    %v4003 = vadd.f32 %v3325, %v4002
    %v4004 = vxor.u32 %v4003, 2147483648
    %v4005 = vmul.f32 %v4004, 1.442695
    %v4006 = vpow.pop %v4005
    %v4007 = vadd.f32 %v4006, 1.0
    %v4008 = vrcp.pop %v4007
    %v4009 = vmul.f32 %v4007, %v4008
    %v4010 = vsub.f32 1.0, %v4009
    %v4011 = vmul.f32 %v4008, %v4010
    %v4012 = vadd.f32 %v4008, %v4011
    %vm4013 = vweird.f32 %v4007
    %vm4014 = vweird.f32 %v4008
    %vm4015 = vmor %vm4013, %vm4014
    %v4016 = vsel %vm4015, %v4008, %v4012
    %v4017 = vand.u32 2147483647, %v4007
    %vm4018 = vcmp.eq.f32.partialorder %v4017, 8.507059e+37
    %v4019 = vand.u32 %v4007, 2147483648
    %v4020 = vor.u32 1.1754944e-38, %v4019
    %v4021 = vsel %vm4018, %v4020, %v4016
    %v4022 = vmul.f32 1.0, %v4021
    %v4023 = vmul.f32 %v3980, %v3453
    %v4024 = vadd.f32 %v3361, %v4023
    %v4025 = vtanh.pop %v4024
    %v4026 = vmul.f32 %v3980, %v3457
    %v4027 = vadd.f32 %v3397, %v4026
    %v4028 = vxor.u32 %v4027, 2147483648
    %v4029 = vmul.f32 %v4028, 1.442695
    %v4030 = vpow.pop %v4029
    %v4031 = vadd.f32 %v4030, 1.0
    %v4032 = vrcp.pop %v4031
    %v4033 = vmul.f32 %v4031, %v4032
    %v4034 = vsub.f32 1.0, %v4033
    %v4035 = vmul.f32 %v4032, %v4034
    %v4036 = vadd.f32 %v4032, %v4035
    %vm4037 = vweird.f32 %v4031
    %vm4038 = vweird.f32 %v4032
    %vm4039 = vmor %vm4037, %vm4038
    %v4040 = vsel %vm4039, %v4032, %v4036
    %v4041 = vand.u32 2147483647, %v4031
    %vm4042 = vcmp.eq.f32.partialorder %v4041, 8.507059e+37
    %v4043 = vand.u32 %v4031, 2147483648
    %v4044 = vor.u32 1.1754944e-38, %v4043
    %v4045 = vsel %vm4042, %v4044, %v4040
    %v4046 = vmul.f32 1.0, %v4045
    %v4047 = vmul.f32 %v4022, %v3978
    %v4048 = vmul.f32 %v4001, %v4025
    %v4049 = vadd.f32 %v4047, %v4048
    %v4050 = vtanh.pop %v4049
    %v4051 = vmul.f32 %v4046, %v4050
    %v4052 = vmul.f32 %v4051, %v3409
    %v4053 = vadd.f32 %v3290, %v4052
    %v4054 = vxor.u32 %v4053, 2147483648
    %v4055 = vmul.f32 %v4054, 1.442695
    %v4056 = vpow.pop %v4055
    %v4057 = vadd.f32 %v4056, 1.0
    %v4058 = vrcp.pop %v4057
    %v4059 = vmul.f32 %v4057, %v4058
    %v4060 = vsub.f32 1.0, %v4059
    %v4061 = vmul.f32 %v4058, %v4060
    %v4062 = vadd.f32 %v4058, %v4061
    %vm4063 = vweird.f32 %v4057
    %vm4064 = vweird.f32 %v4058
    %vm4065 = vmor %vm4063, %vm4064
    %v4066 = vsel %vm4065, %v4058, %v4062
    %v4067 = vand.u32 2147483647, %v4057
    %vm4068 = vcmp.eq.f32.partialorder %v4067, 8.507059e+37
    %v4069 = vand.u32 %v4057, 2147483648
    %v4070 = vor.u32 1.1754944e-38, %v4069
    %v4071 = vsel %vm4068, %v4070, %v4066
    %v4072 = vmul.f32 1.0, %v4071
    %v4073 = vmul.f32 %v4051, %v3431
    %v4074 = vadd.f32 %v3326, %v4073
    %v4075 = vxor.u32 %v4074, 2147483648
    %v4076 = vmul.f32 %v4075, 1.442695
    %v4077 = vpow.pop %v4076
    %v4078 = vadd.f32 %v4077, 1.0
    %v4079 = vrcp.pop %v4078
    %v4080 = vmul.f32 %v4078, %v4079
    %v4081 = vsub.f32 1.0, %v4080
    %v4082 = vmul.f32 %v4079, %v4081
    %v4083 = vadd.f32 %v4079, %v4082
    %vm4084 = vweird.f32 %v4078
    %vm4085 = vweird.f32 %v4079
    %vm4086 = vmor %vm4084, %vm4085
    %v4087 = vsel %vm4086, %v4079, %v4083
    %v4088 = vand.u32 2147483647, %v4078
    %vm4089 = vcmp.eq.f32.partialorder %v4088, 8.507059e+37
    %v4090 = vand.u32 %v4078, 2147483648
    %v4091 = vor.u32 1.1754944e-38, %v4090
    %v4092 = vsel %vm4089, %v4091, %v4087
    %v4093 = vmul.f32 1.0, %v4092
    %v4094 = vmul.f32 %v4051, %v3453
    %v4095 = vadd.f32 %v3362, %v4094
    %v4096 = vtanh.pop %v4095
    %v4097 = vmul.f32 %v4051, %v3457
    %v4098 = vadd.f32 %v3398, %v4097
    %v4099 = vxor.u32 %v4098, 2147483648
    %v4100 = vmul.f32 %v4099, 1.442695
    %v4101 = vpow.pop %v4100
    %v4102 = vadd.f32 %v4101, 1.0
    %v4103 = vrcp.pop %v4102
    %v4104 = vmul.f32 %v4102, %v4103
    %v4105 = vsub.f32 1.0, %v4104
    %v4106 = vmul.f32 %v4103, %v4105
    %v4107 = vadd.f32 %v4103, %v4106
    %vm4108 = vweird.f32 %v4102
    %vm4109 = vweird.f32 %v4103
    %vm4110 = vmor %vm4108, %vm4109
    %v4111 = vsel %vm4110, %v4103, %v4107
    %v4112 = vand.u32 2147483647, %v4102
    %vm4113 = vcmp.eq.f32.partialorder %v4112, 8.507059e+37
    %v4114 = vand.u32 %v4102, 2147483648
    %v4115 = vor.u32 1.1754944e-38, %v4114
    %v4116 = vsel %vm4113, %v4115, %v4111
    %v4117 = vmul.f32 1.0, %v4116
    %v4118 = vmul.f32 %v4093, %v4049
    %v4119 = vmul.f32 %v4072, %v4096
    %v4120 = vadd.f32 %v4118, %v4119
    %v4121 = vtanh.pop %v4120
    %v4122 = vmul.f32 %v4117, %v4121
    %v4123 = vmul.f32 %v4122, %v3409
    %v4124 = vadd.f32 %v3291, %v4123
    %v4125 = vxor.u32 %v4124, 2147483648
    %v4126 = vmul.f32 %v4125, 1.442695
    %v4127 = vpow.pop %v4126
    %v4128 = vadd.f32 %v4127, 1.0
    %v4129 = vrcp.pop %v4128
    %v4130 = vmul.f32 %v4128, %v4129
    %v4131 = vsub.f32 1.0, %v4130
    %v4132 = vmul.f32 %v4129, %v4131
    %v4133 = vadd.f32 %v4129, %v4132
    %vm4134 = vweird.f32 %v4128
    %vm4135 = vweird.f32 %v4129
    %vm4136 = vmor %vm4134, %vm4135
    %v4137 = vsel %vm4136, %v4129, %v4133
    %v4138 = vand.u32 2147483647, %v4128
    %vm4139 = vcmp.eq.f32.partialorder %v4138, 8.507059e+37
    %v4140 = vand.u32 %v4128, 2147483648
    %v4141 = vor.u32 1.1754944e-38, %v4140
    %v4142 = vsel %vm4139, %v4141, %v4137
    %v4143 = vmul.f32 1.0, %v4142
    %v4144 = vmul.f32 %v4122, %v3431
    %v4145 = vadd.f32 %v3327, %v4144
    %v4146 = vxor.u32 %v4145, 2147483648
    %v4147 = vmul.f32 %v4146, 1.442695
    %v4148 = vpow.pop %v4147
    %v4149 = vadd.f32 %v4148, 1.0
    %v4150 = vrcp.pop %v4149
    %v4151 = vmul.f32 %v4149, %v4150
    %v4152 = vsub.f32 1.0, %v4151
    %v4153 = vmul.f32 %v4150, %v4152
    %v4154 = vadd.f32 %v4150, %v4153
    %vm4155 = vweird.f32 %v4149
    %vm4156 = vweird.f32 %v4150
    %vm4157 = vmor %vm4155, %vm4156
    %v4158 = vsel %vm4157, %v4150, %v4154
    %v4159 = vand.u32 2147483647, %v4149
    %vm4160 = vcmp.eq.f32.partialorder %v4159, 8.507059e+37
    %v4161 = vand.u32 %v4149, 2147483648
    %v4162 = vor.u32 1.1754944e-38, %v4161
    %v4163 = vsel %vm4160, %v4162, %v4158
    %v4164 = vmul.f32 1.0, %v4163
    %v4165 = vmul.f32 %v4122, %v3453
    %v4166 = vadd.f32 %v3363, %v4165
    %v4167 = vtanh.pop %v4166
    %v4168 = vmul.f32 %v4122, %v3457
    %v4169 = vadd.f32 %v3399, %v4168
    %v4170 = vxor.u32 %v4169, 2147483648
    %v4171 = vmul.f32 %v4170, 1.442695
    %v4172 = vpow.pop %v4171
    %v4173 = vadd.f32 %v4172, 1.0
    %v4174 = vrcp.pop %v4173
    %v4175 = vmul.f32 %v4173, %v4174
    %v4176 = vsub.f32 1.0, %v4175
    %v4177 = vmul.f32 %v4174, %v4176
    %v4178 = vadd.f32 %v4174, %v4177
    %vm4179 = vweird.f32 %v4173
    %vm4180 = vweird.f32 %v4174
    %vm4181 = vmor %vm4179, %vm4180
    %v4182 = vsel %vm4181, %v4174, %v4178
    %v4183 = vand.u32 2147483647, %v4173
    %vm4184 = vcmp.eq.f32.partialorder %v4183, 8.507059e+37
    %v4185 = vand.u32 %v4173, 2147483648
    %v4186 = vor.u32 1.1754944e-38, %v4185
    %v4187 = vsel %vm4184, %v4186, %v4182
    %v4188 = vmul.f32 1.0, %v4187
    %v4189 = vmul.f32 %v4164, %v4120
    %v4190 = vmul.f32 %v4143, %v4167
    %v4191 = vadd.f32 %v4189, %v4190
    %v4192 = vtanh.pop %v4191
    %v4193 = vmul.f32 %v4188, %v4192
    %v4194 = vmul.f32 %v4193, %v3409
    %v4195 = vadd.f32 %v3292, %v4194
    %v4196 = vxor.u32 %v4195, 2147483648
    %v4197 = vmul.f32 %v4196, 1.442695
    %v4198 = vpow.pop %v4197
    %v4199 = vadd.f32 %v4198, 1.0
    %v4200 = vrcp.pop %v4199
    %v4201 = vmul.f32 %v4199, %v4200
    %v4202 = vsub.f32 1.0, %v4201
    %v4203 = vmul.f32 %v4200, %v4202
    %v4204 = vadd.f32 %v4200, %v4203
    %vm4205 = vweird.f32 %v4199
    %vm4206 = vweird.f32 %v4200
    %vm4207 = vmor %vm4205, %vm4206
    %v4208 = vsel %vm4207, %v4200, %v4204
    %v4209 = vand.u32 2147483647, %v4199
    %vm4210 = vcmp.eq.f32.partialorder %v4209, 8.507059e+37
    %v4211 = vand.u32 %v4199, 2147483648
    %v4212 = vor.u32 1.1754944e-38, %v4211
    %v4213 = vsel %vm4210, %v4212, %v4208
    %v4214 = vmul.f32 1.0, %v4213
    %v4215 = vmul.f32 %v4193, %v3431
    %v4216 = vadd.f32 %v3328, %v4215
    %v4217 = vxor.u32 %v4216, 2147483648
    %v4218 = vmul.f32 %v4217, 1.442695
    %v4219 = vpow.pop %v4218
    %v4220 = vadd.f32 %v4219, 1.0
    %v4221 = vrcp.pop %v4220
    %v4222 = vmul.f32 %v4220, %v4221
    %v4223 = vsub.f32 1.0, %v4222
    %v4224 = vmul.f32 %v4221, %v4223
    %v4225 = vadd.f32 %v4221, %v4224
    %vm4226 = vweird.f32 %v4220
    %vm4227 = vweird.f32 %v4221
    %vm4228 = vmor %vm4226, %vm4227
    %v4229 = vsel %vm4228, %v4221, %v4225
    %v4230 = vand.u32 2147483647, %v4220
    %vm4231 = vcmp.eq.f32.partialorder %v4230, 8.507059e+37
    %v4232 = vand.u32 %v4220, 2147483648
    %v4233 = vor.u32 1.1754944e-38, %v4232
    %v4234 = vsel %vm4231, %v4233, %v4229
    %v4235 = vmul.f32 1.0, %v4234
    %v4236 = vmul.f32 %v4193, %v3453
    %v4237 = vadd.f32 %v3364, %v4236
    %v4238 = vtanh.pop %v4237
    %v4239 = vmul.f32 %v4193, %v3457
    %v4240 = vadd.f32 %v3400, %v4239
    %v4241 = vxor.u32 %v4240, 2147483648
    %v4242 = vmul.f32 %v4241, 1.442695
    %v4243 = vpow.pop %v4242
    %v4244 = vadd.f32 %v4243, 1.0
    %v4245 = vrcp.pop %v4244
    %v4246 = vmul.f32 %v4244, %v4245
    %v4247 = vsub.f32 1.0, %v4246
    %v4248 = vmul.f32 %v4245, %v4247
    %v4249 = vadd.f32 %v4245, %v4248
    %vm4250 = vweird.f32 %v4244
    %vm4251 = vweird.f32 %v4245
    %vm4252 = vmor %vm4250, %vm4251
    %v4253 = vsel %vm4252, %v4245, %v4249
    %v4254 = vand.u32 2147483647, %v4244
    %vm4255 = vcmp.eq.f32.partialorder %v4254, 8.507059e+37
    %v4256 = vand.u32 %v4244, 2147483648
    %v4257 = vor.u32 1.1754944e-38, %v4256
    %v4258 = vsel %vm4255, %v4257, %v4253
    %v4259 = vmul.f32 1.0, %v4258
    %v4260 = vmul.f32 %v4235, %v4191
    %v4261 = vmul.f32 %v4214, %v4238
    %v4262 = vadd.f32 %v4260, %v4261
    %v4263 = vtanh.pop %v4262
    %v4264 = vmul.f32 %v4259, %v4263
    %v4265 = vmul.f32 %v4264, %v3409
    %v4266 = vadd.f32 %v3293, %v4265
    %v4267 = vxor.u32 %v4266, 2147483648
    %v4268 = vmul.f32 %v4267, 1.442695
    %v4269 = vpow.pop %v4268
    %v4270 = vadd.f32 %v4269, 1.0
    %v4271 = vrcp.pop %v4270
    %v4272 = vmul.f32 %v4270, %v4271
    %v4273 = vsub.f32 1.0, %v4272
    %v4274 = vmul.f32 %v4271, %v4273
    %v4275 = vadd.f32 %v4271, %v4274
    %vm4276 = vweird.f32 %v4270
    %vm4277 = vweird.f32 %v4271
    %vm4278 = vmor %vm4276, %vm4277
    %v4279 = vsel %vm4278, %v4271, %v4275
    %v4280 = vand.u32 2147483647, %v4270
    %vm4281 = vcmp.eq.f32.partialorder %v4280, 8.507059e+37
    %v4282 = vand.u32 %v4270, 2147483648
    %v4283 = vor.u32 1.1754944e-38, %v4282
    %v4284 = vsel %vm4281, %v4283, %v4279
    %v4285 = vmul.f32 1.0, %v4284
    %v4286 = vmul.f32 %v4264, %v3431
    %v4287 = vadd.f32 %v3329, %v4286
    %v4288 = vxor.u32 %v4287, 2147483648
    %v4289 = vmul.f32 %v4288, 1.442695
    %v4290 = vpow.pop %v4289
    %v4291 = vadd.f32 %v4290, 1.0
    %v4292 = vrcp.pop %v4291
    %v4293 = vmul.f32 %v4291, %v4292
    %v4294 = vsub.f32 1.0, %v4293
    %v4295 = vmul.f32 %v4292, %v4294
    %v4296 = vadd.f32 %v4292, %v4295
    %vm4297 = vweird.f32 %v4291
    %vm4298 = vweird.f32 %v4292
    %vm4299 = vmor %vm4297, %vm4298
    %v4300 = vsel %vm4299, %v4292, %v4296
    %v4301 = vand.u32 2147483647, %v4291
    %vm4302 = vcmp.eq.f32.partialorder %v4301, 8.507059e+37
    %v4303 = vand.u32 %v4291, 2147483648
    %v4304 = vor.u32 1.1754944e-38, %v4303
    %v4305 = vsel %vm4302, %v4304, %v4300
    %v4306 = vmul.f32 1.0, %v4305
    %v4307 = vmul.f32 %v4264, %v3453
    %v4308 = vadd.f32 %v3365, %v4307
    %v4309 = vtanh.pop %v4308
    %v4310 = vmul.f32 %v4264, %v3457
    %v4311 = vadd.f32 %v3401, %v4310
    %v4312 = vxor.u32 %v4311, 2147483648
    %v4313 = vmul.f32 %v4312, 1.442695
    %v4314 = vpow.pop %v4313
    %v4315 = vadd.f32 %v4314, 1.0
    %v4316 = vrcp.pop %v4315
    %v4317 = vmul.f32 %v4315, %v4316
    %v4318 = vsub.f32 1.0, %v4317
    %v4319 = vmul.f32 %v4316, %v4318
    %v4320 = vadd.f32 %v4316, %v4319
    %vm4321 = vweird.f32 %v4315
    %vm4322 = vweird.f32 %v4316
    %vm4323 = vmor %vm4321, %vm4322
    %v4324 = vsel %vm4323, %v4316, %v4320
    %v4325 = vand.u32 2147483647, %v4315
    %vm4326 = vcmp.eq.f32.partialorder %v4325, 8.507059e+37
    %v4327 = vand.u32 %v4315, 2147483648
    %v4328 = vor.u32 1.1754944e-38, %v4327
    %v4329 = vsel %vm4326, %v4328, %v4324
    %v4330 = vmul.f32 1.0, %v4329
    %v4331 = vmul.f32 %v4306, %v4262
    %v4332 = vmul.f32 %v4285, %v4309
    %v4333 = vadd.f32 %v4331, %v4332
    %v4334 = vtanh.pop %v4333
    %v4335 = vmul.f32 %v4330, %v4334
    %v4336 = vmul.f32 %v4335, %v3409
    %v4337 = vadd.f32 %v3294, %v4336
    %v4338 = vxor.u32 %v4337, 2147483648
    %v4339 = vmul.f32 %v4338, 1.442695
    %v4340 = vpow.pop %v4339
    %v4341 = vadd.f32 %v4340, 1.0
    %v4342 = vrcp.pop %v4341
    %v4343 = vmul.f32 %v4341, %v4342
    %v4344 = vsub.f32 1.0, %v4343
    %v4345 = vmul.f32 %v4342, %v4344
    %v4346 = vadd.f32 %v4342, %v4345
    %vm4347 = vweird.f32 %v4341
    %vm4348 = vweird.f32 %v4342
    %vm4349 = vmor %vm4347, %vm4348
    %v4350 = vsel %vm4349, %v4342, %v4346
    %v4351 = vand.u32 2147483647, %v4341
    %vm4352 = vcmp.eq.f32.partialorder %v4351, 8.507059e+37
    %v4353 = vand.u32 %v4341, 2147483648
    %v4354 = vor.u32 1.1754944e-38, %v4353
    %v4355 = vsel %vm4352, %v4354, %v4350
    %v4356 = vmul.f32 1.0, %v4355
    %v4357 = vmul.f32 %v4335, %v3431
    %v4358 = vadd.f32 %v3330, %v4357
    %v4359 = vxor.u32 %v4358, 2147483648
    %v4360 = vmul.f32 %v4359, 1.442695
    %v4361 = vpow.pop %v4360
    %v4362 = vadd.f32 %v4361, 1.0
    %v4363 = vrcp.pop %v4362
    %v4364 = vmul.f32 %v4362, %v4363
    %v4365 = vsub.f32 1.0, %v4364
    %v4366 = vmul.f32 %v4363, %v4365
    %v4367 = vadd.f32 %v4363, %v4366
    %vm4368 = vweird.f32 %v4362
    %vm4369 = vweird.f32 %v4363
    %vm4370 = vmor %vm4368, %vm4369
    %v4371 = vsel %vm4370, %v4363, %v4367
    %v4372 = vand.u32 2147483647, %v4362
    %vm4373 = vcmp.eq.f32.partialorder %v4372, 8.507059e+37
    %v4374 = vand.u32 %v4362, 2147483648
    %v4375 = vor.u32 1.1754944e-38, %v4374
    %v4376 = vsel %vm4373, %v4375, %v4371
    %v4377 = vmul.f32 1.0, %v4376
    %v4378 = vmul.f32 %v4335, %v3453
    %v4379 = vadd.f32 %v3366, %v4378
    %v4380 = vtanh.pop %v4379
    %v4381 = vmul.f32 %v4335, %v3457
    %v4382 = vadd.f32 %v3402, %v4381
    %v4383 = vxor.u32 %v4382, 2147483648
    %v4384 = vmul.f32 %v4383, 1.442695
    %v4385 = vpow.pop %v4384
    %v4386 = vadd.f32 %v4385, 1.0
    %v4387 = vrcp.pop %v4386
    %v4388 = vmul.f32 %v4386, %v4387
    %v4389 = vsub.f32 1.0, %v4388
    %v4390 = vmul.f32 %v4387, %v4389
    %v4391 = vadd.f32 %v4387, %v4390
    %vm4392 = vweird.f32 %v4386
    %vm4393 = vweird.f32 %v4387
    %vm4394 = vmor %vm4392, %vm4393
    %v4395 = vsel %vm4394, %v4387, %v4391
    %v4396 = vand.u32 2147483647, %v4386
    %vm4397 = vcmp.eq.f32.partialorder %v4396, 8.507059e+37
    %v4398 = vand.u32 %v4386, 2147483648
    %v4399 = vor.u32 1.1754944e-38, %v4398
    %v4400 = vsel %vm4397, %v4399, %v4395
    %v4401 = vmul.f32 1.0, %v4400
    %v4402 = vmul.f32 %v4377, %v4333
    %v4403 = vmul.f32 %v4356, %v4380
    %v4404 = vadd.f32 %v4402, %v4403
    %v4405 = vtanh.pop %v4404
    %v4406 = vmul.f32 %v4401, %v4405
    %v4407 = vmul.f32 %v4406, %v3409
    %v4408 = vadd.f32 %v3295, %v4407
    %v4409 = vxor.u32 %v4408, 2147483648
    %v4410 = vmul.f32 %v4409, 1.442695
    %v4411 = vpow.pop %v4410
    %v4412 = vadd.f32 %v4411, 1.0
    %v4413 = vrcp.pop %v4412
    %v4414 = vmul.f32 %v4412, %v4413
    %v4415 = vsub.f32 1.0, %v4414
    %v4416 = vmul.f32 %v4413, %v4415
    %v4417 = vadd.f32 %v4413, %v4416
    %vm4418 = vweird.f32 %v4412
    %vm4419 = vweird.f32 %v4413
    %vm4420 = vmor %vm4418, %vm4419
    %v4421 = vsel %vm4420, %v4413, %v4417
    %v4422 = vand.u32 2147483647, %v4412
    %vm4423 = vcmp.eq.f32.partialorder %v4422, 8.507059e+37
    %v4424 = vand.u32 %v4412, 2147483648
    %v4425 = vor.u32 1.1754944e-38, %v4424
    %v4426 = vsel %vm4423, %v4425, %v4421
    %v4427 = vmul.f32 1.0, %v4426
    %v4428 = vmul.f32 %v4406, %v3431
    %v4429 = vadd.f32 %v3331, %v4428
    %v4430 = vxor.u32 %v4429, 2147483648
    %v4431 = vmul.f32 %v4430, 1.442695
    %v4432 = vpow.pop %v4431
    %v4433 = vadd.f32 %v4432, 1.0
    %v4434 = vrcp.pop %v4433
    %v4435 = vmul.f32 %v4433, %v4434
    %v4436 = vsub.f32 1.0, %v4435
    %v4437 = vmul.f32 %v4434, %v4436
    %v4438 = vadd.f32 %v4434, %v4437
    %vm4439 = vweird.f32 %v4433
    %vm4440 = vweird.f32 %v4434
    %vm4441 = vmor %vm4439, %vm4440
    %v4442 = vsel %vm4441, %v4434, %v4438
    %v4443 = vand.u32 2147483647, %v4433
    %vm4444 = vcmp.eq.f32.partialorder %v4443, 8.507059e+37
    %v4445 = vand.u32 %v4433, 2147483648
    %v4446 = vor.u32 1.1754944e-38, %v4445
    %v4447 = vsel %vm4444, %v4446, %v4442
    %v4448 = vmul.f32 1.0, %v4447
    %v4449 = vmul.f32 %v4406, %v3453
    %v4450 = vadd.f32 %v3367, %v4449
    %v4451 = vtanh.pop %v4450
    %v4452 = vmul.f32 %v4406, %v3457
    %v4453 = vadd.f32 %v3403, %v4452
    %v4454 = vxor.u32 %v4453, 2147483648
    %v4455 = vmul.f32 %v4454, 1.442695
    %v4456 = vpow.pop %v4455
    %v4457 = vadd.f32 %v4456, 1.0
    %v4458 = vrcp.pop %v4457
    %v4459 = vmul.f32 %v4457, %v4458
    %v4460 = vsub.f32 1.0, %v4459
    %v4461 = vmul.f32 %v4458, %v4460
    %v4462 = vadd.f32 %v4458, %v4461
    %vm4463 = vweird.f32 %v4457
    %vm4464 = vweird.f32 %v4458
    %vm4465 = vmor %vm4463, %vm4464
    %v4466 = vsel %vm4465, %v4458, %v4462
    %v4467 = vand.u32 2147483647, %v4457
    %vm4468 = vcmp.eq.f32.partialorder %v4467, 8.507059e+37
    %v4469 = vand.u32 %v4457, 2147483648
    %v4470 = vor.u32 1.1754944e-38, %v4469
    %v4471 = vsel %vm4468, %v4470, %v4466
    %v4472 = vmul.f32 1.0, %v4471
    %v4473 = vmul.f32 %v4448, %v4404
    %v4474 = vmul.f32 %v4427, %v4451
    %v4475 = vadd.f32 %v4473, %v4474
    %v4476 = vtanh.pop %v4475
    %v4477 = vmul.f32 %v4472, %v4476
    %v4478 = vmul.f32 %v4477, %v3409
    %v4479 = vadd.f32 %v3296, %v4478
    %v4480 = vxor.u32 %v4479, 2147483648
    %v4481 = vmul.f32 %v4480, 1.442695
    %v4482 = vpow.pop %v4481
    %v4483 = vadd.f32 %v4482, 1.0
    %v4484 = vrcp.pop %v4483
    %v4485 = vmul.f32 %v4483, %v4484
    %v4486 = vsub.f32 1.0, %v4485
    %v4487 = vmul.f32 %v4484, %v4486
    %v4488 = vadd.f32 %v4484, %v4487
    %vm4489 = vweird.f32 %v4483
    %vm4490 = vweird.f32 %v4484
    %vm4491 = vmor %vm4489, %vm4490
    %v4492 = vsel %vm4491, %v4484, %v4488
    %v4493 = vand.u32 2147483647, %v4483
    %vm4494 = vcmp.eq.f32.partialorder %v4493, 8.507059e+37
    %v4495 = vand.u32 %v4483, 2147483648
    %v4496 = vor.u32 1.1754944e-38, %v4495
    %v4497 = vsel %vm4494, %v4496, %v4492
    %v4498 = vmul.f32 1.0, %v4497
    %v4499 = vmul.f32 %v4477, %v3431
    %v4500 = vadd.f32 %v3332, %v4499
    %v4501 = vxor.u32 %v4500, 2147483648
    %v4502 = vmul.f32 %v4501, 1.442695
    %v4503 = vpow.pop %v4502
    %v4504 = vadd.f32 %v4503, 1.0
    %v4505 = vrcp.pop %v4504
    %v4506 = vmul.f32 %v4504, %v4505
    %v4507 = vsub.f32 1.0, %v4506
    %v4508 = vmul.f32 %v4505, %v4507
    %v4509 = vadd.f32 %v4505, %v4508
    %vm4510 = vweird.f32 %v4504
    %vm4511 = vweird.f32 %v4505
    %vm4512 = vmor %vm4510, %vm4511
    %v4513 = vsel %vm4512, %v4505, %v4509
    %v4514 = vand.u32 2147483647, %v4504
    %vm4515 = vcmp.eq.f32.partialorder %v4514, 8.507059e+37
    %v4516 = vand.u32 %v4504, 2147483648
    %v4517 = vor.u32 1.1754944e-38, %v4516
    %v4518 = vsel %vm4515, %v4517, %v4513
    %v4519 = vmul.f32 1.0, %v4518
    %v4520 = vmul.f32 %v4477, %v3453
    %v4521 = vadd.f32 %v3368, %v4520
    %v4522 = vtanh.pop %v4521
    %v4523 = vmul.f32 %v4477, %v3457
    %v4524 = vadd.f32 %v3404, %v4523
    %v4525 = vxor.u32 %v4524, 2147483648
    %v4526 = vmul.f32 %v4525, 1.442695
    %v4527 = vpow.pop %v4526
    %v4528 = vadd.f32 %v4527, 1.0
    %v4529 = vrcp.pop %v4528
    %v4530 = vmul.f32 %v4528, %v4529
    %v4531 = vsub.f32 1.0, %v4530
    %v4532 = vmul.f32 %v4529, %v4531
    %v4533 = vadd.f32 %v4529, %v4532
    %vm4534 = vweird.f32 %v4528
    %vm4535 = vweird.f32 %v4529
    %vm4536 = vmor %vm4534, %vm4535
    %v4537 = vsel %vm4536, %v4529, %v4533
    %v4538 = vand.u32 2147483647, %v4528
    %vm4539 = vcmp.eq.f32.partialorder %v4538, 8.507059e+37
    %v4540 = vand.u32 %v4528, 2147483648
    %v4541 = vor.u32 1.1754944e-38, %v4540
    %v4542 = vsel %vm4539, %v4541, %v4537
    %v4543 = vmul.f32 1.0, %v4542
    %v4544 = vmul.f32 %v4519, %v4475
    %v4545 = vmul.f32 %v4498, %v4522
    %v4546 = vadd.f32 %v4544, %v4545
    %v4547 = vtanh.pop %v4546
    %v4548 = vmul.f32 %v4543, %v4547
    %vm4549 = vcmask 394624
    %4550 = vst.msk [vmem:[%s13] sm:$0x3] %vm4549, %v4548
    // Predicated region
    $region78: #{custom_lstm_hn_forward.1} parent=1 // pred_check
      _
    $region79: #{custom_lstm_hn_forward.1} parent=1 // pred_check_branch
      %4552 = sbr.rel (0) target = $region81
    $region80: #{custom_lstm_hn_forward.1} parent=1 // pred_region
      _
    $region81: #{custom_lstm_hn_forward.1} parent=1 // pred_fallthru
      _
    // Predicated region
    $region82: #{custom_lstm_hn_forward.1} parent=1 // pred_check
      _
    $region83: #{custom_lstm_hn_forward.1} parent=1 // pred_check_branch
      %4554 = sbr.rel (0) target = $region85
    $region84: #{custom_lstm_hn_forward.1} parent=1 // pred_region
      _
    $region85: #{custom_lstm_hn_forward.1} parent=1 // pred_fallthru
      _
    %4555 = vsyncpa [#allocation3], 1
    %4556 = vsyncpa [#allocation6], 1
    %4557 = vsyncpa [#allocation4], 1
    %4558 = vsyncpa [#allocation10], 1

</llo_original>
